<compile_context>
chip_gen: v6e
topology: v6e:2x2x1
jax: 0.10.0
libtpu: 0.0.40
codegen_flags: <defaults>
</compile_context>

<pallas_src>
import functools
import math

import jax
import jax.numpy as jnp
from jax import lax
from jax.experimental import pallas as pl
from jax.experimental.pallas import tpu as pltpu


def _round_up(x, m):
    return ((x + m - 1) // m) * m


def _pad_cols(a, target):
    extra = target - a.shape[-1]
    if extra == 0:
        return a
    return jnp.pad(a, [(0, 0)] * (a.ndim - 1) + [(0, extra)])


def _pad_rows(a, target):
    extra = target - a.shape[0]
    if extra == 0:
        return a
    return jnp.pad(a, [(0, extra)] + [(0, 0)] * (a.ndim - 1))


def _pick_row_tile(rows, blocksize, cap=1024):
    """Largest row tile <= cap that divides `rows` and is a multiple of
    lcm(blocksize, 8) (attention-block + sublane alignment)."""
    if rows <= cap:
        return rows
    q = blocksize * 8 // math.gcd(blocksize, 8)
    t = (cap // q) * q
    while t >= q:
        if rows % t == 0:
            return t
        t -= q
    return rows


# ----------------------------------------------------------------------------
# Fused Pallas kernel (one row tile of the folded (B*Tpad) axis per grid step)
# ----------------------------------------------------------------------------
def _fused_av_fusion_kernel(
    spec_ref, vid_ref,
    spec_w_ref, vid_w_ref, val_w_ref, qry_w_ref,
    wq_all_ref, wkv_ref, wo_ref, out_w_ref,
    gvec_ref, lvec_ref,
    x_ref, spec_o_ref, vid_o_ref,
    *, blocksize, heads, n_layers, seq_len, tp,
):
    f32 = jnp.float32
    bf16 = jnp.bfloat16

    R = spec_ref.shape[0]                # rows in this tile (batch*seq folded)
    dip = spec_w_ref.shape[1]            # padded frontend feature width
    d = wkv_ref.shape[1]                 # proc dim
    dop = out_w_ref.shape[1]             # padded output width
    hd = d // heads
    bs = blocksize
    nb = R // bs

    # --- sequence-padding mask -------------------------------------------
    # Padding is applied AFTER the frontends in the reference module, so
    # frontend outputs on padded timesteps must be exactly zero.
    row = lax.broadcasted_iota(jnp.int32, (R, 1), 0) + pl.program_id(0) * R
    pos = row % tp                        # position within a batch element
    tmask = (pos < seq_len).astype(f32)

    gv = gvec_ref[...]                    # packed global bias slab (8, gmax)
    spec_b = gv[0:1, :dip]
    vid_b = gv[1:2, :dip]
    val_b = gv[2:3, :d]
    qry_b = gv[3:4, :d]
    out_b = gv[4:5, :dop]

    # --- CNN-frontend stand-ins --------------------------------------------
    # TODO(synk): spec_frontend_CNN / LIPNET_CNN definitions are not provided;
    # stand-in = per-frame linear projection fused into this kernel.
    spec_feat = (jnp.dot(spec_ref[...].astype(bf16), spec_w_ref[...],
                         preferred_element_type=f32) + spec_b) * tmask
    vid_feat = (jnp.dot(vid_ref[...].astype(bf16), vid_w_ref[...],
                        preferred_element_type=f32) + vid_b) * tmask
    # (kept f32 for fidelity with the reference features; bf16 would halve
    #  the side-output HBM writeback if callers allow it)
    spec_o_ref[...] = spec_feat.astype(spec_o_ref.dtype)
    vid_o_ref[...] = vid_feat.astype(vid_o_ref.dtype)

    # --- fusion-block input projections --------------------------------------
    value = jnp.dot(spec_feat.astype(bf16), val_w_ref[...],
                    preferred_element_type=f32) + val_b
    query = jnp.dot(vid_feat.astype(bf16), qry_w_ref[...],
                    preferred_element_type=f32) + qry_b

    # All per-layer Q projections fused into one (d, L*d) matmul; the query
    # stream is fixed across layers.  1/sqrt(hd) is folded into wq_all / bq.
    q_all = jnp.dot(query.astype(bf16), wq_all_ref[...],
                    preferred_element_type=f32)

    def to_heads(x):          # (R, d) -> (heads*nb, bs, hd), head-major
        x = x.reshape(R, heads, hd)
        x = pltpu.einshape("rhd->hrd", x)
        return x.reshape(heads * nb, bs, hd)

    def from_heads(x):        # (heads*nb, bs, hd) -> (R, d)
        x = x.reshape(heads, R, hd)
        x = pltpu.einshape("hrd->rhd", x)
        return x.reshape(R, d)

    # --- attention stack ------------------------------------------------------
    # TODO(synk): Attention_Block_defAttentionSequSize definition not provided;
    # stand-in = block-local MHA (no pad-key mask, matching the reference which
    # feeds zero-padded features straight into the block) + residual + LayerNorm;
    # dropout in eval mode (identity).
    for li in range(n_layers):
        lv = lvec_ref[li]                 # packed per-layer vectors (8, 2d)
        bkv = lv[0:1, :]                  # fused K|V bias (1, 2d)
        bo = lv[1:2, :d]
        gam = lv[2:3, :d]
        bet = lv[3:4, :d]
        bq = lv[4:5, :d]                  # already scaled by 1/sqrt(hd)

        q = q_all[:, li * d:(li + 1) * d] + bq
        kv = jnp.dot(value.astype(bf16), wkv_ref[li],
                     preferred_element_type=f32) + bkv
        k = kv[:, :d]
        v = kv[:, d:]

        qb = to_heads(q).astype(bf16)
        kb = to_heads(k).astype(bf16)
        vb = to_heads(v).astype(bf16)

        s = jnp.einsum('bqd,bkd->bqk', qb, kb, preferred_element_type=f32)
        s = s - jnp.max(s, axis=-1, keepdims=True)
        p = jnp.exp(s)
        p = p / jnp.sum(p, axis=-1, keepdims=True)      # exact softmax
        o = jnp.einsum('bqk,bkd->bqd', p.astype(bf16), vb,
                       preferred_element_type=f32)

        attn = from_heads(o)
        proj = jnp.dot(attn.astype(bf16), wo_ref[li],
                       preferred_element_type=f32) + bo
        res = value + proj                               # residual on value stream
        mu = jnp.mean(res, axis=-1, keepdims=True)
        var = jnp.mean((res - mu) ** 2, axis=-1, keepdims=True)
        value = (res - mu) * lax.rsqrt(var + 1e-5) * gam + bet

    # --- output projection (lane-padded, lane-dense store) -------------------
    x = jnp.dot(value.astype(bf16), out_w_ref[...],
                preferred_element_type=f32) + out_b
    x_ref[...] = x.astype(x_ref.dtype)


# ----------------------------------------------------------------------------
# Parameter construction (deterministic, synthetic)
# ----------------------------------------------------------------------------
def init_params(key, cfg):
    d_in = cfg["AV_Fusion_inp_dim"]
    d_proc = cfg["AV_Fusion_proc_dim"]
    d_out = cfg["AV_Fusion_out_dim"]
    n_layers = cfg["AV_Fusion_attLayer"]
    spec_in = cfg["Specfront_inp_dim"]
    vid_in = cfg["Lipnet_pixels"]

    def dense(k, din, dout):
        kw, kb = jax.random.split(k)
        return (jax.random.normal(kw, (din, dout), jnp.float32) * 0.02,
                jax.random.normal(kb, (1, dout), jnp.float32) * 0.02)

    keys = jax.random.split(key, 5 + n_layers)
    params = {}
    params["spec_w"], params["spec_b"] = dense(keys[0], spec_in, d_in)
    params["vid_w"], params["vid_b"] = dense(keys[1], vid_in, d_in)
    params["value_w"], params["value_b"] = dense(keys[2], d_in, d_proc)
    params["query_w"], params["query_b"] = dense(keys[3], d_in, d_proc)
    params["out_w"], params["out_b"] = dense(keys[4], d_proc, d_out)

    layers = []
    for li in range(n_layers):
        lk = jax.random.split(keys[5 + li] if False else jax.random.fold_in(keys[4], li + 1), 4)
        wq, bq = dense(lk[0], d_proc, d_proc)
        wk, bk = dense(lk[1], d_proc, d_proc)
        wv, bv = dense(lk[2], d_proc, d_proc)
        wo, bo = dense(lk[3], d_proc, d_proc)
        layers.append(dict(wq=wq, bq=bq, wk=wk, bk=bk, wv=wv, bv=bv, wo=wo, bo=bo,
                           gamma=jnp.ones((1, d_proc), jnp.float32),
                           beta=jnp.zeros((1, d_proc), jnp.float32)))
    params["layers"] = layers
    return params


# ----------------------------------------------------------------------------
# Kernel-ready packing: pad to 128-lane multiples, cast MXU weights to bf16,
# fold 1/sqrt(hd) into the Q projection, pack biases into two slabs.
# Runs ONCE (hoisted out of the jitted forward).
# ----------------------------------------------------------------------------
def prepare_kernel_params(params, cfg):
    bf16 = jnp.bfloat16
    heads = cfg["AV_Fusion_attHeads"]
    d = params["value_w"].shape[1]
    d_in = params["value_w"].shape[0]
    d_out = params["out_w"].shape[1]
    hw = params["vid_w"].shape[0]
    dip = _round_up(d_in, 128)
    dop = _round_up(d_out, 128)
    hwp = _round_up(hw, 128)
    hd = d // heads
    scale = 1.0 / float(hd) ** 0.5
    layers = params["layers"]
    n_layers = len(layers)

    gmax = max(dip, d, dop)
    gvec = jnp.zeros((8, gmax), jnp.float32)
    gvec = gvec.at[0, :dip].set(_pad_cols(params["spec_b"], dip)[0])
    gvec = gvec.at[1, :dip].set(_pad_cols(params["vid_b"], dip)[0])
    gvec = gvec.at[2, :d].set(params["value_b"][0])
    gvec = gvec.at[3, :d].set(params["query_b"][0])
    gvec = gvec.at[4, :dop].set(_pad_cols(params["out_b"], dop)[0])

    lvec = jnp.zeros((n_layers, 8, 2 * d), jnp.float32)
    for li, l in enumerate(layers):
        lvec = lvec.at[li, 0, :d].set(l["bk"][0])
        lvec = lvec.at[li, 0, d:].set(l["bv"][0])
        lvec = lvec.at[li, 1, :d].set(l["bo"][0])
        lvec = lvec.at[li, 2, :d].set(l["gamma"][0])
        lvec = lvec.at[li, 3, :d].set(l["beta"][0])
        lvec = lvec.at[li, 4, :d].set(l["bq"][0] * scale)

    kp = {
        "spec_w": _pad_cols(params["spec_w"], dip).astype(bf16),
        "vid_w": _pad_cols(_pad_rows(params["vid_w"], hwp), dip).astype(bf16),
        "value_w": _pad_rows(params["value_w"], dip).astype(bf16),
        "query_w": _pad_rows(params["query_w"], dip).astype(bf16),
        "wq_all": (jnp.concatenate([l["wq"] for l in layers], axis=1)
                   * scale).astype(bf16),
        "wkv": jnp.stack([jnp.concatenate([l["wk"], l["wv"]], axis=1)
                          for l in layers]).astype(bf16),
        "wo": jnp.stack([l["wo"] for l in layers]).astype(bf16),
        "out_w": _pad_cols(params["out_w"], dop).astype(bf16),
        "gvec": gvec,
        "lvec": lvec,
    }
    return jax.device_put(kp)


_WEIGHT_ORDER = ("spec_w", "vid_w", "value_w", "query_w",
                 "wq_all", "wkv", "wo", "out_w", "gvec", "lvec")


# ----------------------------------------------------------------------------
# Forward pass (mirrors AV_Fusion.forward)
# ----------------------------------------------------------------------------
def av_fusion_forward(kp, inp_spec, inp_video, cfg):
    blocksize = cfg["AV_Fusion_blocksize"]
    heads = cfg["AV_Fusion_attHeads"]
    n_layers = cfg["AV_Fusion_attLayer"]
    d_in = cfg["AV_Fusion_inp_dim"]
    d_out = cfg["AV_Fusion_out_dim"]
    assert blocksize % 4 == 0, "Blocksize must be divisible by 4"

    b = inp_spec.shape[0]
    spec = jnp.transpose(inp_spec[:, 0], (0, 2, 1))          # [B, T, F]
    t = spec.shape[1]
    vid = inp_video[:, 0].reshape(b, t, -1)                   # [B, T, H*W]

    # Pad T to a multiple of blocksize (blocks never span batch elements) and
    # fold batch into the matmul row dimension.
    pad = (-t) % blocksize
    tp = t + pad
    dip = kp["spec_w"].shape[1]
    dop = kp["out_w"].shape[1]
    hwp = kp["vid_w"].shape[0]                                # padded to 128x

    spec_p = jnp.pad(spec, ((0, 0), (0, pad), (0, 0))).reshape(b * tp, -1)
    vid_p = jnp.pad(vid, ((0, 0), (0, pad), (0, hwp - vid.shape[2]))
                    ).reshape(b * tp, hwp)

    rows = b * tp
    row_tile = _pick_row_tile(rows, blocksize)
    grid = (rows // row_tile,)

    weights = [kp[name] for name in _WEIGHT_ORDER]

    kern = functools.partial(_fused_av_fusion_kernel, blocksize=blocksize,
                             heads=heads, n_layers=n_layers, seq_len=t, tp=tp)

    def row_spec(width):
        return pl.BlockSpec((row_tile, width), lambda i: (i, 0))

    def const_spec(a):
        return pl.BlockSpec(a.shape, lambda i, n=a.ndim: (0,) * n)

    x_p, spec_f, vid_f = pl.pallas_call(
        kern,
        out_shape=(
            jax.ShapeDtypeStruct((rows, dop), jnp.float32),
            jax.ShapeDtypeStruct((rows, dip), jnp.float32),
            jax.ShapeDtypeStruct((rows, dip), jnp.float32),
        ),
        grid=grid,
        in_specs=[row_spec(spec_p.shape[1]), row_spec(hwp)]
                 + [const_spec(w) for w in weights],
        out_specs=(row_spec(dop), row_spec(dip), row_spec(dip)),
        compiler_params=pltpu.CompilerParams(
            dimension_semantics=("parallel",)),
    )(spec_p, vid_p, *weights)

    # Strip sequence padding and lane padding, exactly like the reference.
    x = x_p.reshape(b, tp, dop)[:, :t, :d_out]
    spec_out = spec_f.reshape(b, tp, dip)[:, :t, :d_in]
    vid_out = vid_f.reshape(b, tp, dip)[:, :t, :d_in]
    return x, spec_out, vid_out


# ----------------------------------------------------------------------------
# Example run
# ----------------------------------------------------------------------------
if __name__ == "__main__":
    cfg = {
        "AV_Fusion_attLayer": 2,
        "AV_Fusion_attHeads": 4,
        "AV_Fusion_blocksize": 8,
        "AV_Fusion_inp_dim": 64,
        "AV_Fusion_proc_dim": 128,
        "AV_Fusion_out_dim": 64,
        "Specfront_inp_dim": 40,      # frequency bins
        "Lipnet_pixels": 24 * 24,     # flattened spatial per frame
    }

    key = jax.random.PRNGKey(0)
    kparam, ks, kvid = jax.random.split(key, 3)
    params = init_params(kparam, cfg)
    kp = prepare_kernel_params(params, cfg)     # hoisted: runs exactly once

    B, F, T, H, W = 2, 40, 12, 24, 24           # T=12 exercises the pad-to-16 path
    inp_spec = jax.random.normal(ks, (B, 1, F, T), jnp.float32)        # NCHW spectrogram
    inp_video = jax.random.normal(kvid, (B, 1, T, H, W), jnp.float32)   # NCTHW video

    fwd = jax.jit(lambda kp_, s, v: av_fusion_forward(kp_, s, v, cfg))
    x, spec_f, vid_f = fwd(kp, inp_spec, inp_video)
    jax.block_until_ready((x, spec_f, vid_f))

    assert x.shape == (B, T, cfg["AV_Fusion_out_dim"])
    assert spec_f.shape == (B, T, cfg["AV_Fusion_inp_dim"])
    assert vid_f.shape == (B, T, cfg["AV_Fusion_inp_dim"])
    print("KERNEL_OK")
</pallas_src>

<mosaic_0001>
module attributes {stable_mosaic.version = 11 : i64} {
  func.func @_fused_av_fusion_kernel(%arg0: i32, %arg1: memref<32x40xf32, #tpu.memory_space<vmem>>, %arg2: memref<32x640xf32, #tpu.memory_space<vmem>>, %arg3: memref<40x128xbf16, #tpu.memory_space<vmem>>, %arg4: memref<640x128xbf16, #tpu.memory_space<vmem>>, %arg5: memref<128x128xbf16, #tpu.memory_space<vmem>>, %arg6: memref<128x128xbf16, #tpu.memory_space<vmem>>, %arg7: memref<128x256xbf16, #tpu.memory_space<vmem>>, %arg8: memref<2x128x256xbf16, #tpu.memory_space<vmem>>, %arg9: memref<2x128x128xbf16, #tpu.memory_space<vmem>>, %arg10: memref<128x128xbf16, #tpu.memory_space<vmem>>, %arg11: memref<8x128xf32, #tpu.memory_space<vmem>>, %arg12: memref<2x8x256xf32, #tpu.memory_space<vmem>>, %arg13: memref<32x128xf32, #tpu.memory_space<vmem>>, %arg14: memref<32x128xf32, #tpu.memory_space<vmem>>, %arg15: memref<32x128xf32, #tpu.memory_space<vmem>>) attributes {dimension_semantics = [#tpu.dimension_semantics<parallel>], iteration_bounds = array<i64: 1>, scalar_prefetch = 0 : i64, scratch_operands = 0 : i64, tpu.core_type = #tpu.core_type<tc>, window_params = [{transform_indices = @transform_0, window_bounds = array<i64: 32, 40>}, {transform_indices = @transform_1, window_bounds = array<i64: 32, 640>}, {pipeline_mode = #tpu.pipeline_mode<synchronous>, transform_indices = @transform_2, window_bounds = array<i64: 40, 128>}, {pipeline_mode = #tpu.pipeline_mode<synchronous>, transform_indices = @transform_3, window_bounds = array<i64: 640, 128>}, {pipeline_mode = #tpu.pipeline_mode<synchronous>, transform_indices = @transform_4, window_bounds = array<i64: 128, 128>}, {pipeline_mode = #tpu.pipeline_mode<synchronous>, transform_indices = @transform_5, window_bounds = array<i64: 128, 128>}, {pipeline_mode = #tpu.pipeline_mode<synchronous>, transform_indices = @transform_6, window_bounds = array<i64: 128, 256>}, {pipeline_mode = #tpu.pipeline_mode<synchronous>, transform_indices = @transform_7, window_bounds = array<i64: 2, 128, 256>}, {pipeline_mode = #tpu.pipeline_mode<synchronous>, transform_indices = @transform_8, window_bounds = array<i64: 2, 128, 128>}, {pipeline_mode = #tpu.pipeline_mode<synchronous>, transform_indices = @transform_9, window_bounds = array<i64: 128, 128>}, {pipeline_mode = #tpu.pipeline_mode<synchronous>, transform_indices = @transform_10, window_bounds = array<i64: 8, 128>}, {pipeline_mode = #tpu.pipeline_mode<synchronous>, transform_indices = @transform_11, window_bounds = array<i64: 2, 8, 256>}, {transform_indices = @transform_12, window_bounds = array<i64: 32, 128>}, {transform_indices = @transform_13, window_bounds = array<i64: 32, 128>}, {transform_indices = @transform_14, window_bounds = array<i64: 32, 128>}]} {
    %0 = tpu.iota {dimensions = array<i32: 0>} : vector<32x1xi32>
    %c32_i32 = arith.constant 32 : i32
    %1 = arith.muli %arg0, %c32_i32 : i32
    %2 = vector.broadcast %1 : i32 to vector<32x1xi32>
    %3 = arith.addi %0, %2 : vector<32x1xi32>
    %c16_i32 = arith.constant 16 : i32
    %c0_i32 = arith.constant 0 : i32
    %4 = arith.cmpi eq, %c16_i32, %c0_i32 : i32
    %c1_i32 = arith.constant 1 : i32
    %5 = arith.select %4, %c1_i32, %c16_i32 : i32
    %6 = vector.broadcast %5 : i32 to vector<32x1xi32>
    %7 = arith.remsi %3, %6 : vector<32x1xi32>
    %c0_i32_0 = arith.constant 0 : i32
    %8 = vector.broadcast %c0_i32_0 : i32 to vector<32x1xi32>
    %9 = arith.cmpi ne, %7, %8 : vector<32x1xi32>
    %c0_i32_1 = arith.constant 0 : i32
    %10 = vector.broadcast %c0_i32_1 : i32 to vector<32x1xi32>
    %11 = arith.cmpi slt, %7, %10 : vector<32x1xi32>
    %c0_i32_2 = arith.constant 0 : i32
    %12 = arith.cmpi slt, %5, %c0_i32_2 : i32
    %13 = vector.broadcast %12 : i1 to vector<32x1xi1>
    %14 = vector.broadcast %13 : vector<32x1xi1> to vector<32x1xi1>
    %15 = arith.xori %11, %14 : vector<32x1xi1>
    %16 = arith.andi %15, %9 : vector<32x1xi1>
    %17 = vector.broadcast %5 : i32 to vector<32x1xi32>
    %18 = arith.addi %7, %17 : vector<32x1xi32>
    %19 = arith.select %16, %18, %7 : vector<32x1xi1>, vector<32x1xi32>
    %c12_i32 = arith.constant 12 : i32
    %20 = vector.broadcast %c12_i32 : i32 to vector<32x1xi32>
    %21 = arith.cmpi slt, %19, %20 : vector<32x1xi32>
    %22 = arith.extui %21 : vector<32x1xi1> to vector<32x1xi32>
    %23 = arith.sitofp %22 : vector<32x1xi32> to vector<32x1xf32>
    %c0 = arith.constant 0 : index
    %c0_3 = arith.constant 0 : index
    %24 = vector.load %arg11[%c0, %c0_3] : memref<8x128xf32, #tpu.memory_space<vmem>>, vector<8x128xf32>
    %25 = vector.extract_strided_slice %24 {offsets = [0, 0], sizes = [1, 128], strides = [1, 1]} : vector<8x128xf32> to vector<1x128xf32>
    %26 = vector.extract_strided_slice %24 {offsets = [1, 0], sizes = [1, 128], strides = [1, 1]} : vector<8x128xf32> to vector<1x128xf32>
    %27 = vector.extract_strided_slice %24 {offsets = [2, 0], sizes = [1, 128], strides = [1, 1]} : vector<8x128xf32> to vector<1x128xf32>
    %28 = vector.extract_strided_slice %24 {offsets = [3, 0], sizes = [1, 128], strides = [1, 1]} : vector<8x128xf32> to vector<1x128xf32>
    %29 = vector.extract_strided_slice %24 {offsets = [4, 0], sizes = [1, 128], strides = [1, 1]} : vector<8x128xf32> to vector<1x128xf32>
    %c0_4 = arith.constant 0 : index
    %c0_5 = arith.constant 0 : index
    %30 = vector.load %arg1[%c0_4, %c0_5] : memref<32x40xf32, #tpu.memory_space<vmem>>, vector<32x40xf32>
    %31 = arith.truncf %30 : vector<32x40xf32> to vector<32x40xbf16>
    %c0_6 = arith.constant 0 : index
    %c0_7 = arith.constant 0 : index
    %32 = vector.load %arg3[%c0_6, %c0_7] : memref<40x128xbf16, #tpu.memory_space<vmem>>, vector<40x128xbf16>
    %cst = arith.constant dense<0.000000e+00> : vector<32x128xf32>
    %33 = tpu.matmul %31, %32, %cst {dimension_numbers = #tpu.dot_dimension_numbers<[1], [0], [0], [1], [0, 0, 1, 1], [], []>} : vector<32x40xbf16>, vector<40x128xbf16>, vector<32x128xf32> -> vector<32x128xf32>
    %34 = vector.broadcast %25 : vector<1x128xf32> to vector<32x128xf32>
    %35 = arith.addf %33, %34 : vector<32x128xf32>
    %36 = vector.broadcast %23 : vector<32x1xf32> to vector<32x128xf32>
    %37 = arith.mulf %35, %36 : vector<32x128xf32>
    %c0_8 = arith.constant 0 : index
    %c0_9 = arith.constant 0 : index
    %38 = vector.load %arg2[%c0_8, %c0_9] : memref<32x640xf32, #tpu.memory_space<vmem>>, vector<32x640xf32>
    %39 = arith.truncf %38 : vector<32x640xf32> to vector<32x640xbf16>
    %c0_10 = arith.constant 0 : index
    %c0_11 = arith.constant 0 : index
    %40 = vector.load %arg4[%c0_10, %c0_11] : memref<640x128xbf16, #tpu.memory_space<vmem>>, vector<640x128xbf16>
    %cst_12 = arith.constant dense<0.000000e+00> : vector<32x128xf32>
    %41 = tpu.matmul %39, %40, %cst_12 {dimension_numbers = #tpu.dot_dimension_numbers<[1], [0], [0], [1], [0, 0, 1, 1], [], []>} : vector<32x640xbf16>, vector<640x128xbf16>, vector<32x128xf32> -> vector<32x128xf32>
    %42 = vector.broadcast %26 : vector<1x128xf32> to vector<32x128xf32>
    %43 = arith.addf %41, %42 : vector<32x128xf32>
    %44 = vector.broadcast %23 : vector<32x1xf32> to vector<32x128xf32>
    %45 = arith.mulf %43, %44 : vector<32x128xf32>
    %c0_13 = arith.constant 0 : index
    %c0_14 = arith.constant 0 : index
    %46 = vector.load %arg14[%c0_13, %c0_14] : memref<32x128xf32, #tpu.memory_space<vmem>>, vector<32x128xf32>
    tpu.vector_store %arg14[%c0_13, %c0_14], %37 {strides = array<i32>} : memref<32x128xf32, #tpu.memory_space<vmem>>, vector<32x128xf32>,
    %c0_15 = arith.constant 0 : index
    %c0_16 = arith.constant 0 : index
    %47 = vector.load %arg15[%c0_15, %c0_16] : memref<32x128xf32, #tpu.memory_space<vmem>>, vector<32x128xf32>
    tpu.vector_store %arg15[%c0_15, %c0_16], %45 {strides = array<i32>} : memref<32x128xf32, #tpu.memory_space<vmem>>, vector<32x128xf32>,
    %48 = arith.truncf %37 : vector<32x128xf32> to vector<32x128xbf16>
    %c0_17 = arith.constant 0 : index
    %c0_18 = arith.constant 0 : index
    %49 = vector.load %arg5[%c0_17, %c0_18] : memref<128x128xbf16, #tpu.memory_space<vmem>>, vector<128x128xbf16>
    %cst_19 = arith.constant dense<0.000000e+00> : vector<32x128xf32>
    %50 = tpu.matmul %48, %49, %cst_19 {dimension_numbers = #tpu.dot_dimension_numbers<[1], [0], [0], [1], [0, 0, 1, 1], [], []>} : vector<32x128xbf16>, vector<128x128xbf16>, vector<32x128xf32> -> vector<32x128xf32>
    %51 = vector.broadcast %27 : vector<1x128xf32> to vector<32x128xf32>
    %52 = arith.addf %50, %51 : vector<32x128xf32>
    %53 = arith.truncf %45 : vector<32x128xf32> to vector<32x128xbf16>
    %c0_20 = arith.constant 0 : index
    %c0_21 = arith.constant 0 : index
    %54 = vector.load %arg6[%c0_20, %c0_21] : memref<128x128xbf16, #tpu.memory_space<vmem>>, vector<128x128xbf16>
    %cst_22 = arith.constant dense<0.000000e+00> : vector<32x128xf32>
    %55 = tpu.matmul %53, %54, %cst_22 {dimension_numbers = #tpu.dot_dimension_numbers<[1], [0], [0], [1], [0, 0, 1, 1], [], []>} : vector<32x128xbf16>, vector<128x128xbf16>, vector<32x128xf32> -> vector<32x128xf32>
    %56 = vector.broadcast %28 : vector<1x128xf32> to vector<32x128xf32>
    %57 = arith.addf %55, %56 : vector<32x128xf32>
    %58 = arith.truncf %57 : vector<32x128xf32> to vector<32x128xbf16>
    %c0_23 = arith.constant 0 : index
    %c0_24 = arith.constant 0 : index
    %59 = vector.load %arg7[%c0_23, %c0_24] : memref<128x256xbf16, #tpu.memory_space<vmem>>, vector<128x256xbf16>
    %cst_25 = arith.constant dense<0.000000e+00> : vector<32x256xf32>
    %60 = tpu.matmul %58, %59, %cst_25 {dimension_numbers = #tpu.dot_dimension_numbers<[1], [0], [0], [1], [0, 0, 1, 1], [], []>} : vector<32x128xbf16>, vector<128x256xbf16>, vector<32x256xf32> -> vector<32x256xf32>
    %c0_26 = arith.constant 0 : index
    %c0_27 = arith.constant 0 : index
    %c0_28 = arith.constant 0 : index
    %61 = vector.load %arg12[%c0_26, %c0_27, %c0_28] : memref<2x8x256xf32, #tpu.memory_space<vmem>>, vector<1x8x256xf32>
    %62 = vector.shape_cast %61 : vector<1x8x256xf32> to vector<8x256xf32>
    %63 = vector.extract_strided_slice %62 {offsets = [0, 0], sizes = [1, 256], strides = [1, 1]} : vector<8x256xf32> to vector<1x256xf32>
    %64 = vector.extract_strided_slice %62 {offsets = [1, 0], sizes = [1, 128], strides = [1, 1]} : vector<8x256xf32> to vector<1x128xf32>
    %65 = vector.extract_strided_slice %62 {offsets = [2, 0], sizes = [1, 128], strides = [1, 1]} : vector<8x256xf32> to vector<1x128xf32>
    %66 = vector.extract_strided_slice %62 {offsets = [3, 0], sizes = [1, 128], strides = [1, 1]} : vector<8x256xf32> to vector<1x128xf32>
    %67 = vector.extract_strided_slice %62 {offsets = [4, 0], sizes = [1, 128], strides = [1, 1]} : vector<8x256xf32> to vector<1x128xf32>
    %68 = vector.extract_strided_slice %60 {offsets = [0, 0], sizes = [32, 128], strides = [1, 1]} : vector<32x256xf32> to vector<32x128xf32>
    %69 = vector.broadcast %67 : vector<1x128xf32> to vector<32x128xf32>
    %70 = arith.addf %68, %69 : vector<32x128xf32>
    %71 = arith.truncf %52 : vector<32x128xf32> to vector<32x128xbf16>
    %c0_29 = arith.constant 0 : index
    %c0_30 = arith.constant 0 : index
    %c0_31 = arith.constant 0 : index
    %72 = vector.load %arg8[%c0_29, %c0_30, %c0_31] : memref<2x128x256xbf16, #tpu.memory_space<vmem>>, vector<1x128x256xbf16>
    %73 = vector.shape_cast %72 : vector<1x128x256xbf16> to vector<128x256xbf16>
    %cst_32 = arith.constant dense<0.000000e+00> : vector<32x256xf32>
    %74 = tpu.matmul %71, %73, %cst_32 {dimension_numbers = #tpu.dot_dimension_numbers<[1], [0], [0], [1], [0, 0, 1, 1], [], []>} : vector<32x128xbf16>, vector<128x256xbf16>, vector<32x256xf32> -> vector<32x256xf32>
    %75 = vector.broadcast %63 : vector<1x256xf32> to vector<32x256xf32>
    %76 = arith.addf %74, %75 : vector<32x256xf32>
    %77 = vector.extract_strided_slice %76 {offsets = [0, 0], sizes = [32, 128], strides = [1, 1]} : vector<32x256xf32> to vector<32x128xf32>
    %78 = vector.extract_strided_slice %76 {offsets = [0, 128], sizes = [32, 128], strides = [1, 1]} : vector<32x256xf32> to vector<32x128xf32>
    %79 = vector.shape_cast %70 : vector<32x128xf32> to vector<32x4x32xf32>
    %80 = tpu.transpose %79, [1, 0, 2] : vector<32x4x32xf32> -> vector<4x32x32xf32>
    %81 = vector.shape_cast %80 : vector<4x32x32xf32> to vector<16x8x32xf32>
    %82 = arith.truncf %81 : vector<16x8x32xf32> to vector<16x8x32xbf16>
    %83 = vector.shape_cast %77 : vector<32x128xf32> to vector<32x4x32xf32>
    %84 = tpu.transpose %83, [1, 0, 2] : vector<32x4x32xf32> -> vector<4x32x32xf32>
    %85 = vector.shape_cast %84 : vector<4x32x32xf32> to vector<16x8x32xf32>
    %86 = arith.truncf %85 : vector<16x8x32xf32> to vector<16x8x32xbf16>
    %87 = vector.shape_cast %78 : vector<32x128xf32> to vector<32x4x32xf32>
    %88 = tpu.transpose %87, [1, 0, 2] : vector<32x4x32xf32> -> vector<4x32x32xf32>
    %89 = vector.shape_cast %88 : vector<4x32x32xf32> to vector<16x8x32xf32>
    %90 = arith.truncf %89 : vector<16x8x32xf32> to vector<16x8x32xbf16>
    "tpu.trace_start"() <{level = 10 : i32, message = "bqd,bkd->bqk"}> : () -> ()
    %cst_33 = arith.constant dense<0.000000e+00> : vector<16x8x8xf32>
    %91 = tpu.matmul %82, %86, %cst_33 {dimension_numbers = #tpu.dot_dimension_numbers<[2], [2], [1], [1], [0, 0, 0, 1, 1, 1], [0], [0]>} : vector<16x8x32xbf16>, vector<16x8x32xbf16>, vector<16x8x8xf32> -> vector<16x8x8xf32>
    "tpu.trace_stop"() : () -> ()
    %cst_34 = arith.constant dense<0xFF800000> : vector<16x8xf32>
    %92 = vector.multi_reduction <maximumf>, %91, %cst_34 [2] : vector<16x8x8xf32> to vector<16x8xf32>
    %93 = vector.shape_cast %92 : vector<16x8xf32> to vector<16x8x1xf32>
    %94 = vector.broadcast %93 : vector<16x8x1xf32> to vector<16x8x8xf32>
    %95 = arith.subf %91, %94 : vector<16x8x8xf32>
    %96 = math.exp %95 : vector<16x8x8xf32>
    %cst_35 = arith.constant dense<0.000000e+00> : vector<16x8xf32>
    %97 = vector.multi_reduction <add>, %96, %cst_35 [2] : vector<16x8x8xf32> to vector<16x8xf32>
    %98 = vector.shape_cast %97 : vector<16x8xf32> to vector<16x8x1xf32>
    %99 = vector.broadcast %98 : vector<16x8x1xf32> to vector<16x8x8xf32>
    %100 = arith.divf %96, %99 : vector<16x8x8xf32>
    %101 = arith.truncf %100 : vector<16x8x8xf32> to vector<16x8x8xbf16>
    "tpu.trace_start"() <{level = 10 : i32, message = "bqk,bkd->bqd"}> : () -> ()
    %cst_36 = arith.constant dense<0.000000e+00> : vector<16x8x32xf32>
    %102 = tpu.matmul %101, %90, %cst_36 {dimension_numbers = #tpu.dot_dimension_numbers<[2], [1], [1], [2], [0, 0, 0, 1, 1, 2], [0], [0]>} : vector<16x8x8xbf16>, vector<16x8x32xbf16>, vector<16x8x32xf32> -> vector<16x8x32xf32>
    "tpu.trace_stop"() : () -> ()
    %103 = vector.shape_cast %102 : vector<16x8x32xf32> to vector<4x32x32xf32>
    %104 = tpu.transpose %103, [1, 0, 2] : vector<4x32x32xf32> -> vector<32x4x32xf32>
    %105 = vector.shape_cast %104 : vector<32x4x32xf32> to vector<32x128xf32>
    %106 = arith.truncf %105 : vector<32x128xf32> to vector<32x128xbf16>
    %c0_37 = arith.constant 0 : index
    %c0_38 = arith.constant 0 : index
    %c0_39 = arith.constant 0 : index
    %107 = vector.load %arg9[%c0_37, %c0_38, %c0_39] : memref<2x128x128xbf16, #tpu.memory_space<vmem>>, vector<1x128x128xbf16>
    %108 = vector.shape_cast %107 : vector<1x128x128xbf16> to vector<128x128xbf16>
    %cst_40 = arith.constant dense<0.000000e+00> : vector<32x128xf32>
    %109 = tpu.matmul %106, %108, %cst_40 {dimension_numbers = #tpu.dot_dimension_numbers<[1], [0], [0], [1], [0, 0, 1, 1], [], []>} : vector<32x128xbf16>, vector<128x128xbf16>, vector<32x128xf32> -> vector<32x128xf32>
    %110 = vector.broadcast %64 : vector<1x128xf32> to vector<32x128xf32>
    %111 = arith.addf %109, %110 : vector<32x128xf32>
    %112 = arith.addf %52, %111 : vector<32x128xf32>
    %cst_41 = arith.constant dense<0.000000e+00> : vector<32xf32>
    %113 = vector.multi_reduction <add>, %112, %cst_41 [1] : vector<32x128xf32> to vector<32xf32>
    %114 = vector.shape_cast %113 : vector<32xf32> to vector<32x1xf32>
    %cst_42 = arith.constant 1.280000e+02 : f32
    %115 = vector.broadcast %cst_42 : f32 to vector<32x1xf32>
    %116 = arith.divf %114, %115 : vector<32x1xf32>
    %117 = vector.broadcast %116 : vector<32x1xf32> to vector<32x128xf32>
    %118 = arith.subf %112, %117 : vector<32x128xf32>
    %119 = arith.mulf %118, %118 : vector<32x128xf32>
    %cst_43 = arith.constant dense<0.000000e+00> : vector<32xf32>
    %120 = vector.multi_reduction <add>, %119, %cst_43 [1] : vector<32x128xf32> to vector<32xf32>
    %121 = vector.shape_cast %120 : vector<32xf32> to vector<32x1xf32>
    %cst_44 = arith.constant 1.280000e+02 : f32
    %122 = vector.broadcast %cst_44 : f32 to vector<32x1xf32>
    %123 = arith.divf %121, %122 : vector<32x1xf32>
    %124 = vector.broadcast %116 : vector<32x1xf32> to vector<32x128xf32>
    %125 = arith.subf %112, %124 : vector<32x128xf32>
    %cst_45 = arith.constant 9.99999974E-6 : f32
    %126 = vector.broadcast %cst_45 : f32 to vector<32x1xf32>
    %127 = arith.addf %123, %126 : vector<32x1xf32>
    %128 = math.rsqrt %127 : vector<32x1xf32>
    %129 = vector.broadcast %128 : vector<32x1xf32> to vector<32x128xf32>
    %130 = arith.mulf %125, %129 : vector<32x128xf32>
    %131 = vector.broadcast %65 : vector<1x128xf32> to vector<32x128xf32>
    %132 = arith.mulf %130, %131 : vector<32x128xf32>
    %133 = vector.broadcast %66 : vector<1x128xf32> to vector<32x128xf32>
    %134 = arith.addf %132, %133 : vector<32x128xf32>
    %c1 = arith.constant 1 : index
    %c0_46 = arith.constant 0 : index
    %c0_47 = arith.constant 0 : index
    %135 = vector.load %arg12[%c1, %c0_46, %c0_47] : memref<2x8x256xf32, #tpu.memory_space<vmem>>, vector<1x8x256xf32>
    %136 = vector.shape_cast %135 : vector<1x8x256xf32> to vector<8x256xf32>
    %137 = vector.extract_strided_slice %136 {offsets = [0, 0], sizes = [1, 256], strides = [1, 1]} : vector<8x256xf32> to vector<1x256xf32>
    %138 = vector.extract_strided_slice %136 {offsets = [1, 0], sizes = [1, 128], strides = [1, 1]} : vector<8x256xf32> to vector<1x128xf32>
    %139 = vector.extract_strided_slice %136 {offsets = [2, 0], sizes = [1, 128], strides = [1, 1]} : vector<8x256xf32> to vector<1x128xf32>
    %140 = vector.extract_strided_slice %136 {offsets = [3, 0], sizes = [1, 128], strides = [1, 1]} : vector<8x256xf32> to vector<1x128xf32>
    %141 = vector.extract_strided_slice %136 {offsets = [4, 0], sizes = [1, 128], strides = [1, 1]} : vector<8x256xf32> to vector<1x128xf32>
    %142 = vector.extract_strided_slice %60 {offsets = [0, 128], sizes = [32, 128], strides = [1, 1]} : vector<32x256xf32> to vector<32x128xf32>
    %143 = vector.broadcast %141 : vector<1x128xf32> to vector<32x128xf32>
    %144 = arith.addf %142, %143 : vector<32x128xf32>
    %145 = arith.truncf %134 : vector<32x128xf32> to vector<32x128xbf16>
    %c1_48 = arith.constant 1 : index
    %c0_49 = arith.constant 0 : index
    %c0_50 = arith.constant 0 : index
    %146 = vector.load %arg8[%c1_48, %c0_49, %c0_50] : memref<2x128x256xbf16, #tpu.memory_space<vmem>>, vector<1x128x256xbf16>
    %147 = vector.shape_cast %146 : vector<1x128x256xbf16> to vector<128x256xbf16>
    %cst_51 = arith.constant dense<0.000000e+00> : vector<32x256xf32>
    %148 = tpu.matmul %145, %147, %cst_51 {dimension_numbers = #tpu.dot_dimension_numbers<[1], [0], [0], [1], [0, 0, 1, 1], [], []>} : vector<32x128xbf16>, vector<128x256xbf16>, vector<32x256xf32> -> vector<32x256xf32>
    %149 = vector.broadcast %137 : vector<1x256xf32> to vector<32x256xf32>
    %150 = arith.addf %148, %149 : vector<32x256xf32>
    %151 = vector.extract_strided_slice %150 {offsets = [0, 0], sizes = [32, 128], strides = [1, 1]} : vector<32x256xf32> to vector<32x128xf32>
    %152 = vector.extract_strided_slice %150 {offsets = [0, 128], sizes = [32, 128], strides = [1, 1]} : vector<32x256xf32> to vector<32x128xf32>
    %153 = vector.shape_cast %144 : vector<32x128xf32> to vector<32x4x32xf32>
    %154 = tpu.transpose %153, [1, 0, 2] : vector<32x4x32xf32> -> vector<4x32x32xf32>
    %155 = vector.shape_cast %154 : vector<4x32x32xf32> to vector<16x8x32xf32>
    %156 = arith.truncf %155 : vector<16x8x32xf32> to vector<16x8x32xbf16>
    %157 = vector.shape_cast %151 : vector<32x128xf32> to vector<32x4x32xf32>
    %158 = tpu.transpose %157, [1, 0, 2] : vector<32x4x32xf32> -> vector<4x32x32xf32>
    %159 = vector.shape_cast %158 : vector<4x32x32xf32> to vector<16x8x32xf32>
    %160 = arith.truncf %159 : vector<16x8x32xf32> to vector<16x8x32xbf16>
    %161 = vector.shape_cast %152 : vector<32x128xf32> to vector<32x4x32xf32>
    %162 = tpu.transpose %161, [1, 0, 2] : vector<32x4x32xf32> -> vector<4x32x32xf32>
    %163 = vector.shape_cast %162 : vector<4x32x32xf32> to vector<16x8x32xf32>
    %164 = arith.truncf %163 : vector<16x8x32xf32> to vector<16x8x32xbf16>
    "tpu.trace_start"() <{level = 10 : i32, message = "bqd,bkd->bqk"}> : () -> ()
    %cst_52 = arith.constant dense<0.000000e+00> : vector<16x8x8xf32>
    %165 = tpu.matmul %156, %160, %cst_52 {dimension_numbers = #tpu.dot_dimension_numbers<[2], [2], [1], [1], [0, 0, 0, 1, 1, 1], [0], [0]>} : vector<16x8x32xbf16>, vector<16x8x32xbf16>, vector<16x8x8xf32> -> vector<16x8x8xf32>
    "tpu.trace_stop"() : () -> ()
    %cst_53 = arith.constant dense<0xFF800000> : vector<16x8xf32>
    %166 = vector.multi_reduction <maximumf>, %165, %cst_53 [2] : vector<16x8x8xf32> to vector<16x8xf32>
    %167 = vector.shape_cast %166 : vector<16x8xf32> to vector<16x8x1xf32>
    %168 = vector.broadcast %167 : vector<16x8x1xf32> to vector<16x8x8xf32>
    %169 = arith.subf %165, %168 : vector<16x8x8xf32>
    %170 = math.exp %169 : vector<16x8x8xf32>
    %cst_54 = arith.constant dense<0.000000e+00> : vector<16x8xf32>
    %171 = vector.multi_reduction <add>, %170, %cst_54 [2] : vector<16x8x8xf32> to vector<16x8xf32>
    %172 = vector.shape_cast %171 : vector<16x8xf32> to vector<16x8x1xf32>
    %173 = vector.broadcast %172 : vector<16x8x1xf32> to vector<16x8x8xf32>
    %174 = arith.divf %170, %173 : vector<16x8x8xf32>
    %175 = arith.truncf %174 : vector<16x8x8xf32> to vector<16x8x8xbf16>
    "tpu.trace_start"() <{level = 10 : i32, message = "bqk,bkd->bqd"}> : () -> ()
    %cst_55 = arith.constant dense<0.000000e+00> : vector<16x8x32xf32>
    %176 = tpu.matmul %175, %164, %cst_55 {dimension_numbers = #tpu.dot_dimension_numbers<[2], [1], [1], [2], [0, 0, 0, 1, 1, 2], [0], [0]>} : vector<16x8x8xbf16>, vector<16x8x32xbf16>, vector<16x8x32xf32> -> vector<16x8x32xf32>
    "tpu.trace_stop"() : () -> ()
    %177 = vector.shape_cast %176 : vector<16x8x32xf32> to vector<4x32x32xf32>
    %178 = tpu.transpose %177, [1, 0, 2] : vector<4x32x32xf32> -> vector<32x4x32xf32>
    %179 = vector.shape_cast %178 : vector<32x4x32xf32> to vector<32x128xf32>
    %180 = arith.truncf %179 : vector<32x128xf32> to vector<32x128xbf16>
    %c1_56 = arith.constant 1 : index
    %c0_57 = arith.constant 0 : index
    %c0_58 = arith.constant 0 : index
    %181 = vector.load %arg9[%c1_56, %c0_57, %c0_58] : memref<2x128x128xbf16, #tpu.memory_space<vmem>>, vector<1x128x128xbf16>
    %182 = vector.shape_cast %181 : vector<1x128x128xbf16> to vector<128x128xbf16>
    %cst_59 = arith.constant dense<0.000000e+00> : vector<32x128xf32>
    %183 = tpu.matmul %180, %182, %cst_59 {dimension_numbers = #tpu.dot_dimension_numbers<[1], [0], [0], [1], [0, 0, 1, 1], [], []>} : vector<32x128xbf16>, vector<128x128xbf16>, vector<32x128xf32> -> vector<32x128xf32>
    %184 = vector.broadcast %138 : vector<1x128xf32> to vector<32x128xf32>
    %185 = arith.addf %183, %184 : vector<32x128xf32>
    %186 = arith.addf %134, %185 : vector<32x128xf32>
    %cst_60 = arith.constant dense<0.000000e+00> : vector<32xf32>
    %187 = vector.multi_reduction <add>, %186, %cst_60 [1] : vector<32x128xf32> to vector<32xf32>
    %188 = vector.shape_cast %187 : vector<32xf32> to vector<32x1xf32>
    %cst_61 = arith.constant 1.280000e+02 : f32
    %189 = vector.broadcast %cst_61 : f32 to vector<32x1xf32>
    %190 = arith.divf %188, %189 : vector<32x1xf32>
    %191 = vector.broadcast %190 : vector<32x1xf32> to vector<32x128xf32>
    %192 = arith.subf %186, %191 : vector<32x128xf32>
    %193 = arith.mulf %192, %192 : vector<32x128xf32>
    %cst_62 = arith.constant dense<0.000000e+00> : vector<32xf32>
    %194 = vector.multi_reduction <add>, %193, %cst_62 [1] : vector<32x128xf32> to vector<32xf32>
    %195 = vector.shape_cast %194 : vector<32xf32> to vector<32x1xf32>
    %cst_63 = arith.constant 1.280000e+02 : f32
    %196 = vector.broadcast %cst_63 : f32 to vector<32x1xf32>
    %197 = arith.divf %195, %196 : vector<32x1xf32>
    %198 = vector.broadcast %190 : vector<32x1xf32> to vector<32x128xf32>
    %199 = arith.subf %186, %198 : vector<32x128xf32>
    %cst_64 = arith.constant 9.99999974E-6 : f32
    %200 = vector.broadcast %cst_64 : f32 to vector<32x1xf32>
    %201 = arith.addf %197, %200 : vector<32x1xf32>
    %202 = math.rsqrt %201 : vector<32x1xf32>
    %203 = vector.broadcast %202 : vector<32x1xf32> to vector<32x128xf32>
    %204 = arith.mulf %199, %203 : vector<32x128xf32>
    %205 = vector.broadcast %139 : vector<1x128xf32> to vector<32x128xf32>
    %206 = arith.mulf %204, %205 : vector<32x128xf32>
    %207 = vector.broadcast %140 : vector<1x128xf32> to vector<32x128xf32>
    %208 = arith.addf %206, %207 : vector<32x128xf32>
    %209 = arith.truncf %208 : vector<32x128xf32> to vector<32x128xbf16>
    %c0_65 = arith.constant 0 : index
    %c0_66 = arith.constant 0 : index
    %210 = vector.load %arg10[%c0_65, %c0_66] : memref<128x128xbf16, #tpu.memory_space<vmem>>, vector<128x128xbf16>
    %cst_67 = arith.constant dense<0.000000e+00> : vector<32x128xf32>
    %211 = tpu.matmul %209, %210, %cst_67 {dimension_numbers = #tpu.dot_dimension_numbers<[1], [0], [0], [1], [0, 0, 1, 1], [], []>} : vector<32x128xbf16>, vector<128x128xbf16>, vector<32x128xf32> -> vector<32x128xf32>
    %212 = vector.broadcast %29 : vector<1x128xf32> to vector<32x128xf32>
    %213 = arith.addf %211, %212 : vector<32x128xf32>
    %c0_68 = arith.constant 0 : index
    %c0_69 = arith.constant 0 : index
    %214 = vector.load %arg13[%c0_68, %c0_69] : memref<32x128xf32, #tpu.memory_space<vmem>>, vector<32x128xf32>
    tpu.vector_store %arg13[%c0_68, %c0_69], %213 {strides = array<i32>} : memref<32x128xf32, #tpu.memory_space<vmem>>, vector<32x128xf32>,
    return
  }
  func.func @transform_0(%arg0: i32) -> (i32, i32) {
    %c0_i32 = arith.constant 0 : i32
    %c0_i32_0 = arith.constant 0 : i32
    return %arg0, %c0_i32 : i32, i32
  }
  func.func @transform_1(%arg0: i32) -> (i32, i32) {
    %c0_i32 = arith.constant 0 : i32
    %c0_i32_0 = arith.constant 0 : i32
    return %arg0, %c0_i32 : i32, i32
  }
  func.func @transform_2(%arg0: i32) -> (i32, i32) {
    %c0_i32 = arith.constant 0 : i32
    %c0_i32_0 = arith.constant 0 : i32
    %c0_i32_1 = arith.constant 0 : i32
    return %c0_i32, %c0_i32_0 : i32, i32
  }
  func.func @transform_3(%arg0: i32) -> (i32, i32) {
    %c0_i32 = arith.constant 0 : i32
    %c0_i32_0 = arith.constant 0 : i32
    %c0_i32_1 = arith.constant 0 : i32
    return %c0_i32, %c0_i32_0 : i32, i32
  }
  func.func @transform_4(%arg0: i32) -> (i32, i32) {
    %c0_i32 = arith.constant 0 : i32
    %c0_i32_0 = arith.constant 0 : i32
    %c0_i32_1 = arith.constant 0 : i32
    return %c0_i32, %c0_i32_0 : i32, i32
  }
  func.func @transform_5(%arg0: i32) -> (i32, i32) {
    %c0_i32 = arith.constant 0 : i32
    %c0_i32_0 = arith.constant 0 : i32
    %c0_i32_1 = arith.constant 0 : i32
    return %c0_i32, %c0_i32_0 : i32, i32
  }
  func.func @transform_6(%arg0: i32) -> (i32, i32) {
    %c0_i32 = arith.constant 0 : i32
    %c0_i32_0 = arith.constant 0 : i32
    %c0_i32_1 = arith.constant 0 : i32
    return %c0_i32, %c0_i32_0 : i32, i32
  }
  func.func @transform_7(%arg0: i32) -> (i32, i32, i32) {
    %c0_i32 = arith.constant 0 : i32
    %c0_i32_0 = arith.constant 0 : i32
    %c0_i32_1 = arith.constant 0 : i32
    %c0_i32_2 = arith.constant 0 : i32
    return %c0_i32, %c0_i32_0, %c0_i32_1 : i32, i32, i32
  }
  func.func @transform_8(%arg0: i32) -> (i32, i32, i32) {
    %c0_i32 = arith.constant 0 : i32
    %c0_i32_0 = arith.constant 0 : i32
    %c0_i32_1 = arith.constant 0 : i32
    %c0_i32_2 = arith.constant 0 : i32
    return %c0_i32, %c0_i32_0, %c0_i32_1 : i32, i32, i32
  }
  func.func @transform_9(%arg0: i32) -> (i32, i32) {
    %c0_i32 = arith.constant 0 : i32
    %c0_i32_0 = arith.constant 0 : i32
    %c0_i32_1 = arith.constant 0 : i32
    return %c0_i32, %c0_i32_0 : i32, i32
  }
  func.func @transform_10(%arg0: i32) -> (i32, i32) {
    %c0_i32 = arith.constant 0 : i32
    %c0_i32_0 = arith.constant 0 : i32
    %c0_i32_1 = arith.constant 0 : i32
    return %c0_i32, %c0_i32_0 : i32, i32
  }
  func.func @transform_11(%arg0: i32) -> (i32, i32, i32) {
    %c0_i32 = arith.constant 0 : i32
    %c0_i32_0 = arith.constant 0 : i32
    %c0_i32_1 = arith.constant 0 : i32
    %c0_i32_2 = arith.constant 0 : i32
    return %c0_i32, %c0_i32_0, %c0_i32_1 : i32, i32, i32
  }
  func.func @transform_12(%arg0: i32) -> (i32, i32) {
    %c0_i32 = arith.constant 0 : i32
    %c0_i32_0 = arith.constant 0 : i32
    return %arg0, %c0_i32 : i32, i32
  }
  func.func @transform_13(%arg0: i32) -> (i32, i32) {
    %c0_i32 = arith.constant 0 : i32
    %c0_i32_0 = arith.constant 0 : i32
    return %arg0, %c0_i32 : i32, i32
  }
  func.func @transform_14(%arg0: i32) -> (i32, i32) {
    %c0_i32 = arith.constant 0 : i32
    %c0_i32_0 = arith.constant 0 : i32
    return %arg0, %c0_i32 : i32, i32
  }
}

</mosaic_0001>

<llo_original>
// kernel: _lambda_.1
$region0: #{_lambda_.1}
  #allocation0 [shape = 'u32[]', space=smem, size = 0x4, offset = 0x4, fixed_abs, tag = 'smem constant byte address 0x4 - core index']
  #allocation1 [shape = 'u32[144,128]{1,0:T(1,128)}', space=vmem, size = 0x12000, scoped, tag = 'internal scratch']
  %s0 = inlined_call_operand.vmem [shape: f32[32,40], index: 0, kind: input, shape index: {}]
  %s1 = inlined_call_operand.vmem [shape: f32[32,640], index: 1, kind: input, shape index: {}]
  %s2 = inlined_call_operand.vmem [shape: bf16[40,128], index: 2, kind: input, shape index: {}]
  %s3 = inlined_call_operand.vmem [shape: bf16[640,128], index: 3, kind: input, shape index: {}]
  %s4 = inlined_call_operand.vmem [shape: bf16[128,128], index: 4, kind: input, shape index: {}]
  %s5 = inlined_call_operand.vmem [shape: bf16[128,128], index: 5, kind: input, shape index: {}]
  %s6 = inlined_call_operand.vmem [shape: bf16[128,256], index: 6, kind: input, shape index: {}]
  %s7 = inlined_call_operand.vmem [shape: bf16[2,128,256], index: 7, kind: input, shape index: {}]
  %s8 = inlined_call_operand.vmem [shape: bf16[2,128,128], index: 8, kind: input, shape index: {}]
  %s9 = inlined_call_operand.vmem [shape: bf16[128,128], index: 9, kind: input, shape index: {}]
  %s10 = inlined_call_operand.vmem [shape: f32[8,128], index: 10, kind: input, shape index: {}]
  %s11 = inlined_call_operand.vmem [shape: f32[2,8,256], index: 11, kind: input, shape index: {}]
  %s12 = inlined_call_operand.vmem [shape: f32[32,128], index: 12, kind: output, shape index: {0}]
  %s13 = inlined_call_operand.vmem [shape: f32[32,128], index: 13, kind: output, shape index: {1}]
  %s14 = inlined_call_operand.vmem [shape: f32[32,128], index: 14, kind: output, shape index: {2}]
  %15 = xla_tuple %s12, %s13, %s14
  %s16 = sld [smem:[#allocation0]]
  $region74: #{_lambda_.1} parent=0
    _
  %s18 = ssub.s32 1, %s16
  %s19 = scalar_select 0, %s18, %s16
  // Predicated region
  $region2: #{_lambda_.1} parent=0 // pred_check
    _
  $region3: #{_lambda_.1} parent=0 // pred_check_branch
    %21 = sbr.rel (0) target = $region5
  $region4: #{_lambda_.1} parent=0 // pred_region
    _
  $region5: #{_lambda_.1} parent=0 // pred_fallthru
    _
  // Predicated region
  $region6: #{_lambda_.1} parent=0 // pred_check
    _
  $region7: #{_lambda_.1} parent=0 // pred_check_branch
    %23 = sbr.rel (0) target = $region9
  $region8: #{_lambda_.1} parent=0 // pred_region
    _
  $region9: #{_lambda_.1} parent=0 // pred_fallthru
    _
  // Predicated region
  $region10: #{_lambda_.1} parent=0 // pred_check
    _
  $region11: #{_lambda_.1} parent=0 // pred_check_branch
    %25 = sbr.rel (0) target = $region13
  $region12: #{_lambda_.1} parent=0 // pred_region
    _
  $region13: #{_lambda_.1} parent=0 // pred_fallthru
    _
  // Predicated region
  $region14: #{_lambda_.1} parent=0 // pred_check
    _
  $region15: #{_lambda_.1} parent=0 // pred_check_branch
    %27 = sbr.rel (0) target = $region17
  $region16: #{_lambda_.1} parent=0 // pred_region
    _
  $region17: #{_lambda_.1} parent=0 // pred_fallthru
    _
  // Predicated region
  $region18: #{_lambda_.1} parent=0 // pred_check
    _
  $region19: #{_lambda_.1} parent=0 // pred_check_branch
    %29 = sbr.rel (0) target = $region21
  $region20: #{_lambda_.1} parent=0 // pred_region
    _
  $region21: #{_lambda_.1} parent=0 // pred_fallthru
    _
  // Predicated region
  $region22: #{_lambda_.1} parent=0 // pred_check
    _
  $region23: #{_lambda_.1} parent=0 // pred_check_branch
    %31 = sbr.rel (0) target = $region25
  $region24: #{_lambda_.1} parent=0 // pred_region
    _
  $region25: #{_lambda_.1} parent=0 // pred_fallthru
    _
  // Predicated region
  $region26: #{_lambda_.1} parent=0 // pred_check
    _
  $region27: #{_lambda_.1} parent=0 // pred_check_branch
    %33 = sbr.rel (0) target = $region29
  $region28: #{_lambda_.1} parent=0 // pred_region
    _
  $region29: #{_lambda_.1} parent=0 // pred_fallthru
    _
  // Predicated region
  $region30: #{_lambda_.1} parent=0 // pred_check
    _
  $region31: #{_lambda_.1} parent=0 // pred_check_branch
    %35 = sbr.rel (0) target = $region33
  $region32: #{_lambda_.1} parent=0 // pred_region
    _
  $region33: #{_lambda_.1} parent=0 // pred_fallthru
    _
  // Predicated region
  $region34: #{_lambda_.1} parent=0 // pred_check
    _
  $region35: #{_lambda_.1} parent=0 // pred_check_branch
    %37 = sbr.rel (0) target = $region37
  $region36: #{_lambda_.1} parent=0 // pred_region
    _
  $region37: #{_lambda_.1} parent=0 // pred_fallthru
    _
  // Predicated region
  $region38: #{_lambda_.1} parent=0 // pred_check
    _
  $region39: #{_lambda_.1} parent=0 // pred_check_branch
    %39 = sbr.rel (0) target = $region41
  $region40: #{_lambda_.1} parent=0 // pred_region
    _
  $region41: #{_lambda_.1} parent=0 // pred_fallthru
    _
  // Predicated region
  $region42: #{_lambda_.1} parent=0 // pred_check
    _
  $region43: #{_lambda_.1} parent=0 // pred_check_branch
    %41 = sbr.rel (0) target = $region45
  $region44: #{_lambda_.1} parent=0 // pred_region
    _
  $region45: #{_lambda_.1} parent=0 // pred_fallthru
    _
  // Predicated region
  $region46: #{_lambda_.1} parent=0 // pred_check
    _
  $region47: #{_lambda_.1} parent=0 // pred_check_branch
    %43 = sbr.rel (0) target = $region49
  $region48: #{_lambda_.1} parent=0 // pred_region
    _
  $region49: #{_lambda_.1} parent=0 // pred_fallthru
    _
  %v45 = vlaneseq
  %v46 = vshrl.u32 %v45, 7
  %v47 = vadd.s32 %v46, 8
  %v48 = vadd.s32 %v46, 16
  %v49 = vadd.s32 %v46, 24
  %s50 = smul.u32 0, 32
  %v51 = vstv %s50
  %v52 = vadd.s32 %v46, %v51
  %v53 = vadd.s32 %v47, %v51
  %v54 = vadd.s32 %v48, %v51
  %v55 = vadd.s32 %v49, %v51
  %vm56 = vcmp.lt.s32.totalorder %v52, 0
  %v57 = vsub.s32 0, %v52
  %v58 = vsel %vm56, %v57, %v52
  %v59 = vshrl.u32 %v58, 4
  %v60 = vand.u32 %v58, 15
  %v61 = vsub.s32 0, %v60
  %v62 = vsel %vm56, %v61, %v60
  %vm63 = vcmp.lt.s32.totalorder %v53, 0
  %v64 = vsub.s32 0, %v53
  %v65 = vsel %vm63, %v64, %v53
  %v66 = vshrl.u32 %v65, 4
  %v67 = vand.u32 %v65, 15
  %v68 = vsub.s32 0, %v67
  %v69 = vsel %vm63, %v68, %v67
  %vm70 = vcmp.lt.s32.totalorder %v54, 0
  %v71 = vsub.s32 0, %v54
  %v72 = vsel %vm70, %v71, %v54
  %v73 = vshrl.u32 %v72, 4
  %v74 = vand.u32 %v72, 15
  %v75 = vsub.s32 0, %v74
  %v76 = vsel %vm70, %v75, %v74
  %vm77 = vcmp.lt.s32.totalorder %v55, 0
  %v78 = vsub.s32 0, %v55
  %v79 = vsel %vm77, %v78, %v55
  %v80 = vshrl.u32 %v79, 4
  %v81 = vand.u32 %v79, 15
  %v82 = vsub.s32 0, %v81
  %v83 = vsel %vm77, %v82, %v81
  %vm84 = vcmp.ne.s32.totalorder %v62, 0
  %vm85 = vcmp.ne.s32.totalorder %v69, 0
  %vm86 = vcmp.ne.s32.totalorder %v76, 0
  %vm87 = vcmp.ne.s32.totalorder %v83, 0
  %vm88 = vcmp.lt.s32.totalorder %v62, 0
  %vm89 = vcmp.lt.s32.totalorder %v69, 0
  %vm90 = vcmp.lt.s32.totalorder %v76, 0
  %vm91 = vcmp.lt.s32.totalorder %v83, 0
  %vm92 = vmand %vm88, %vm84
  %vm93 = vmand %vm89, %vm85
  %vm94 = vmand %vm90, %vm86
  %vm95 = vmand %vm91, %vm87
  %v96 = vadd.s32 %v62, 16
  %v97 = vadd.s32 %v69, 16
  %v98 = vadd.s32 %v76, 16
  %v99 = vadd.s32 %v83, 16
  %v100 = vsel %vm92, %v96, %v62
  %v101 = vsel %vm93, %v97, %v69
  %v102 = vsel %vm94, %v98, %v76
  %v103 = vsel %vm95, %v99, %v83
  %vm104 = vcmp.lt.s32.totalorder %v100, 12
  %vm105 = vcmp.lt.s32.totalorder %v101, 12
  %vm106 = vcmp.lt.s32.totalorder %v102, 12
  %vm107 = vcmp.lt.s32.totalorder %v103, 12
  %v108 = vsel %vm104, 1, 0
  %v109 = vsel %vm105, 1, 0
  %v110 = vsel %vm106, 1, 0
  %v111 = vsel %vm107, 1, 0
  %v112 = vcvt.s32.f32 %v108
  %v113 = vcvt.s32.f32 %v109
  %v114 = vcvt.s32.f32 %v110
  %v115 = vcvt.s32.f32 %v111
  %v116 = vld [vmem:[%s10] sm:$0xff]
  %v117 = vld [vmem:[%s0] sm:$0xff]
  %v118 = vld [vmem:[%s0 + $0x8] sm:$0xff]
  %v119 = vld [vmem:[%s0 + $0x10] sm:$0xff]
  %v120 = vld [vmem:[%s0 + $0x18] sm:$0xff]
  %v121 = vpack.c.bf16 %v118, %v117
  %v122 = vpack.c.bf16 %v120, %v119
  %v123 = vld [vmem:[%s2] sm:$0xf]
  %v124 = vld [vmem:[%s2 + $0x4] sm:$0xf]
  %v125 = vld [vmem:[%s2 + $0x8] sm:$0xf]
  %v126 = vld [vmem:[%s2 + $0xc] sm:$0xf]
  %v127 = vld [vmem:[%s2 + $0x10] sm:$0xf]
  %v128 = vlaneseq
  %v129 = vshrl.u32 %v128, 7
  %v130 = vsub.s32 0, %v129
  %v131 = vrot.slane %v116, %v130
  %v137 = vunpack.c.l.b16 %v123
  %v138 = vunpack.c.l.b16 %v124
  %v139 = vunpack.c.l.b16 %v125
  %v140 = vunpack.c.l.b16 %v126
  %v141 = vunpack.c.l.b16 %v127
  %v142 = vpack.c.b16 %v138, %v137
  %v143 = vpack.c.b16 %v140, %v139
  %v144 = vpack.c.b16 %v141, %v141
  %vm147 = vcmask 326656
  %v149 = vsel %vm147, %v121, 0
  %v152 = vsel %vm147, %v122, 0
  %vm154 = vcmask 1043456
  %v156 = vsel %vm154, %v144, 0
  %158 = vmatprep.subr.bf16.mxu0 0
  %159 = vmatpush1.bf16.msra.mxu0 0
  %160 = vmatprep.subr.bf16.mxu0 0
  %161 = vmatpush1.bf16.msra.mxu0 0
  %162 = vmatprep.subr.bf16.mxu0 0
  %163 = vmatpush1.bf16.msra.mxu0 0
  %164 = vmatprep.subr.bf16.mxu0 0
  %165 = vmatpush1.bf16.msra.mxu0 0
  %166 = vmatprep.subr.bf16.mxu0 0
  %167 = vmatpush1.bf16.msra.mxu0 0
  %168 = vmatprep.subr.bf16.mxu0 0
  %169 = vmatpush1.bf16.msra.mxu0 %v156
  %170 = vmatprep.subr.bf16.mxu0 0
  %171 = vmatpush1.bf16.msra.mxu0 %v143
  %172 = vmatprep.subr.bf16.mxu0 0
  %173 = vmatpush1.bf16.msra.mxu0 %v142
  %174 = vmatprep.subr.bf16.mxu0 0
  %175 = vmatpush2.bf16.msra.mxu0 0
  %176 = vmatprep.subr.bf16.mxu0 0
  %177 = vmatpush2.bf16.msra.mxu0 0
  %178 = vmatprep.subr.bf16.mxu0 0
  %179 = vmatpush2.bf16.msra.mxu0 0
  %180 = vmatprep.subr.bf16.mxu0 0
  %181 = vmatpush2.bf16.msra.mxu0 0
  %182 = vmatprep.subr.bf16.mxu0 0
  %183 = vmatpush2.bf16.msra.mxu0 0
  %184 = vmatprep.subr.bf16.mxu0 0
  %185 = vmatpush2.bf16.msra.mxu0 0
  %186 = vmatprep.subr.bf16.mxu0 0
  %187 = vmatpush2.bf16.msra.mxu0 0
  %188 = vmatprep.subr.bf16.mxu0 0
  %189 = vmatpush2.bf16.msra.mxu0 0
  %190 = vmatprep.mubr.bf16.mxu0 0
  %191 = vmatmul.mubr.bf16.gmra.mxu0 %v149
  %v192 = vpop.f32.mrf.mxu0
  %v193 = vadd.f32 %v131, %v192
  %v194 = vpop.f32.mrf.mxu0
  %v195 = vpop.f32.mrf.mxu0
  %v196 = vadd.f32 %v131, %v195
  %v197 = vpop.f32.mrf.mxu0
  %198 = vmatprep.mubr.bf16.mxu0 0
  %199 = vmatmul.mubr.bf16.gmra.mxu0 %v152
  %v200 = vpop.f32.mrf.mxu0
  %v201 = vadd.f32 %v131, %v200
  %v202 = vpop.f32.mrf.mxu0
  %v203 = vpop.f32.mrf.mxu0
  %v204 = vadd.f32 %v131, %v203
  %v205 = vpop.f32.mrf.mxu0
  %206 = vdwg.mxu0
  %v207 = vmul.f32 %v193, %v112
  %v208 = vmul.f32 %v196, %v113
  %v209 = vmul.f32 %v201, %v114
  %v210 = vmul.f32 %v204, %v115
  %v211 = vld [vmem:[%s1] sm:$0xff]
  %v212 = vld [vmem:[%s1 + $0x8] sm:$0xff]
  %v213 = vld [vmem:[%s1 + $0x10] sm:$0xff]
  %v214 = vld [vmem:[%s1 + $0x18] sm:$0xff]
  %v215 = vld [vmem:[%s1 + $0x20] sm:$0xff]
  %v216 = vld [vmem:[%s1 + $0x28] sm:$0xff]
  %v217 = vld [vmem:[%s1 + $0x30] sm:$0xff]
  %v218 = vld [vmem:[%s1 + $0x38] sm:$0xff]
  %v219 = vld [vmem:[%s1 + $0x40] sm:$0xff]
  %v220 = vld [vmem:[%s1 + $0x48] sm:$0xff]
  %v221 = vld [vmem:[%s1 + $0x50] sm:$0xff]
  %v222 = vld [vmem:[%s1 + $0x58] sm:$0xff]
  %v223 = vld [vmem:[%s1 + $0x60] sm:$0xff]
  %v224 = vld [vmem:[%s1 + $0x68] sm:$0xff]
  %v225 = vld [vmem:[%s1 + $0x70] sm:$0xff]
  %v226 = vld [vmem:[%s1 + $0x78] sm:$0xff]
  %v227 = vld [vmem:[%s1 + $0x80] sm:$0xff]
  %v228 = vld [vmem:[%s1 + $0x88] sm:$0xff]
  %v229 = vld [vmem:[%s1 + $0x90] sm:$0xff]
  %v230 = vld [vmem:[%s1 + $0x98] sm:$0xff]
  %v231 = vpack.c.bf16 %v216, %v211
  %v232 = vpack.c.bf16 %v217, %v212
  %v233 = vpack.c.bf16 %v218, %v213
  %v234 = vpack.c.bf16 %v219, %v214
  %v235 = vpack.c.bf16 %v220, %v215
  %v236 = vpack.c.bf16 %v226, %v221
  %v237 = vpack.c.bf16 %v227, %v222
  %v238 = vpack.c.bf16 %v228, %v223
  %v239 = vpack.c.bf16 %v229, %v224
  %v240 = vpack.c.bf16 %v230, %v225
  %v241 = vld [vmem:[%s3] sm:$0xf]
  %v242 = vld [vmem:[%s3 + $0x4] sm:$0xf]
  %v243 = vld [vmem:[%s3 + $0x8] sm:$0xf]
  %v244 = vld [vmem:[%s3 + $0xc] sm:$0xf]
  %v245 = vld [vmem:[%s3 + $0x10] sm:$0xf]
  %v246 = vld [vmem:[%s3 + $0x14] sm:$0xf]
  %v247 = vld [vmem:[%s3 + $0x18] sm:$0xf]
  %v248 = vld [vmem:[%s3 + $0x1c] sm:$0xf]
  %v249 = vld [vmem:[%s3 + $0x20] sm:$0xf]
  %v250 = vld [vmem:[%s3 + $0x24] sm:$0xf]
  %v251 = vld [vmem:[%s3 + $0x28] sm:$0xf]
  %v252 = vld [vmem:[%s3 + $0x2c] sm:$0xf]
  %v253 = vld [vmem:[%s3 + $0x30] sm:$0xf]
  %v254 = vld [vmem:[%s3 + $0x34] sm:$0xf]
  %v255 = vld [vmem:[%s3 + $0x38] sm:$0xf]
  %v256 = vld [vmem:[%s3 + $0x3c] sm:$0xf]
  %v257 = vld [vmem:[%s3 + $0x40] sm:$0xf]
  %v258 = vld [vmem:[%s3 + $0x44] sm:$0xf]
  %v259 = vld [vmem:[%s3 + $0x48] sm:$0xf]
  %v260 = vld [vmem:[%s3 + $0x4c] sm:$0xf]
  %v261 = vld [vmem:[%s3 + $0x50] sm:$0xf]
  %v262 = vld [vmem:[%s3 + $0x54] sm:$0xf]
  %v263 = vld [vmem:[%s3 + $0x58] sm:$0xf]
  %v264 = vld [vmem:[%s3 + $0x5c] sm:$0xf]
  %v265 = vld [vmem:[%s3 + $0x60] sm:$0xf]
  %v266 = vld [vmem:[%s3 + $0x64] sm:$0xf]
  %v267 = vld [vmem:[%s3 + $0x68] sm:$0xf]
  %v268 = vld [vmem:[%s3 + $0x6c] sm:$0xf]
  %v269 = vld [vmem:[%s3 + $0x70] sm:$0xf]
  %v270 = vld [vmem:[%s3 + $0x74] sm:$0xf]
  %v271 = vld [vmem:[%s3 + $0x78] sm:$0xf]
  %v272 = vld [vmem:[%s3 + $0x7c] sm:$0xf]
  %v273 = vld [vmem:[%s3 + $0x80] sm:$0xf]
  %v274 = vld [vmem:[%s3 + $0x84] sm:$0xf]
  %v275 = vld [vmem:[%s3 + $0x88] sm:$0xf]
  %v276 = vld [vmem:[%s3 + $0x8c] sm:$0xf]
  %v277 = vld [vmem:[%s3 + $0x90] sm:$0xf]
  %v278 = vld [vmem:[%s3 + $0x94] sm:$0xf]
  %v279 = vld [vmem:[%s3 + $0x98] sm:$0xf]
  %v280 = vld [vmem:[%s3 + $0x9c] sm:$0xf]
  %v281 = vld [vmem:[%s3 + $0xa0] sm:$0xf]
  %v282 = vld [vmem:[%s3 + $0xa4] sm:$0xf]
  %v283 = vld [vmem:[%s3 + $0xa8] sm:$0xf]
  %v284 = vld [vmem:[%s3 + $0xac] sm:$0xf]
  %v285 = vld [vmem:[%s3 + $0xb0] sm:$0xf]
  %v286 = vld [vmem:[%s3 + $0xb4] sm:$0xf]
  %v287 = vld [vmem:[%s3 + $0xb8] sm:$0xf]
  %v288 = vld [vmem:[%s3 + $0xbc] sm:$0xf]
  %v289 = vld [vmem:[%s3 + $0xc0] sm:$0xf]
  %v290 = vld [vmem:[%s3 + $0xc4] sm:$0xf]
  %v291 = vld [vmem:[%s3 + $0xc8] sm:$0xf]
  %v292 = vld [vmem:[%s3 + $0xcc] sm:$0xf]
  %v293 = vld [vmem:[%s3 + $0xd0] sm:$0xf]
  %v294 = vld [vmem:[%s3 + $0xd4] sm:$0xf]
  %v295 = vld [vmem:[%s3 + $0xd8] sm:$0xf]
  %v296 = vld [vmem:[%s3 + $0xdc] sm:$0xf]
  %v297 = vld [vmem:[%s3 + $0xe0] sm:$0xf]
  %v298 = vld [vmem:[%s3 + $0xe4] sm:$0xf]
  %v299 = vld [vmem:[%s3 + $0xe8] sm:$0xf]
  %v300 = vld [vmem:[%s3 + $0xec] sm:$0xf]
  %v301 = vld [vmem:[%s3 + $0xf0] sm:$0xf]
  %v302 = vld [vmem:[%s3 + $0xf4] sm:$0xf]
  %v303 = vld [vmem:[%s3 + $0xf8] sm:$0xf]
  %v304 = vld [vmem:[%s3 + $0xfc] sm:$0xf]
  %v305 = vld [vmem:[%s3 + $0x100] sm:$0xf]
  %v306 = vld [vmem:[%s3 + $0x104] sm:$0xf]
  %v307 = vld [vmem:[%s3 + $0x108] sm:$0xf]
  %v308 = vld [vmem:[%s3 + $0x10c] sm:$0xf]
  %v309 = vld [vmem:[%s3 + $0x110] sm:$0xf]
  %v310 = vld [vmem:[%s3 + $0x114] sm:$0xf]
  %v311 = vld [vmem:[%s3 + $0x118] sm:$0xf]
  %v312 = vld [vmem:[%s3 + $0x11c] sm:$0xf]
  %v313 = vld [vmem:[%s3 + $0x120] sm:$0xf]
  %v314 = vld [vmem:[%s3 + $0x124] sm:$0xf]
  %v315 = vld [vmem:[%s3 + $0x128] sm:$0xf]
  %v316 = vld [vmem:[%s3 + $0x12c] sm:$0xf]
  %v317 = vld [vmem:[%s3 + $0x130] sm:$0xf]
  %v318 = vld [vmem:[%s3 + $0x134] sm:$0xf]
  %v319 = vld [vmem:[%s3 + $0x138] sm:$0xf]
  %v320 = vld [vmem:[%s3 + $0x13c] sm:$0xf]
  %v321 = vlaneseq
  %v322 = vshrl.u32 %v321, 7
  %v323 = vsub.s32 1, %v322
  %v324 = vrot.slane %v116, %v323
  %v405 = vunpack.c.l.b16 %v241
  %v406 = vunpack.c.l.b16 %v242
  %v407 = vunpack.c.l.b16 %v243
  %v408 = vunpack.c.l.b16 %v244
  %v409 = vunpack.c.l.b16 %v245
  %v410 = vunpack.c.l.b16 %v246
  %v411 = vunpack.c.l.b16 %v247
  %v412 = vunpack.c.l.b16 %v248
  %v413 = vunpack.c.l.b16 %v249
  %v414 = vunpack.c.l.b16 %v250
  %v415 = vunpack.c.l.b16 %v251
  %v416 = vunpack.c.l.b16 %v252
  %v417 = vunpack.c.l.b16 %v253
  %v418 = vunpack.c.l.b16 %v254
  %v419 = vunpack.c.l.b16 %v255
  %v420 = vunpack.c.l.b16 %v256
  %v421 = vunpack.c.l.b16 %v257
  %v422 = vunpack.c.l.b16 %v258
  %v423 = vunpack.c.l.b16 %v259
  %v424 = vunpack.c.l.b16 %v260
  %v425 = vunpack.c.l.b16 %v261
  %v426 = vunpack.c.l.b16 %v262
  %v427 = vunpack.c.l.b16 %v263
  %v428 = vunpack.c.l.b16 %v264
  %v429 = vunpack.c.l.b16 %v265
  %v430 = vunpack.c.l.b16 %v266
  %v431 = vunpack.c.l.b16 %v267
  %v432 = vunpack.c.l.b16 %v268
  %v433 = vunpack.c.l.b16 %v269
  %v434 = vunpack.c.l.b16 %v270
  %v435 = vunpack.c.l.b16 %v271
  %v436 = vunpack.c.l.b16 %v272
  %v437 = vunpack.c.l.b16 %v273
  %v438 = vunpack.c.l.b16 %v274
  %v439 = vunpack.c.l.b16 %v275
  %v440 = vunpack.c.l.b16 %v276
  %v441 = vunpack.c.l.b16 %v277
  %v442 = vunpack.c.l.b16 %v278
  %v443 = vunpack.c.l.b16 %v279
  %v444 = vunpack.c.l.b16 %v280
  %v445 = vunpack.c.l.b16 %v281
  %v446 = vunpack.c.l.b16 %v282
  %v447 = vunpack.c.l.b16 %v283
  %v448 = vunpack.c.l.b16 %v284
  %v449 = vunpack.c.l.b16 %v285
  %v450 = vunpack.c.l.b16 %v286
  %v451 = vunpack.c.l.b16 %v287
  %v452 = vunpack.c.l.b16 %v288
  %v453 = vunpack.c.l.b16 %v289
  %v454 = vunpack.c.l.b16 %v290
  %v455 = vunpack.c.l.b16 %v291
  %v456 = vunpack.c.l.b16 %v292
  %v457 = vunpack.c.l.b16 %v293
  %v458 = vunpack.c.l.b16 %v294
  %v459 = vunpack.c.l.b16 %v295
  %v460 = vunpack.c.l.b16 %v296
  %v461 = vunpack.c.l.b16 %v297
  %v462 = vunpack.c.l.b16 %v298
  %v463 = vunpack.c.l.b16 %v299
  %v464 = vunpack.c.l.b16 %v300
  %v465 = vunpack.c.l.b16 %v301
  %v466 = vunpack.c.l.b16 %v302
  %v467 = vunpack.c.l.b16 %v303
  %v468 = vunpack.c.l.b16 %v304
  %v469 = vunpack.c.l.b16 %v305
  %v470 = vunpack.c.l.b16 %v306
  %v471 = vunpack.c.l.b16 %v307
  %v472 = vunpack.c.l.b16 %v308
  %v473 = vunpack.c.l.b16 %v309
  %v474 = vunpack.c.l.b16 %v310
  %v475 = vunpack.c.l.b16 %v311
  %v476 = vunpack.c.l.b16 %v312
  %v477 = vunpack.c.l.b16 %v313
  %v478 = vunpack.c.l.b16 %v314
  %v479 = vunpack.c.l.b16 %v315
  %v480 = vunpack.c.l.b16 %v316
  %v481 = vunpack.c.l.b16 %v317
  %v482 = vunpack.c.l.b16 %v318
  %v483 = vunpack.c.l.b16 %v319
  %v484 = vunpack.c.l.b16 %v320
  %v485 = vpack.c.b16 %v406, %v405
  %v486 = vpack.c.b16 %v408, %v407
  %v487 = vpack.c.b16 %v410, %v409
  %v488 = vpack.c.b16 %v412, %v411
  %v489 = vpack.c.b16 %v414, %v413
  %v490 = vpack.c.b16 %v416, %v415
  %v491 = vpack.c.b16 %v418, %v417
  %v492 = vpack.c.b16 %v420, %v419
  %v493 = vpack.c.b16 %v422, %v421
  %v494 = vpack.c.b16 %v424, %v423
  %v495 = vpack.c.b16 %v426, %v425
  %v496 = vpack.c.b16 %v428, %v427
  %v497 = vpack.c.b16 %v430, %v429
  %v498 = vpack.c.b16 %v432, %v431
  %v499 = vpack.c.b16 %v434, %v433
  %v500 = vpack.c.b16 %v436, %v435
  %v501 = vpack.c.b16 %v438, %v437
  %v502 = vpack.c.b16 %v440, %v439
  %v503 = vpack.c.b16 %v442, %v441
  %v504 = vpack.c.b16 %v444, %v443
  %v505 = vpack.c.b16 %v446, %v445
  %v506 = vpack.c.b16 %v448, %v447
  %v507 = vpack.c.b16 %v450, %v449
  %v508 = vpack.c.b16 %v452, %v451
  %v509 = vpack.c.b16 %v454, %v453
  %v510 = vpack.c.b16 %v456, %v455
  %v511 = vpack.c.b16 %v458, %v457
  %v512 = vpack.c.b16 %v460, %v459
  %v513 = vpack.c.b16 %v462, %v461
  %v514 = vpack.c.b16 %v464, %v463
  %v515 = vpack.c.b16 %v466, %v465
  %v516 = vpack.c.b16 %v468, %v467
  %v517 = vpack.c.b16 %v470, %v469
  %v518 = vpack.c.b16 %v472, %v471
  %v519 = vpack.c.b16 %v474, %v473
  %v520 = vpack.c.b16 %v476, %v475
  %v521 = vpack.c.b16 %v478, %v477
  %v522 = vpack.c.b16 %v480, %v479
  %v523 = vpack.c.b16 %v482, %v481
  %v524 = vpack.c.b16 %v484, %v483
  %565 = vmatprep.subr.bf16.mxu0 0
  %566 = vmatpush1.bf16.msra.mxu0 %v492
  %567 = vmatprep.subr.bf16.mxu0 0
  %568 = vmatpush1.bf16.msra.mxu0 %v491
  %569 = vmatprep.subr.bf16.mxu0 0
  %570 = vmatpush1.bf16.msra.mxu0 %v490
  %571 = vmatprep.subr.bf16.mxu0 0
  %572 = vmatpush1.bf16.msra.mxu0 %v489
  %573 = vmatprep.subr.bf16.mxu0 0
  %574 = vmatpush1.bf16.msra.mxu0 %v488
  %575 = vmatprep.subr.bf16.mxu0 0
  %576 = vmatpush1.bf16.msra.mxu0 %v487
  %577 = vmatprep.subr.bf16.mxu0 0
  %578 = vmatpush1.bf16.msra.mxu0 %v486
  %579 = vmatprep.subr.bf16.mxu0 0
  %580 = vmatpush1.bf16.msra.mxu0 %v485
  %581 = vmatprep.subr.bf16.mxu0 0
  %582 = vmatpush2.bf16.msra.mxu0 %v500
  %583 = vmatprep.subr.bf16.mxu0 0
  %584 = vmatpush2.bf16.msra.mxu0 %v499
  %585 = vmatprep.subr.bf16.mxu0 0
  %586 = vmatpush2.bf16.msra.mxu0 %v498
  %587 = vmatprep.subr.bf16.mxu0 0
  %588 = vmatpush2.bf16.msra.mxu0 %v497
  %589 = vmatprep.subr.bf16.mxu0 0
  %590 = vmatpush2.bf16.msra.mxu0 %v496
  %591 = vmatprep.subr.bf16.mxu0 0
  %592 = vmatpush2.bf16.msra.mxu0 %v495
  %593 = vmatprep.subr.bf16.mxu0 0
  %594 = vmatpush2.bf16.msra.mxu0 %v494
  %595 = vmatprep.subr.bf16.mxu0 0
  %596 = vmatpush2.bf16.msra.mxu0 %v493
  %597 = vmatprep.mubr.bf16.mxu0 %v232
  %598 = vmatmul.mubr.bf16.gmra.mxu0 %v231
  %v599 = vpop.f32.mrf.mxu0
  %v600 = vadd.f32 %v324, %v599
  %v601 = vpop.f32.mrf.mxu0
  %v602 = vpop.f32.mrf.mxu0
  %v603 = vadd.f32 %v324, %v602
  %v604 = vpop.f32.mrf.mxu0
  %605 = vmatprep.mubr.bf16.mxu0 %v237
  %606 = vmatmul.mubr.bf16.gmra.mxu0 %v236
  %v607 = vpop.f32.mrf.mxu0
  %v608 = vadd.f32 %v324, %v607
  %v609 = vpop.f32.mrf.mxu0
  %v610 = vpop.f32.mrf.mxu0
  %v611 = vadd.f32 %v324, %v610
  %v612 = vpop.f32.mrf.mxu0
  %613 = vdwg.mxu0
  %614 = vmatprep.subr.bf16.mxu0 0
  %615 = vmatpush1.bf16.msra.mxu0 %v508
  %616 = vmatprep.subr.bf16.mxu0 0
  %617 = vmatpush1.bf16.msra.mxu0 %v507
  %618 = vmatprep.subr.bf16.mxu0 0
  %619 = vmatpush1.bf16.msra.mxu0 %v506
  %620 = vmatprep.subr.bf16.mxu0 0
  %621 = vmatpush1.bf16.msra.mxu0 %v505
  %622 = vmatprep.subr.bf16.mxu0 0
  %623 = vmatpush1.bf16.msra.mxu0 %v504
  %624 = vmatprep.subr.bf16.mxu0 0
  %625 = vmatpush1.bf16.msra.mxu0 %v503
  %626 = vmatprep.subr.bf16.mxu0 0
  %627 = vmatpush1.bf16.msra.mxu0 %v502
  %628 = vmatprep.subr.bf16.mxu0 0
  %629 = vmatpush1.bf16.msra.mxu0 %v501
  %630 = vmatprep.subr.bf16.mxu0 0
  %631 = vmatpush2.bf16.msra.mxu0 %v516
  %632 = vmatprep.subr.bf16.mxu0 0
  %633 = vmatpush2.bf16.msra.mxu0 %v515
  %634 = vmatprep.subr.bf16.mxu0 0
  %635 = vmatpush2.bf16.msra.mxu0 %v514
  %636 = vmatprep.subr.bf16.mxu0 0
  %637 = vmatpush2.bf16.msra.mxu0 %v513
  %638 = vmatprep.subr.bf16.mxu0 0
  %639 = vmatpush2.bf16.msra.mxu0 %v512
  %640 = vmatprep.subr.bf16.mxu0 0
  %641 = vmatpush2.bf16.msra.mxu0 %v511
  %642 = vmatprep.subr.bf16.mxu0 0
  %643 = vmatpush2.bf16.msra.mxu0 %v510
  %644 = vmatprep.subr.bf16.mxu0 0
  %645 = vmatpush2.bf16.msra.mxu0 %v509
  %646 = vmatprep.mubr.bf16.mxu0 %v234
  %647 = vmatmul.mubr.bf16.gmra.mxu0 %v233
  %v648 = vpop.f32.mrf.mxu0
  %v649 = vadd.f32 %v600, %v648
  %v650 = vpop.f32.mrf.mxu0
  %v651 = vpop.f32.mrf.mxu0
  %v652 = vadd.f32 %v603, %v651
  %v653 = vpop.f32.mrf.mxu0
  %654 = vmatprep.mubr.bf16.mxu0 %v239
  %655 = vmatmul.mubr.bf16.gmra.mxu0 %v238
  %v656 = vpop.f32.mrf.mxu0
  %v657 = vadd.f32 %v608, %v656
  %v658 = vpop.f32.mrf.mxu0
  %v659 = vpop.f32.mrf.mxu0
  %v660 = vadd.f32 %v611, %v659
  %v661 = vpop.f32.mrf.mxu0
  %662 = vdwg.mxu0
  %663 = vmatprep.subr.bf16.mxu0 0
  %664 = vmatpush1.bf16.msra.mxu0 %v524
  %665 = vmatprep.subr.bf16.mxu0 0
  %666 = vmatpush1.bf16.msra.mxu0 %v523
  %667 = vmatprep.subr.bf16.mxu0 0
  %668 = vmatpush1.bf16.msra.mxu0 %v522
  %669 = vmatprep.subr.bf16.mxu0 0
  %670 = vmatpush1.bf16.msra.mxu0 %v521
  %671 = vmatprep.subr.bf16.mxu0 0
  %672 = vmatpush1.bf16.msra.mxu0 %v520
  %673 = vmatprep.subr.bf16.mxu0 0
  %674 = vmatpush1.bf16.msra.mxu0 %v519
  %675 = vmatprep.subr.bf16.mxu0 0
  %676 = vmatpush1.bf16.msra.mxu0 %v518
  %677 = vmatprep.subr.bf16.mxu0 0
  %678 = vmatpush1.bf16.msra.mxu0 %v517
  %679 = vmatprep.subr.bf16.mxu0 0
  %680 = vmatpush2.bf16.msra.mxu0 0
  %681 = vmatprep.subr.bf16.mxu0 0
  %682 = vmatpush2.bf16.msra.mxu0 0
  %683 = vmatprep.subr.bf16.mxu0 0
  %684 = vmatpush2.bf16.msra.mxu0 0
  %685 = vmatprep.subr.bf16.mxu0 0
  %686 = vmatpush2.bf16.msra.mxu0 0
  %687 = vmatprep.subr.bf16.mxu0 0
  %688 = vmatpush2.bf16.msra.mxu0 0
  %689 = vmatprep.subr.bf16.mxu0 0
  %690 = vmatpush2.bf16.msra.mxu0 0
  %691 = vmatprep.subr.bf16.mxu0 0
  %692 = vmatpush2.bf16.msra.mxu0 0
  %693 = vmatprep.subr.bf16.mxu0 0
  %694 = vmatpush2.bf16.msra.mxu0 0
  %695 = vmatprep.mubr.bf16.mxu0 0
  %696 = vmatmul.mubr.bf16.gmra.mxu0 %v235
  %v697 = vpop.f32.mrf.mxu0
  %v698 = vadd.f32 %v649, %v697
  %v699 = vpop.f32.mrf.mxu0
  %v700 = vpop.f32.mrf.mxu0
  %v701 = vadd.f32 %v652, %v700
  %v702 = vpop.f32.mrf.mxu0
  %703 = vmatprep.mubr.bf16.mxu0 0
  %704 = vmatmul.mubr.bf16.gmra.mxu0 %v240
  %v705 = vpop.f32.mrf.mxu0
  %v706 = vadd.f32 %v657, %v705
  %v707 = vpop.f32.mrf.mxu0
  %v708 = vpop.f32.mrf.mxu0
  %v709 = vadd.f32 %v660, %v708
  %v710 = vpop.f32.mrf.mxu0
  %711 = vdwg.mxu0
  %v712 = vmul.f32 %v698, %v112
  %v713 = vmul.f32 %v701, %v113
  %v714 = vmul.f32 %v706, %v114
  %v715 = vmul.f32 %v709, %v115
  %716 = vst [vmem:[%s13] sm:$0xff] %v207
  %717 = vst [vmem:[%s13 + $0x8] sm:$0xff] %v208
  %718 = vst [vmem:[%s13 + $0x10] sm:$0xff] %v209
  %719 = vst [vmem:[%s13 + $0x18] sm:$0xff] %v210
  %720 = vst [vmem:[%s14] sm:$0xff] %v712
  %721 = vst [vmem:[%s14 + $0x8] sm:$0xff] %v713
  %722 = vst [vmem:[%s14 + $0x10] sm:$0xff] %v714
  %723 = vst [vmem:[%s14 + $0x18] sm:$0xff] %v715
  %v724 = vpack.c.bf16 %v208, %v207
  %v725 = vpack.c.bf16 %v210, %v209
  %v726 = vld [vmem:[%s4] sm:$0xf]
  %v727 = vld [vmem:[%s4 + $0x4] sm:$0xf]
  %v728 = vld [vmem:[%s4 + $0x8] sm:$0xf]
  %v729 = vld [vmem:[%s4 + $0xc] sm:$0xf]
  %v730 = vld [vmem:[%s4 + $0x10] sm:$0xf]
  %v731 = vld [vmem:[%s4 + $0x14] sm:$0xf]
  %v732 = vld [vmem:[%s4 + $0x18] sm:$0xf]
  %v733 = vld [vmem:[%s4 + $0x1c] sm:$0xf]
  %v734 = vld [vmem:[%s4 + $0x20] sm:$0xf]
  %v735 = vld [vmem:[%s4 + $0x24] sm:$0xf]
  %v736 = vld [vmem:[%s4 + $0x28] sm:$0xf]
  %v737 = vld [vmem:[%s4 + $0x2c] sm:$0xf]
  %v738 = vld [vmem:[%s4 + $0x30] sm:$0xf]
  %v739 = vld [vmem:[%s4 + $0x34] sm:$0xf]
  %v740 = vld [vmem:[%s4 + $0x38] sm:$0xf]
  %v741 = vld [vmem:[%s4 + $0x3c] sm:$0xf]
  %v742 = vlaneseq
  %v743 = vshrl.u32 %v742, 7
  %v744 = vsub.s32 2, %v743
  %v745 = vrot.slane %v116, %v744
  %v762 = vunpack.c.l.b16 %v726
  %v763 = vunpack.c.l.b16 %v727
  %v764 = vunpack.c.l.b16 %v728
  %v765 = vunpack.c.l.b16 %v729
  %v766 = vunpack.c.l.b16 %v730
  %v767 = vunpack.c.l.b16 %v731
  %v768 = vunpack.c.l.b16 %v732
  %v769 = vunpack.c.l.b16 %v733
  %v770 = vunpack.c.l.b16 %v734
  %v771 = vunpack.c.l.b16 %v735
  %v772 = vunpack.c.l.b16 %v736
  %v773 = vunpack.c.l.b16 %v737
  %v774 = vunpack.c.l.b16 %v738
  %v775 = vunpack.c.l.b16 %v739
  %v776 = vunpack.c.l.b16 %v740
  %v777 = vunpack.c.l.b16 %v741
  %v778 = vpack.c.b16 %v763, %v762
  %v779 = vpack.c.b16 %v765, %v764
  %v780 = vpack.c.b16 %v767, %v766
  %v781 = vpack.c.b16 %v769, %v768
  %v782 = vpack.c.b16 %v771, %v770
  %v783 = vpack.c.b16 %v773, %v772
  %v784 = vpack.c.b16 %v775, %v774
  %v785 = vpack.c.b16 %v777, %v776
  %794 = vmatprep.subr.bf16.mxu0 0
  %795 = vmatpush1.bf16.msra.mxu0 %v785
  %796 = vmatprep.subr.bf16.mxu0 0
  %797 = vmatpush1.bf16.msra.mxu0 %v784
  %798 = vmatprep.subr.bf16.mxu0 0
  %799 = vmatpush1.bf16.msra.mxu0 %v783
  %800 = vmatprep.subr.bf16.mxu0 0
  %801 = vmatpush1.bf16.msra.mxu0 %v782
  %802 = vmatprep.subr.bf16.mxu0 0
  %803 = vmatpush1.bf16.msra.mxu0 %v781
  %804 = vmatprep.subr.bf16.mxu0 0
  %805 = vmatpush1.bf16.msra.mxu0 %v780
  %806 = vmatprep.subr.bf16.mxu0 0
  %807 = vmatpush1.bf16.msra.mxu0 %v779
  %808 = vmatprep.subr.bf16.mxu0 0
  %809 = vmatpush1.bf16.msra.mxu0 %v778
  %810 = vmatprep.subr.bf16.mxu0 0
  %811 = vmatpush2.bf16.msra.mxu0 0
  %812 = vmatprep.subr.bf16.mxu0 0
  %813 = vmatpush2.bf16.msra.mxu0 0
  %814 = vmatprep.subr.bf16.mxu0 0
  %815 = vmatpush2.bf16.msra.mxu0 0
  %816 = vmatprep.subr.bf16.mxu0 0
  %817 = vmatpush2.bf16.msra.mxu0 0
  %818 = vmatprep.subr.bf16.mxu0 0
  %819 = vmatpush2.bf16.msra.mxu0 0
  %820 = vmatprep.subr.bf16.mxu0 0
  %821 = vmatpush2.bf16.msra.mxu0 0
  %822 = vmatprep.subr.bf16.mxu0 0
  %823 = vmatpush2.bf16.msra.mxu0 0
  %824 = vmatprep.subr.bf16.mxu0 0
  %825 = vmatpush2.bf16.msra.mxu0 0
  %826 = vmatprep.mubr.bf16.mxu0 0
  %827 = vmatmul.mubr.bf16.gmra.mxu0 %v724
  %v828 = vpop.f32.mrf.mxu0
  %v829 = vadd.f32 %v745, %v828
  %v830 = vpop.f32.mrf.mxu0
  %v831 = vpop.f32.mrf.mxu0
  %v832 = vadd.f32 %v745, %v831
  %v833 = vpop.f32.mrf.mxu0
  %834 = vmatprep.mubr.bf16.mxu0 0
  %835 = vmatmul.mubr.bf16.gmra.mxu0 %v725
  %v836 = vpop.f32.mrf.mxu0
  %v837 = vadd.f32 %v745, %v836
  %v838 = vpop.f32.mrf.mxu0
  %v839 = vpop.f32.mrf.mxu0
  %v840 = vadd.f32 %v745, %v839
  %v841 = vpop.f32.mrf.mxu0
  %842 = vdwg.mxu0
  %v843 = vpack.c.bf16 %v713, %v712
  %v844 = vpack.c.bf16 %v715, %v714
  %v845 = vld [vmem:[%s5] sm:$0xf]
  %v846 = vld [vmem:[%s5 + $0x4] sm:$0xf]
  %v847 = vld [vmem:[%s5 + $0x8] sm:$0xf]
  %v848 = vld [vmem:[%s5 + $0xc] sm:$0xf]
  %v849 = vld [vmem:[%s5 + $0x10] sm:$0xf]
  %v850 = vld [vmem:[%s5 + $0x14] sm:$0xf]
  %v851 = vld [vmem:[%s5 + $0x18] sm:$0xf]
  %v852 = vld [vmem:[%s5 + $0x1c] sm:$0xf]
  %v853 = vld [vmem:[%s5 + $0x20] sm:$0xf]
  %v854 = vld [vmem:[%s5 + $0x24] sm:$0xf]
  %v855 = vld [vmem:[%s5 + $0x28] sm:$0xf]
  %v856 = vld [vmem:[%s5 + $0x2c] sm:$0xf]
  %v857 = vld [vmem:[%s5 + $0x30] sm:$0xf]
  %v858 = vld [vmem:[%s5 + $0x34] sm:$0xf]
  %v859 = vld [vmem:[%s5 + $0x38] sm:$0xf]
  %v860 = vld [vmem:[%s5 + $0x3c] sm:$0xf]
  %v861 = vlaneseq
  %v862 = vshrl.u32 %v861, 7
  %v863 = vsub.s32 3, %v862
  %v864 = vrot.slane %v116, %v863
  %v881 = vunpack.c.l.b16 %v845
  %v882 = vunpack.c.l.b16 %v846
  %v883 = vunpack.c.l.b16 %v847
  %v884 = vunpack.c.l.b16 %v848
  %v885 = vunpack.c.l.b16 %v849
  %v886 = vunpack.c.l.b16 %v850
  %v887 = vunpack.c.l.b16 %v851
  %v888 = vunpack.c.l.b16 %v852
  %v889 = vunpack.c.l.b16 %v853
  %v890 = vunpack.c.l.b16 %v854
  %v891 = vunpack.c.l.b16 %v855
  %v892 = vunpack.c.l.b16 %v856
  %v893 = vunpack.c.l.b16 %v857
  %v894 = vunpack.c.l.b16 %v858
  %v895 = vunpack.c.l.b16 %v859
  %v896 = vunpack.c.l.b16 %v860
  %v897 = vpack.c.b16 %v882, %v881
  %v898 = vpack.c.b16 %v884, %v883
  %v899 = vpack.c.b16 %v886, %v885
  %v900 = vpack.c.b16 %v888, %v887
  %v901 = vpack.c.b16 %v890, %v889
  %v902 = vpack.c.b16 %v892, %v891
  %v903 = vpack.c.b16 %v894, %v893
  %v904 = vpack.c.b16 %v896, %v895
  %913 = vmatprep.subr.bf16.mxu0 0
  %914 = vmatpush1.bf16.msra.mxu0 %v904
  %915 = vmatprep.subr.bf16.mxu0 0
  %916 = vmatpush1.bf16.msra.mxu0 %v903
  %917 = vmatprep.subr.bf16.mxu0 0
  %918 = vmatpush1.bf16.msra.mxu0 %v902
  %919 = vmatprep.subr.bf16.mxu0 0
  %920 = vmatpush1.bf16.msra.mxu0 %v901
  %921 = vmatprep.subr.bf16.mxu0 0
  %922 = vmatpush1.bf16.msra.mxu0 %v900
  %923 = vmatprep.subr.bf16.mxu0 0
  %924 = vmatpush1.bf16.msra.mxu0 %v899
  %925 = vmatprep.subr.bf16.mxu0 0
  %926 = vmatpush1.bf16.msra.mxu0 %v898
  %927 = vmatprep.subr.bf16.mxu0 0
  %928 = vmatpush1.bf16.msra.mxu0 %v897
  %929 = vmatprep.subr.bf16.mxu0 0
  %930 = vmatpush2.bf16.msra.mxu0 0
  %931 = vmatprep.subr.bf16.mxu0 0
  %932 = vmatpush2.bf16.msra.mxu0 0
  %933 = vmatprep.subr.bf16.mxu0 0
  %934 = vmatpush2.bf16.msra.mxu0 0
  %935 = vmatprep.subr.bf16.mxu0 0
  %936 = vmatpush2.bf16.msra.mxu0 0
  %937 = vmatprep.subr.bf16.mxu0 0
  %938 = vmatpush2.bf16.msra.mxu0 0
  %939 = vmatprep.subr.bf16.mxu0 0
  %940 = vmatpush2.bf16.msra.mxu0 0
  %941 = vmatprep.subr.bf16.mxu0 0
  %942 = vmatpush2.bf16.msra.mxu0 0
  %943 = vmatprep.subr.bf16.mxu0 0
  %944 = vmatpush2.bf16.msra.mxu0 0
  %945 = vmatprep.mubr.bf16.mxu0 0
  %946 = vmatmul.mubr.bf16.gmra.mxu0 %v843
  %v947 = vpop.f32.mrf.mxu0
  %v948 = vadd.f32 %v864, %v947
  %v949 = vpop.f32.mrf.mxu0
  %v950 = vpop.f32.mrf.mxu0
  %v951 = vadd.f32 %v864, %v950
  %v952 = vpop.f32.mrf.mxu0
  %953 = vmatprep.mubr.bf16.mxu0 0
  %954 = vmatmul.mubr.bf16.gmra.mxu0 %v844
  %v955 = vpop.f32.mrf.mxu0
  %v956 = vadd.f32 %v864, %v955
  %v957 = vpop.f32.mrf.mxu0
  %v958 = vpop.f32.mrf.mxu0
  %v959 = vadd.f32 %v864, %v958
  %v960 = vpop.f32.mrf.mxu0
  %961 = vdwg.mxu0
  %v962 = vpack.c.bf16 %v951, %v948
  %v963 = vpack.c.bf16 %v959, %v956
  %v964 = vld [vmem:[%s6] sm:$0xff]
  %v965 = vld [vmem:[%s6 + $0x8] sm:$0xff]
  %v966 = vld [vmem:[%s6 + $0x10] sm:$0xff]
  %v967 = vld [vmem:[%s6 + $0x18] sm:$0xff]
  %v968 = vld [vmem:[%s6 + $0x20] sm:$0xff]
  %v969 = vld [vmem:[%s6 + $0x28] sm:$0xff]
  %v970 = vld [vmem:[%s6 + $0x30] sm:$0xff]
  %v971 = vld [vmem:[%s6 + $0x38] sm:$0xff]
  %v972 = vld [vmem:[%s6 + $0x40] sm:$0xff]
  %v973 = vld [vmem:[%s6 + $0x48] sm:$0xff]
  %v974 = vld [vmem:[%s6 + $0x50] sm:$0xff]
  %v975 = vld [vmem:[%s6 + $0x58] sm:$0xff]
  %v976 = vld [vmem:[%s6 + $0x60] sm:$0xff]
  %v977 = vld [vmem:[%s6 + $0x68] sm:$0xff]
  %v978 = vld [vmem:[%s6 + $0x70] sm:$0xff]
  %v979 = vld [vmem:[%s6 + $0x78] sm:$0xff]
  %v996 = vunpack.c.l.b16 %v964
  %v997 = vunpack.c.h.b16 %v964
  %v998 = vunpack.c.l.b16 %v965
  %v999 = vunpack.c.h.b16 %v965
  %v1000 = vunpack.c.l.b16 %v966
  %v1001 = vunpack.c.h.b16 %v966
  %v1002 = vunpack.c.l.b16 %v967
  %v1003 = vunpack.c.h.b16 %v967
  %v1004 = vunpack.c.l.b16 %v968
  %v1005 = vunpack.c.h.b16 %v968
  %v1006 = vunpack.c.l.b16 %v969
  %v1007 = vunpack.c.h.b16 %v969
  %v1008 = vunpack.c.l.b16 %v970
  %v1009 = vunpack.c.h.b16 %v970
  %v1010 = vunpack.c.l.b16 %v971
  %v1011 = vunpack.c.h.b16 %v971
  %v1012 = vunpack.c.l.b16 %v972
  %v1013 = vunpack.c.h.b16 %v972
  %v1014 = vunpack.c.l.b16 %v973
  %v1015 = vunpack.c.h.b16 %v973
  %v1016 = vunpack.c.l.b16 %v974
  %v1017 = vunpack.c.h.b16 %v974
  %v1018 = vunpack.c.l.b16 %v975
  %v1019 = vunpack.c.h.b16 %v975
  %v1020 = vunpack.c.l.b16 %v976
  %v1021 = vunpack.c.h.b16 %v976
  %v1022 = vunpack.c.l.b16 %v977
  %v1023 = vunpack.c.h.b16 %v977
  %v1024 = vunpack.c.l.b16 %v978
  %v1025 = vunpack.c.h.b16 %v978
  %v1026 = vunpack.c.l.b16 %v979
  %v1027 = vunpack.c.h.b16 %v979
  %v1028 = vpack.c.b16 %v998, %v996
  %v1029 = vpack.c.b16 %v999, %v997
  %v1030 = vpack.c.b16 %v1002, %v1000
  %v1031 = vpack.c.b16 %v1003, %v1001
  %v1032 = vpack.c.b16 %v1006, %v1004
  %v1033 = vpack.c.b16 %v1007, %v1005
  %v1034 = vpack.c.b16 %v1010, %v1008
  %v1035 = vpack.c.b16 %v1011, %v1009
  %v1036 = vpack.c.b16 %v1014, %v1012
  %v1037 = vpack.c.b16 %v1015, %v1013
  %v1038 = vpack.c.b16 %v1018, %v1016
  %v1039 = vpack.c.b16 %v1019, %v1017
  %v1040 = vpack.c.b16 %v1022, %v1020
  %v1041 = vpack.c.b16 %v1023, %v1021
  %v1042 = vpack.c.b16 %v1026, %v1024
  %v1043 = vpack.c.b16 %v1027, %v1025
  %1060 = vmatprep.subr.bf16.mxu0 %v1043
  %1061 = vmatpush1.bf16.msra.mxu0 %v1042
  %1062 = vmatprep.subr.bf16.mxu0 %v1041
  %1063 = vmatpush1.bf16.msra.mxu0 %v1040
  %1064 = vmatprep.subr.bf16.mxu0 %v1039
  %1065 = vmatpush1.bf16.msra.mxu0 %v1038
  %1066 = vmatprep.subr.bf16.mxu0 %v1037
  %1067 = vmatpush1.bf16.msra.mxu0 %v1036
  %1068 = vmatprep.subr.bf16.mxu0 %v1035
  %1069 = vmatpush1.bf16.msra.mxu0 %v1034
  %1070 = vmatprep.subr.bf16.mxu0 %v1033
  %1071 = vmatpush1.bf16.msra.mxu0 %v1032
  %1072 = vmatprep.subr.bf16.mxu0 %v1031
  %1073 = vmatpush1.bf16.msra.mxu0 %v1030
  %1074 = vmatprep.subr.bf16.mxu0 %v1029
  %1075 = vmatpush1.bf16.msra.mxu0 %v1028
  %1076 = vmatprep.subr.bf16.mxu0 0
  %1077 = vmatpush2.bf16.msra.mxu0 0
  %1078 = vmatprep.subr.bf16.mxu0 0
  %1079 = vmatpush2.bf16.msra.mxu0 0
  %1080 = vmatprep.subr.bf16.mxu0 0
  %1081 = vmatpush2.bf16.msra.mxu0 0
  %1082 = vmatprep.subr.bf16.mxu0 0
  %1083 = vmatpush2.bf16.msra.mxu0 0
  %1084 = vmatprep.subr.bf16.mxu0 0
  %1085 = vmatpush2.bf16.msra.mxu0 0
  %1086 = vmatprep.subr.bf16.mxu0 0
  %1087 = vmatpush2.bf16.msra.mxu0 0
  %1088 = vmatprep.subr.bf16.mxu0 0
  %1089 = vmatpush2.bf16.msra.mxu0 0
  %1090 = vmatprep.subr.bf16.mxu0 0
  %1091 = vmatpush2.bf16.msra.mxu0 0
  %1092 = vmatprep.mubr.bf16.mxu0 0
  %1093 = vmatmul.mubr.bf16.gmra.mxu0 %v962
  %v1094 = vpop.f32.mrf.mxu0
  %v1095 = vadd.f32 0.0, %v1094
  %v1096 = vpop.f32.mrf.mxu0
  %v1097 = vadd.f32 0.0, %v1096
  %v1098 = vpop.f32.mrf.mxu0
  %v1099 = vadd.f32 0.0, %v1098
  %v1100 = vpop.f32.mrf.mxu0
  %v1101 = vadd.f32 0.0, %v1100
  %1102 = vmatprep.mubr.bf16.mxu0 0
  %1103 = vmatmul.mubr.bf16.gmra.mxu0 %v963
  %v1104 = vpop.f32.mrf.mxu0
  %v1105 = vadd.f32 0.0, %v1104
  %v1106 = vpop.f32.mrf.mxu0
  %v1107 = vadd.f32 0.0, %v1106
  %v1108 = vpop.f32.mrf.mxu0
  %v1109 = vadd.f32 0.0, %v1108
  %v1110 = vpop.f32.mrf.mxu0
  %v1111 = vadd.f32 0.0, %v1110
  %1112 = vdwg.mxu0
  %v1113 = vld [vmem:[%s11] sm:$0xff]
  %v1114 = vld [vmem:[%s11 + $0x8] sm:$0xff]
  %v1115 = vlaneseq
  %v1116 = vshrl.u32 %v1115, 7
  %v1117 = vsub.s32 4, %v1116
  %v1118 = vrot.slane %v1113, %v1117
  %v1119 = vadd.f32 %v1095, %v1118
  %v1120 = vadd.f32 %v1099, %v1118
  %v1121 = vadd.f32 %v1105, %v1118
  %v1122 = vadd.f32 %v1109, %v1118
  %v1123 = vpack.c.bf16 %v832, %v829
  %v1124 = vpack.c.bf16 %v840, %v837
  %v1125 = vld [vmem:[%s7] sm:$0xff]
  %v1126 = vld [vmem:[%s7 + $0x8] sm:$0xff]
  %v1127 = vld [vmem:[%s7 + $0x10] sm:$0xff]
  %v1128 = vld [vmem:[%s7 + $0x18] sm:$0xff]
  %v1129 = vld [vmem:[%s7 + $0x20] sm:$0xff]
  %v1130 = vld [vmem:[%s7 + $0x28] sm:$0xff]
  %v1131 = vld [vmem:[%s7 + $0x30] sm:$0xff]
  %v1132 = vld [vmem:[%s7 + $0x38] sm:$0xff]
  %v1133 = vld [vmem:[%s7 + $0x40] sm:$0xff]
  %v1134 = vld [vmem:[%s7 + $0x48] sm:$0xff]
  %v1135 = vld [vmem:[%s7 + $0x50] sm:$0xff]
  %v1136 = vld [vmem:[%s7 + $0x58] sm:$0xff]
  %v1137 = vld [vmem:[%s7 + $0x60] sm:$0xff]
  %v1138 = vld [vmem:[%s7 + $0x68] sm:$0xff]
  %v1139 = vld [vmem:[%s7 + $0x70] sm:$0xff]
  %v1140 = vld [vmem:[%s7 + $0x78] sm:$0xff]
  %v1141 = vlaneseq
  %v1142 = vshrl.u32 %v1141, 7
  %v1143 = vsub.s32 0, %v1142
  %v1144 = vrot.slane %v1113, %v1143
  %v1145 = vlaneseq
  %v1146 = vshrl.u32 %v1145, 7
  %v1147 = vsub.s32 0, %v1146
  %v1148 = vrot.slane %v1114, %v1147
  %v1165 = vunpack.c.l.b16 %v1125
  %v1166 = vunpack.c.h.b16 %v1125
  %v1167 = vunpack.c.l.b16 %v1126
  %v1168 = vunpack.c.h.b16 %v1126
  %v1169 = vunpack.c.l.b16 %v1127
  %v1170 = vunpack.c.h.b16 %v1127
  %v1171 = vunpack.c.l.b16 %v1128
  %v1172 = vunpack.c.h.b16 %v1128
  %v1173 = vunpack.c.l.b16 %v1129
  %v1174 = vunpack.c.h.b16 %v1129
  %v1175 = vunpack.c.l.b16 %v1130
  %v1176 = vunpack.c.h.b16 %v1130
  %v1177 = vunpack.c.l.b16 %v1131
  %v1178 = vunpack.c.h.b16 %v1131
  %v1179 = vunpack.c.l.b16 %v1132
  %v1180 = vunpack.c.h.b16 %v1132
  %v1181 = vunpack.c.l.b16 %v1133
  %v1182 = vunpack.c.h.b16 %v1133
  %v1183 = vunpack.c.l.b16 %v1134
  %v1184 = vunpack.c.h.b16 %v1134
  %v1185 = vunpack.c.l.b16 %v1135
  %v1186 = vunpack.c.h.b16 %v1135
  %v1187 = vunpack.c.l.b16 %v1136
  %v1188 = vunpack.c.h.b16 %v1136
  %v1189 = vunpack.c.l.b16 %v1137
  %v1190 = vunpack.c.h.b16 %v1137
  %v1191 = vunpack.c.l.b16 %v1138
  %v1192 = vunpack.c.h.b16 %v1138
  %v1193 = vunpack.c.l.b16 %v1139
  %v1194 = vunpack.c.h.b16 %v1139
  %v1195 = vunpack.c.l.b16 %v1140
  %v1196 = vunpack.c.h.b16 %v1140
  %v1197 = vpack.c.b16 %v1167, %v1165
  %v1198 = vpack.c.b16 %v1168, %v1166
  %v1199 = vpack.c.b16 %v1171, %v1169
  %v1200 = vpack.c.b16 %v1172, %v1170
  %v1201 = vpack.c.b16 %v1175, %v1173
  %v1202 = vpack.c.b16 %v1176, %v1174
  %v1203 = vpack.c.b16 %v1179, %v1177
  %v1204 = vpack.c.b16 %v1180, %v1178
  %v1205 = vpack.c.b16 %v1183, %v1181
  %v1206 = vpack.c.b16 %v1184, %v1182
  %v1207 = vpack.c.b16 %v1187, %v1185
  %v1208 = vpack.c.b16 %v1188, %v1186
  %v1209 = vpack.c.b16 %v1191, %v1189
  %v1210 = vpack.c.b16 %v1192, %v1190
  %v1211 = vpack.c.b16 %v1195, %v1193
  %v1212 = vpack.c.b16 %v1196, %v1194
  %1229 = vmatprep.subr.bf16.mxu0 %v1212
  %1230 = vmatpush1.bf16.msra.mxu0 %v1211
  %1231 = vmatprep.subr.bf16.mxu0 %v1210
  %1232 = vmatpush1.bf16.msra.mxu0 %v1209
  %1233 = vmatprep.subr.bf16.mxu0 %v1208
  %1234 = vmatpush1.bf16.msra.mxu0 %v1207
  %1235 = vmatprep.subr.bf16.mxu0 %v1206
  %1236 = vmatpush1.bf16.msra.mxu0 %v1205
  %1237 = vmatprep.subr.bf16.mxu0 %v1204
  %1238 = vmatpush1.bf16.msra.mxu0 %v1203
  %1239 = vmatprep.subr.bf16.mxu0 %v1202
  %1240 = vmatpush1.bf16.msra.mxu0 %v1201
  %1241 = vmatprep.subr.bf16.mxu0 %v1200
  %1242 = vmatpush1.bf16.msra.mxu0 %v1199
  %1243 = vmatprep.subr.bf16.mxu0 %v1198
  %1244 = vmatpush1.bf16.msra.mxu0 %v1197
  %1245 = vmatprep.subr.bf16.mxu0 0
  %1246 = vmatpush2.bf16.msra.mxu0 0
  %1247 = vmatprep.subr.bf16.mxu0 0
  %1248 = vmatpush2.bf16.msra.mxu0 0
  %1249 = vmatprep.subr.bf16.mxu0 0
  %1250 = vmatpush2.bf16.msra.mxu0 0
  %1251 = vmatprep.subr.bf16.mxu0 0
  %1252 = vmatpush2.bf16.msra.mxu0 0
  %1253 = vmatprep.subr.bf16.mxu0 0
  %1254 = vmatpush2.bf16.msra.mxu0 0
  %1255 = vmatprep.subr.bf16.mxu0 0
  %1256 = vmatpush2.bf16.msra.mxu0 0
  %1257 = vmatprep.subr.bf16.mxu0 0
  %1258 = vmatpush2.bf16.msra.mxu0 0
  %1259 = vmatprep.subr.bf16.mxu0 0
  %1260 = vmatpush2.bf16.msra.mxu0 0
  %1261 = vmatprep.mubr.bf16.mxu0 0
  %1262 = vmatmul.mubr.bf16.gmra.mxu0 %v1123
  %v1263 = vpop.f32.mrf.mxu0
  %v1264 = vadd.f32 %v1144, %v1263
  %v1265 = vpop.f32.mrf.mxu0
  %v1266 = vadd.f32 %v1148, %v1265
  %v1267 = vpop.f32.mrf.mxu0
  %v1268 = vadd.f32 %v1144, %v1267
  %v1269 = vpop.f32.mrf.mxu0
  %v1270 = vadd.f32 %v1148, %v1269
  %1271 = vmatprep.mubr.bf16.mxu0 0
  %1272 = vmatmul.mubr.bf16.gmra.mxu0 %v1124
  %v1273 = vpop.f32.mrf.mxu0
  %v1274 = vadd.f32 %v1144, %v1273
  %v1275 = vpop.f32.mrf.mxu0
  %v1276 = vadd.f32 %v1148, %v1275
  %v1277 = vpop.f32.mrf.mxu0
  %v1278 = vadd.f32 %v1144, %v1277
  %v1279 = vpop.f32.mrf.mxu0
  %v1280 = vadd.f32 %v1148, %v1279
  %1281 = vdwg.mxu0
  %1286 = vrot.lane.b32.xlu0 %v1119, 96
  %v1287 = vpop.permute.xlu0 %1286
  %1288 = vrot.lane.b32.xlu0 %v1120, 96
  %v1289 = vpop.permute.xlu0 %1288
  %1290 = vrot.lane.b32.xlu0 %v1121, 96
  %v1291 = vpop.permute.xlu0 %1290
  %1292 = vrot.lane.b32.xlu0 %v1122, 96
  %v1293 = vpop.permute.xlu0 %1292
  %1298 = vrot.lane.b32.xlu0 %v1119, 64
  %v1299 = vpop.permute.xlu0 %1298
  %1300 = vrot.lane.b32.xlu0 %v1120, 64
  %v1301 = vpop.permute.xlu0 %1300
  %1302 = vrot.lane.b32.xlu0 %v1121, 64
  %v1303 = vpop.permute.xlu0 %1302
  %1304 = vrot.lane.b32.xlu0 %v1122, 64
  %v1305 = vpop.permute.xlu0 %1304
  %1310 = vrot.lane.b32.xlu0 %v1119, 32
  %v1311 = vpop.permute.xlu0 %1310
  %1312 = vrot.lane.b32.xlu0 %v1120, 32
  %v1313 = vpop.permute.xlu0 %1312
  %1314 = vrot.lane.b32.xlu0 %v1121, 32
  %v1315 = vpop.permute.xlu0 %1314
  %1316 = vrot.lane.b32.xlu0 %v1122, 32
  %v1317 = vpop.permute.xlu0 %1316
  %v1322 = vcombine.low %v1119, %v1299
  %v1323 = vcombine.high %v1119, %v1299
  %v1325 = vunpack.c.l.s4 1983009808
  %v1326 = vunpack.c.0.s8 %v1325
  %v1327 = vlaneseq
  %v1328 = vshrl.u32 %v1327, 7
  %v1329 = vsub.s32 %v1326, %v1328
  %v1330 = vrot.slane %v1322, %v1329
  %v1332 = vunpack.c.l.s4 1983009808
  %v1333 = vunpack.c.0.s8 %v1332
  %v1334 = vlaneseq
  %v1335 = vshrl.u32 %v1334, 7
  %v1336 = vsub.s32 %v1333, %v1335
  %v1337 = vrot.slane %v1323, %v1336
  %v1338 = vcombine.low %v1287, %v1311
  %v1339 = vcombine.high %v1287, %v1311
  %v1341 = vunpack.c.l.s4 1983009808
  %v1342 = vunpack.c.0.s8 %v1341
  %v1343 = vlaneseq
  %v1344 = vshrl.u32 %v1343, 7
  %v1345 = vsub.s32 %v1342, %v1344
  %v1346 = vrot.slane %v1338, %v1345
  %v1348 = vunpack.c.l.s4 1983009808
  %v1349 = vunpack.c.0.s8 %v1348
  %v1350 = vlaneseq
  %v1351 = vshrl.u32 %v1350, 7
  %v1352 = vsub.s32 %v1349, %v1351
  %v1353 = vrot.slane %v1339, %v1352
  %v1354 = vcombine.low %v1330, %v1346
  %v1355 = vcombine.high %v1330, %v1346
  %v1357 = vunpack.c.l.s4 1934713408
  %v1358 = vunpack.c.0.s8 %v1357
  %v1359 = vlaneseq
  %v1360 = vshrl.u32 %v1359, 7
  %v1361 = vsub.s32 %v1358, %v1360
  %v1362 = vrot.slane %v1354, %v1361
  %v1364 = vunpack.c.l.s4 1934713408
  %v1365 = vunpack.c.0.s8 %v1364
  %v1366 = vlaneseq
  %v1367 = vshrl.u32 %v1366, 7
  %v1368 = vsub.s32 %v1365, %v1367
  %v1369 = vrot.slane %v1355, %v1368
  %v1370 = vcombine.low %v1337, %v1353
  %v1371 = vcombine.high %v1337, %v1353
  %v1373 = vunpack.c.l.s4 1934713408
  %v1374 = vunpack.c.0.s8 %v1373
  %v1375 = vlaneseq
  %v1376 = vshrl.u32 %v1375, 7
  %v1377 = vsub.s32 %v1374, %v1376
  %v1378 = vrot.slane %v1370, %v1377
  %v1380 = vunpack.c.l.s4 1934713408
  %v1381 = vunpack.c.0.s8 %v1380
  %v1382 = vlaneseq
  %v1383 = vshrl.u32 %v1382, 7
  %v1384 = vsub.s32 %v1381, %v1383
  %v1385 = vrot.slane %v1371, %v1384
  %v1386 = vcombine.high %v1362, 0.0
  %v1387 = vcombine.high %v1369, 0.0
  %v1388 = vcombine.high %v1378, 0.0
  %v1389 = vcombine.high %v1385, 0.0
  %v1390 = vcombine.low %v1120, %v1301
  %v1391 = vcombine.high %v1120, %v1301
  %v1393 = vunpack.c.l.s4 1983009808
  %v1394 = vunpack.c.0.s8 %v1393
  %v1395 = vlaneseq
  %v1396 = vshrl.u32 %v1395, 7
  %v1397 = vsub.s32 %v1394, %v1396
  %v1398 = vrot.slane %v1390, %v1397
  %v1400 = vunpack.c.l.s4 1983009808
  %v1401 = vunpack.c.0.s8 %v1400
  %v1402 = vlaneseq
  %v1403 = vshrl.u32 %v1402, 7
  %v1404 = vsub.s32 %v1401, %v1403
  %v1405 = vrot.slane %v1391, %v1404
  %v1406 = vcombine.low %v1289, %v1313
  %v1407 = vcombine.high %v1289, %v1313
  %v1409 = vunpack.c.l.s4 1983009808
  %v1410 = vunpack.c.0.s8 %v1409
  %v1411 = vlaneseq
  %v1412 = vshrl.u32 %v1411, 7
  %v1413 = vsub.s32 %v1410, %v1412
  %v1414 = vrot.slane %v1406, %v1413
  %v1416 = vunpack.c.l.s4 1983009808
  %v1417 = vunpack.c.0.s8 %v1416
  %v1418 = vlaneseq
  %v1419 = vshrl.u32 %v1418, 7
  %v1420 = vsub.s32 %v1417, %v1419
  %v1421 = vrot.slane %v1407, %v1420
  %v1422 = vcombine.low %v1398, %v1414
  %v1423 = vcombine.high %v1398, %v1414
  %v1425 = vunpack.c.l.s4 1934713408
  %v1426 = vunpack.c.0.s8 %v1425
  %v1427 = vlaneseq
  %v1428 = vshrl.u32 %v1427, 7
  %v1429 = vsub.s32 %v1426, %v1428
  %v1430 = vrot.slane %v1422, %v1429
  %v1432 = vunpack.c.l.s4 1934713408
  %v1433 = vunpack.c.0.s8 %v1432
  %v1434 = vlaneseq
  %v1435 = vshrl.u32 %v1434, 7
  %v1436 = vsub.s32 %v1433, %v1435
  %v1437 = vrot.slane %v1423, %v1436
  %v1438 = vcombine.low %v1405, %v1421
  %v1439 = vcombine.high %v1405, %v1421
  %v1441 = vunpack.c.l.s4 1934713408
  %v1442 = vunpack.c.0.s8 %v1441
  %v1443 = vlaneseq
  %v1444 = vshrl.u32 %v1443, 7
  %v1445 = vsub.s32 %v1442, %v1444
  %v1446 = vrot.slane %v1438, %v1445
  %v1448 = vunpack.c.l.s4 1934713408
  %v1449 = vunpack.c.0.s8 %v1448
  %v1450 = vlaneseq
  %v1451 = vshrl.u32 %v1450, 7
  %v1452 = vsub.s32 %v1449, %v1451
  %v1453 = vrot.slane %v1439, %v1452
  %v1454 = vcombine.high %v1430, 0.0
  %v1455 = vcombine.high %v1437, 0.0
  %v1456 = vcombine.high %v1446, 0.0
  %v1457 = vcombine.high %v1453, 0.0
  %v1458 = vcombine.low %v1121, %v1303
  %v1459 = vcombine.high %v1121, %v1303
  %v1461 = vunpack.c.l.s4 1983009808
  %v1462 = vunpack.c.0.s8 %v1461
  %v1463 = vlaneseq
  %v1464 = vshrl.u32 %v1463, 7
  %v1465 = vsub.s32 %v1462, %v1464
  %v1466 = vrot.slane %v1458, %v1465
  %v1468 = vunpack.c.l.s4 1983009808
  %v1469 = vunpack.c.0.s8 %v1468
  %v1470 = vlaneseq
  %v1471 = vshrl.u32 %v1470, 7
  %v1472 = vsub.s32 %v1469, %v1471
  %v1473 = vrot.slane %v1459, %v1472
  %v1474 = vcombine.low %v1291, %v1315
  %v1475 = vcombine.high %v1291, %v1315
  %v1477 = vunpack.c.l.s4 1983009808
  %v1478 = vunpack.c.0.s8 %v1477
  %v1479 = vlaneseq
  %v1480 = vshrl.u32 %v1479, 7
  %v1481 = vsub.s32 %v1478, %v1480
  %v1482 = vrot.slane %v1474, %v1481
  %v1484 = vunpack.c.l.s4 1983009808
  %v1485 = vunpack.c.0.s8 %v1484
  %v1486 = vlaneseq
  %v1487 = vshrl.u32 %v1486, 7
  %v1488 = vsub.s32 %v1485, %v1487
  %v1489 = vrot.slane %v1475, %v1488
  %v1490 = vcombine.low %v1466, %v1482
  %v1491 = vcombine.high %v1466, %v1482
  %v1493 = vunpack.c.l.s4 1934713408
  %v1494 = vunpack.c.0.s8 %v1493
  %v1495 = vlaneseq
  %v1496 = vshrl.u32 %v1495, 7
  %v1497 = vsub.s32 %v1494, %v1496
  %v1498 = vrot.slane %v1490, %v1497
  %v1500 = vunpack.c.l.s4 1934713408
  %v1501 = vunpack.c.0.s8 %v1500
  %v1502 = vlaneseq
  %v1503 = vshrl.u32 %v1502, 7
  %v1504 = vsub.s32 %v1501, %v1503
  %v1505 = vrot.slane %v1491, %v1504
  %v1506 = vcombine.low %v1473, %v1489
  %v1507 = vcombine.high %v1473, %v1489
  %v1509 = vunpack.c.l.s4 1934713408
  %v1510 = vunpack.c.0.s8 %v1509
  %v1511 = vlaneseq
  %v1512 = vshrl.u32 %v1511, 7
  %v1513 = vsub.s32 %v1510, %v1512
  %v1514 = vrot.slane %v1506, %v1513
  %v1516 = vunpack.c.l.s4 1934713408
  %v1517 = vunpack.c.0.s8 %v1516
  %v1518 = vlaneseq
  %v1519 = vshrl.u32 %v1518, 7
  %v1520 = vsub.s32 %v1517, %v1519
  %v1521 = vrot.slane %v1507, %v1520
  %v1522 = vcombine.high %v1498, 0.0
  %v1523 = vcombine.high %v1505, 0.0
  %v1524 = vcombine.high %v1514, 0.0
  %v1525 = vcombine.high %v1521, 0.0
  %v1526 = vcombine.low %v1122, %v1305
  %v1527 = vcombine.high %v1122, %v1305
  %v1529 = vunpack.c.l.s4 1983009808
  %v1530 = vunpack.c.0.s8 %v1529
  %v1531 = vlaneseq
  %v1532 = vshrl.u32 %v1531, 7
  %v1533 = vsub.s32 %v1530, %v1532
  %v1534 = vrot.slane %v1526, %v1533
  %v1536 = vunpack.c.l.s4 1983009808
  %v1537 = vunpack.c.0.s8 %v1536
  %v1538 = vlaneseq
  %v1539 = vshrl.u32 %v1538, 7
  %v1540 = vsub.s32 %v1537, %v1539
  %v1541 = vrot.slane %v1527, %v1540
  %v1542 = vcombine.low %v1293, %v1317
  %v1543 = vcombine.high %v1293, %v1317
  %v1545 = vunpack.c.l.s4 1983009808
  %v1546 = vunpack.c.0.s8 %v1545
  %v1547 = vlaneseq
  %v1548 = vshrl.u32 %v1547, 7
  %v1549 = vsub.s32 %v1546, %v1548
  %v1550 = vrot.slane %v1542, %v1549
  %v1552 = vunpack.c.l.s4 1983009808
  %v1553 = vunpack.c.0.s8 %v1552
  %v1554 = vlaneseq
  %v1555 = vshrl.u32 %v1554, 7
  %v1556 = vsub.s32 %v1553, %v1555
  %v1557 = vrot.slane %v1543, %v1556
  %v1558 = vcombine.low %v1534, %v1550
  %v1559 = vcombine.high %v1534, %v1550
  %v1561 = vunpack.c.l.s4 1934713408
  %v1562 = vunpack.c.0.s8 %v1561
  %v1563 = vlaneseq
  %v1564 = vshrl.u32 %v1563, 7
  %v1565 = vsub.s32 %v1562, %v1564
  %v1566 = vrot.slane %v1558, %v1565
  %v1568 = vunpack.c.l.s4 1934713408
  %v1569 = vunpack.c.0.s8 %v1568
  %v1570 = vlaneseq
  %v1571 = vshrl.u32 %v1570, 7
  %v1572 = vsub.s32 %v1569, %v1571
  %v1573 = vrot.slane %v1559, %v1572
  %v1574 = vcombine.low %v1541, %v1557
  %v1575 = vcombine.high %v1541, %v1557
  %v1577 = vunpack.c.l.s4 1934713408
  %v1578 = vunpack.c.0.s8 %v1577
  %v1579 = vlaneseq
  %v1580 = vshrl.u32 %v1579, 7
  %v1581 = vsub.s32 %v1578, %v1580
  %v1582 = vrot.slane %v1574, %v1581
  %v1584 = vunpack.c.l.s4 1934713408
  %v1585 = vunpack.c.0.s8 %v1584
  %v1586 = vlaneseq
  %v1587 = vshrl.u32 %v1586, 7
  %v1588 = vsub.s32 %v1585, %v1587
  %v1589 = vrot.slane %v1575, %v1588
  %v1590 = vcombine.high %v1566, 0.0
  %v1591 = vcombine.high %v1573, 0.0
  %v1592 = vcombine.high %v1582, 0.0
  %v1593 = vcombine.high %v1589, 0.0
  %v1594 = vcombine.low %v1362, %v1369
  %v1596 = vunpack.c.l.s4 1983009808
  %v1597 = vunpack.c.0.s8 %v1596
  %v1598 = vlaneseq
  %v1599 = vshrl.u32 %v1598, 7
  %v1600 = vsub.s32 %v1597, %v1599
  %v1601 = vrot.slane %v1594, %v1600
  %v1602 = vcombine.low %v1386, %v1387
  %v1604 = vunpack.c.l.s4 1983009808
  %v1605 = vunpack.c.0.s8 %v1604
  %v1606 = vlaneseq
  %v1607 = vshrl.u32 %v1606, 7
  %v1608 = vsub.s32 %v1605, %v1607
  %v1609 = vrot.slane %v1602, %v1608
  %v1610 = vcombine.low %v1378, %v1385
  %v1612 = vunpack.c.l.s4 1983009808
  %v1613 = vunpack.c.0.s8 %v1612
  %v1614 = vlaneseq
  %v1615 = vshrl.u32 %v1614, 7
  %v1616 = vsub.s32 %v1613, %v1615
  %v1617 = vrot.slane %v1610, %v1616
  %v1618 = vcombine.low %v1388, %v1389
  %v1620 = vunpack.c.l.s4 1983009808
  %v1621 = vunpack.c.0.s8 %v1620
  %v1622 = vlaneseq
  %v1623 = vshrl.u32 %v1622, 7
  %v1624 = vsub.s32 %v1621, %v1623
  %v1625 = vrot.slane %v1618, %v1624
  %v1626 = vcombine.low %v1601, %v1609
  %v1627 = vcombine.high %v1601, %v1609
  %v1629 = vunpack.c.l.s4 1934713408
  %v1630 = vunpack.c.0.s8 %v1629
  %v1631 = vlaneseq
  %v1632 = vshrl.u32 %v1631, 7
  %v1633 = vsub.s32 %v1630, %v1632
  %v1634 = vrot.slane %v1626, %v1633
  %v1636 = vunpack.c.l.s4 1934713408
  %v1637 = vunpack.c.0.s8 %v1636
  %v1638 = vlaneseq
  %v1639 = vshrl.u32 %v1638, 7
  %v1640 = vsub.s32 %v1637, %v1639
  %v1641 = vrot.slane %v1627, %v1640
  %v1642 = vcombine.low %v1617, %v1625
  %v1643 = vcombine.high %v1617, %v1625
  %v1645 = vunpack.c.l.s4 1934713408
  %v1646 = vunpack.c.0.s8 %v1645
  %v1647 = vlaneseq
  %v1648 = vshrl.u32 %v1647, 7
  %v1649 = vsub.s32 %v1646, %v1648
  %v1650 = vrot.slane %v1642, %v1649
  %v1652 = vunpack.c.l.s4 1934713408
  %v1653 = vunpack.c.0.s8 %v1652
  %v1654 = vlaneseq
  %v1655 = vshrl.u32 %v1654, 7
  %v1656 = vsub.s32 %v1653, %v1655
  %v1657 = vrot.slane %v1643, %v1656
  %v1658 = vcombine.low %v1634, %v1650
  %v1659 = vcombine.high %v1634, %v1650
  %v1660 = vcombine.low %v1641, %v1657
  %v1661 = vcombine.high %v1641, %v1657
  %v1662 = vcombine.low %v1430, %v1437
  %v1664 = vunpack.c.l.s4 1983009808
  %v1665 = vunpack.c.0.s8 %v1664
  %v1666 = vlaneseq
  %v1667 = vshrl.u32 %v1666, 7
  %v1668 = vsub.s32 %v1665, %v1667
  %v1669 = vrot.slane %v1662, %v1668
  %v1670 = vcombine.low %v1454, %v1455
  %v1672 = vunpack.c.l.s4 1983009808
  %v1673 = vunpack.c.0.s8 %v1672
  %v1674 = vlaneseq
  %v1675 = vshrl.u32 %v1674, 7
  %v1676 = vsub.s32 %v1673, %v1675
  %v1677 = vrot.slane %v1670, %v1676
  %v1678 = vcombine.low %v1446, %v1453
  %v1680 = vunpack.c.l.s4 1983009808
  %v1681 = vunpack.c.0.s8 %v1680
  %v1682 = vlaneseq
  %v1683 = vshrl.u32 %v1682, 7
  %v1684 = vsub.s32 %v1681, %v1683
  %v1685 = vrot.slane %v1678, %v1684
  %v1686 = vcombine.low %v1456, %v1457
  %v1688 = vunpack.c.l.s4 1983009808
  %v1689 = vunpack.c.0.s8 %v1688
  %v1690 = vlaneseq
  %v1691 = vshrl.u32 %v1690, 7
  %v1692 = vsub.s32 %v1689, %v1691
  %v1693 = vrot.slane %v1686, %v1692
  %v1694 = vcombine.low %v1669, %v1677
  %v1695 = vcombine.high %v1669, %v1677
  %v1697 = vunpack.c.l.s4 1934713408
  %v1698 = vunpack.c.0.s8 %v1697
  %v1699 = vlaneseq
  %v1700 = vshrl.u32 %v1699, 7
  %v1701 = vsub.s32 %v1698, %v1700
  %v1702 = vrot.slane %v1694, %v1701
  %v1704 = vunpack.c.l.s4 1934713408
  %v1705 = vunpack.c.0.s8 %v1704
  %v1706 = vlaneseq
  %v1707 = vshrl.u32 %v1706, 7
  %v1708 = vsub.s32 %v1705, %v1707
  %v1709 = vrot.slane %v1695, %v1708
  %v1710 = vcombine.low %v1685, %v1693
  %v1711 = vcombine.high %v1685, %v1693
  %v1713 = vunpack.c.l.s4 1934713408
  %v1714 = vunpack.c.0.s8 %v1713
  %v1715 = vlaneseq
  %v1716 = vshrl.u32 %v1715, 7
  %v1717 = vsub.s32 %v1714, %v1716
  %v1718 = vrot.slane %v1710, %v1717
  %v1720 = vunpack.c.l.s4 1934713408
  %v1721 = vunpack.c.0.s8 %v1720
  %v1722 = vlaneseq
  %v1723 = vshrl.u32 %v1722, 7
  %v1724 = vsub.s32 %v1721, %v1723
  %v1725 = vrot.slane %v1711, %v1724
  %v1726 = vcombine.low %v1702, %v1718
  %v1727 = vcombine.high %v1702, %v1718
  %v1728 = vcombine.low %v1709, %v1725
  %v1729 = vcombine.high %v1709, %v1725
  %v1730 = vcombine.low %v1498, %v1505
  %v1732 = vunpack.c.l.s4 1983009808
  %v1733 = vunpack.c.0.s8 %v1732
  %v1734 = vlaneseq
  %v1735 = vshrl.u32 %v1734, 7
  %v1736 = vsub.s32 %v1733, %v1735
  %v1737 = vrot.slane %v1730, %v1736
  %v1738 = vcombine.low %v1522, %v1523
  %v1740 = vunpack.c.l.s4 1983009808
  %v1741 = vunpack.c.0.s8 %v1740
  %v1742 = vlaneseq
  %v1743 = vshrl.u32 %v1742, 7
  %v1744 = vsub.s32 %v1741, %v1743
  %v1745 = vrot.slane %v1738, %v1744
  %v1746 = vcombine.low %v1514, %v1521
  %v1748 = vunpack.c.l.s4 1983009808
  %v1749 = vunpack.c.0.s8 %v1748
  %v1750 = vlaneseq
  %v1751 = vshrl.u32 %v1750, 7
  %v1752 = vsub.s32 %v1749, %v1751
  %v1753 = vrot.slane %v1746, %v1752
  %v1754 = vcombine.low %v1524, %v1525
  %v1756 = vunpack.c.l.s4 1983009808
  %v1757 = vunpack.c.0.s8 %v1756
  %v1758 = vlaneseq
  %v1759 = vshrl.u32 %v1758, 7
  %v1760 = vsub.s32 %v1757, %v1759
  %v1761 = vrot.slane %v1754, %v1760
  %v1762 = vcombine.low %v1737, %v1745
  %v1763 = vcombine.high %v1737, %v1745
  %v1765 = vunpack.c.l.s4 1934713408
  %v1766 = vunpack.c.0.s8 %v1765
  %v1767 = vlaneseq
  %v1768 = vshrl.u32 %v1767, 7
  %v1769 = vsub.s32 %v1766, %v1768
  %v1770 = vrot.slane %v1762, %v1769
  %v1772 = vunpack.c.l.s4 1934713408
  %v1773 = vunpack.c.0.s8 %v1772
  %v1774 = vlaneseq
  %v1775 = vshrl.u32 %v1774, 7
  %v1776 = vsub.s32 %v1773, %v1775
  %v1777 = vrot.slane %v1763, %v1776
  %v1778 = vcombine.low %v1753, %v1761
  %v1779 = vcombine.high %v1753, %v1761
  %v1781 = vunpack.c.l.s4 1934713408
  %v1782 = vunpack.c.0.s8 %v1781
  %v1783 = vlaneseq
  %v1784 = vshrl.u32 %v1783, 7
  %v1785 = vsub.s32 %v1782, %v1784
  %v1786 = vrot.slane %v1778, %v1785
  %v1788 = vunpack.c.l.s4 1934713408
  %v1789 = vunpack.c.0.s8 %v1788
  %v1790 = vlaneseq
  %v1791 = vshrl.u32 %v1790, 7
  %v1792 = vsub.s32 %v1789, %v1791
  %v1793 = vrot.slane %v1779, %v1792
  %v1794 = vcombine.low %v1770, %v1786
  %v1795 = vcombine.high %v1770, %v1786
  %v1796 = vcombine.low %v1777, %v1793
  %v1797 = vcombine.high %v1777, %v1793
  %v1798 = vcombine.low %v1566, %v1573
  %v1800 = vunpack.c.l.s4 1983009808
  %v1801 = vunpack.c.0.s8 %v1800
  %v1802 = vlaneseq
  %v1803 = vshrl.u32 %v1802, 7
  %v1804 = vsub.s32 %v1801, %v1803
  %v1805 = vrot.slane %v1798, %v1804
  %v1806 = vcombine.low %v1590, %v1591
  %v1808 = vunpack.c.l.s4 1983009808
  %v1809 = vunpack.c.0.s8 %v1808
  %v1810 = vlaneseq
  %v1811 = vshrl.u32 %v1810, 7
  %v1812 = vsub.s32 %v1809, %v1811
  %v1813 = vrot.slane %v1806, %v1812
  %v1814 = vcombine.low %v1582, %v1589
  %v1816 = vunpack.c.l.s4 1983009808
  %v1817 = vunpack.c.0.s8 %v1816
  %v1818 = vlaneseq
  %v1819 = vshrl.u32 %v1818, 7
  %v1820 = vsub.s32 %v1817, %v1819
  %v1821 = vrot.slane %v1814, %v1820
  %v1822 = vcombine.low %v1592, %v1593
  %v1824 = vunpack.c.l.s4 1983009808
  %v1825 = vunpack.c.0.s8 %v1824
  %v1826 = vlaneseq
  %v1827 = vshrl.u32 %v1826, 7
  %v1828 = vsub.s32 %v1825, %v1827
  %v1829 = vrot.slane %v1822, %v1828
  %v1830 = vcombine.low %v1805, %v1813
  %v1831 = vcombine.high %v1805, %v1813
  %v1833 = vunpack.c.l.s4 1934713408
  %v1834 = vunpack.c.0.s8 %v1833
  %v1835 = vlaneseq
  %v1836 = vshrl.u32 %v1835, 7
  %v1837 = vsub.s32 %v1834, %v1836
  %v1838 = vrot.slane %v1830, %v1837
  %v1840 = vunpack.c.l.s4 1934713408
  %v1841 = vunpack.c.0.s8 %v1840
  %v1842 = vlaneseq
  %v1843 = vshrl.u32 %v1842, 7
  %v1844 = vsub.s32 %v1841, %v1843
  %v1845 = vrot.slane %v1831, %v1844
  %v1846 = vcombine.low %v1821, %v1829
  %v1847 = vcombine.high %v1821, %v1829
  %v1849 = vunpack.c.l.s4 1934713408
  %v1850 = vunpack.c.0.s8 %v1849
  %v1851 = vlaneseq
  %v1852 = vshrl.u32 %v1851, 7
  %v1853 = vsub.s32 %v1850, %v1852
  %v1854 = vrot.slane %v1846, %v1853
  %v1856 = vunpack.c.l.s4 1934713408
  %v1857 = vunpack.c.0.s8 %v1856
  %v1858 = vlaneseq
  %v1859 = vshrl.u32 %v1858, 7
  %v1860 = vsub.s32 %v1857, %v1859
  %v1861 = vrot.slane %v1847, %v1860
  %v1862 = vcombine.low %v1838, %v1854
  %v1863 = vcombine.high %v1838, %v1854
  %v1864 = vcombine.low %v1845, %v1861
  %v1865 = vcombine.high %v1845, %v1861
  %v1866 = vpack.c.bf16 %v1658, %v1658
  %v1867 = vpack.c.bf16 %v1726, %v1726
  %v1868 = vpack.c.bf16 %v1794, %v1794
  %v1869 = vpack.c.bf16 %v1862, %v1862
  %v1870 = vpack.c.bf16 %v1659, %v1659
  %v1871 = vpack.c.bf16 %v1727, %v1727
  %v1872 = vpack.c.bf16 %v1795, %v1795
  %v1873 = vpack.c.bf16 %v1863, %v1863
  %v1874 = vpack.c.bf16 %v1660, %v1660
  %v1875 = vpack.c.bf16 %v1728, %v1728
  %v1876 = vpack.c.bf16 %v1796, %v1796
  %v1877 = vpack.c.bf16 %v1864, %v1864
  %v1878 = vpack.c.bf16 %v1661, %v1661
  %v1879 = vpack.c.bf16 %v1729, %v1729
  %v1880 = vpack.c.bf16 %v1797, %v1797
  %v1881 = vpack.c.bf16 %v1865, %v1865
  %1886 = vrot.lane.b32.xlu0 %v1264, 96
  %v1887 = vpop.permute.xlu0 %1886
  %1888 = vrot.lane.b32.xlu0 %v1268, 96
  %v1889 = vpop.permute.xlu0 %1888
  %1890 = vrot.lane.b32.xlu0 %v1274, 96
  %v1891 = vpop.permute.xlu0 %1890
  %1892 = vrot.lane.b32.xlu0 %v1278, 96
  %v1893 = vpop.permute.xlu0 %1892
  %1898 = vrot.lane.b32.xlu0 %v1264, 64
  %v1899 = vpop.permute.xlu0 %1898
  %1900 = vrot.lane.b32.xlu0 %v1268, 64
  %v1901 = vpop.permute.xlu0 %1900
  %1902 = vrot.lane.b32.xlu0 %v1274, 64
  %v1903 = vpop.permute.xlu0 %1902
  %1904 = vrot.lane.b32.xlu0 %v1278, 64
  %v1905 = vpop.permute.xlu0 %1904
  %1910 = vrot.lane.b32.xlu0 %v1264, 32
  %v1911 = vpop.permute.xlu0 %1910
  %1912 = vrot.lane.b32.xlu0 %v1268, 32
  %v1913 = vpop.permute.xlu0 %1912
  %1914 = vrot.lane.b32.xlu0 %v1274, 32
  %v1915 = vpop.permute.xlu0 %1914
  %1916 = vrot.lane.b32.xlu0 %v1278, 32
  %v1917 = vpop.permute.xlu0 %1916
  %v1922 = vcombine.low %v1264, %v1899
  %v1923 = vcombine.high %v1264, %v1899
  %v1925 = vunpack.c.l.s4 1983009808
  %v1926 = vunpack.c.0.s8 %v1925
  %v1927 = vlaneseq
  %v1928 = vshrl.u32 %v1927, 7
  %v1929 = vsub.s32 %v1926, %v1928
  %v1930 = vrot.slane %v1922, %v1929
  %v1932 = vunpack.c.l.s4 1983009808
  %v1933 = vunpack.c.0.s8 %v1932
  %v1934 = vlaneseq
  %v1935 = vshrl.u32 %v1934, 7
  %v1936 = vsub.s32 %v1933, %v1935
  %v1937 = vrot.slane %v1923, %v1936
  %v1938 = vcombine.low %v1887, %v1911
  %v1939 = vcombine.high %v1887, %v1911
  %v1941 = vunpack.c.l.s4 1983009808
  %v1942 = vunpack.c.0.s8 %v1941
  %v1943 = vlaneseq
  %v1944 = vshrl.u32 %v1943, 7
  %v1945 = vsub.s32 %v1942, %v1944
  %v1946 = vrot.slane %v1938, %v1945
  %v1948 = vunpack.c.l.s4 1983009808
  %v1949 = vunpack.c.0.s8 %v1948
  %v1950 = vlaneseq
  %v1951 = vshrl.u32 %v1950, 7
  %v1952 = vsub.s32 %v1949, %v1951
  %v1953 = vrot.slane %v1939, %v1952
  %v1954 = vcombine.low %v1930, %v1946
  %v1955 = vcombine.high %v1930, %v1946
  %v1957 = vunpack.c.l.s4 1934713408
  %v1958 = vunpack.c.0.s8 %v1957
  %v1959 = vlaneseq
  %v1960 = vshrl.u32 %v1959, 7
  %v1961 = vsub.s32 %v1958, %v1960
  %v1962 = vrot.slane %v1954, %v1961
  %v1964 = vunpack.c.l.s4 1934713408
  %v1965 = vunpack.c.0.s8 %v1964
  %v1966 = vlaneseq
  %v1967 = vshrl.u32 %v1966, 7
  %v1968 = vsub.s32 %v1965, %v1967
  %v1969 = vrot.slane %v1955, %v1968
  %v1970 = vcombine.low %v1937, %v1953
  %v1971 = vcombine.high %v1937, %v1953
  %v1973 = vunpack.c.l.s4 1934713408
  %v1974 = vunpack.c.0.s8 %v1973
  %v1975 = vlaneseq
  %v1976 = vshrl.u32 %v1975, 7
  %v1977 = vsub.s32 %v1974, %v1976
  %v1978 = vrot.slane %v1970, %v1977
  %v1980 = vunpack.c.l.s4 1934713408
  %v1981 = vunpack.c.0.s8 %v1980
  %v1982 = vlaneseq
  %v1983 = vshrl.u32 %v1982, 7
  %v1984 = vsub.s32 %v1981, %v1983
  %v1985 = vrot.slane %v1971, %v1984
  %v1986 = vcombine.high %v1962, 0.0
  %v1987 = vcombine.high %v1969, 0.0
  %v1988 = vcombine.high %v1978, 0.0
  %v1989 = vcombine.high %v1985, 0.0
  %v1990 = vcombine.low %v1268, %v1901
  %v1991 = vcombine.high %v1268, %v1901
  %v1993 = vunpack.c.l.s4 1983009808
  %v1994 = vunpack.c.0.s8 %v1993
  %v1995 = vlaneseq
  %v1996 = vshrl.u32 %v1995, 7
  %v1997 = vsub.s32 %v1994, %v1996
  %v1998 = vrot.slane %v1990, %v1997
  %v2000 = vunpack.c.l.s4 1983009808
  %v2001 = vunpack.c.0.s8 %v2000
  %v2002 = vlaneseq
  %v2003 = vshrl.u32 %v2002, 7
  %v2004 = vsub.s32 %v2001, %v2003
  %v2005 = vrot.slane %v1991, %v2004
  %v2006 = vcombine.low %v1889, %v1913
  %v2007 = vcombine.high %v1889, %v1913
  %v2009 = vunpack.c.l.s4 1983009808
  %v2010 = vunpack.c.0.s8 %v2009
  %v2011 = vlaneseq
  %v2012 = vshrl.u32 %v2011, 7
  %v2013 = vsub.s32 %v2010, %v2012
  %v2014 = vrot.slane %v2006, %v2013
  %v2016 = vunpack.c.l.s4 1983009808
  %v2017 = vunpack.c.0.s8 %v2016
  %v2018 = vlaneseq
  %v2019 = vshrl.u32 %v2018, 7
  %v2020 = vsub.s32 %v2017, %v2019
  %v2021 = vrot.slane %v2007, %v2020
  %v2022 = vcombine.low %v1998, %v2014
  %v2023 = vcombine.high %v1998, %v2014
  %v2025 = vunpack.c.l.s4 1934713408
  %v2026 = vunpack.c.0.s8 %v2025
  %v2027 = vlaneseq
  %v2028 = vshrl.u32 %v2027, 7
  %v2029 = vsub.s32 %v2026, %v2028
  %v2030 = vrot.slane %v2022, %v2029
  %v2032 = vunpack.c.l.s4 1934713408
  %v2033 = vunpack.c.0.s8 %v2032
  %v2034 = vlaneseq
  %v2035 = vshrl.u32 %v2034, 7
  %v2036 = vsub.s32 %v2033, %v2035
  %v2037 = vrot.slane %v2023, %v2036
  %v2038 = vcombine.low %v2005, %v2021
  %v2039 = vcombine.high %v2005, %v2021
  %v2041 = vunpack.c.l.s4 1934713408
  %v2042 = vunpack.c.0.s8 %v2041
  %v2043 = vlaneseq
  %v2044 = vshrl.u32 %v2043, 7
  %v2045 = vsub.s32 %v2042, %v2044
  %v2046 = vrot.slane %v2038, %v2045
  %v2048 = vunpack.c.l.s4 1934713408
  %v2049 = vunpack.c.0.s8 %v2048
  %v2050 = vlaneseq
  %v2051 = vshrl.u32 %v2050, 7
  %v2052 = vsub.s32 %v2049, %v2051
  %v2053 = vrot.slane %v2039, %v2052
  %v2054 = vcombine.high %v2030, 0.0
  %v2055 = vcombine.high %v2037, 0.0
  %v2056 = vcombine.high %v2046, 0.0
  %v2057 = vcombine.high %v2053, 0.0
  %v2058 = vcombine.low %v1274, %v1903
  %v2059 = vcombine.high %v1274, %v1903
  %v2061 = vunpack.c.l.s4 1983009808
  %v2062 = vunpack.c.0.s8 %v2061
  %v2063 = vlaneseq
  %v2064 = vshrl.u32 %v2063, 7
  %v2065 = vsub.s32 %v2062, %v2064
  %v2066 = vrot.slane %v2058, %v2065
  %v2068 = vunpack.c.l.s4 1983009808
  %v2069 = vunpack.c.0.s8 %v2068
  %v2070 = vlaneseq
  %v2071 = vshrl.u32 %v2070, 7
  %v2072 = vsub.s32 %v2069, %v2071
  %v2073 = vrot.slane %v2059, %v2072
  %v2074 = vcombine.low %v1891, %v1915
  %v2075 = vcombine.high %v1891, %v1915
  %v2077 = vunpack.c.l.s4 1983009808
  %v2078 = vunpack.c.0.s8 %v2077
  %v2079 = vlaneseq
  %v2080 = vshrl.u32 %v2079, 7
  %v2081 = vsub.s32 %v2078, %v2080
  %v2082 = vrot.slane %v2074, %v2081
  %v2084 = vunpack.c.l.s4 1983009808
  %v2085 = vunpack.c.0.s8 %v2084
  %v2086 = vlaneseq
  %v2087 = vshrl.u32 %v2086, 7
  %v2088 = vsub.s32 %v2085, %v2087
  %v2089 = vrot.slane %v2075, %v2088
  %v2090 = vcombine.low %v2066, %v2082
  %v2091 = vcombine.high %v2066, %v2082
  %v2093 = vunpack.c.l.s4 1934713408
  %v2094 = vunpack.c.0.s8 %v2093
  %v2095 = vlaneseq
  %v2096 = vshrl.u32 %v2095, 7
  %v2097 = vsub.s32 %v2094, %v2096
  %v2098 = vrot.slane %v2090, %v2097
  %v2100 = vunpack.c.l.s4 1934713408
  %v2101 = vunpack.c.0.s8 %v2100
  %v2102 = vlaneseq
  %v2103 = vshrl.u32 %v2102, 7
  %v2104 = vsub.s32 %v2101, %v2103
  %v2105 = vrot.slane %v2091, %v2104
  %v2106 = vcombine.low %v2073, %v2089
  %v2107 = vcombine.high %v2073, %v2089
  %v2109 = vunpack.c.l.s4 1934713408
  %v2110 = vunpack.c.0.s8 %v2109
  %v2111 = vlaneseq
  %v2112 = vshrl.u32 %v2111, 7
  %v2113 = vsub.s32 %v2110, %v2112
  %v2114 = vrot.slane %v2106, %v2113
  %v2116 = vunpack.c.l.s4 1934713408
  %v2117 = vunpack.c.0.s8 %v2116
  %v2118 = vlaneseq
  %v2119 = vshrl.u32 %v2118, 7
  %v2120 = vsub.s32 %v2117, %v2119
  %v2121 = vrot.slane %v2107, %v2120
  %v2122 = vcombine.high %v2098, 0.0
  %v2123 = vcombine.high %v2105, 0.0
  %v2124 = vcombine.high %v2114, 0.0
  %v2125 = vcombine.high %v2121, 0.0
  %v2126 = vcombine.low %v1278, %v1905
  %v2127 = vcombine.high %v1278, %v1905
  %v2129 = vunpack.c.l.s4 1983009808
  %v2130 = vunpack.c.0.s8 %v2129
  %v2131 = vlaneseq
  %v2132 = vshrl.u32 %v2131, 7
  %v2133 = vsub.s32 %v2130, %v2132
  %v2134 = vrot.slane %v2126, %v2133
  %v2136 = vunpack.c.l.s4 1983009808
  %v2137 = vunpack.c.0.s8 %v2136
  %v2138 = vlaneseq
  %v2139 = vshrl.u32 %v2138, 7
  %v2140 = vsub.s32 %v2137, %v2139
  %v2141 = vrot.slane %v2127, %v2140
  %v2142 = vcombine.low %v1893, %v1917
  %v2143 = vcombine.high %v1893, %v1917
  %v2145 = vunpack.c.l.s4 1983009808
  %v2146 = vunpack.c.0.s8 %v2145
  %v2147 = vlaneseq
  %v2148 = vshrl.u32 %v2147, 7
  %v2149 = vsub.s32 %v2146, %v2148
  %v2150 = vrot.slane %v2142, %v2149
  %v2152 = vunpack.c.l.s4 1983009808
  %v2153 = vunpack.c.0.s8 %v2152
  %v2154 = vlaneseq
  %v2155 = vshrl.u32 %v2154, 7
  %v2156 = vsub.s32 %v2153, %v2155
  %v2157 = vrot.slane %v2143, %v2156
  %v2158 = vcombine.low %v2134, %v2150
  %v2159 = vcombine.high %v2134, %v2150
  %v2161 = vunpack.c.l.s4 1934713408
  %v2162 = vunpack.c.0.s8 %v2161
  %v2163 = vlaneseq
  %v2164 = vshrl.u32 %v2163, 7
  %v2165 = vsub.s32 %v2162, %v2164
  %v2166 = vrot.slane %v2158, %v2165
  %v2168 = vunpack.c.l.s4 1934713408
  %v2169 = vunpack.c.0.s8 %v2168
  %v2170 = vlaneseq
  %v2171 = vshrl.u32 %v2170, 7
  %v2172 = vsub.s32 %v2169, %v2171
  %v2173 = vrot.slane %v2159, %v2172
  %v2174 = vcombine.low %v2141, %v2157
  %v2175 = vcombine.high %v2141, %v2157
  %v2177 = vunpack.c.l.s4 1934713408
  %v2178 = vunpack.c.0.s8 %v2177
  %v2179 = vlaneseq
  %v2180 = vshrl.u32 %v2179, 7
  %v2181 = vsub.s32 %v2178, %v2180
  %v2182 = vrot.slane %v2174, %v2181
  %v2184 = vunpack.c.l.s4 1934713408
  %v2185 = vunpack.c.0.s8 %v2184
  %v2186 = vlaneseq
  %v2187 = vshrl.u32 %v2186, 7
  %v2188 = vsub.s32 %v2185, %v2187
  %v2189 = vrot.slane %v2175, %v2188
  %v2190 = vcombine.high %v2166, 0.0
  %v2191 = vcombine.high %v2173, 0.0
  %v2192 = vcombine.high %v2182, 0.0
  %v2193 = vcombine.high %v2189, 0.0
  %v2194 = vcombine.low %v1962, %v1969
  %v2196 = vunpack.c.l.s4 1983009808
  %v2197 = vunpack.c.0.s8 %v2196
  %v2198 = vlaneseq
  %v2199 = vshrl.u32 %v2198, 7
  %v2200 = vsub.s32 %v2197, %v2199
  %v2201 = vrot.slane %v2194, %v2200
  %v2202 = vcombine.low %v1986, %v1987
  %v2204 = vunpack.c.l.s4 1983009808
  %v2205 = vunpack.c.0.s8 %v2204
  %v2206 = vlaneseq
  %v2207 = vshrl.u32 %v2206, 7
  %v2208 = vsub.s32 %v2205, %v2207
  %v2209 = vrot.slane %v2202, %v2208
  %v2210 = vcombine.low %v1978, %v1985
  %v2212 = vunpack.c.l.s4 1983009808
  %v2213 = vunpack.c.0.s8 %v2212
  %v2214 = vlaneseq
  %v2215 = vshrl.u32 %v2214, 7
  %v2216 = vsub.s32 %v2213, %v2215
  %v2217 = vrot.slane %v2210, %v2216
  %v2218 = vcombine.low %v1988, %v1989
  %v2220 = vunpack.c.l.s4 1983009808
  %v2221 = vunpack.c.0.s8 %v2220
  %v2222 = vlaneseq
  %v2223 = vshrl.u32 %v2222, 7
  %v2224 = vsub.s32 %v2221, %v2223
  %v2225 = vrot.slane %v2218, %v2224
  %v2226 = vcombine.low %v2201, %v2209
  %v2227 = vcombine.high %v2201, %v2209
  %v2229 = vunpack.c.l.s4 1934713408
  %v2230 = vunpack.c.0.s8 %v2229
  %v2231 = vlaneseq
  %v2232 = vshrl.u32 %v2231, 7
  %v2233 = vsub.s32 %v2230, %v2232
  %v2234 = vrot.slane %v2226, %v2233
  %v2236 = vunpack.c.l.s4 1934713408
  %v2237 = vunpack.c.0.s8 %v2236
  %v2238 = vlaneseq
  %v2239 = vshrl.u32 %v2238, 7
  %v2240 = vsub.s32 %v2237, %v2239
  %v2241 = vrot.slane %v2227, %v2240
  %v2242 = vcombine.low %v2217, %v2225
  %v2243 = vcombine.high %v2217, %v2225
  %v2245 = vunpack.c.l.s4 1934713408
  %v2246 = vunpack.c.0.s8 %v2245
  %v2247 = vlaneseq
  %v2248 = vshrl.u32 %v2247, 7
  %v2249 = vsub.s32 %v2246, %v2248
  %v2250 = vrot.slane %v2242, %v2249
  %v2252 = vunpack.c.l.s4 1934713408
  %v2253 = vunpack.c.0.s8 %v2252
  %v2254 = vlaneseq
  %v2255 = vshrl.u32 %v2254, 7
  %v2256 = vsub.s32 %v2253, %v2255
  %v2257 = vrot.slane %v2243, %v2256
  %v2258 = vcombine.low %v2234, %v2250
  %v2259 = vcombine.high %v2234, %v2250
  %v2260 = vcombine.low %v2241, %v2257
  %v2261 = vcombine.high %v2241, %v2257
  %v2262 = vcombine.low %v2030, %v2037
  %v2264 = vunpack.c.l.s4 1983009808
  %v2265 = vunpack.c.0.s8 %v2264
  %v2266 = vlaneseq
  %v2267 = vshrl.u32 %v2266, 7
  %v2268 = vsub.s32 %v2265, %v2267
  %v2269 = vrot.slane %v2262, %v2268
  %v2270 = vcombine.low %v2054, %v2055
  %v2272 = vunpack.c.l.s4 1983009808
  %v2273 = vunpack.c.0.s8 %v2272
  %v2274 = vlaneseq
  %v2275 = vshrl.u32 %v2274, 7
  %v2276 = vsub.s32 %v2273, %v2275
  %v2277 = vrot.slane %v2270, %v2276
  %v2278 = vcombine.low %v2046, %v2053
  %v2280 = vunpack.c.l.s4 1983009808
  %v2281 = vunpack.c.0.s8 %v2280
  %v2282 = vlaneseq
  %v2283 = vshrl.u32 %v2282, 7
  %v2284 = vsub.s32 %v2281, %v2283
  %v2285 = vrot.slane %v2278, %v2284
  %v2286 = vcombine.low %v2056, %v2057
  %v2288 = vunpack.c.l.s4 1983009808
  %v2289 = vunpack.c.0.s8 %v2288
  %v2290 = vlaneseq
  %v2291 = vshrl.u32 %v2290, 7
  %v2292 = vsub.s32 %v2289, %v2291
  %v2293 = vrot.slane %v2286, %v2292
  %v2294 = vcombine.low %v2269, %v2277
  %v2295 = vcombine.high %v2269, %v2277
  %v2297 = vunpack.c.l.s4 1934713408
  %v2298 = vunpack.c.0.s8 %v2297
  %v2299 = vlaneseq
  %v2300 = vshrl.u32 %v2299, 7
  %v2301 = vsub.s32 %v2298, %v2300
  %v2302 = vrot.slane %v2294, %v2301
  %v2304 = vunpack.c.l.s4 1934713408
  %v2305 = vunpack.c.0.s8 %v2304
  %v2306 = vlaneseq
  %v2307 = vshrl.u32 %v2306, 7
  %v2308 = vsub.s32 %v2305, %v2307
  %v2309 = vrot.slane %v2295, %v2308
  %v2310 = vcombine.low %v2285, %v2293
  %v2311 = vcombine.high %v2285, %v2293
  %v2313 = vunpack.c.l.s4 1934713408
  %v2314 = vunpack.c.0.s8 %v2313
  %v2315 = vlaneseq
  %v2316 = vshrl.u32 %v2315, 7
  %v2317 = vsub.s32 %v2314, %v2316
  %v2318 = vrot.slane %v2310, %v2317
  %v2320 = vunpack.c.l.s4 1934713408
  %v2321 = vunpack.c.0.s8 %v2320
  %v2322 = vlaneseq
  %v2323 = vshrl.u32 %v2322, 7
  %v2324 = vsub.s32 %v2321, %v2323
  %v2325 = vrot.slane %v2311, %v2324
  %v2326 = vcombine.low %v2302, %v2318
  %v2327 = vcombine.high %v2302, %v2318
  %v2328 = vcombine.low %v2309, %v2325
  %v2329 = vcombine.high %v2309, %v2325
  %v2330 = vcombine.low %v2098, %v2105
  %v2332 = vunpack.c.l.s4 1983009808
  %v2333 = vunpack.c.0.s8 %v2332
  %v2334 = vlaneseq
  %v2335 = vshrl.u32 %v2334, 7
  %v2336 = vsub.s32 %v2333, %v2335
  %v2337 = vrot.slane %v2330, %v2336
  %v2338 = vcombine.low %v2122, %v2123
  %v2340 = vunpack.c.l.s4 1983009808
  %v2341 = vunpack.c.0.s8 %v2340
  %v2342 = vlaneseq
  %v2343 = vshrl.u32 %v2342, 7
  %v2344 = vsub.s32 %v2341, %v2343
  %v2345 = vrot.slane %v2338, %v2344
  %v2346 = vcombine.low %v2114, %v2121
  %v2348 = vunpack.c.l.s4 1983009808
  %v2349 = vunpack.c.0.s8 %v2348
  %v2350 = vlaneseq
  %v2351 = vshrl.u32 %v2350, 7
  %v2352 = vsub.s32 %v2349, %v2351
  %v2353 = vrot.slane %v2346, %v2352
  %v2354 = vcombine.low %v2124, %v2125
  %v2356 = vunpack.c.l.s4 1983009808
  %v2357 = vunpack.c.0.s8 %v2356
  %v2358 = vlaneseq
  %v2359 = vshrl.u32 %v2358, 7
  %v2360 = vsub.s32 %v2357, %v2359
  %v2361 = vrot.slane %v2354, %v2360
  %v2362 = vcombine.low %v2337, %v2345
  %v2363 = vcombine.high %v2337, %v2345
  %v2365 = vunpack.c.l.s4 1934713408
  %v2366 = vunpack.c.0.s8 %v2365
  %v2367 = vlaneseq
  %v2368 = vshrl.u32 %v2367, 7
  %v2369 = vsub.s32 %v2366, %v2368
  %v2370 = vrot.slane %v2362, %v2369
  %v2372 = vunpack.c.l.s4 1934713408
  %v2373 = vunpack.c.0.s8 %v2372
  %v2374 = vlaneseq
  %v2375 = vshrl.u32 %v2374, 7
  %v2376 = vsub.s32 %v2373, %v2375
  %v2377 = vrot.slane %v2363, %v2376
  %v2378 = vcombine.low %v2353, %v2361
  %v2379 = vcombine.high %v2353, %v2361
  %v2381 = vunpack.c.l.s4 1934713408
  %v2382 = vunpack.c.0.s8 %v2381
  %v2383 = vlaneseq
  %v2384 = vshrl.u32 %v2383, 7
  %v2385 = vsub.s32 %v2382, %v2384
  %v2386 = vrot.slane %v2378, %v2385
  %v2388 = vunpack.c.l.s4 1934713408
  %v2389 = vunpack.c.0.s8 %v2388
  %v2390 = vlaneseq
  %v2391 = vshrl.u32 %v2390, 7
  %v2392 = vsub.s32 %v2389, %v2391
  %v2393 = vrot.slane %v2379, %v2392
  %v2394 = vcombine.low %v2370, %v2386
  %v2395 = vcombine.high %v2370, %v2386
  %v2396 = vcombine.low %v2377, %v2393
  %v2397 = vcombine.high %v2377, %v2393
  %v2398 = vcombine.low %v2166, %v2173
  %v2400 = vunpack.c.l.s4 1983009808
  %v2401 = vunpack.c.0.s8 %v2400
  %v2402 = vlaneseq
  %v2403 = vshrl.u32 %v2402, 7
  %v2404 = vsub.s32 %v2401, %v2403
  %v2405 = vrot.slane %v2398, %v2404
  %v2406 = vcombine.low %v2190, %v2191
  %v2408 = vunpack.c.l.s4 1983009808
  %v2409 = vunpack.c.0.s8 %v2408
  %v2410 = vlaneseq
  %v2411 = vshrl.u32 %v2410, 7
  %v2412 = vsub.s32 %v2409, %v2411
  %v2413 = vrot.slane %v2406, %v2412
  %v2414 = vcombine.low %v2182, %v2189
  %v2416 = vunpack.c.l.s4 1983009808
  %v2417 = vunpack.c.0.s8 %v2416
  %v2418 = vlaneseq
  %v2419 = vshrl.u32 %v2418, 7
  %v2420 = vsub.s32 %v2417, %v2419
  %v2421 = vrot.slane %v2414, %v2420
  %v2422 = vcombine.low %v2192, %v2193
  %v2424 = vunpack.c.l.s4 1983009808
  %v2425 = vunpack.c.0.s8 %v2424
  %v2426 = vlaneseq
  %v2427 = vshrl.u32 %v2426, 7
  %v2428 = vsub.s32 %v2425, %v2427
  %v2429 = vrot.slane %v2422, %v2428
  %v2430 = vcombine.low %v2405, %v2413
  %v2431 = vcombine.high %v2405, %v2413
  %v2433 = vunpack.c.l.s4 1934713408
  %v2434 = vunpack.c.0.s8 %v2433
  %v2435 = vlaneseq
  %v2436 = vshrl.u32 %v2435, 7
  %v2437 = vsub.s32 %v2434, %v2436
  %v2438 = vrot.slane %v2430, %v2437
  %v2440 = vunpack.c.l.s4 1934713408
  %v2441 = vunpack.c.0.s8 %v2440
  %v2442 = vlaneseq
  %v2443 = vshrl.u32 %v2442, 7
  %v2444 = vsub.s32 %v2441, %v2443
  %v2445 = vrot.slane %v2431, %v2444
  %v2446 = vcombine.low %v2421, %v2429
  %v2447 = vcombine.high %v2421, %v2429
  %v2449 = vunpack.c.l.s4 1934713408
  %v2450 = vunpack.c.0.s8 %v2449
  %v2451 = vlaneseq
  %v2452 = vshrl.u32 %v2451, 7
  %v2453 = vsub.s32 %v2450, %v2452
  %v2454 = vrot.slane %v2446, %v2453
  %v2456 = vunpack.c.l.s4 1934713408
  %v2457 = vunpack.c.0.s8 %v2456
  %v2458 = vlaneseq
  %v2459 = vshrl.u32 %v2458, 7
  %v2460 = vsub.s32 %v2457, %v2459
  %v2461 = vrot.slane %v2447, %v2460
  %v2462 = vcombine.low %v2438, %v2454
  %v2463 = vcombine.high %v2438, %v2454
  %v2464 = vcombine.low %v2445, %v2461
  %v2465 = vcombine.high %v2445, %v2461
  %v2466 = vpack.c.bf16 %v2258, %v2258
  %v2467 = vpack.c.bf16 %v2326, %v2326
  %v2468 = vpack.c.bf16 %v2394, %v2394
  %v2469 = vpack.c.bf16 %v2462, %v2462
  %v2470 = vpack.c.bf16 %v2259, %v2259
  %v2471 = vpack.c.bf16 %v2327, %v2327
  %v2472 = vpack.c.bf16 %v2395, %v2395
  %v2473 = vpack.c.bf16 %v2463, %v2463
  %v2474 = vpack.c.bf16 %v2260, %v2260
  %v2475 = vpack.c.bf16 %v2328, %v2328
  %v2476 = vpack.c.bf16 %v2396, %v2396
  %v2477 = vpack.c.bf16 %v2464, %v2464
  %v2478 = vpack.c.bf16 %v2261, %v2261
  %v2479 = vpack.c.bf16 %v2329, %v2329
  %v2480 = vpack.c.bf16 %v2397, %v2397
  %v2481 = vpack.c.bf16 %v2465, %v2465
  %2486 = vrot.lane.b32.xlu0 %v1266, 96
  %v2487 = vpop.permute.xlu0 %2486
  %2488 = vrot.lane.b32.xlu0 %v1270, 96
  %v2489 = vpop.permute.xlu0 %2488
  %2490 = vrot.lane.b32.xlu0 %v1276, 96
  %v2491 = vpop.permute.xlu0 %2490
  %2492 = vrot.lane.b32.xlu0 %v1280, 96
  %v2493 = vpop.permute.xlu0 %2492
  %2498 = vrot.lane.b32.xlu0 %v1266, 64
  %v2499 = vpop.permute.xlu0 %2498
  %2500 = vrot.lane.b32.xlu0 %v1270, 64
  %v2501 = vpop.permute.xlu0 %2500
  %2502 = vrot.lane.b32.xlu0 %v1276, 64
  %v2503 = vpop.permute.xlu0 %2502
  %2504 = vrot.lane.b32.xlu0 %v1280, 64
  %v2505 = vpop.permute.xlu0 %2504
  %2510 = vrot.lane.b32.xlu0 %v1266, 32
  %v2511 = vpop.permute.xlu0 %2510
  %2512 = vrot.lane.b32.xlu0 %v1270, 32
  %v2513 = vpop.permute.xlu0 %2512
  %2514 = vrot.lane.b32.xlu0 %v1276, 32
  %v2515 = vpop.permute.xlu0 %2514
  %2516 = vrot.lane.b32.xlu0 %v1280, 32
  %v2517 = vpop.permute.xlu0 %2516
  %v2522 = vcombine.low %v1266, %v2499
  %v2523 = vcombine.high %v1266, %v2499
  %v2525 = vunpack.c.l.s4 1983009808
  %v2526 = vunpack.c.0.s8 %v2525
  %v2527 = vlaneseq
  %v2528 = vshrl.u32 %v2527, 7
  %v2529 = vsub.s32 %v2526, %v2528
  %v2530 = vrot.slane %v2522, %v2529
  %v2532 = vunpack.c.l.s4 1983009808
  %v2533 = vunpack.c.0.s8 %v2532
  %v2534 = vlaneseq
  %v2535 = vshrl.u32 %v2534, 7
  %v2536 = vsub.s32 %v2533, %v2535
  %v2537 = vrot.slane %v2523, %v2536
  %v2538 = vcombine.low %v2487, %v2511
  %v2539 = vcombine.high %v2487, %v2511
  %v2541 = vunpack.c.l.s4 1983009808
  %v2542 = vunpack.c.0.s8 %v2541
  %v2543 = vlaneseq
  %v2544 = vshrl.u32 %v2543, 7
  %v2545 = vsub.s32 %v2542, %v2544
  %v2546 = vrot.slane %v2538, %v2545
  %v2548 = vunpack.c.l.s4 1983009808
  %v2549 = vunpack.c.0.s8 %v2548
  %v2550 = vlaneseq
  %v2551 = vshrl.u32 %v2550, 7
  %v2552 = vsub.s32 %v2549, %v2551
  %v2553 = vrot.slane %v2539, %v2552
  %v2554 = vcombine.low %v2530, %v2546
  %v2555 = vcombine.high %v2530, %v2546
  %v2557 = vunpack.c.l.s4 1934713408
  %v2558 = vunpack.c.0.s8 %v2557
  %v2559 = vlaneseq
  %v2560 = vshrl.u32 %v2559, 7
  %v2561 = vsub.s32 %v2558, %v2560
  %v2562 = vrot.slane %v2554, %v2561
  %v2564 = vunpack.c.l.s4 1934713408
  %v2565 = vunpack.c.0.s8 %v2564
  %v2566 = vlaneseq
  %v2567 = vshrl.u32 %v2566, 7
  %v2568 = vsub.s32 %v2565, %v2567
  %v2569 = vrot.slane %v2555, %v2568
  %v2570 = vcombine.low %v2537, %v2553
  %v2571 = vcombine.high %v2537, %v2553
  %v2573 = vunpack.c.l.s4 1934713408
  %v2574 = vunpack.c.0.s8 %v2573
  %v2575 = vlaneseq
  %v2576 = vshrl.u32 %v2575, 7
  %v2577 = vsub.s32 %v2574, %v2576
  %v2578 = vrot.slane %v2570, %v2577
  %v2580 = vunpack.c.l.s4 1934713408
  %v2581 = vunpack.c.0.s8 %v2580
  %v2582 = vlaneseq
  %v2583 = vshrl.u32 %v2582, 7
  %v2584 = vsub.s32 %v2581, %v2583
  %v2585 = vrot.slane %v2571, %v2584
  %v2586 = vcombine.high %v2562, 0.0
  %v2587 = vcombine.high %v2569, 0.0
  %v2588 = vcombine.high %v2578, 0.0
  %v2589 = vcombine.high %v2585, 0.0
  %v2590 = vcombine.low %v1270, %v2501
  %v2591 = vcombine.high %v1270, %v2501
  %v2593 = vunpack.c.l.s4 1983009808
  %v2594 = vunpack.c.0.s8 %v2593
  %v2595 = vlaneseq
  %v2596 = vshrl.u32 %v2595, 7
  %v2597 = vsub.s32 %v2594, %v2596
  %v2598 = vrot.slane %v2590, %v2597
  %v2600 = vunpack.c.l.s4 1983009808
  %v2601 = vunpack.c.0.s8 %v2600
  %v2602 = vlaneseq
  %v2603 = vshrl.u32 %v2602, 7
  %v2604 = vsub.s32 %v2601, %v2603
  %v2605 = vrot.slane %v2591, %v2604
  %v2606 = vcombine.low %v2489, %v2513
  %v2607 = vcombine.high %v2489, %v2513
  %v2609 = vunpack.c.l.s4 1983009808
  %v2610 = vunpack.c.0.s8 %v2609
  %v2611 = vlaneseq
  %v2612 = vshrl.u32 %v2611, 7
  %v2613 = vsub.s32 %v2610, %v2612
  %v2614 = vrot.slane %v2606, %v2613
  %v2616 = vunpack.c.l.s4 1983009808
  %v2617 = vunpack.c.0.s8 %v2616
  %v2618 = vlaneseq
  %v2619 = vshrl.u32 %v2618, 7
  %v2620 = vsub.s32 %v2617, %v2619
  %v2621 = vrot.slane %v2607, %v2620
  %v2622 = vcombine.low %v2598, %v2614
  %v2623 = vcombine.high %v2598, %v2614
  %v2625 = vunpack.c.l.s4 1934713408
  %v2626 = vunpack.c.0.s8 %v2625
  %v2627 = vlaneseq
  %v2628 = vshrl.u32 %v2627, 7
  %v2629 = vsub.s32 %v2626, %v2628
  %v2630 = vrot.slane %v2622, %v2629
  %v2632 = vunpack.c.l.s4 1934713408
  %v2633 = vunpack.c.0.s8 %v2632
  %v2634 = vlaneseq
  %v2635 = vshrl.u32 %v2634, 7
  %v2636 = vsub.s32 %v2633, %v2635
  %v2637 = vrot.slane %v2623, %v2636
  %v2638 = vcombine.low %v2605, %v2621
  %v2639 = vcombine.high %v2605, %v2621
  %v2641 = vunpack.c.l.s4 1934713408
  %v2642 = vunpack.c.0.s8 %v2641
  %v2643 = vlaneseq
  %v2644 = vshrl.u32 %v2643, 7
  %v2645 = vsub.s32 %v2642, %v2644
  %v2646 = vrot.slane %v2638, %v2645
  %v2648 = vunpack.c.l.s4 1934713408
  %v2649 = vunpack.c.0.s8 %v2648
  %v2650 = vlaneseq
  %v2651 = vshrl.u32 %v2650, 7
  %v2652 = vsub.s32 %v2649, %v2651
  %v2653 = vrot.slane %v2639, %v2652
  %v2654 = vcombine.high %v2630, 0.0
  %v2655 = vcombine.high %v2637, 0.0
  %v2656 = vcombine.high %v2646, 0.0
  %v2657 = vcombine.high %v2653, 0.0
  %v2658 = vcombine.low %v1276, %v2503
  %v2659 = vcombine.high %v1276, %v2503
  %v2661 = vunpack.c.l.s4 1983009808
  %v2662 = vunpack.c.0.s8 %v2661
  %v2663 = vlaneseq
  %v2664 = vshrl.u32 %v2663, 7
  %v2665 = vsub.s32 %v2662, %v2664
  %v2666 = vrot.slane %v2658, %v2665
  %v2668 = vunpack.c.l.s4 1983009808
  %v2669 = vunpack.c.0.s8 %v2668
  %v2670 = vlaneseq
  %v2671 = vshrl.u32 %v2670, 7
  %v2672 = vsub.s32 %v2669, %v2671
  %v2673 = vrot.slane %v2659, %v2672
  %v2674 = vcombine.low %v2491, %v2515
  %v2675 = vcombine.high %v2491, %v2515
  %v2677 = vunpack.c.l.s4 1983009808
  %v2678 = vunpack.c.0.s8 %v2677
  %v2679 = vlaneseq
  %v2680 = vshrl.u32 %v2679, 7
  %v2681 = vsub.s32 %v2678, %v2680
  %v2682 = vrot.slane %v2674, %v2681
  %v2684 = vunpack.c.l.s4 1983009808
  %v2685 = vunpack.c.0.s8 %v2684
  %v2686 = vlaneseq
  %v2687 = vshrl.u32 %v2686, 7
  %v2688 = vsub.s32 %v2685, %v2687
  %v2689 = vrot.slane %v2675, %v2688
  %v2690 = vcombine.low %v2666, %v2682
  %v2691 = vcombine.high %v2666, %v2682
  %v2693 = vunpack.c.l.s4 1934713408
  %v2694 = vunpack.c.0.s8 %v2693
  %v2695 = vlaneseq
  %v2696 = vshrl.u32 %v2695, 7
  %v2697 = vsub.s32 %v2694, %v2696
  %v2698 = vrot.slane %v2690, %v2697
  %v2700 = vunpack.c.l.s4 1934713408
  %v2701 = vunpack.c.0.s8 %v2700
  %v2702 = vlaneseq
  %v2703 = vshrl.u32 %v2702, 7
  %v2704 = vsub.s32 %v2701, %v2703
  %v2705 = vrot.slane %v2691, %v2704
  %v2706 = vcombine.low %v2673, %v2689
  %v2707 = vcombine.high %v2673, %v2689
  %v2709 = vunpack.c.l.s4 1934713408
  %v2710 = vunpack.c.0.s8 %v2709
  %v2711 = vlaneseq
  %v2712 = vshrl.u32 %v2711, 7
  %v2713 = vsub.s32 %v2710, %v2712
  %v2714 = vrot.slane %v2706, %v2713
  %v2716 = vunpack.c.l.s4 1934713408
  %v2717 = vunpack.c.0.s8 %v2716
  %v2718 = vlaneseq
  %v2719 = vshrl.u32 %v2718, 7
  %v2720 = vsub.s32 %v2717, %v2719
  %v2721 = vrot.slane %v2707, %v2720
  %v2722 = vcombine.high %v2698, 0.0
  %v2723 = vcombine.high %v2705, 0.0
  %v2724 = vcombine.high %v2714, 0.0
  %v2725 = vcombine.high %v2721, 0.0
  %v2726 = vcombine.low %v1280, %v2505
  %v2727 = vcombine.high %v1280, %v2505
  %v2729 = vunpack.c.l.s4 1983009808
  %v2730 = vunpack.c.0.s8 %v2729
  %v2731 = vlaneseq
  %v2732 = vshrl.u32 %v2731, 7
  %v2733 = vsub.s32 %v2730, %v2732
  %v2734 = vrot.slane %v2726, %v2733
  %v2736 = vunpack.c.l.s4 1983009808
  %v2737 = vunpack.c.0.s8 %v2736
  %v2738 = vlaneseq
  %v2739 = vshrl.u32 %v2738, 7
  %v2740 = vsub.s32 %v2737, %v2739
  %v2741 = vrot.slane %v2727, %v2740
  %v2742 = vcombine.low %v2493, %v2517
  %v2743 = vcombine.high %v2493, %v2517
  %v2745 = vunpack.c.l.s4 1983009808
  %v2746 = vunpack.c.0.s8 %v2745
  %v2747 = vlaneseq
  %v2748 = vshrl.u32 %v2747, 7
  %v2749 = vsub.s32 %v2746, %v2748
  %v2750 = vrot.slane %v2742, %v2749
  %v2752 = vunpack.c.l.s4 1983009808
  %v2753 = vunpack.c.0.s8 %v2752
  %v2754 = vlaneseq
  %v2755 = vshrl.u32 %v2754, 7
  %v2756 = vsub.s32 %v2753, %v2755
  %v2757 = vrot.slane %v2743, %v2756
  %v2758 = vcombine.low %v2734, %v2750
  %v2759 = vcombine.high %v2734, %v2750
  %v2761 = vunpack.c.l.s4 1934713408
  %v2762 = vunpack.c.0.s8 %v2761
  %v2763 = vlaneseq
  %v2764 = vshrl.u32 %v2763, 7
  %v2765 = vsub.s32 %v2762, %v2764
  %v2766 = vrot.slane %v2758, %v2765
  %v2768 = vunpack.c.l.s4 1934713408
  %v2769 = vunpack.c.0.s8 %v2768
  %v2770 = vlaneseq
  %v2771 = vshrl.u32 %v2770, 7
  %v2772 = vsub.s32 %v2769, %v2771
  %v2773 = vrot.slane %v2759, %v2772
  %v2774 = vcombine.low %v2741, %v2757
  %v2775 = vcombine.high %v2741, %v2757
  %v2777 = vunpack.c.l.s4 1934713408
  %v2778 = vunpack.c.0.s8 %v2777
  %v2779 = vlaneseq
  %v2780 = vshrl.u32 %v2779, 7
  %v2781 = vsub.s32 %v2778, %v2780
  %v2782 = vrot.slane %v2774, %v2781
  %v2784 = vunpack.c.l.s4 1934713408
  %v2785 = vunpack.c.0.s8 %v2784
  %v2786 = vlaneseq
  %v2787 = vshrl.u32 %v2786, 7
  %v2788 = vsub.s32 %v2785, %v2787
  %v2789 = vrot.slane %v2775, %v2788
  %v2790 = vcombine.high %v2766, 0.0
  %v2791 = vcombine.high %v2773, 0.0
  %v2792 = vcombine.high %v2782, 0.0
  %v2793 = vcombine.high %v2789, 0.0
  %v2794 = vcombine.low %v2562, %v2569
  %v2796 = vunpack.c.l.s4 1983009808
  %v2797 = vunpack.c.0.s8 %v2796
  %v2798 = vlaneseq
  %v2799 = vshrl.u32 %v2798, 7
  %v2800 = vsub.s32 %v2797, %v2799
  %v2801 = vrot.slane %v2794, %v2800
  %v2802 = vcombine.low %v2586, %v2587
  %v2804 = vunpack.c.l.s4 1983009808
  %v2805 = vunpack.c.0.s8 %v2804
  %v2806 = vlaneseq
  %v2807 = vshrl.u32 %v2806, 7
  %v2808 = vsub.s32 %v2805, %v2807
  %v2809 = vrot.slane %v2802, %v2808
  %v2810 = vcombine.low %v2578, %v2585
  %v2812 = vunpack.c.l.s4 1983009808
  %v2813 = vunpack.c.0.s8 %v2812
  %v2814 = vlaneseq
  %v2815 = vshrl.u32 %v2814, 7
  %v2816 = vsub.s32 %v2813, %v2815
  %v2817 = vrot.slane %v2810, %v2816
  %v2818 = vcombine.low %v2588, %v2589
  %v2820 = vunpack.c.l.s4 1983009808
  %v2821 = vunpack.c.0.s8 %v2820
  %v2822 = vlaneseq
  %v2823 = vshrl.u32 %v2822, 7
  %v2824 = vsub.s32 %v2821, %v2823
  %v2825 = vrot.slane %v2818, %v2824
  %v2826 = vcombine.low %v2801, %v2809
  %v2827 = vcombine.high %v2801, %v2809
  %v2829 = vunpack.c.l.s4 1934713408
  %v2830 = vunpack.c.0.s8 %v2829
  %v2831 = vlaneseq
  %v2832 = vshrl.u32 %v2831, 7
  %v2833 = vsub.s32 %v2830, %v2832
  %v2834 = vrot.slane %v2826, %v2833
  %v2836 = vunpack.c.l.s4 1934713408
  %v2837 = vunpack.c.0.s8 %v2836
  %v2838 = vlaneseq
  %v2839 = vshrl.u32 %v2838, 7
  %v2840 = vsub.s32 %v2837, %v2839
  %v2841 = vrot.slane %v2827, %v2840
  %v2842 = vcombine.low %v2817, %v2825
  %v2843 = vcombine.high %v2817, %v2825
  %v2845 = vunpack.c.l.s4 1934713408
  %v2846 = vunpack.c.0.s8 %v2845
  %v2847 = vlaneseq
  %v2848 = vshrl.u32 %v2847, 7
  %v2849 = vsub.s32 %v2846, %v2848
  %v2850 = vrot.slane %v2842, %v2849
  %v2852 = vunpack.c.l.s4 1934713408
  %v2853 = vunpack.c.0.s8 %v2852
  %v2854 = vlaneseq
  %v2855 = vshrl.u32 %v2854, 7
  %v2856 = vsub.s32 %v2853, %v2855
  %v2857 = vrot.slane %v2843, %v2856
  %v2858 = vcombine.low %v2834, %v2850
  %v2859 = vcombine.high %v2834, %v2850
  %v2860 = vcombine.low %v2841, %v2857
  %v2861 = vcombine.high %v2841, %v2857
  %v2862 = vcombine.low %v2630, %v2637
  %v2864 = vunpack.c.l.s4 1983009808
  %v2865 = vunpack.c.0.s8 %v2864
  %v2866 = vlaneseq
  %v2867 = vshrl.u32 %v2866, 7
  %v2868 = vsub.s32 %v2865, %v2867
  %v2869 = vrot.slane %v2862, %v2868
  %v2870 = vcombine.low %v2654, %v2655
  %v2872 = vunpack.c.l.s4 1983009808
  %v2873 = vunpack.c.0.s8 %v2872
  %v2874 = vlaneseq
  %v2875 = vshrl.u32 %v2874, 7
  %v2876 = vsub.s32 %v2873, %v2875
  %v2877 = vrot.slane %v2870, %v2876
  %v2878 = vcombine.low %v2646, %v2653
  %v2880 = vunpack.c.l.s4 1983009808
  %v2881 = vunpack.c.0.s8 %v2880
  %v2882 = vlaneseq
  %v2883 = vshrl.u32 %v2882, 7
  %v2884 = vsub.s32 %v2881, %v2883
  %v2885 = vrot.slane %v2878, %v2884
  %v2886 = vcombine.low %v2656, %v2657
  %v2888 = vunpack.c.l.s4 1983009808
  %v2889 = vunpack.c.0.s8 %v2888
  %v2890 = vlaneseq
  %v2891 = vshrl.u32 %v2890, 7
  %v2892 = vsub.s32 %v2889, %v2891
  %v2893 = vrot.slane %v2886, %v2892
  %v2894 = vcombine.low %v2869, %v2877
  %v2895 = vcombine.high %v2869, %v2877
  %v2897 = vunpack.c.l.s4 1934713408
  %v2898 = vunpack.c.0.s8 %v2897
  %v2899 = vlaneseq
  %v2900 = vshrl.u32 %v2899, 7
  %v2901 = vsub.s32 %v2898, %v2900
  %v2902 = vrot.slane %v2894, %v2901
  %v2904 = vunpack.c.l.s4 1934713408
  %v2905 = vunpack.c.0.s8 %v2904
  %v2906 = vlaneseq
  %v2907 = vshrl.u32 %v2906, 7
  %v2908 = vsub.s32 %v2905, %v2907
  %v2909 = vrot.slane %v2895, %v2908
  %v2910 = vcombine.low %v2885, %v2893
  %v2911 = vcombine.high %v2885, %v2893
  %v2913 = vunpack.c.l.s4 1934713408
  %v2914 = vunpack.c.0.s8 %v2913
  %v2915 = vlaneseq
  %v2916 = vshrl.u32 %v2915, 7
  %v2917 = vsub.s32 %v2914, %v2916
  %v2918 = vrot.slane %v2910, %v2917
  %v2920 = vunpack.c.l.s4 1934713408
  %v2921 = vunpack.c.0.s8 %v2920
  %v2922 = vlaneseq
  %v2923 = vshrl.u32 %v2922, 7
  %v2924 = vsub.s32 %v2921, %v2923
  %v2925 = vrot.slane %v2911, %v2924
  %v2926 = vcombine.low %v2902, %v2918
  %v2927 = vcombine.high %v2902, %v2918
  %v2928 = vcombine.low %v2909, %v2925
  %v2929 = vcombine.high %v2909, %v2925
  %v2930 = vcombine.low %v2698, %v2705
  %v2932 = vunpack.c.l.s4 1983009808
  %v2933 = vunpack.c.0.s8 %v2932
  %v2934 = vlaneseq
  %v2935 = vshrl.u32 %v2934, 7
  %v2936 = vsub.s32 %v2933, %v2935
  %v2937 = vrot.slane %v2930, %v2936
  %v2938 = vcombine.low %v2722, %v2723
  %v2940 = vunpack.c.l.s4 1983009808
  %v2941 = vunpack.c.0.s8 %v2940
  %v2942 = vlaneseq
  %v2943 = vshrl.u32 %v2942, 7
  %v2944 = vsub.s32 %v2941, %v2943
  %v2945 = vrot.slane %v2938, %v2944
  %v2946 = vcombine.low %v2714, %v2721
  %v2948 = vunpack.c.l.s4 1983009808
  %v2949 = vunpack.c.0.s8 %v2948
  %v2950 = vlaneseq
  %v2951 = vshrl.u32 %v2950, 7
  %v2952 = vsub.s32 %v2949, %v2951
  %v2953 = vrot.slane %v2946, %v2952
  %v2954 = vcombine.low %v2724, %v2725
  %v2956 = vunpack.c.l.s4 1983009808
  %v2957 = vunpack.c.0.s8 %v2956
  %v2958 = vlaneseq
  %v2959 = vshrl.u32 %v2958, 7
  %v2960 = vsub.s32 %v2957, %v2959
  %v2961 = vrot.slane %v2954, %v2960
  %v2962 = vcombine.low %v2937, %v2945
  %v2963 = vcombine.high %v2937, %v2945
  %v2965 = vunpack.c.l.s4 1934713408
  %v2966 = vunpack.c.0.s8 %v2965
  %v2967 = vlaneseq
  %v2968 = vshrl.u32 %v2967, 7
  %v2969 = vsub.s32 %v2966, %v2968
  %v2970 = vrot.slane %v2962, %v2969
  %v2972 = vunpack.c.l.s4 1934713408
  %v2973 = vunpack.c.0.s8 %v2972
  %v2974 = vlaneseq
  %v2975 = vshrl.u32 %v2974, 7
  %v2976 = vsub.s32 %v2973, %v2975
  %v2977 = vrot.slane %v2963, %v2976
  %v2978 = vcombine.low %v2953, %v2961
  %v2979 = vcombine.high %v2953, %v2961
  %v2981 = vunpack.c.l.s4 1934713408
  %v2982 = vunpack.c.0.s8 %v2981
  %v2983 = vlaneseq
  %v2984 = vshrl.u32 %v2983, 7
  %v2985 = vsub.s32 %v2982, %v2984
  %v2986 = vrot.slane %v2978, %v2985
  %v2988 = vunpack.c.l.s4 1934713408
  %v2989 = vunpack.c.0.s8 %v2988
  %v2990 = vlaneseq
  %v2991 = vshrl.u32 %v2990, 7
  %v2992 = vsub.s32 %v2989, %v2991
  %v2993 = vrot.slane %v2979, %v2992
  %v2994 = vcombine.low %v2970, %v2986
  %v2995 = vcombine.high %v2970, %v2986
  %v2996 = vcombine.low %v2977, %v2993
  %v2997 = vcombine.high %v2977, %v2993
  %v2998 = vcombine.low %v2766, %v2773
  %v3000 = vunpack.c.l.s4 1983009808
  %v3001 = vunpack.c.0.s8 %v3000
  %v3002 = vlaneseq
  %v3003 = vshrl.u32 %v3002, 7
  %v3004 = vsub.s32 %v3001, %v3003
  %v3005 = vrot.slane %v2998, %v3004
  %v3006 = vcombine.low %v2790, %v2791
  %v3008 = vunpack.c.l.s4 1983009808
  %v3009 = vunpack.c.0.s8 %v3008
  %v3010 = vlaneseq
  %v3011 = vshrl.u32 %v3010, 7
  %v3012 = vsub.s32 %v3009, %v3011
  %v3013 = vrot.slane %v3006, %v3012
  %v3014 = vcombine.low %v2782, %v2789
  %v3016 = vunpack.c.l.s4 1983009808
  %v3017 = vunpack.c.0.s8 %v3016
  %v3018 = vlaneseq
  %v3019 = vshrl.u32 %v3018, 7
  %v3020 = vsub.s32 %v3017, %v3019
  %v3021 = vrot.slane %v3014, %v3020
  %v3022 = vcombine.low %v2792, %v2793
  %v3024 = vunpack.c.l.s4 1983009808
  %v3025 = vunpack.c.0.s8 %v3024
  %v3026 = vlaneseq
  %v3027 = vshrl.u32 %v3026, 7
  %v3028 = vsub.s32 %v3025, %v3027
  %v3029 = vrot.slane %v3022, %v3028
  %v3030 = vcombine.low %v3005, %v3013
  %v3031 = vcombine.high %v3005, %v3013
  %v3033 = vunpack.c.l.s4 1934713408
  %v3034 = vunpack.c.0.s8 %v3033
  %v3035 = vlaneseq
  %v3036 = vshrl.u32 %v3035, 7
  %v3037 = vsub.s32 %v3034, %v3036
  %v3038 = vrot.slane %v3030, %v3037
  %v3040 = vunpack.c.l.s4 1934713408
  %v3041 = vunpack.c.0.s8 %v3040
  %v3042 = vlaneseq
  %v3043 = vshrl.u32 %v3042, 7
  %v3044 = vsub.s32 %v3041, %v3043
  %v3045 = vrot.slane %v3031, %v3044
  %v3046 = vcombine.low %v3021, %v3029
  %v3047 = vcombine.high %v3021, %v3029
  %v3049 = vunpack.c.l.s4 1934713408
  %v3050 = vunpack.c.0.s8 %v3049
  %v3051 = vlaneseq
  %v3052 = vshrl.u32 %v3051, 7
  %v3053 = vsub.s32 %v3050, %v3052
  %v3054 = vrot.slane %v3046, %v3053
  %v3056 = vunpack.c.l.s4 1934713408
  %v3057 = vunpack.c.0.s8 %v3056
  %v3058 = vlaneseq
  %v3059 = vshrl.u32 %v3058, 7
  %v3060 = vsub.s32 %v3057, %v3059
  %v3061 = vrot.slane %v3047, %v3060
  %v3062 = vcombine.low %v3038, %v3054
  %v3063 = vcombine.high %v3038, %v3054
  %v3064 = vcombine.low %v3045, %v3061
  %v3065 = vcombine.high %v3045, %v3061
  %v3066 = vpack.c.bf16 %v2858, %v2858
  %v3067 = vpack.c.bf16 %v2926, %v2926
  %v3068 = vpack.c.bf16 %v2994, %v2994
  %v3069 = vpack.c.bf16 %v3062, %v3062
  %v3070 = vpack.c.bf16 %v2859, %v2859
  %v3071 = vpack.c.bf16 %v2927, %v2927
  %v3072 = vpack.c.bf16 %v2995, %v2995
  %v3073 = vpack.c.bf16 %v3063, %v3063
  %v3074 = vpack.c.bf16 %v2860, %v2860
  %v3075 = vpack.c.bf16 %v2928, %v2928
  %v3076 = vpack.c.bf16 %v2996, %v2996
  %v3077 = vpack.c.bf16 %v3064, %v3064
  %v3078 = vpack.c.bf16 %v2861, %v2861
  %v3079 = vpack.c.bf16 %v2929, %v2929
  %v3080 = vpack.c.bf16 %v2997, %v2997
  %v3081 = vpack.c.bf16 %v3065, %v3065
  %vm3082 = vcmask 261120
  %v3084 = vsel %vm3082, %v1866, 0
  %v3087 = vsel %vm3082, %v2466, 0
  %3089 = vmatprep.subr.bf16.mxu0 0
  %3090 = vmatpush1.bf16.xpose.msra.mxu0 0
  %3091 = vmatprep.subr.bf16.mxu0 0
  %3092 = vmatpush1.bf16.xpose.msra.mxu0 0
  %3093 = vmatprep.subr.bf16.mxu0 0
  %3094 = vmatpush1.bf16.xpose.msra.mxu0 0
  %3095 = vmatprep.subr.bf16.mxu0 0
  %3096 = vmatpush1.bf16.xpose.msra.mxu0 0
  %3097 = vmatprep.subr.bf16.mxu0 0
  %3098 = vmatpush1.bf16.xpose.msra.mxu0 0
  %3099 = vmatprep.subr.bf16.mxu0 0
  %3100 = vmatpush1.bf16.xpose.msra.mxu0 0
  %3101 = vmatprep.subr.bf16.mxu0 0
  %3102 = vmatpush1.bf16.xpose.msra.mxu0 0
  %3103 = vmatprep.subr.bf16.mxu0 0
  %3104 = vmatpush1.bf16.xpose.msra.mxu0 %v3087
  %3105 = vmatprep.subr.bf16.mxu0 0
  %3106 = vmatpush2.bf16.xpose.msra.mxu0 0
  %3107 = vmatprep.subr.bf16.mxu0 0
  %3108 = vmatpush2.bf16.xpose.msra.mxu0 0
  %3109 = vmatprep.subr.bf16.mxu0 0
  %3110 = vmatpush2.bf16.xpose.msra.mxu0 0
  %3111 = vmatprep.subr.bf16.mxu0 0
  %3112 = vmatpush2.bf16.xpose.msra.mxu0 0
  %3113 = vmatprep.subr.bf16.mxu0 0
  %3114 = vmatpush2.bf16.xpose.msra.mxu0 0
  %3115 = vmatprep.subr.bf16.mxu0 0
  %3116 = vmatpush2.bf16.xpose.msra.mxu0 0
  %3117 = vmatprep.subr.bf16.mxu0 0
  %3118 = vmatpush2.bf16.xpose.msra.mxu0 0
  %3119 = vmatprep.subr.bf16.mxu0 0
  %3120 = vmatpush2.bf16.xpose.msra.mxu0 0
  %3121 = vmatprep.mubr.bf16.mxu0 0
  %3122 = vmatmul.mubr.bf16.gmra.mxu0 %v3084
  %v3123 = vpop.f32.mrf.mxu0
  %v3124 = vadd.f32 0.0, %v3123
  %v3125 = vpop.f32.mrf.mxu0
  %v3126 = vpop.f32.mrf.mxu0
  %v3127 = vpop.f32.mrf.mxu0
  %3128 = vdwg.mxu0
  %v3130 = vsel %vm3082, %v1867, 0
  %v3133 = vsel %vm3082, %v2467, 0
  %3135 = vmatprep.subr.bf16.mxu0 0
  %3136 = vmatpush1.bf16.xpose.msra.mxu0 0
  %3137 = vmatprep.subr.bf16.mxu0 0
  %3138 = vmatpush1.bf16.xpose.msra.mxu0 0
  %3139 = vmatprep.subr.bf16.mxu0 0
  %3140 = vmatpush1.bf16.xpose.msra.mxu0 0
  %3141 = vmatprep.subr.bf16.mxu0 0
  %3142 = vmatpush1.bf16.xpose.msra.mxu0 0
  %3143 = vmatprep.subr.bf16.mxu0 0
  %3144 = vmatpush1.bf16.xpose.msra.mxu0 0
  %3145 = vmatprep.subr.bf16.mxu0 0
  %3146 = vmatpush1.bf16.xpose.msra.mxu0 0
  %3147 = vmatprep.subr.bf16.mxu0 0
  %3148 = vmatpush1.bf16.xpose.msra.mxu0 0
  %3149 = vmatprep.subr.bf16.mxu0 0
  %3150 = vmatpush1.bf16.xpose.msra.mxu0 %v3133
  %3151 = vmatprep.subr.bf16.mxu0 0
  %3152 = vmatpush2.bf16.xpose.msra.mxu0 0
  %3153 = vmatprep.subr.bf16.mxu0 0
  %3154 = vmatpush2.bf16.xpose.msra.mxu0 0
  %3155 = vmatprep.subr.bf16.mxu0 0
  %3156 = vmatpush2.bf16.xpose.msra.mxu0 0
  %3157 = vmatprep.subr.bf16.mxu0 0
  %3158 = vmatpush2.bf16.xpose.msra.mxu0 0
  %3159 = vmatprep.subr.bf16.mxu0 0
  %3160 = vmatpush2.bf16.xpose.msra.mxu0 0
  %3161 = vmatprep.subr.bf16.mxu0 0
  %3162 = vmatpush2.bf16.xpose.msra.mxu0 0
  %3163 = vmatprep.subr.bf16.mxu0 0
  %3164 = vmatpush2.bf16.xpose.msra.mxu0 0
  %3165 = vmatprep.subr.bf16.mxu0 0
  %3166 = vmatpush2.bf16.xpose.msra.mxu0 0
  %3167 = vmatprep.mubr.bf16.mxu0 0
  %3168 = vmatmul.mubr.bf16.gmra.mxu0 %v3130
  %v3169 = vpop.f32.mrf.mxu0
  %v3170 = vadd.f32 0.0, %v3169
  %v3171 = vpop.f32.mrf.mxu0
  %v3172 = vpop.f32.mrf.mxu0
  %v3173 = vpop.f32.mrf.mxu0
  %3174 = vdwg.mxu0
  %v3176 = vsel %vm3082, %v1868, 0
  %v3179 = vsel %vm3082, %v2468, 0
  %3181 = vmatprep.subr.bf16.mxu0 0
  %3182 = vmatpush1.bf16.xpose.msra.mxu0 0
  %3183 = vmatprep.subr.bf16.mxu0 0
  %3184 = vmatpush1.bf16.xpose.msra.mxu0 0
  %3185 = vmatprep.subr.bf16.mxu0 0
  %3186 = vmatpush1.bf16.xpose.msra.mxu0 0
  %3187 = vmatprep.subr.bf16.mxu0 0
  %3188 = vmatpush1.bf16.xpose.msra.mxu0 0
  %3189 = vmatprep.subr.bf16.mxu0 0
  %3190 = vmatpush1.bf16.xpose.msra.mxu0 0
  %3191 = vmatprep.subr.bf16.mxu0 0
  %3192 = vmatpush1.bf16.xpose.msra.mxu0 0
  %3193 = vmatprep.subr.bf16.mxu0 0
  %3194 = vmatpush1.bf16.xpose.msra.mxu0 0
  %3195 = vmatprep.subr.bf16.mxu0 0
  %3196 = vmatpush1.bf16.xpose.msra.mxu0 %v3179
  %3197 = vmatprep.subr.bf16.mxu0 0
  %3198 = vmatpush2.bf16.xpose.msra.mxu0 0
  %3199 = vmatprep.subr.bf16.mxu0 0
  %3200 = vmatpush2.bf16.xpose.msra.mxu0 0
  %3201 = vmatprep.subr.bf16.mxu0 0
  %3202 = vmatpush2.bf16.xpose.msra.mxu0 0
  %3203 = vmatprep.subr.bf16.mxu0 0
  %3204 = vmatpush2.bf16.xpose.msra.mxu0 0
  %3205 = vmatprep.subr.bf16.mxu0 0
  %3206 = vmatpush2.bf16.xpose.msra.mxu0 0
  %3207 = vmatprep.subr.bf16.mxu0 0
  %3208 = vmatpush2.bf16.xpose.msra.mxu0 0
  %3209 = vmatprep.subr.bf16.mxu0 0
  %3210 = vmatpush2.bf16.xpose.msra.mxu0 0
  %3211 = vmatprep.subr.bf16.mxu0 0
  %3212 = vmatpush2.bf16.xpose.msra.mxu0 0
  %3213 = vmatprep.mubr.bf16.mxu0 0
  %3214 = vmatmul.mubr.bf16.gmra.mxu0 %v3176
  %v3215 = vpop.f32.mrf.mxu0
  %v3216 = vadd.f32 0.0, %v3215
  %v3217 = vpop.f32.mrf.mxu0
  %v3218 = vpop.f32.mrf.mxu0
  %v3219 = vpop.f32.mrf.mxu0
  %3220 = vdwg.mxu0
  %v3222 = vsel %vm3082, %v1869, 0
  %v3225 = vsel %vm3082, %v2469, 0
  %3227 = vmatprep.subr.bf16.mxu0 0
  %3228 = vmatpush1.bf16.xpose.msra.mxu0 0
  %3229 = vmatprep.subr.bf16.mxu0 0
  %3230 = vmatpush1.bf16.xpose.msra.mxu0 0
  %3231 = vmatprep.subr.bf16.mxu0 0
  %3232 = vmatpush1.bf16.xpose.msra.mxu0 0
  %3233 = vmatprep.subr.bf16.mxu0 0
  %3234 = vmatpush1.bf16.xpose.msra.mxu0 0
  %3235 = vmatprep.subr.bf16.mxu0 0
  %3236 = vmatpush1.bf16.xpose.msra.mxu0 0
  %3237 = vmatprep.subr.bf16.mxu0 0
  %3238 = vmatpush1.bf16.xpose.msra.mxu0 0
  %3239 = vmatprep.subr.bf16.mxu0 0
  %3240 = vmatpush1.bf16.xpose.msra.mxu0 0
  %3241 = vmatprep.subr.bf16.mxu0 0
  %3242 = vmatpush1.bf16.xpose.msra.mxu0 %v3225
  %3243 = vmatprep.subr.bf16.mxu0 0
  %3244 = vmatpush2.bf16.xpose.msra.mxu0 0
  %3245 = vmatprep.subr.bf16.mxu0 0
  %3246 = vmatpush2.bf16.xpose.msra.mxu0 0
  %3247 = vmatprep.subr.bf16.mxu0 0
  %3248 = vmatpush2.bf16.xpose.msra.mxu0 0
  %3249 = vmatprep.subr.bf16.mxu0 0
  %3250 = vmatpush2.bf16.xpose.msra.mxu0 0
  %3251 = vmatprep.subr.bf16.mxu0 0
  %3252 = vmatpush2.bf16.xpose.msra.mxu0 0
  %3253 = vmatprep.subr.bf16.mxu0 0
  %3254 = vmatpush2.bf16.xpose.msra.mxu0 0
  %3255 = vmatprep.subr.bf16.mxu0 0
  %3256 = vmatpush2.bf16.xpose.msra.mxu0 0
  %3257 = vmatprep.subr.bf16.mxu0 0
  %3258 = vmatpush2.bf16.xpose.msra.mxu0 0
  %3259 = vmatprep.mubr.bf16.mxu0 0
  %3260 = vmatmul.mubr.bf16.gmra.mxu0 %v3222
  %v3261 = vpop.f32.mrf.mxu0
  %v3262 = vadd.f32 0.0, %v3261
  %v3263 = vpop.f32.mrf.mxu0
  %v3264 = vpop.f32.mrf.mxu0
  %v3265 = vpop.f32.mrf.mxu0
  %3266 = vdwg.mxu0
  %v3268 = vsel %vm3082, %v1870, 0
  %v3271 = vsel %vm3082, %v2470, 0
  %3273 = vmatprep.subr.bf16.mxu0 0
  %3274 = vmatpush1.bf16.xpose.msra.mxu0 0
  %3275 = vmatprep.subr.bf16.mxu0 0
  %3276 = vmatpush1.bf16.xpose.msra.mxu0 0
  %3277 = vmatprep.subr.bf16.mxu0 0
  %3278 = vmatpush1.bf16.xpose.msra.mxu0 0
  %3279 = vmatprep.subr.bf16.mxu0 0
  %3280 = vmatpush1.bf16.xpose.msra.mxu0 0
  %3281 = vmatprep.subr.bf16.mxu0 0
  %3282 = vmatpush1.bf16.xpose.msra.mxu0 0
  %3283 = vmatprep.subr.bf16.mxu0 0
  %3284 = vmatpush1.bf16.xpose.msra.mxu0 0
  %3285 = vmatprep.subr.bf16.mxu0 0
  %3286 = vmatpush1.bf16.xpose.msra.mxu0 0
  %3287 = vmatprep.subr.bf16.mxu0 0
  %3288 = vmatpush1.bf16.xpose.msra.mxu0 %v3271
  %3289 = vmatprep.subr.bf16.mxu0 0
  %3290 = vmatpush2.bf16.xpose.msra.mxu0 0
  %3291 = vmatprep.subr.bf16.mxu0 0
  %3292 = vmatpush2.bf16.xpose.msra.mxu0 0
  %3293 = vmatprep.subr.bf16.mxu0 0
  %3294 = vmatpush2.bf16.xpose.msra.mxu0 0
  %3295 = vmatprep.subr.bf16.mxu0 0
  %3296 = vmatpush2.bf16.xpose.msra.mxu0 0
  %3297 = vmatprep.subr.bf16.mxu0 0
  %3298 = vmatpush2.bf16.xpose.msra.mxu0 0
  %3299 = vmatprep.subr.bf16.mxu0 0
  %3300 = vmatpush2.bf16.xpose.msra.mxu0 0
  %3301 = vmatprep.subr.bf16.mxu0 0
  %3302 = vmatpush2.bf16.xpose.msra.mxu0 0
  %3303 = vmatprep.subr.bf16.mxu0 0
  %3304 = vmatpush2.bf16.xpose.msra.mxu0 0
  %3305 = vmatprep.mubr.bf16.mxu0 0
  %3306 = vmatmul.mubr.bf16.gmra.mxu0 %v3268
  %v3307 = vpop.f32.mrf.mxu0
  %v3308 = vadd.f32 0.0, %v3307
  %v3309 = vpop.f32.mrf.mxu0
  %v3310 = vpop.f32.mrf.mxu0
  %v3311 = vpop.f32.mrf.mxu0
  %3312 = vdwg.mxu0
  %v3314 = vsel %vm3082, %v1871, 0
  %v3317 = vsel %vm3082, %v2471, 0
  %3319 = vmatprep.subr.bf16.mxu0 0
  %3320 = vmatpush1.bf16.xpose.msra.mxu0 0
  %3321 = vmatprep.subr.bf16.mxu0 0
  %3322 = vmatpush1.bf16.xpose.msra.mxu0 0
  %3323 = vmatprep.subr.bf16.mxu0 0
  %3324 = vmatpush1.bf16.xpose.msra.mxu0 0
  %3325 = vmatprep.subr.bf16.mxu0 0
  %3326 = vmatpush1.bf16.xpose.msra.mxu0 0
  %3327 = vmatprep.subr.bf16.mxu0 0
  %3328 = vmatpush1.bf16.xpose.msra.mxu0 0
  %3329 = vmatprep.subr.bf16.mxu0 0
  %3330 = vmatpush1.bf16.xpose.msra.mxu0 0
  %3331 = vmatprep.subr.bf16.mxu0 0
  %3332 = vmatpush1.bf16.xpose.msra.mxu0 0
  %3333 = vmatprep.subr.bf16.mxu0 0
  %3334 = vmatpush1.bf16.xpose.msra.mxu0 %v3317
  %3335 = vmatprep.subr.bf16.mxu0 0
  %3336 = vmatpush2.bf16.xpose.msra.mxu0 0
  %3337 = vmatprep.subr.bf16.mxu0 0
  %3338 = vmatpush2.bf16.xpose.msra.mxu0 0
  %3339 = vmatprep.subr.bf16.mxu0 0
  %3340 = vmatpush2.bf16.xpose.msra.mxu0 0
  %3341 = vmatprep.subr.bf16.mxu0 0
  %3342 = vmatpush2.bf16.xpose.msra.mxu0 0
  %3343 = vmatprep.subr.bf16.mxu0 0
  %3344 = vmatpush2.bf16.xpose.msra.mxu0 0
  %3345 = vmatprep.subr.bf16.mxu0 0
  %3346 = vmatpush2.bf16.xpose.msra.mxu0 0
  %3347 = vmatprep.subr.bf16.mxu0 0
  %3348 = vmatpush2.bf16.xpose.msra.mxu0 0
  %3349 = vmatprep.subr.bf16.mxu0 0
  %3350 = vmatpush2.bf16.xpose.msra.mxu0 0
  %3351 = vmatprep.mubr.bf16.mxu0 0
  %3352 = vmatmul.mubr.bf16.gmra.mxu0 %v3314
  %v3353 = vpop.f32.mrf.mxu0
  %v3354 = vadd.f32 0.0, %v3353
  %v3355 = vpop.f32.mrf.mxu0
  %v3356 = vpop.f32.mrf.mxu0
  %v3357 = vpop.f32.mrf.mxu0
  %3358 = vdwg.mxu0
  %v3360 = vsel %vm3082, %v1872, 0
  %v3363 = vsel %vm3082, %v2472, 0
  %3365 = vmatprep.subr.bf16.mxu0 0
  %3366 = vmatpush1.bf16.xpose.msra.mxu0 0
  %3367 = vmatprep.subr.bf16.mxu0 0
  %3368 = vmatpush1.bf16.xpose.msra.mxu0 0
  %3369 = vmatprep.subr.bf16.mxu0 0
  %3370 = vmatpush1.bf16.xpose.msra.mxu0 0
  %3371 = vmatprep.subr.bf16.mxu0 0
  %3372 = vmatpush1.bf16.xpose.msra.mxu0 0
  %3373 = vmatprep.subr.bf16.mxu0 0
  %3374 = vmatpush1.bf16.xpose.msra.mxu0 0
  %3375 = vmatprep.subr.bf16.mxu0 0
  %3376 = vmatpush1.bf16.xpose.msra.mxu0 0
  %3377 = vmatprep.subr.bf16.mxu0 0
  %3378 = vmatpush1.bf16.xpose.msra.mxu0 0
  %3379 = vmatprep.subr.bf16.mxu0 0
  %3380 = vmatpush1.bf16.xpose.msra.mxu0 %v3363
  %3381 = vmatprep.subr.bf16.mxu0 0
  %3382 = vmatpush2.bf16.xpose.msra.mxu0 0
  %3383 = vmatprep.subr.bf16.mxu0 0
  %3384 = vmatpush2.bf16.xpose.msra.mxu0 0
  %3385 = vmatprep.subr.bf16.mxu0 0
  %3386 = vmatpush2.bf16.xpose.msra.mxu0 0
  %3387 = vmatprep.subr.bf16.mxu0 0
  %3388 = vmatpush2.bf16.xpose.msra.mxu0 0
  %3389 = vmatprep.subr.bf16.mxu0 0
  %3390 = vmatpush2.bf16.xpose.msra.mxu0 0
  %3391 = vmatprep.subr.bf16.mxu0 0
  %3392 = vmatpush2.bf16.xpose.msra.mxu0 0
  %3393 = vmatprep.subr.bf16.mxu0 0
  %3394 = vmatpush2.bf16.xpose.msra.mxu0 0
  %3395 = vmatprep.subr.bf16.mxu0 0
  %3396 = vmatpush2.bf16.xpose.msra.mxu0 0
  %3397 = vmatprep.mubr.bf16.mxu0 0
  %3398 = vmatmul.mubr.bf16.gmra.mxu0 %v3360
  %v3399 = vpop.f32.mrf.mxu0
  %v3400 = vadd.f32 0.0, %v3399
  %v3401 = vpop.f32.mrf.mxu0
  %v3402 = vpop.f32.mrf.mxu0
  %v3403 = vpop.f32.mrf.mxu0
  %3404 = vdwg.mxu0
  %v3406 = vsel %vm3082, %v1873, 0
  %v3409 = vsel %vm3082, %v2473, 0
  %3411 = vmatprep.subr.bf16.mxu0 0
  %3412 = vmatpush1.bf16.xpose.msra.mxu0 0
  %3413 = vmatprep.subr.bf16.mxu0 0
  %3414 = vmatpush1.bf16.xpose.msra.mxu0 0
  %3415 = vmatprep.subr.bf16.mxu0 0
  %3416 = vmatpush1.bf16.xpose.msra.mxu0 0
  %3417 = vmatprep.subr.bf16.mxu0 0
  %3418 = vmatpush1.bf16.xpose.msra.mxu0 0
  %3419 = vmatprep.subr.bf16.mxu0 0
  %3420 = vmatpush1.bf16.xpose.msra.mxu0 0
  %3421 = vmatprep.subr.bf16.mxu0 0
  %3422 = vmatpush1.bf16.xpose.msra.mxu0 0
  %3423 = vmatprep.subr.bf16.mxu0 0
  %3424 = vmatpush1.bf16.xpose.msra.mxu0 0
  %3425 = vmatprep.subr.bf16.mxu0 0
  %3426 = vmatpush1.bf16.xpose.msra.mxu0 %v3409
  %3427 = vmatprep.subr.bf16.mxu0 0
  %3428 = vmatpush2.bf16.xpose.msra.mxu0 0
  %3429 = vmatprep.subr.bf16.mxu0 0
  %3430 = vmatpush2.bf16.xpose.msra.mxu0 0
  %3431 = vmatprep.subr.bf16.mxu0 0
  %3432 = vmatpush2.bf16.xpose.msra.mxu0 0
  %3433 = vmatprep.subr.bf16.mxu0 0
  %3434 = vmatpush2.bf16.xpose.msra.mxu0 0
  %3435 = vmatprep.subr.bf16.mxu0 0
  %3436 = vmatpush2.bf16.xpose.msra.mxu0 0
  %3437 = vmatprep.subr.bf16.mxu0 0
  %3438 = vmatpush2.bf16.xpose.msra.mxu0 0
  %3439 = vmatprep.subr.bf16.mxu0 0
  %3440 = vmatpush2.bf16.xpose.msra.mxu0 0
  %3441 = vmatprep.subr.bf16.mxu0 0
  %3442 = vmatpush2.bf16.xpose.msra.mxu0 0
  %3443 = vmatprep.mubr.bf16.mxu0 0
  %3444 = vmatmul.mubr.bf16.gmra.mxu0 %v3406
  %v3445 = vpop.f32.mrf.mxu0
  %v3446 = vadd.f32 0.0, %v3445
  %v3447 = vpop.f32.mrf.mxu0
  %v3448 = vpop.f32.mrf.mxu0
  %v3449 = vpop.f32.mrf.mxu0
  %3450 = vdwg.mxu0
  %v3452 = vsel %vm3082, %v1874, 0
  %v3455 = vsel %vm3082, %v2474, 0
  %3457 = vmatprep.subr.bf16.mxu0 0
  %3458 = vmatpush1.bf16.xpose.msra.mxu0 0
  %3459 = vmatprep.subr.bf16.mxu0 0
  %3460 = vmatpush1.bf16.xpose.msra.mxu0 0
  %3461 = vmatprep.subr.bf16.mxu0 0
  %3462 = vmatpush1.bf16.xpose.msra.mxu0 0
  %3463 = vmatprep.subr.bf16.mxu0 0
  %3464 = vmatpush1.bf16.xpose.msra.mxu0 0
  %3465 = vmatprep.subr.bf16.mxu0 0
  %3466 = vmatpush1.bf16.xpose.msra.mxu0 0
  %3467 = vmatprep.subr.bf16.mxu0 0
  %3468 = vmatpush1.bf16.xpose.msra.mxu0 0
  %3469 = vmatprep.subr.bf16.mxu0 0
  %3470 = vmatpush1.bf16.xpose.msra.mxu0 0
  %3471 = vmatprep.subr.bf16.mxu0 0
  %3472 = vmatpush1.bf16.xpose.msra.mxu0 %v3455
  %3473 = vmatprep.subr.bf16.mxu0 0
  %3474 = vmatpush2.bf16.xpose.msra.mxu0 0
  %3475 = vmatprep.subr.bf16.mxu0 0
  %3476 = vmatpush2.bf16.xpose.msra.mxu0 0
  %3477 = vmatprep.subr.bf16.mxu0 0
  %3478 = vmatpush2.bf16.xpose.msra.mxu0 0
  %3479 = vmatprep.subr.bf16.mxu0 0
  %3480 = vmatpush2.bf16.xpose.msra.mxu0 0
  %3481 = vmatprep.subr.bf16.mxu0 0
  %3482 = vmatpush2.bf16.xpose.msra.mxu0 0
  %3483 = vmatprep.subr.bf16.mxu0 0
  %3484 = vmatpush2.bf16.xpose.msra.mxu0 0
  %3485 = vmatprep.subr.bf16.mxu0 0
  %3486 = vmatpush2.bf16.xpose.msra.mxu0 0
  %3487 = vmatprep.subr.bf16.mxu0 0
  %3488 = vmatpush2.bf16.xpose.msra.mxu0 0
  %3489 = vmatprep.mubr.bf16.mxu0 0
  %3490 = vmatmul.mubr.bf16.gmra.mxu0 %v3452
  %v3491 = vpop.f32.mrf.mxu0
  %v3492 = vadd.f32 0.0, %v3491
  %v3493 = vpop.f32.mrf.mxu0
  %v3494 = vpop.f32.mrf.mxu0
  %v3495 = vpop.f32.mrf.mxu0
  %3496 = vdwg.mxu0
  %v3498 = vsel %vm3082, %v1875, 0
  %v3501 = vsel %vm3082, %v2475, 0
  %3503 = vmatprep.subr.bf16.mxu0 0
  %3504 = vmatpush1.bf16.xpose.msra.mxu0 0
  %3505 = vmatprep.subr.bf16.mxu0 0
  %3506 = vmatpush1.bf16.xpose.msra.mxu0 0
  %3507 = vmatprep.subr.bf16.mxu0 0
  %3508 = vmatpush1.bf16.xpose.msra.mxu0 0
  %3509 = vmatprep.subr.bf16.mxu0 0
  %3510 = vmatpush1.bf16.xpose.msra.mxu0 0
  %3511 = vmatprep.subr.bf16.mxu0 0
  %3512 = vmatpush1.bf16.xpose.msra.mxu0 0
  %3513 = vmatprep.subr.bf16.mxu0 0
  %3514 = vmatpush1.bf16.xpose.msra.mxu0 0
  %3515 = vmatprep.subr.bf16.mxu0 0
  %3516 = vmatpush1.bf16.xpose.msra.mxu0 0
  %3517 = vmatprep.subr.bf16.mxu0 0
  %3518 = vmatpush1.bf16.xpose.msra.mxu0 %v3501
  %3519 = vmatprep.subr.bf16.mxu0 0
  %3520 = vmatpush2.bf16.xpose.msra.mxu0 0
  %3521 = vmatprep.subr.bf16.mxu0 0
  %3522 = vmatpush2.bf16.xpose.msra.mxu0 0
  %3523 = vmatprep.subr.bf16.mxu0 0
  %3524 = vmatpush2.bf16.xpose.msra.mxu0 0
  %3525 = vmatprep.subr.bf16.mxu0 0
  %3526 = vmatpush2.bf16.xpose.msra.mxu0 0
  %3527 = vmatprep.subr.bf16.mxu0 0
  %3528 = vmatpush2.bf16.xpose.msra.mxu0 0
  %3529 = vmatprep.subr.bf16.mxu0 0
  %3530 = vmatpush2.bf16.xpose.msra.mxu0 0
  %3531 = vmatprep.subr.bf16.mxu0 0
  %3532 = vmatpush2.bf16.xpose.msra.mxu0 0
  %3533 = vmatprep.subr.bf16.mxu0 0
  %3534 = vmatpush2.bf16.xpose.msra.mxu0 0
  %3535 = vmatprep.mubr.bf16.mxu0 0
  %3536 = vmatmul.mubr.bf16.gmra.mxu0 %v3498
  %v3537 = vpop.f32.mrf.mxu0
  %v3538 = vadd.f32 0.0, %v3537
  %v3539 = vpop.f32.mrf.mxu0
  %v3540 = vpop.f32.mrf.mxu0
  %v3541 = vpop.f32.mrf.mxu0
  %3542 = vdwg.mxu0
  %v3544 = vsel %vm3082, %v1876, 0
  %v3547 = vsel %vm3082, %v2476, 0
  %3549 = vmatprep.subr.bf16.mxu0 0
  %3550 = vmatpush1.bf16.xpose.msra.mxu0 0
  %3551 = vmatprep.subr.bf16.mxu0 0
  %3552 = vmatpush1.bf16.xpose.msra.mxu0 0
  %3553 = vmatprep.subr.bf16.mxu0 0
  %3554 = vmatpush1.bf16.xpose.msra.mxu0 0
  %3555 = vmatprep.subr.bf16.mxu0 0
  %3556 = vmatpush1.bf16.xpose.msra.mxu0 0
  %3557 = vmatprep.subr.bf16.mxu0 0
  %3558 = vmatpush1.bf16.xpose.msra.mxu0 0
  %3559 = vmatprep.subr.bf16.mxu0 0
  %3560 = vmatpush1.bf16.xpose.msra.mxu0 0
  %3561 = vmatprep.subr.bf16.mxu0 0
  %3562 = vmatpush1.bf16.xpose.msra.mxu0 0
  %3563 = vmatprep.subr.bf16.mxu0 0
  %3564 = vmatpush1.bf16.xpose.msra.mxu0 %v3547
  %3565 = vmatprep.subr.bf16.mxu0 0
  %3566 = vmatpush2.bf16.xpose.msra.mxu0 0
  %3567 = vmatprep.subr.bf16.mxu0 0
  %3568 = vmatpush2.bf16.xpose.msra.mxu0 0
  %3569 = vmatprep.subr.bf16.mxu0 0
  %3570 = vmatpush2.bf16.xpose.msra.mxu0 0
  %3571 = vmatprep.subr.bf16.mxu0 0
  %3572 = vmatpush2.bf16.xpose.msra.mxu0 0
  %3573 = vmatprep.subr.bf16.mxu0 0
  %3574 = vmatpush2.bf16.xpose.msra.mxu0 0
  %3575 = vmatprep.subr.bf16.mxu0 0
  %3576 = vmatpush2.bf16.xpose.msra.mxu0 0
  %3577 = vmatprep.subr.bf16.mxu0 0
  %3578 = vmatpush2.bf16.xpose.msra.mxu0 0
  %3579 = vmatprep.subr.bf16.mxu0 0
  %3580 = vmatpush2.bf16.xpose.msra.mxu0 0
  %3581 = vmatprep.mubr.bf16.mxu0 0
  %3582 = vmatmul.mubr.bf16.gmra.mxu0 %v3544
  %v3583 = vpop.f32.mrf.mxu0
  %v3584 = vadd.f32 0.0, %v3583
  %v3585 = vpop.f32.mrf.mxu0
  %v3586 = vpop.f32.mrf.mxu0
  %v3587 = vpop.f32.mrf.mxu0
  %3588 = vdwg.mxu0
  %v3590 = vsel %vm3082, %v1877, 0
  %v3593 = vsel %vm3082, %v2477, 0
  %3595 = vmatprep.subr.bf16.mxu0 0
  %3596 = vmatpush1.bf16.xpose.msra.mxu0 0
  %3597 = vmatprep.subr.bf16.mxu0 0
  %3598 = vmatpush1.bf16.xpose.msra.mxu0 0
  %3599 = vmatprep.subr.bf16.mxu0 0
  %3600 = vmatpush1.bf16.xpose.msra.mxu0 0
  %3601 = vmatprep.subr.bf16.mxu0 0
  %3602 = vmatpush1.bf16.xpose.msra.mxu0 0
  %3603 = vmatprep.subr.bf16.mxu0 0
  %3604 = vmatpush1.bf16.xpose.msra.mxu0 0
  %3605 = vmatprep.subr.bf16.mxu0 0
  %3606 = vmatpush1.bf16.xpose.msra.mxu0 0
  %3607 = vmatprep.subr.bf16.mxu0 0
  %3608 = vmatpush1.bf16.xpose.msra.mxu0 0
  %3609 = vmatprep.subr.bf16.mxu0 0
  %3610 = vmatpush1.bf16.xpose.msra.mxu0 %v3593
  %3611 = vmatprep.subr.bf16.mxu0 0
  %3612 = vmatpush2.bf16.xpose.msra.mxu0 0
  %3613 = vmatprep.subr.bf16.mxu0 0
  %3614 = vmatpush2.bf16.xpose.msra.mxu0 0
  %3615 = vmatprep.subr.bf16.mxu0 0
  %3616 = vmatpush2.bf16.xpose.msra.mxu0 0
  %3617 = vmatprep.subr.bf16.mxu0 0
  %3618 = vmatpush2.bf16.xpose.msra.mxu0 0
  %3619 = vmatprep.subr.bf16.mxu0 0
  %3620 = vmatpush2.bf16.xpose.msra.mxu0 0
  %3621 = vmatprep.subr.bf16.mxu0 0
  %3622 = vmatpush2.bf16.xpose.msra.mxu0 0
  %3623 = vmatprep.subr.bf16.mxu0 0
  %3624 = vmatpush2.bf16.xpose.msra.mxu0 0
  %3625 = vmatprep.subr.bf16.mxu0 0
  %3626 = vmatpush2.bf16.xpose.msra.mxu0 0
  %3627 = vmatprep.mubr.bf16.mxu0 0
  %3628 = vmatmul.mubr.bf16.gmra.mxu0 %v3590
  %v3629 = vpop.f32.mrf.mxu0
  %v3630 = vadd.f32 0.0, %v3629
  %v3631 = vpop.f32.mrf.mxu0
  %v3632 = vpop.f32.mrf.mxu0
  %v3633 = vpop.f32.mrf.mxu0
  %3634 = vdwg.mxu0
  %v3636 = vsel %vm3082, %v1878, 0
  %v3639 = vsel %vm3082, %v2478, 0
  %3641 = vmatprep.subr.bf16.mxu0 0
  %3642 = vmatpush1.bf16.xpose.msra.mxu0 0
  %3643 = vmatprep.subr.bf16.mxu0 0
  %3644 = vmatpush1.bf16.xpose.msra.mxu0 0
  %3645 = vmatprep.subr.bf16.mxu0 0
  %3646 = vmatpush1.bf16.xpose.msra.mxu0 0
  %3647 = vmatprep.subr.bf16.mxu0 0
  %3648 = vmatpush1.bf16.xpose.msra.mxu0 0
  %3649 = vmatprep.subr.bf16.mxu0 0
  %3650 = vmatpush1.bf16.xpose.msra.mxu0 0
  %3651 = vmatprep.subr.bf16.mxu0 0
  %3652 = vmatpush1.bf16.xpose.msra.mxu0 0
  %3653 = vmatprep.subr.bf16.mxu0 0
  %3654 = vmatpush1.bf16.xpose.msra.mxu0 0
  %3655 = vmatprep.subr.bf16.mxu0 0
  %3656 = vmatpush1.bf16.xpose.msra.mxu0 %v3639
  %3657 = vmatprep.subr.bf16.mxu0 0
  %3658 = vmatpush2.bf16.xpose.msra.mxu0 0
  %3659 = vmatprep.subr.bf16.mxu0 0
  %3660 = vmatpush2.bf16.xpose.msra.mxu0 0
  %3661 = vmatprep.subr.bf16.mxu0 0
  %3662 = vmatpush2.bf16.xpose.msra.mxu0 0
  %3663 = vmatprep.subr.bf16.mxu0 0
  %3664 = vmatpush2.bf16.xpose.msra.mxu0 0
  %3665 = vmatprep.subr.bf16.mxu0 0
  %3666 = vmatpush2.bf16.xpose.msra.mxu0 0
  %3667 = vmatprep.subr.bf16.mxu0 0
  %3668 = vmatpush2.bf16.xpose.msra.mxu0 0
  %3669 = vmatprep.subr.bf16.mxu0 0
  %3670 = vmatpush2.bf16.xpose.msra.mxu0 0
  %3671 = vmatprep.subr.bf16.mxu0 0
  %3672 = vmatpush2.bf16.xpose.msra.mxu0 0
  %3673 = vmatprep.mubr.bf16.mxu0 0
  %3674 = vmatmul.mubr.bf16.gmra.mxu0 %v3636
  %v3675 = vpop.f32.mrf.mxu0
  %v3676 = vadd.f32 0.0, %v3675
  %v3677 = vpop.f32.mrf.mxu0
  %v3678 = vpop.f32.mrf.mxu0
  %v3679 = vpop.f32.mrf.mxu0
  %3680 = vdwg.mxu0
  %v3682 = vsel %vm3082, %v1879, 0
  %v3685 = vsel %vm3082, %v2479, 0
  %3687 = vmatprep.subr.bf16.mxu0 0
  %3688 = vmatpush1.bf16.xpose.msra.mxu0 0
  %3689 = vmatprep.subr.bf16.mxu0 0
  %3690 = vmatpush1.bf16.xpose.msra.mxu0 0
  %3691 = vmatprep.subr.bf16.mxu0 0
  %3692 = vmatpush1.bf16.xpose.msra.mxu0 0
  %3693 = vmatprep.subr.bf16.mxu0 0
  %3694 = vmatpush1.bf16.xpose.msra.mxu0 0
  %3695 = vmatprep.subr.bf16.mxu0 0
  %3696 = vmatpush1.bf16.xpose.msra.mxu0 0
  %3697 = vmatprep.subr.bf16.mxu0 0
  %3698 = vmatpush1.bf16.xpose.msra.mxu0 0
  %3699 = vmatprep.subr.bf16.mxu0 0
  %3700 = vmatpush1.bf16.xpose.msra.mxu0 0
  %3701 = vmatprep.subr.bf16.mxu0 0
  %3702 = vmatpush1.bf16.xpose.msra.mxu0 %v3685
  %3703 = vmatprep.subr.bf16.mxu0 0
  %3704 = vmatpush2.bf16.xpose.msra.mxu0 0
  %3705 = vmatprep.subr.bf16.mxu0 0
  %3706 = vmatpush2.bf16.xpose.msra.mxu0 0
  %3707 = vmatprep.subr.bf16.mxu0 0
  %3708 = vmatpush2.bf16.xpose.msra.mxu0 0
  %3709 = vmatprep.subr.bf16.mxu0 0
  %3710 = vmatpush2.bf16.xpose.msra.mxu0 0
  %3711 = vmatprep.subr.bf16.mxu0 0
  %3712 = vmatpush2.bf16.xpose.msra.mxu0 0
  %3713 = vmatprep.subr.bf16.mxu0 0
  %3714 = vmatpush2.bf16.xpose.msra.mxu0 0
  %3715 = vmatprep.subr.bf16.mxu0 0
  %3716 = vmatpush2.bf16.xpose.msra.mxu0 0
  %3717 = vmatprep.subr.bf16.mxu0 0
  %3718 = vmatpush2.bf16.xpose.msra.mxu0 0
  %3719 = vmatprep.mubr.bf16.mxu0 0
  %3720 = vmatmul.mubr.bf16.gmra.mxu0 %v3682
  %v3721 = vpop.f32.mrf.mxu0
  %v3722 = vadd.f32 0.0, %v3721
  %v3723 = vpop.f32.mrf.mxu0
  %v3724 = vpop.f32.mrf.mxu0
  %v3725 = vpop.f32.mrf.mxu0
  %3726 = vdwg.mxu0
  %v3728 = vsel %vm3082, %v1880, 0
  %v3731 = vsel %vm3082, %v2480, 0
  %3733 = vmatprep.subr.bf16.mxu0 0
  %3734 = vmatpush1.bf16.xpose.msra.mxu0 0
  %3735 = vmatprep.subr.bf16.mxu0 0
  %3736 = vmatpush1.bf16.xpose.msra.mxu0 0
  %3737 = vmatprep.subr.bf16.mxu0 0
  %3738 = vmatpush1.bf16.xpose.msra.mxu0 0
  %3739 = vmatprep.subr.bf16.mxu0 0
  %3740 = vmatpush1.bf16.xpose.msra.mxu0 0
  %3741 = vmatprep.subr.bf16.mxu0 0
  %3742 = vmatpush1.bf16.xpose.msra.mxu0 0
  %3743 = vmatprep.subr.bf16.mxu0 0
  %3744 = vmatpush1.bf16.xpose.msra.mxu0 0
  %3745 = vmatprep.subr.bf16.mxu0 0
  %3746 = vmatpush1.bf16.xpose.msra.mxu0 0
  %3747 = vmatprep.subr.bf16.mxu0 0
  %3748 = vmatpush1.bf16.xpose.msra.mxu0 %v3731
  %3749 = vmatprep.subr.bf16.mxu0 0
  %3750 = vmatpush2.bf16.xpose.msra.mxu0 0
  %3751 = vmatprep.subr.bf16.mxu0 0
  %3752 = vmatpush2.bf16.xpose.msra.mxu0 0
  %3753 = vmatprep.subr.bf16.mxu0 0
  %3754 = vmatpush2.bf16.xpose.msra.mxu0 0
  %3755 = vmatprep.subr.bf16.mxu0 0
  %3756 = vmatpush2.bf16.xpose.msra.mxu0 0
  %3757 = vmatprep.subr.bf16.mxu0 0
  %3758 = vmatpush2.bf16.xpose.msra.mxu0 0
  %3759 = vmatprep.subr.bf16.mxu0 0
  %3760 = vmatpush2.bf16.xpose.msra.mxu0 0
  %3761 = vmatprep.subr.bf16.mxu0 0
  %3762 = vmatpush2.bf16.xpose.msra.mxu0 0
  %3763 = vmatprep.subr.bf16.mxu0 0
  %3764 = vmatpush2.bf16.xpose.msra.mxu0 0
  %3765 = vmatprep.mubr.bf16.mxu0 0
  %3766 = vmatmul.mubr.bf16.gmra.mxu0 %v3728
  %v3767 = vpop.f32.mrf.mxu0
  %v3768 = vadd.f32 0.0, %v3767
  %v3769 = vpop.f32.mrf.mxu0
  %v3770 = vpop.f32.mrf.mxu0
  %v3771 = vpop.f32.mrf.mxu0
  %3772 = vdwg.mxu0
  %v3774 = vsel %vm3082, %v1881, 0
  %v3777 = vsel %vm3082, %v2481, 0
  %3779 = vmatprep.subr.bf16.mxu0 0
  %3780 = vmatpush1.bf16.xpose.msra.mxu0 0
  %3781 = vmatprep.subr.bf16.mxu0 0
  %3782 = vmatpush1.bf16.xpose.msra.mxu0 0
  %3783 = vmatprep.subr.bf16.mxu0 0
  %3784 = vmatpush1.bf16.xpose.msra.mxu0 0
  %3785 = vmatprep.subr.bf16.mxu0 0
  %3786 = vmatpush1.bf16.xpose.msra.mxu0 0
  %3787 = vmatprep.subr.bf16.mxu0 0
  %3788 = vmatpush1.bf16.xpose.msra.mxu0 0
  %3789 = vmatprep.subr.bf16.mxu0 0
  %3790 = vmatpush1.bf16.xpose.msra.mxu0 0
  %3791 = vmatprep.subr.bf16.mxu0 0
  %3792 = vmatpush1.bf16.xpose.msra.mxu0 0
  %3793 = vmatprep.subr.bf16.mxu0 0
  %3794 = vmatpush1.bf16.xpose.msra.mxu0 %v3777
  %3795 = vmatprep.subr.bf16.mxu0 0
  %3796 = vmatpush2.bf16.xpose.msra.mxu0 0
  %3797 = vmatprep.subr.bf16.mxu0 0
  %3798 = vmatpush2.bf16.xpose.msra.mxu0 0
  %3799 = vmatprep.subr.bf16.mxu0 0
  %3800 = vmatpush2.bf16.xpose.msra.mxu0 0
  %3801 = vmatprep.subr.bf16.mxu0 0
  %3802 = vmatpush2.bf16.xpose.msra.mxu0 0
  %3803 = vmatprep.subr.bf16.mxu0 0
  %3804 = vmatpush2.bf16.xpose.msra.mxu0 0
  %3805 = vmatprep.subr.bf16.mxu0 0
  %3806 = vmatpush2.bf16.xpose.msra.mxu0 0
  %3807 = vmatprep.subr.bf16.mxu0 0
  %3808 = vmatpush2.bf16.xpose.msra.mxu0 0
  %3809 = vmatprep.subr.bf16.mxu0 0
  %3810 = vmatpush2.bf16.xpose.msra.mxu0 0
  %3811 = vmatprep.mubr.bf16.mxu0 0
  %3812 = vmatmul.mubr.bf16.gmra.mxu0 %v3774
  %v3813 = vpop.f32.mrf.mxu0
  %v3814 = vadd.f32 0.0, %v3813
  %v3815 = vpop.f32.mrf.mxu0
  %v3816 = vpop.f32.mrf.mxu0
  %v3817 = vpop.f32.mrf.mxu0
  %3818 = vdwg.mxu0
  %vm3819 = vcmask 64512
  %v3820 = vsel %vm3819, %v3124, -inf
  %3821 = vmax.xlane.f32.xlu0 %v3820
  %v3822 = vpop.xlane.xlu0 %3821
  %v3823 = vsel %vm3819, %v3170, -inf
  %3824 = vmax.xlane.f32.xlu0 %v3823
  %v3825 = vpop.xlane.xlu0 %3824
  %v3826 = vsel %vm3819, %v3216, -inf
  %3827 = vmax.xlane.f32.xlu0 %v3826
  %v3828 = vpop.xlane.xlu0 %3827
  %v3829 = vsel %vm3819, %v3262, -inf
  %3830 = vmax.xlane.f32.xlu0 %v3829
  %v3831 = vpop.xlane.xlu0 %3830
  %v3832 = vsel %vm3819, %v3308, -inf
  %3833 = vmax.xlane.f32.xlu0 %v3832
  %v3834 = vpop.xlane.xlu0 %3833
  %v3835 = vsel %vm3819, %v3354, -inf
  %3836 = vmax.xlane.f32.xlu0 %v3835
  %v3837 = vpop.xlane.xlu0 %3836
  %v3838 = vsel %vm3819, %v3400, -inf
  %3839 = vmax.xlane.f32.xlu0 %v3838
  %v3840 = vpop.xlane.xlu0 %3839
  %v3841 = vsel %vm3819, %v3446, -inf
  %3842 = vmax.xlane.f32.xlu0 %v3841
  %v3843 = vpop.xlane.xlu0 %3842
  %v3844 = vsel %vm3819, %v3492, -inf
  %3845 = vmax.xlane.f32.xlu0 %v3844
  %v3846 = vpop.xlane.xlu0 %3845
  %v3847 = vsel %vm3819, %v3538, -inf
  %3848 = vmax.xlane.f32.xlu0 %v3847
  %v3849 = vpop.xlane.xlu0 %3848
  %v3850 = vsel %vm3819, %v3584, -inf
  %3851 = vmax.xlane.f32.xlu0 %v3850
  %v3852 = vpop.xlane.xlu0 %3851
  %v3853 = vsel %vm3819, %v3630, -inf
  %3854 = vmax.xlane.f32.xlu0 %v3853
  %v3855 = vpop.xlane.xlu0 %3854
  %v3856 = vsel %vm3819, %v3676, -inf
  %3857 = vmax.xlane.f32.xlu0 %v3856
  %v3858 = vpop.xlane.xlu0 %3857
  %v3859 = vsel %vm3819, %v3722, -inf
  %3860 = vmax.xlane.f32.xlu0 %v3859
  %v3861 = vpop.xlane.xlu0 %3860
  %v3862 = vsel %vm3819, %v3768, -inf
  %3863 = vmax.xlane.f32.xlu0 %v3862
  %v3864 = vpop.xlane.xlu0 %3863
  %v3865 = vsel %vm3819, %v3814, -inf
  %3866 = vmax.xlane.f32.xlu0 %v3865
  %v3867 = vpop.xlane.xlu0 %3866
  %v3868 = vsub.f32 %v3124, %v3822
  %v3869 = vsub.f32 %v3170, %v3825
  %v3870 = vsub.f32 %v3216, %v3828
  %v3871 = vsub.f32 %v3262, %v3831
  %v3872 = vsub.f32 %v3308, %v3834
  %v3873 = vsub.f32 %v3354, %v3837
  %v3874 = vsub.f32 %v3400, %v3840
  %v3875 = vsub.f32 %v3446, %v3843
  %v3876 = vsub.f32 %v3492, %v3846
  %v3877 = vsub.f32 %v3538, %v3849
  %v3878 = vsub.f32 %v3584, %v3852
  %v3879 = vsub.f32 %v3630, %v3855
  %v3880 = vsub.f32 %v3676, %v3858
  %v3881 = vsub.f32 %v3722, %v3861
  %v3882 = vsub.f32 %v3768, %v3864
  %v3883 = vsub.f32 %v3814, %v3867
  %v3884 = vmul.f32 %v3868, 1.442695
  %v3885 = vpow.pop %v3884
  %v3886 = vmul.f32 %v3869, 1.442695
  %v3887 = vpow.pop %v3886
  %v3888 = vmul.f32 %v3870, 1.442695
  %v3889 = vpow.pop %v3888
  %v3890 = vmul.f32 %v3871, 1.442695
  %v3891 = vpow.pop %v3890
  %v3892 = vmul.f32 %v3872, 1.442695
  %v3893 = vpow.pop %v3892
  %v3894 = vmul.f32 %v3873, 1.442695
  %v3895 = vpow.pop %v3894
  %v3896 = vmul.f32 %v3874, 1.442695
  %v3897 = vpow.pop %v3896
  %v3898 = vmul.f32 %v3875, 1.442695
  %v3899 = vpow.pop %v3898
  %v3900 = vmul.f32 %v3876, 1.442695
  %v3901 = vpow.pop %v3900
  %v3902 = vmul.f32 %v3877, 1.442695
  %v3903 = vpow.pop %v3902
  %v3904 = vmul.f32 %v3878, 1.442695
  %v3905 = vpow.pop %v3904
  %v3906 = vmul.f32 %v3879, 1.442695
  %v3907 = vpow.pop %v3906
  %v3908 = vmul.f32 %v3880, 1.442695
  %v3909 = vpow.pop %v3908
  %v3910 = vmul.f32 %v3881, 1.442695
  %v3911 = vpow.pop %v3910
  %v3912 = vmul.f32 %v3882, 1.442695
  %v3913 = vpow.pop %v3912
  %v3914 = vmul.f32 %v3883, 1.442695
  %v3915 = vpow.pop %v3914
  %v3916 = vsel %vm3819, %v3885, 0.0
  %3917 = vadd.xlane.f32.xlu0 %v3916
  %v3918 = vpop.xlane.xlu0 %3917
  %v3919 = vsel %vm3819, %v3887, 0.0
  %3920 = vadd.xlane.f32.xlu0 %v3919
  %v3921 = vpop.xlane.xlu0 %3920
  %v3922 = vsel %vm3819, %v3889, 0.0
  %3923 = vadd.xlane.f32.xlu0 %v3922
  %v3924 = vpop.xlane.xlu0 %3923
  %v3925 = vsel %vm3819, %v3891, 0.0
  %3926 = vadd.xlane.f32.xlu0 %v3925
  %v3927 = vpop.xlane.xlu0 %3926
  %v3928 = vsel %vm3819, %v3893, 0.0
  %3929 = vadd.xlane.f32.xlu0 %v3928
  %v3930 = vpop.xlane.xlu0 %3929
  %v3931 = vsel %vm3819, %v3895, 0.0
  %3932 = vadd.xlane.f32.xlu0 %v3931
  %v3933 = vpop.xlane.xlu0 %3932
  %v3934 = vsel %vm3819, %v3897, 0.0
  %3935 = vadd.xlane.f32.xlu0 %v3934
  %v3936 = vpop.xlane.xlu0 %3935
  %v3937 = vsel %vm3819, %v3899, 0.0
  %3938 = vadd.xlane.f32.xlu0 %v3937
  %v3939 = vpop.xlane.xlu0 %3938
  %v3940 = vsel %vm3819, %v3901, 0.0
  %3941 = vadd.xlane.f32.xlu0 %v3940
  %v3942 = vpop.xlane.xlu0 %3941
  %v3943 = vsel %vm3819, %v3903, 0.0
  %3944 = vadd.xlane.f32.xlu0 %v3943
  %v3945 = vpop.xlane.xlu0 %3944
  %v3946 = vsel %vm3819, %v3905, 0.0
  %3947 = vadd.xlane.f32.xlu0 %v3946
  %v3948 = vpop.xlane.xlu0 %3947
  %v3949 = vsel %vm3819, %v3907, 0.0
  %3950 = vadd.xlane.f32.xlu0 %v3949
  %v3951 = vpop.xlane.xlu0 %3950
  %v3952 = vsel %vm3819, %v3909, 0.0
  %3953 = vadd.xlane.f32.xlu0 %v3952
  %v3954 = vpop.xlane.xlu0 %3953
  %v3955 = vsel %vm3819, %v3911, 0.0
  %3956 = vadd.xlane.f32.xlu0 %v3955
  %v3957 = vpop.xlane.xlu0 %3956
  %v3958 = vsel %vm3819, %v3913, 0.0
  %3959 = vadd.xlane.f32.xlu0 %v3958
  %v3960 = vpop.xlane.xlu0 %3959
  %v3961 = vsel %vm3819, %v3915, 0.0
  %3962 = vadd.xlane.f32.xlu0 %v3961
  %v3963 = vpop.xlane.xlu0 %3962
  %v3964 = vrcp.pop %v3918
  %v3965 = vmul.f32 %v3885, %v3964
  %v3966 = vrcp.pop %v3921
  %v3967 = vmul.f32 %v3887, %v3966
  %v3968 = vrcp.pop %v3924
  %v3969 = vmul.f32 %v3889, %v3968
  %v3970 = vrcp.pop %v3927
  %v3971 = vmul.f32 %v3891, %v3970
  %v3972 = vrcp.pop %v3930
  %v3973 = vmul.f32 %v3893, %v3972
  %v3974 = vrcp.pop %v3933
  %v3975 = vmul.f32 %v3895, %v3974
  %v3976 = vrcp.pop %v3936
  %v3977 = vmul.f32 %v3897, %v3976
  %v3978 = vrcp.pop %v3939
  %v3979 = vmul.f32 %v3899, %v3978
  %v3980 = vrcp.pop %v3942
  %v3981 = vmul.f32 %v3901, %v3980
  %v3982 = vrcp.pop %v3945
  %v3983 = vmul.f32 %v3903, %v3982
  %v3984 = vrcp.pop %v3948
  %v3985 = vmul.f32 %v3905, %v3984
  %v3986 = vrcp.pop %v3951
  %v3987 = vmul.f32 %v3907, %v3986
  %v3988 = vrcp.pop %v3954
  %v3989 = vmul.f32 %v3909, %v3988
  %v3990 = vrcp.pop %v3957
  %v3991 = vmul.f32 %v3911, %v3990
  %v3992 = vrcp.pop %v3960
  %v3993 = vmul.f32 %v3913, %v3992
  %v3994 = vrcp.pop %v3963
  %v3995 = vmul.f32 %v3915, %v3994
  %v3996 = vpack.c.bf16 %v3965, %v3965
  %v3997 = vpack.c.bf16 %v3967, %v3967
  %v3998 = vpack.c.bf16 %v3969, %v3969
  %v3999 = vpack.c.bf16 %v3971, %v3971
  %v4000 = vpack.c.bf16 %v3973, %v3973
  %v4001 = vpack.c.bf16 %v3975, %v3975
  %v4002 = vpack.c.bf16 %v3977, %v3977
  %v4003 = vpack.c.bf16 %v3979, %v3979
  %v4004 = vpack.c.bf16 %v3981, %v3981
  %v4005 = vpack.c.bf16 %v3983, %v3983
  %v4006 = vpack.c.bf16 %v3985, %v3985
  %v4007 = vpack.c.bf16 %v3987, %v3987
  %v4008 = vpack.c.bf16 %v3989, %v3989
  %v4009 = vpack.c.bf16 %v3991, %v3991
  %v4010 = vpack.c.bf16 %v3993, %v3993
  %v4011 = vpack.c.bf16 %v3995, %v3995
  %v4013 = vsel %vm3819, %v3996, 0
  %v4016 = vsel %vm154, %v3066, 0
  %4018 = vmatprep.subr.bf16.mxu0 0
  %4019 = vmatpush1.bf16.msra.mxu0 0
  %4020 = vmatprep.subr.bf16.mxu0 0
  %4021 = vmatpush1.bf16.msra.mxu0 0
  %4022 = vmatprep.subr.bf16.mxu0 0
  %4023 = vmatpush1.bf16.msra.mxu0 0
  %4024 = vmatprep.subr.bf16.mxu0 0
  %4025 = vmatpush1.bf16.msra.mxu0 0
  %4026 = vmatprep.subr.bf16.mxu0 0
  %4027 = vmatpush1.bf16.msra.mxu0 0
  %4028 = vmatprep.subr.bf16.mxu0 0
  %4029 = vmatpush1.bf16.msra.mxu0 0
  %4030 = vmatprep.subr.bf16.mxu0 0
  %4031 = vmatpush1.bf16.msra.mxu0 0
  %4032 = vmatprep.subr.bf16.mxu0 0
  %4033 = vmatpush1.bf16.msra.mxu0 %v4016
  %4034 = vmatprep.subr.bf16.mxu0 0
  %4035 = vmatpush2.bf16.msra.mxu0 0
  %4036 = vmatprep.subr.bf16.mxu0 0
  %4037 = vmatpush2.bf16.msra.mxu0 0
  %4038 = vmatprep.subr.bf16.mxu0 0
  %4039 = vmatpush2.bf16.msra.mxu0 0
  %4040 = vmatprep.subr.bf16.mxu0 0
  %4041 = vmatpush2.bf16.msra.mxu0 0
  %4042 = vmatprep.subr.bf16.mxu0 0
  %4043 = vmatpush2.bf16.msra.mxu0 0
  %4044 = vmatprep.subr.bf16.mxu0 0
  %4045 = vmatpush2.bf16.msra.mxu0 0
  %4046 = vmatprep.subr.bf16.mxu0 0
  %4047 = vmatpush2.bf16.msra.mxu0 0
  %4048 = vmatprep.subr.bf16.mxu0 0
  %4049 = vmatpush2.bf16.msra.mxu0 0
  %4050 = vmatprep.mubr.bf16.mxu0 0
  %4051 = vmatmul.mubr.bf16.gmra.mxu0 %v4013
  %v4052 = vpop.f32.mrf.mxu0
  %v4053 = vadd.f32 0.0, %v4052
  %v4054 = vpop.f32.mrf.mxu0
  %v4055 = vpop.f32.mrf.mxu0
  %v4056 = vpop.f32.mrf.mxu0
  %4057 = vdwg.mxu0
  %v4059 = vsel %vm3819, %v3997, 0
  %v4062 = vsel %vm154, %v3067, 0
  %4064 = vmatprep.subr.bf16.mxu0 0
  %4065 = vmatpush1.bf16.msra.mxu0 0
  %4066 = vmatprep.subr.bf16.mxu0 0
  %4067 = vmatpush1.bf16.msra.mxu0 0
  %4068 = vmatprep.subr.bf16.mxu0 0
  %4069 = vmatpush1.bf16.msra.mxu0 0
  %4070 = vmatprep.subr.bf16.mxu0 0
  %4071 = vmatpush1.bf16.msra.mxu0 0
  %4072 = vmatprep.subr.bf16.mxu0 0
  %4073 = vmatpush1.bf16.msra.mxu0 0
  %4074 = vmatprep.subr.bf16.mxu0 0
  %4075 = vmatpush1.bf16.msra.mxu0 0
  %4076 = vmatprep.subr.bf16.mxu0 0
  %4077 = vmatpush1.bf16.msra.mxu0 0
  %4078 = vmatprep.subr.bf16.mxu0 0
  %4079 = vmatpush1.bf16.msra.mxu0 %v4062
  %4080 = vmatprep.subr.bf16.mxu0 0
  %4081 = vmatpush2.bf16.msra.mxu0 0
  %4082 = vmatprep.subr.bf16.mxu0 0
  %4083 = vmatpush2.bf16.msra.mxu0 0
  %4084 = vmatprep.subr.bf16.mxu0 0
  %4085 = vmatpush2.bf16.msra.mxu0 0
  %4086 = vmatprep.subr.bf16.mxu0 0
  %4087 = vmatpush2.bf16.msra.mxu0 0
  %4088 = vmatprep.subr.bf16.mxu0 0
  %4089 = vmatpush2.bf16.msra.mxu0 0
  %4090 = vmatprep.subr.bf16.mxu0 0
  %4091 = vmatpush2.bf16.msra.mxu0 0
  %4092 = vmatprep.subr.bf16.mxu0 0
  %4093 = vmatpush2.bf16.msra.mxu0 0
  %4094 = vmatprep.subr.bf16.mxu0 0
  %4095 = vmatpush2.bf16.msra.mxu0 0
  %4096 = vmatprep.mubr.bf16.mxu0 0
  %4097 = vmatmul.mubr.bf16.gmra.mxu0 %v4059
  %v4098 = vpop.f32.mrf.mxu0
  %v4099 = vadd.f32 0.0, %v4098
  %v4100 = vpop.f32.mrf.mxu0
  %v4101 = vpop.f32.mrf.mxu0
  %v4102 = vpop.f32.mrf.mxu0
  %4103 = vdwg.mxu0
  %v4105 = vsel %vm3819, %v3998, 0
  %v4108 = vsel %vm154, %v3068, 0
  %4110 = vmatprep.subr.bf16.mxu0 0
  %4111 = vmatpush1.bf16.msra.mxu0 0
  %4112 = vmatprep.subr.bf16.mxu0 0
  %4113 = vmatpush1.bf16.msra.mxu0 0
  %4114 = vmatprep.subr.bf16.mxu0 0
  %4115 = vmatpush1.bf16.msra.mxu0 0
  %4116 = vmatprep.subr.bf16.mxu0 0
  %4117 = vmatpush1.bf16.msra.mxu0 0
  %4118 = vmatprep.subr.bf16.mxu0 0
  %4119 = vmatpush1.bf16.msra.mxu0 0
  %4120 = vmatprep.subr.bf16.mxu0 0
  %4121 = vmatpush1.bf16.msra.mxu0 0
  %4122 = vmatprep.subr.bf16.mxu0 0
  %4123 = vmatpush1.bf16.msra.mxu0 0
  %4124 = vmatprep.subr.bf16.mxu0 0
  %4125 = vmatpush1.bf16.msra.mxu0 %v4108
  %4126 = vmatprep.subr.bf16.mxu0 0
  %4127 = vmatpush2.bf16.msra.mxu0 0
  %4128 = vmatprep.subr.bf16.mxu0 0
  %4129 = vmatpush2.bf16.msra.mxu0 0
  %4130 = vmatprep.subr.bf16.mxu0 0
  %4131 = vmatpush2.bf16.msra.mxu0 0
  %4132 = vmatprep.subr.bf16.mxu0 0
  %4133 = vmatpush2.bf16.msra.mxu0 0
  %4134 = vmatprep.subr.bf16.mxu0 0
  %4135 = vmatpush2.bf16.msra.mxu0 0
  %4136 = vmatprep.subr.bf16.mxu0 0
  %4137 = vmatpush2.bf16.msra.mxu0 0
  %4138 = vmatprep.subr.bf16.mxu0 0
  %4139 = vmatpush2.bf16.msra.mxu0 0
  %4140 = vmatprep.subr.bf16.mxu0 0
  %4141 = vmatpush2.bf16.msra.mxu0 0
  %4142 = vmatprep.mubr.bf16.mxu0 0
  %4143 = vmatmul.mubr.bf16.gmra.mxu0 %v4105
  %v4144 = vpop.f32.mrf.mxu0
  %v4145 = vadd.f32 0.0, %v4144
  %v4146 = vpop.f32.mrf.mxu0
  %v4147 = vpop.f32.mrf.mxu0
  %v4148 = vpop.f32.mrf.mxu0
  %4149 = vdwg.mxu0
  %v4151 = vsel %vm3819, %v3999, 0
  %v4154 = vsel %vm154, %v3069, 0
  %4156 = vmatprep.subr.bf16.mxu0 0
  %4157 = vmatpush1.bf16.msra.mxu0 0
  %4158 = vmatprep.subr.bf16.mxu0 0
  %4159 = vmatpush1.bf16.msra.mxu0 0
  %4160 = vmatprep.subr.bf16.mxu0 0
  %4161 = vmatpush1.bf16.msra.mxu0 0
  %4162 = vmatprep.subr.bf16.mxu0 0
  %4163 = vmatpush1.bf16.msra.mxu0 0
  %4164 = vmatprep.subr.bf16.mxu0 0
  %4165 = vmatpush1.bf16.msra.mxu0 0
  %4166 = vmatprep.subr.bf16.mxu0 0
  %4167 = vmatpush1.bf16.msra.mxu0 0
  %4168 = vmatprep.subr.bf16.mxu0 0
  %4169 = vmatpush1.bf16.msra.mxu0 0
  %4170 = vmatprep.subr.bf16.mxu0 0
  %4171 = vmatpush1.bf16.msra.mxu0 %v4154
  %4172 = vmatprep.subr.bf16.mxu0 0
  %4173 = vmatpush2.bf16.msra.mxu0 0
  %4174 = vmatprep.subr.bf16.mxu0 0
  %4175 = vmatpush2.bf16.msra.mxu0 0
  %4176 = vmatprep.subr.bf16.mxu0 0
  %4177 = vmatpush2.bf16.msra.mxu0 0
  %4178 = vmatprep.subr.bf16.mxu0 0
  %4179 = vmatpush2.bf16.msra.mxu0 0
  %4180 = vmatprep.subr.bf16.mxu0 0
  %4181 = vmatpush2.bf16.msra.mxu0 0
  %4182 = vmatprep.subr.bf16.mxu0 0
  %4183 = vmatpush2.bf16.msra.mxu0 0
  %4184 = vmatprep.subr.bf16.mxu0 0
  %4185 = vmatpush2.bf16.msra.mxu0 0
  %4186 = vmatprep.subr.bf16.mxu0 0
  %4187 = vmatpush2.bf16.msra.mxu0 0
  %4188 = vmatprep.mubr.bf16.mxu0 0
  %4189 = vmatmul.mubr.bf16.gmra.mxu0 %v4151
  %v4190 = vpop.f32.mrf.mxu0
  %v4191 = vadd.f32 0.0, %v4190
  %v4192 = vpop.f32.mrf.mxu0
  %v4193 = vpop.f32.mrf.mxu0
  %v4194 = vpop.f32.mrf.mxu0
  %4195 = vdwg.mxu0
  %v4197 = vsel %vm3819, %v4000, 0
  %v4200 = vsel %vm154, %v3070, 0
  %4202 = vmatprep.subr.bf16.mxu0 0
  %4203 = vmatpush1.bf16.msra.mxu0 0
  %4204 = vmatprep.subr.bf16.mxu0 0
  %4205 = vmatpush1.bf16.msra.mxu0 0
  %4206 = vmatprep.subr.bf16.mxu0 0
  %4207 = vmatpush1.bf16.msra.mxu0 0
  %4208 = vmatprep.subr.bf16.mxu0 0
  %4209 = vmatpush1.bf16.msra.mxu0 0
  %4210 = vmatprep.subr.bf16.mxu0 0
  %4211 = vmatpush1.bf16.msra.mxu0 0
  %4212 = vmatprep.subr.bf16.mxu0 0
  %4213 = vmatpush1.bf16.msra.mxu0 0
  %4214 = vmatprep.subr.bf16.mxu0 0
  %4215 = vmatpush1.bf16.msra.mxu0 0
  %4216 = vmatprep.subr.bf16.mxu0 0
  %4217 = vmatpush1.bf16.msra.mxu0 %v4200
  %4218 = vmatprep.subr.bf16.mxu0 0
  %4219 = vmatpush2.bf16.msra.mxu0 0
  %4220 = vmatprep.subr.bf16.mxu0 0
  %4221 = vmatpush2.bf16.msra.mxu0 0
  %4222 = vmatprep.subr.bf16.mxu0 0
  %4223 = vmatpush2.bf16.msra.mxu0 0
  %4224 = vmatprep.subr.bf16.mxu0 0
  %4225 = vmatpush2.bf16.msra.mxu0 0
  %4226 = vmatprep.subr.bf16.mxu0 0
  %4227 = vmatpush2.bf16.msra.mxu0 0
  %4228 = vmatprep.subr.bf16.mxu0 0
  %4229 = vmatpush2.bf16.msra.mxu0 0
  %4230 = vmatprep.subr.bf16.mxu0 0
  %4231 = vmatpush2.bf16.msra.mxu0 0
  %4232 = vmatprep.subr.bf16.mxu0 0
  %4233 = vmatpush2.bf16.msra.mxu0 0
  %4234 = vmatprep.mubr.bf16.mxu0 0
  %4235 = vmatmul.mubr.bf16.gmra.mxu0 %v4197
  %v4236 = vpop.f32.mrf.mxu0
  %v4237 = vadd.f32 0.0, %v4236
  %v4238 = vpop.f32.mrf.mxu0
  %v4239 = vpop.f32.mrf.mxu0
  %v4240 = vpop.f32.mrf.mxu0
  %4241 = vdwg.mxu0
  %v4243 = vsel %vm3819, %v4001, 0
  %v4246 = vsel %vm154, %v3071, 0
  %4248 = vmatprep.subr.bf16.mxu0 0
  %4249 = vmatpush1.bf16.msra.mxu0 0
  %4250 = vmatprep.subr.bf16.mxu0 0
  %4251 = vmatpush1.bf16.msra.mxu0 0
  %4252 = vmatprep.subr.bf16.mxu0 0
  %4253 = vmatpush1.bf16.msra.mxu0 0
  %4254 = vmatprep.subr.bf16.mxu0 0
  %4255 = vmatpush1.bf16.msra.mxu0 0
  %4256 = vmatprep.subr.bf16.mxu0 0
  %4257 = vmatpush1.bf16.msra.mxu0 0
  %4258 = vmatprep.subr.bf16.mxu0 0
  %4259 = vmatpush1.bf16.msra.mxu0 0
  %4260 = vmatprep.subr.bf16.mxu0 0
  %4261 = vmatpush1.bf16.msra.mxu0 0
  %4262 = vmatprep.subr.bf16.mxu0 0
  %4263 = vmatpush1.bf16.msra.mxu0 %v4246
  %4264 = vmatprep.subr.bf16.mxu0 0
  %4265 = vmatpush2.bf16.msra.mxu0 0
  %4266 = vmatprep.subr.bf16.mxu0 0
  %4267 = vmatpush2.bf16.msra.mxu0 0
  %4268 = vmatprep.subr.bf16.mxu0 0
  %4269 = vmatpush2.bf16.msra.mxu0 0
  %4270 = vmatprep.subr.bf16.mxu0 0
  %4271 = vmatpush2.bf16.msra.mxu0 0
  %4272 = vmatprep.subr.bf16.mxu0 0
  %4273 = vmatpush2.bf16.msra.mxu0 0
  %4274 = vmatprep.subr.bf16.mxu0 0
  %4275 = vmatpush2.bf16.msra.mxu0 0
  %4276 = vmatprep.subr.bf16.mxu0 0
  %4277 = vmatpush2.bf16.msra.mxu0 0
  %4278 = vmatprep.subr.bf16.mxu0 0
  %4279 = vmatpush2.bf16.msra.mxu0 0
  %4280 = vmatprep.mubr.bf16.mxu0 0
  %4281 = vmatmul.mubr.bf16.gmra.mxu0 %v4243
  %v4282 = vpop.f32.mrf.mxu0
  %v4283 = vadd.f32 0.0, %v4282
  %v4284 = vpop.f32.mrf.mxu0
  %v4285 = vpop.f32.mrf.mxu0
  %v4286 = vpop.f32.mrf.mxu0
  %4287 = vdwg.mxu0
  %v4289 = vsel %vm3819, %v4002, 0
  %v4292 = vsel %vm154, %v3072, 0
  %4294 = vmatprep.subr.bf16.mxu0 0
  %4295 = vmatpush1.bf16.msra.mxu0 0
  %4296 = vmatprep.subr.bf16.mxu0 0
  %4297 = vmatpush1.bf16.msra.mxu0 0
  %4298 = vmatprep.subr.bf16.mxu0 0
  %4299 = vmatpush1.bf16.msra.mxu0 0
  %4300 = vmatprep.subr.bf16.mxu0 0
  %4301 = vmatpush1.bf16.msra.mxu0 0
  %4302 = vmatprep.subr.bf16.mxu0 0
  %4303 = vmatpush1.bf16.msra.mxu0 0
  %4304 = vmatprep.subr.bf16.mxu0 0
  %4305 = vmatpush1.bf16.msra.mxu0 0
  %4306 = vmatprep.subr.bf16.mxu0 0
  %4307 = vmatpush1.bf16.msra.mxu0 0
  %4308 = vmatprep.subr.bf16.mxu0 0
  %4309 = vmatpush1.bf16.msra.mxu0 %v4292
  %4310 = vmatprep.subr.bf16.mxu0 0
  %4311 = vmatpush2.bf16.msra.mxu0 0
  %4312 = vmatprep.subr.bf16.mxu0 0
  %4313 = vmatpush2.bf16.msra.mxu0 0
  %4314 = vmatprep.subr.bf16.mxu0 0
  %4315 = vmatpush2.bf16.msra.mxu0 0
  %4316 = vmatprep.subr.bf16.mxu0 0
  %4317 = vmatpush2.bf16.msra.mxu0 0
  %4318 = vmatprep.subr.bf16.mxu0 0
  %4319 = vmatpush2.bf16.msra.mxu0 0
  %4320 = vmatprep.subr.bf16.mxu0 0
  %4321 = vmatpush2.bf16.msra.mxu0 0
  %4322 = vmatprep.subr.bf16.mxu0 0
  %4323 = vmatpush2.bf16.msra.mxu0 0
  %4324 = vmatprep.subr.bf16.mxu0 0
  %4325 = vmatpush2.bf16.msra.mxu0 0
  %4326 = vmatprep.mubr.bf16.mxu0 0
  %4327 = vmatmul.mubr.bf16.gmra.mxu0 %v4289
  %v4328 = vpop.f32.mrf.mxu0
  %v4329 = vadd.f32 0.0, %v4328
  %v4330 = vpop.f32.mrf.mxu0
  %v4331 = vpop.f32.mrf.mxu0
  %v4332 = vpop.f32.mrf.mxu0
  %4333 = vdwg.mxu0
  %v4335 = vsel %vm3819, %v4003, 0
  %v4338 = vsel %vm154, %v3073, 0
  %4340 = vmatprep.subr.bf16.mxu0 0
  %4341 = vmatpush1.bf16.msra.mxu0 0
  %4342 = vmatprep.subr.bf16.mxu0 0
  %4343 = vmatpush1.bf16.msra.mxu0 0
  %4344 = vmatprep.subr.bf16.mxu0 0
  %4345 = vmatpush1.bf16.msra.mxu0 0
  %4346 = vmatprep.subr.bf16.mxu0 0
  %4347 = vmatpush1.bf16.msra.mxu0 0
  %4348 = vmatprep.subr.bf16.mxu0 0
  %4349 = vmatpush1.bf16.msra.mxu0 0
  %4350 = vmatprep.subr.bf16.mxu0 0
  %4351 = vmatpush1.bf16.msra.mxu0 0
  %4352 = vmatprep.subr.bf16.mxu0 0
  %4353 = vmatpush1.bf16.msra.mxu0 0
  %4354 = vmatprep.subr.bf16.mxu0 0
  %4355 = vmatpush1.bf16.msra.mxu0 %v4338
  %4356 = vmatprep.subr.bf16.mxu0 0
  %4357 = vmatpush2.bf16.msra.mxu0 0
  %4358 = vmatprep.subr.bf16.mxu0 0
  %4359 = vmatpush2.bf16.msra.mxu0 0
  %4360 = vmatprep.subr.bf16.mxu0 0
  %4361 = vmatpush2.bf16.msra.mxu0 0
  %4362 = vmatprep.subr.bf16.mxu0 0
  %4363 = vmatpush2.bf16.msra.mxu0 0
  %4364 = vmatprep.subr.bf16.mxu0 0
  %4365 = vmatpush2.bf16.msra.mxu0 0
  %4366 = vmatprep.subr.bf16.mxu0 0
  %4367 = vmatpush2.bf16.msra.mxu0 0
  %4368 = vmatprep.subr.bf16.mxu0 0
  %4369 = vmatpush2.bf16.msra.mxu0 0
  %4370 = vmatprep.subr.bf16.mxu0 0
  %4371 = vmatpush2.bf16.msra.mxu0 0
  %4372 = vmatprep.mubr.bf16.mxu0 0
  %4373 = vmatmul.mubr.bf16.gmra.mxu0 %v4335
  %v4374 = vpop.f32.mrf.mxu0
  %v4375 = vadd.f32 0.0, %v4374
  %v4376 = vpop.f32.mrf.mxu0
  %v4377 = vpop.f32.mrf.mxu0
  %v4378 = vpop.f32.mrf.mxu0
  %4379 = vdwg.mxu0
  %v4381 = vsel %vm3819, %v4004, 0
  %v4384 = vsel %vm154, %v3074, 0
  %4386 = vmatprep.subr.bf16.mxu0 0
  %4387 = vmatpush1.bf16.msra.mxu0 0
  %4388 = vmatprep.subr.bf16.mxu0 0
  %4389 = vmatpush1.bf16.msra.mxu0 0
  %4390 = vmatprep.subr.bf16.mxu0 0
  %4391 = vmatpush1.bf16.msra.mxu0 0
  %4392 = vmatprep.subr.bf16.mxu0 0
  %4393 = vmatpush1.bf16.msra.mxu0 0
  %4394 = vmatprep.subr.bf16.mxu0 0
  %4395 = vmatpush1.bf16.msra.mxu0 0
  %4396 = vmatprep.subr.bf16.mxu0 0
  %4397 = vmatpush1.bf16.msra.mxu0 0
  %4398 = vmatprep.subr.bf16.mxu0 0
  %4399 = vmatpush1.bf16.msra.mxu0 0
  %4400 = vmatprep.subr.bf16.mxu0 0
  %4401 = vmatpush1.bf16.msra.mxu0 %v4384
  %4402 = vmatprep.subr.bf16.mxu0 0
  %4403 = vmatpush2.bf16.msra.mxu0 0
  %4404 = vmatprep.subr.bf16.mxu0 0
  %4405 = vmatpush2.bf16.msra.mxu0 0
  %4406 = vmatprep.subr.bf16.mxu0 0
  %4407 = vmatpush2.bf16.msra.mxu0 0
  %4408 = vmatprep.subr.bf16.mxu0 0
  %4409 = vmatpush2.bf16.msra.mxu0 0
  %4410 = vmatprep.subr.bf16.mxu0 0
  %4411 = vmatpush2.bf16.msra.mxu0 0
  %4412 = vmatprep.subr.bf16.mxu0 0
  %4413 = vmatpush2.bf16.msra.mxu0 0
  %4414 = vmatprep.subr.bf16.mxu0 0
  %4415 = vmatpush2.bf16.msra.mxu0 0
  %4416 = vmatprep.subr.bf16.mxu0 0
  %4417 = vmatpush2.bf16.msra.mxu0 0
  %4418 = vmatprep.mubr.bf16.mxu0 0
  %4419 = vmatmul.mubr.bf16.gmra.mxu0 %v4381
  %v4420 = vpop.f32.mrf.mxu0
  %v4421 = vadd.f32 0.0, %v4420
  %v4422 = vpop.f32.mrf.mxu0
  %v4423 = vpop.f32.mrf.mxu0
  %v4424 = vpop.f32.mrf.mxu0
  %4425 = vdwg.mxu0
  %v4427 = vsel %vm3819, %v4005, 0
  %v4430 = vsel %vm154, %v3075, 0
  %4432 = vmatprep.subr.bf16.mxu0 0
  %4433 = vmatpush1.bf16.msra.mxu0 0
  %4434 = vmatprep.subr.bf16.mxu0 0
  %4435 = vmatpush1.bf16.msra.mxu0 0
  %4436 = vmatprep.subr.bf16.mxu0 0
  %4437 = vmatpush1.bf16.msra.mxu0 0
  %4438 = vmatprep.subr.bf16.mxu0 0
  %4439 = vmatpush1.bf16.msra.mxu0 0
  %4440 = vmatprep.subr.bf16.mxu0 0
  %4441 = vmatpush1.bf16.msra.mxu0 0
  %4442 = vmatprep.subr.bf16.mxu0 0
  %4443 = vmatpush1.bf16.msra.mxu0 0
  %4444 = vmatprep.subr.bf16.mxu0 0
  %4445 = vmatpush1.bf16.msra.mxu0 0
  %4446 = vmatprep.subr.bf16.mxu0 0
  %4447 = vmatpush1.bf16.msra.mxu0 %v4430
  %4448 = vmatprep.subr.bf16.mxu0 0
  %4449 = vmatpush2.bf16.msra.mxu0 0
  %4450 = vmatprep.subr.bf16.mxu0 0
  %4451 = vmatpush2.bf16.msra.mxu0 0
  %4452 = vmatprep.subr.bf16.mxu0 0
  %4453 = vmatpush2.bf16.msra.mxu0 0
  %4454 = vmatprep.subr.bf16.mxu0 0
  %4455 = vmatpush2.bf16.msra.mxu0 0
  %4456 = vmatprep.subr.bf16.mxu0 0
  %4457 = vmatpush2.bf16.msra.mxu0 0
  %4458 = vmatprep.subr.bf16.mxu0 0
  %4459 = vmatpush2.bf16.msra.mxu0 0
  %4460 = vmatprep.subr.bf16.mxu0 0
  %4461 = vmatpush2.bf16.msra.mxu0 0
  %4462 = vmatprep.subr.bf16.mxu0 0
  %4463 = vmatpush2.bf16.msra.mxu0 0
  %4464 = vmatprep.mubr.bf16.mxu0 0
  %4465 = vmatmul.mubr.bf16.gmra.mxu0 %v4427
  %v4466 = vpop.f32.mrf.mxu0
  %v4467 = vadd.f32 0.0, %v4466
  %v4468 = vpop.f32.mrf.mxu0
  %v4469 = vpop.f32.mrf.mxu0
  %v4470 = vpop.f32.mrf.mxu0
  %4471 = vdwg.mxu0
  %v4473 = vsel %vm3819, %v4006, 0
  %v4476 = vsel %vm154, %v3076, 0
  %4478 = vmatprep.subr.bf16.mxu0 0
  %4479 = vmatpush1.bf16.msra.mxu0 0
  %4480 = vmatprep.subr.bf16.mxu0 0
  %4481 = vmatpush1.bf16.msra.mxu0 0
  %4482 = vmatprep.subr.bf16.mxu0 0
  %4483 = vmatpush1.bf16.msra.mxu0 0
  %4484 = vmatprep.subr.bf16.mxu0 0
  %4485 = vmatpush1.bf16.msra.mxu0 0
  %4486 = vmatprep.subr.bf16.mxu0 0
  %4487 = vmatpush1.bf16.msra.mxu0 0
  %4488 = vmatprep.subr.bf16.mxu0 0
  %4489 = vmatpush1.bf16.msra.mxu0 0
  %4490 = vmatprep.subr.bf16.mxu0 0
  %4491 = vmatpush1.bf16.msra.mxu0 0
  %4492 = vmatprep.subr.bf16.mxu0 0
  %4493 = vmatpush1.bf16.msra.mxu0 %v4476
  %4494 = vmatprep.subr.bf16.mxu0 0
  %4495 = vmatpush2.bf16.msra.mxu0 0
  %4496 = vmatprep.subr.bf16.mxu0 0
  %4497 = vmatpush2.bf16.msra.mxu0 0
  %4498 = vmatprep.subr.bf16.mxu0 0
  %4499 = vmatpush2.bf16.msra.mxu0 0
  %4500 = vmatprep.subr.bf16.mxu0 0
  %4501 = vmatpush2.bf16.msra.mxu0 0
  %4502 = vmatprep.subr.bf16.mxu0 0
  %4503 = vmatpush2.bf16.msra.mxu0 0
  %4504 = vmatprep.subr.bf16.mxu0 0
  %4505 = vmatpush2.bf16.msra.mxu0 0
  %4506 = vmatprep.subr.bf16.mxu0 0
  %4507 = vmatpush2.bf16.msra.mxu0 0
  %4508 = vmatprep.subr.bf16.mxu0 0
  %4509 = vmatpush2.bf16.msra.mxu0 0
  %4510 = vmatprep.mubr.bf16.mxu0 0
  %4511 = vmatmul.mubr.bf16.gmra.mxu0 %v4473
  %v4512 = vpop.f32.mrf.mxu0
  %v4513 = vadd.f32 0.0, %v4512
  %v4514 = vpop.f32.mrf.mxu0
  %v4515 = vpop.f32.mrf.mxu0
  %v4516 = vpop.f32.mrf.mxu0
  %4517 = vdwg.mxu0
  %v4519 = vsel %vm3819, %v4007, 0
  %v4522 = vsel %vm154, %v3077, 0
  %4524 = vmatprep.subr.bf16.mxu0 0
  %4525 = vmatpush1.bf16.msra.mxu0 0
  %4526 = vmatprep.subr.bf16.mxu0 0
  %4527 = vmatpush1.bf16.msra.mxu0 0
  %4528 = vmatprep.subr.bf16.mxu0 0
  %4529 = vmatpush1.bf16.msra.mxu0 0
  %4530 = vmatprep.subr.bf16.mxu0 0
  %4531 = vmatpush1.bf16.msra.mxu0 0
  %4532 = vmatprep.subr.bf16.mxu0 0
  %4533 = vmatpush1.bf16.msra.mxu0 0
  %4534 = vmatprep.subr.bf16.mxu0 0
  %4535 = vmatpush1.bf16.msra.mxu0 0
  %4536 = vmatprep.subr.bf16.mxu0 0
  %4537 = vmatpush1.bf16.msra.mxu0 0
  %4538 = vmatprep.subr.bf16.mxu0 0
  %4539 = vmatpush1.bf16.msra.mxu0 %v4522
  %4540 = vmatprep.subr.bf16.mxu0 0
  %4541 = vmatpush2.bf16.msra.mxu0 0
  %4542 = vmatprep.subr.bf16.mxu0 0
  %4543 = vmatpush2.bf16.msra.mxu0 0
  %4544 = vmatprep.subr.bf16.mxu0 0
  %4545 = vmatpush2.bf16.msra.mxu0 0
  %4546 = vmatprep.subr.bf16.mxu0 0
  %4547 = vmatpush2.bf16.msra.mxu0 0
  %4548 = vmatprep.subr.bf16.mxu0 0
  %4549 = vmatpush2.bf16.msra.mxu0 0
  %4550 = vmatprep.subr.bf16.mxu0 0
  %4551 = vmatpush2.bf16.msra.mxu0 0
  %4552 = vmatprep.subr.bf16.mxu0 0
  %4553 = vmatpush2.bf16.msra.mxu0 0
  %4554 = vmatprep.subr.bf16.mxu0 0
  %4555 = vmatpush2.bf16.msra.mxu0 0
  %4556 = vmatprep.mubr.bf16.mxu0 0
  %4557 = vmatmul.mubr.bf16.gmra.mxu0 %v4519
  %v4558 = vpop.f32.mrf.mxu0
  %v4559 = vadd.f32 0.0, %v4558
  %v4560 = vpop.f32.mrf.mxu0
  %v4561 = vpop.f32.mrf.mxu0
  %v4562 = vpop.f32.mrf.mxu0
  %4563 = vdwg.mxu0
  %v4565 = vsel %vm3819, %v4008, 0
  %v4568 = vsel %vm154, %v3078, 0
  %4570 = vmatprep.subr.bf16.mxu0 0
  %4571 = vmatpush1.bf16.msra.mxu0 0
  %4572 = vmatprep.subr.bf16.mxu0 0
  %4573 = vmatpush1.bf16.msra.mxu0 0
  %4574 = vmatprep.subr.bf16.mxu0 0
  %4575 = vmatpush1.bf16.msra.mxu0 0
  %4576 = vmatprep.subr.bf16.mxu0 0
  %4577 = vmatpush1.bf16.msra.mxu0 0
  %4578 = vmatprep.subr.bf16.mxu0 0
  %4579 = vmatpush1.bf16.msra.mxu0 0
  %4580 = vmatprep.subr.bf16.mxu0 0
  %4581 = vmatpush1.bf16.msra.mxu0 0
  %4582 = vmatprep.subr.bf16.mxu0 0
  %4583 = vmatpush1.bf16.msra.mxu0 0
  %4584 = vmatprep.subr.bf16.mxu0 0
  %4585 = vmatpush1.bf16.msra.mxu0 %v4568
  %4586 = vmatprep.subr.bf16.mxu0 0
  %4587 = vmatpush2.bf16.msra.mxu0 0
  %4588 = vmatprep.subr.bf16.mxu0 0
  %4589 = vmatpush2.bf16.msra.mxu0 0
  %4590 = vmatprep.subr.bf16.mxu0 0
  %4591 = vmatpush2.bf16.msra.mxu0 0
  %4592 = vmatprep.subr.bf16.mxu0 0
  %4593 = vmatpush2.bf16.msra.mxu0 0
  %4594 = vmatprep.subr.bf16.mxu0 0
  %4595 = vmatpush2.bf16.msra.mxu0 0
  %4596 = vmatprep.subr.bf16.mxu0 0
  %4597 = vmatpush2.bf16.msra.mxu0 0
  %4598 = vmatprep.subr.bf16.mxu0 0
  %4599 = vmatpush2.bf16.msra.mxu0 0
  %4600 = vmatprep.subr.bf16.mxu0 0
  %4601 = vmatpush2.bf16.msra.mxu0 0
  %4602 = vmatprep.mubr.bf16.mxu0 0
  %4603 = vmatmul.mubr.bf16.gmra.mxu0 %v4565
  %v4604 = vpop.f32.mrf.mxu0
  %v4605 = vadd.f32 0.0, %v4604
  %v4606 = vpop.f32.mrf.mxu0
  %v4607 = vpop.f32.mrf.mxu0
  %v4608 = vpop.f32.mrf.mxu0
  %4609 = vdwg.mxu0
  %v4611 = vsel %vm3819, %v4009, 0
  %v4614 = vsel %vm154, %v3079, 0
  %4616 = vmatprep.subr.bf16.mxu0 0
  %4617 = vmatpush1.bf16.msra.mxu0 0
  %4618 = vmatprep.subr.bf16.mxu0 0
  %4619 = vmatpush1.bf16.msra.mxu0 0
  %4620 = vmatprep.subr.bf16.mxu0 0
  %4621 = vmatpush1.bf16.msra.mxu0 0
  %4622 = vmatprep.subr.bf16.mxu0 0
  %4623 = vmatpush1.bf16.msra.mxu0 0
  %4624 = vmatprep.subr.bf16.mxu0 0
  %4625 = vmatpush1.bf16.msra.mxu0 0
  %4626 = vmatprep.subr.bf16.mxu0 0
  %4627 = vmatpush1.bf16.msra.mxu0 0
  %4628 = vmatprep.subr.bf16.mxu0 0
  %4629 = vmatpush1.bf16.msra.mxu0 0
  %4630 = vmatprep.subr.bf16.mxu0 0
  %4631 = vmatpush1.bf16.msra.mxu0 %v4614
  %4632 = vmatprep.subr.bf16.mxu0 0
  %4633 = vmatpush2.bf16.msra.mxu0 0
  %4634 = vmatprep.subr.bf16.mxu0 0
  %4635 = vmatpush2.bf16.msra.mxu0 0
  %4636 = vmatprep.subr.bf16.mxu0 0
  %4637 = vmatpush2.bf16.msra.mxu0 0
  %4638 = vmatprep.subr.bf16.mxu0 0
  %4639 = vmatpush2.bf16.msra.mxu0 0
  %4640 = vmatprep.subr.bf16.mxu0 0
  %4641 = vmatpush2.bf16.msra.mxu0 0
  %4642 = vmatprep.subr.bf16.mxu0 0
  %4643 = vmatpush2.bf16.msra.mxu0 0
  %4644 = vmatprep.subr.bf16.mxu0 0
  %4645 = vmatpush2.bf16.msra.mxu0 0
  %4646 = vmatprep.subr.bf16.mxu0 0
  %4647 = vmatpush2.bf16.msra.mxu0 0
  %4648 = vmatprep.mubr.bf16.mxu0 0
  %4649 = vmatmul.mubr.bf16.gmra.mxu0 %v4611
  %v4650 = vpop.f32.mrf.mxu0
  %v4651 = vadd.f32 0.0, %v4650
  %v4652 = vpop.f32.mrf.mxu0
  %v4653 = vpop.f32.mrf.mxu0
  %v4654 = vpop.f32.mrf.mxu0
  %4655 = vdwg.mxu0
  %v4657 = vsel %vm3819, %v4010, 0
  %v4660 = vsel %vm154, %v3080, 0
  %4662 = vmatprep.subr.bf16.mxu0 0
  %4663 = vmatpush1.bf16.msra.mxu0 0
  %4664 = vmatprep.subr.bf16.mxu0 0
  %4665 = vmatpush1.bf16.msra.mxu0 0
  %4666 = vmatprep.subr.bf16.mxu0 0
  %4667 = vmatpush1.bf16.msra.mxu0 0
  %4668 = vmatprep.subr.bf16.mxu0 0
  %4669 = vmatpush1.bf16.msra.mxu0 0
  %4670 = vmatprep.subr.bf16.mxu0 0
  %4671 = vmatpush1.bf16.msra.mxu0 0
  %4672 = vmatprep.subr.bf16.mxu0 0
  %4673 = vmatpush1.bf16.msra.mxu0 0
  %4674 = vmatprep.subr.bf16.mxu0 0
  %4675 = vmatpush1.bf16.msra.mxu0 0
  %4676 = vmatprep.subr.bf16.mxu0 0
  %4677 = vmatpush1.bf16.msra.mxu0 %v4660
  %4678 = vmatprep.subr.bf16.mxu0 0
  %4679 = vmatpush2.bf16.msra.mxu0 0
  %4680 = vmatprep.subr.bf16.mxu0 0
  %4681 = vmatpush2.bf16.msra.mxu0 0
  %4682 = vmatprep.subr.bf16.mxu0 0
  %4683 = vmatpush2.bf16.msra.mxu0 0
  %4684 = vmatprep.subr.bf16.mxu0 0
  %4685 = vmatpush2.bf16.msra.mxu0 0
  %4686 = vmatprep.subr.bf16.mxu0 0
  %4687 = vmatpush2.bf16.msra.mxu0 0
  %4688 = vmatprep.subr.bf16.mxu0 0
  %4689 = vmatpush2.bf16.msra.mxu0 0
  %4690 = vmatprep.subr.bf16.mxu0 0
  %4691 = vmatpush2.bf16.msra.mxu0 0
  %4692 = vmatprep.subr.bf16.mxu0 0
  %4693 = vmatpush2.bf16.msra.mxu0 0
  %4694 = vmatprep.mubr.bf16.mxu0 0
  %4695 = vmatmul.mubr.bf16.gmra.mxu0 %v4657
  %v4696 = vpop.f32.mrf.mxu0
  %v4697 = vadd.f32 0.0, %v4696
  %v4698 = vpop.f32.mrf.mxu0
  %v4699 = vpop.f32.mrf.mxu0
  %v4700 = vpop.f32.mrf.mxu0
  %4701 = vdwg.mxu0
  %v4703 = vsel %vm3819, %v4011, 0
  %v4706 = vsel %vm154, %v3081, 0
  %4708 = vmatprep.subr.bf16.mxu0 0
  %4709 = vmatpush1.bf16.msra.mxu0 0
  %4710 = vmatprep.subr.bf16.mxu0 0
  %4711 = vmatpush1.bf16.msra.mxu0 0
  %4712 = vmatprep.subr.bf16.mxu0 0
  %4713 = vmatpush1.bf16.msra.mxu0 0
  %4714 = vmatprep.subr.bf16.mxu0 0
  %4715 = vmatpush1.bf16.msra.mxu0 0
  %4716 = vmatprep.subr.bf16.mxu0 0
  %4717 = vmatpush1.bf16.msra.mxu0 0
  %4718 = vmatprep.subr.bf16.mxu0 0
  %4719 = vmatpush1.bf16.msra.mxu0 0
  %4720 = vmatprep.subr.bf16.mxu0 0
  %4721 = vmatpush1.bf16.msra.mxu0 0
  %4722 = vmatprep.subr.bf16.mxu0 0
  %4723 = vmatpush1.bf16.msra.mxu0 %v4706
  %4724 = vmatprep.subr.bf16.mxu0 0
  %4725 = vmatpush2.bf16.msra.mxu0 0
  %4726 = vmatprep.subr.bf16.mxu0 0
  %4727 = vmatpush2.bf16.msra.mxu0 0
  %4728 = vmatprep.subr.bf16.mxu0 0
  %4729 = vmatpush2.bf16.msra.mxu0 0
  %4730 = vmatprep.subr.bf16.mxu0 0
  %4731 = vmatpush2.bf16.msra.mxu0 0
  %4732 = vmatprep.subr.bf16.mxu0 0
  %4733 = vmatpush2.bf16.msra.mxu0 0
  %4734 = vmatprep.subr.bf16.mxu0 0
  %4735 = vmatpush2.bf16.msra.mxu0 0
  %4736 = vmatprep.subr.bf16.mxu0 0
  %4737 = vmatpush2.bf16.msra.mxu0 0
  %4738 = vmatprep.subr.bf16.mxu0 0
  %4739 = vmatpush2.bf16.msra.mxu0 0
  %4740 = vmatprep.mubr.bf16.mxu0 0
  %4741 = vmatmul.mubr.bf16.gmra.mxu0 %v4703
  %v4742 = vpop.f32.mrf.mxu0
  %v4743 = vadd.f32 0.0, %v4742
  %v4744 = vpop.f32.mrf.mxu0
  %v4745 = vpop.f32.mrf.mxu0
  %v4746 = vpop.f32.mrf.mxu0
  %4747 = vdwg.mxu0
  %v4748 = vcombine.low %v4053, %v4421
  %v4749 = vcombine.high %v4053, %v4421
  %v4751 = vunpack.c.l.s4 1983009808
  %v4752 = vunpack.c.0.s8 %v4751
  %v4753 = vlaneseq
  %v4754 = vshrl.u32 %v4753, 7
  %v4755 = vsub.s32 %v4752, %v4754
  %v4756 = vrot.slane %v4748, %v4755
  %v4758 = vunpack.c.l.s4 1983009808
  %v4759 = vunpack.c.0.s8 %v4758
  %v4760 = vlaneseq
  %v4761 = vshrl.u32 %v4760, 7
  %v4762 = vsub.s32 %v4759, %v4761
  %v4763 = vrot.slane %v4749, %v4762
  %v4764 = vcombine.low %v4237, %v4605
  %v4765 = vcombine.high %v4237, %v4605
  %v4767 = vunpack.c.l.s4 1983009808
  %v4768 = vunpack.c.0.s8 %v4767
  %v4769 = vlaneseq
  %v4770 = vshrl.u32 %v4769, 7
  %v4771 = vsub.s32 %v4768, %v4770
  %v4772 = vrot.slane %v4764, %v4771
  %v4774 = vunpack.c.l.s4 1983009808
  %v4775 = vunpack.c.0.s8 %v4774
  %v4776 = vlaneseq
  %v4777 = vshrl.u32 %v4776, 7
  %v4778 = vsub.s32 %v4775, %v4777
  %v4779 = vrot.slane %v4765, %v4778
  %v4780 = vcombine.low %v4756, %v4772
  %v4781 = vcombine.high %v4756, %v4772
  %v4783 = vunpack.c.l.s4 1934713408
  %v4784 = vunpack.c.0.s8 %v4783
  %v4785 = vlaneseq
  %v4786 = vshrl.u32 %v4785, 7
  %v4787 = vsub.s32 %v4784, %v4786
  %v4788 = vrot.slane %v4780, %v4787
  %v4790 = vunpack.c.l.s4 1934713408
  %v4791 = vunpack.c.0.s8 %v4790
  %v4792 = vlaneseq
  %v4793 = vshrl.u32 %v4792, 7
  %v4794 = vsub.s32 %v4791, %v4793
  %v4795 = vrot.slane %v4781, %v4794
  %v4796 = vcombine.low %v4763, %v4779
  %v4797 = vcombine.high %v4763, %v4779
  %v4799 = vunpack.c.l.s4 1934713408
  %v4800 = vunpack.c.0.s8 %v4799
  %v4801 = vlaneseq
  %v4802 = vshrl.u32 %v4801, 7
  %v4803 = vsub.s32 %v4800, %v4802
  %v4804 = vrot.slane %v4796, %v4803
  %v4806 = vunpack.c.l.s4 1934713408
  %v4807 = vunpack.c.0.s8 %v4806
  %v4808 = vlaneseq
  %v4809 = vshrl.u32 %v4808, 7
  %v4810 = vsub.s32 %v4807, %v4809
  %v4811 = vrot.slane %v4797, %v4810
  %v4812 = vcombine.high %v4788, 0.0
  %v4813 = vcombine.high %v4795, 0.0
  %v4814 = vcombine.high %v4804, 0.0
  %v4815 = vcombine.high %v4811, 0.0
  %v4816 = vcombine.low %v4099, %v4467
  %v4817 = vcombine.high %v4099, %v4467
  %v4819 = vunpack.c.l.s4 1983009808
  %v4820 = vunpack.c.0.s8 %v4819
  %v4821 = vlaneseq
  %v4822 = vshrl.u32 %v4821, 7
  %v4823 = vsub.s32 %v4820, %v4822
  %v4824 = vrot.slane %v4816, %v4823
  %v4826 = vunpack.c.l.s4 1983009808
  %v4827 = vunpack.c.0.s8 %v4826
  %v4828 = vlaneseq
  %v4829 = vshrl.u32 %v4828, 7
  %v4830 = vsub.s32 %v4827, %v4829
  %v4831 = vrot.slane %v4817, %v4830
  %v4832 = vcombine.low %v4283, %v4651
  %v4833 = vcombine.high %v4283, %v4651
  %v4835 = vunpack.c.l.s4 1983009808
  %v4836 = vunpack.c.0.s8 %v4835
  %v4837 = vlaneseq
  %v4838 = vshrl.u32 %v4837, 7
  %v4839 = vsub.s32 %v4836, %v4838
  %v4840 = vrot.slane %v4832, %v4839
  %v4842 = vunpack.c.l.s4 1983009808
  %v4843 = vunpack.c.0.s8 %v4842
  %v4844 = vlaneseq
  %v4845 = vshrl.u32 %v4844, 7
  %v4846 = vsub.s32 %v4843, %v4845
  %v4847 = vrot.slane %v4833, %v4846
  %v4848 = vcombine.low %v4824, %v4840
  %v4849 = vcombine.high %v4824, %v4840
  %v4851 = vunpack.c.l.s4 1934713408
  %v4852 = vunpack.c.0.s8 %v4851
  %v4853 = vlaneseq
  %v4854 = vshrl.u32 %v4853, 7
  %v4855 = vsub.s32 %v4852, %v4854
  %v4856 = vrot.slane %v4848, %v4855
  %v4858 = vunpack.c.l.s4 1934713408
  %v4859 = vunpack.c.0.s8 %v4858
  %v4860 = vlaneseq
  %v4861 = vshrl.u32 %v4860, 7
  %v4862 = vsub.s32 %v4859, %v4861
  %v4863 = vrot.slane %v4849, %v4862
  %v4864 = vcombine.low %v4831, %v4847
  %v4865 = vcombine.high %v4831, %v4847
  %v4867 = vunpack.c.l.s4 1934713408
  %v4868 = vunpack.c.0.s8 %v4867
  %v4869 = vlaneseq
  %v4870 = vshrl.u32 %v4869, 7
  %v4871 = vsub.s32 %v4868, %v4870
  %v4872 = vrot.slane %v4864, %v4871
  %v4874 = vunpack.c.l.s4 1934713408
  %v4875 = vunpack.c.0.s8 %v4874
  %v4876 = vlaneseq
  %v4877 = vshrl.u32 %v4876, 7
  %v4878 = vsub.s32 %v4875, %v4877
  %v4879 = vrot.slane %v4865, %v4878
  %v4880 = vcombine.high %v4856, 0.0
  %v4881 = vcombine.high %v4863, 0.0
  %v4882 = vcombine.high %v4872, 0.0
  %v4883 = vcombine.high %v4879, 0.0
  %v4884 = vcombine.low %v4145, %v4513
  %v4885 = vcombine.high %v4145, %v4513
  %v4887 = vunpack.c.l.s4 1983009808
  %v4888 = vunpack.c.0.s8 %v4887
  %v4889 = vlaneseq
  %v4890 = vshrl.u32 %v4889, 7
  %v4891 = vsub.s32 %v4888, %v4890
  %v4892 = vrot.slane %v4884, %v4891
  %v4894 = vunpack.c.l.s4 1983009808
  %v4895 = vunpack.c.0.s8 %v4894
  %v4896 = vlaneseq
  %v4897 = vshrl.u32 %v4896, 7
  %v4898 = vsub.s32 %v4895, %v4897
  %v4899 = vrot.slane %v4885, %v4898
  %v4900 = vcombine.low %v4329, %v4697
  %v4901 = vcombine.high %v4329, %v4697
  %v4903 = vunpack.c.l.s4 1983009808
  %v4904 = vunpack.c.0.s8 %v4903
  %v4905 = vlaneseq
  %v4906 = vshrl.u32 %v4905, 7
  %v4907 = vsub.s32 %v4904, %v4906
  %v4908 = vrot.slane %v4900, %v4907
  %v4910 = vunpack.c.l.s4 1983009808
  %v4911 = vunpack.c.0.s8 %v4910
  %v4912 = vlaneseq
  %v4913 = vshrl.u32 %v4912, 7
  %v4914 = vsub.s32 %v4911, %v4913
  %v4915 = vrot.slane %v4901, %v4914
  %v4916 = vcombine.low %v4892, %v4908
  %v4917 = vcombine.high %v4892, %v4908
  %v4919 = vunpack.c.l.s4 1934713408
  %v4920 = vunpack.c.0.s8 %v4919
  %v4921 = vlaneseq
  %v4922 = vshrl.u32 %v4921, 7
  %v4923 = vsub.s32 %v4920, %v4922
  %v4924 = vrot.slane %v4916, %v4923
  %v4926 = vunpack.c.l.s4 1934713408
  %v4927 = vunpack.c.0.s8 %v4926
  %v4928 = vlaneseq
  %v4929 = vshrl.u32 %v4928, 7
  %v4930 = vsub.s32 %v4927, %v4929
  %v4931 = vrot.slane %v4917, %v4930
  %v4932 = vcombine.low %v4899, %v4915
  %v4933 = vcombine.high %v4899, %v4915
  %v4935 = vunpack.c.l.s4 1934713408
  %v4936 = vunpack.c.0.s8 %v4935
  %v4937 = vlaneseq
  %v4938 = vshrl.u32 %v4937, 7
  %v4939 = vsub.s32 %v4936, %v4938
  %v4940 = vrot.slane %v4932, %v4939
  %v4942 = vunpack.c.l.s4 1934713408
  %v4943 = vunpack.c.0.s8 %v4942
  %v4944 = vlaneseq
  %v4945 = vshrl.u32 %v4944, 7
  %v4946 = vsub.s32 %v4943, %v4945
  %v4947 = vrot.slane %v4933, %v4946
  %v4948 = vcombine.high %v4924, 0.0
  %v4949 = vcombine.high %v4931, 0.0
  %v4950 = vcombine.high %v4940, 0.0
  %v4951 = vcombine.high %v4947, 0.0
  %v4952 = vcombine.low %v4191, %v4559
  %v4953 = vcombine.high %v4191, %v4559
  %v4955 = vunpack.c.l.s4 1983009808
  %v4956 = vunpack.c.0.s8 %v4955
  %v4957 = vlaneseq
  %v4958 = vshrl.u32 %v4957, 7
  %v4959 = vsub.s32 %v4956, %v4958
  %v4960 = vrot.slane %v4952, %v4959
  %v4962 = vunpack.c.l.s4 1983009808
  %v4963 = vunpack.c.0.s8 %v4962
  %v4964 = vlaneseq
  %v4965 = vshrl.u32 %v4964, 7
  %v4966 = vsub.s32 %v4963, %v4965
  %v4967 = vrot.slane %v4953, %v4966
  %v4968 = vcombine.low %v4375, %v4743
  %v4969 = vcombine.high %v4375, %v4743
  %v4971 = vunpack.c.l.s4 1983009808
  %v4972 = vunpack.c.0.s8 %v4971
  %v4973 = vlaneseq
  %v4974 = vshrl.u32 %v4973, 7
  %v4975 = vsub.s32 %v4972, %v4974
  %v4976 = vrot.slane %v4968, %v4975
  %v4978 = vunpack.c.l.s4 1983009808
  %v4979 = vunpack.c.0.s8 %v4978
  %v4980 = vlaneseq
  %v4981 = vshrl.u32 %v4980, 7
  %v4982 = vsub.s32 %v4979, %v4981
  %v4983 = vrot.slane %v4969, %v4982
  %v4984 = vcombine.low %v4960, %v4976
  %v4985 = vcombine.high %v4960, %v4976
  %v4987 = vunpack.c.l.s4 1934713408
  %v4988 = vunpack.c.0.s8 %v4987
  %v4989 = vlaneseq
  %v4990 = vshrl.u32 %v4989, 7
  %v4991 = vsub.s32 %v4988, %v4990
  %v4992 = vrot.slane %v4984, %v4991
  %v4994 = vunpack.c.l.s4 1934713408
  %v4995 = vunpack.c.0.s8 %v4994
  %v4996 = vlaneseq
  %v4997 = vshrl.u32 %v4996, 7
  %v4998 = vsub.s32 %v4995, %v4997
  %v4999 = vrot.slane %v4985, %v4998
  %v5000 = vcombine.low %v4967, %v4983
  %v5001 = vcombine.high %v4967, %v4983
  %v5003 = vunpack.c.l.s4 1934713408
  %v5004 = vunpack.c.0.s8 %v5003
  %v5005 = vlaneseq
  %v5006 = vshrl.u32 %v5005, 7
  %v5007 = vsub.s32 %v5004, %v5006
  %v5008 = vrot.slane %v5000, %v5007
  %v5010 = vunpack.c.l.s4 1934713408
  %v5011 = vunpack.c.0.s8 %v5010
  %v5012 = vlaneseq
  %v5013 = vshrl.u32 %v5012, 7
  %v5014 = vsub.s32 %v5011, %v5013
  %v5015 = vrot.slane %v5001, %v5014
  %v5016 = vcombine.high %v4992, 0.0
  %v5017 = vcombine.high %v4999, 0.0
  %v5018 = vcombine.high %v5008, 0.0
  %v5019 = vcombine.high %v5015, 0.0
  %v5020 = vcombine.low %v4788, %v4795
  %v5022 = vunpack.c.l.s4 1983009808
  %v5023 = vunpack.c.0.s8 %v5022
  %v5024 = vlaneseq
  %v5025 = vshrl.u32 %v5024, 7
  %v5026 = vsub.s32 %v5023, %v5025
  %v5027 = vrot.slane %v5020, %v5026
  %v5028 = vcombine.low %v4812, %v4813
  %v5030 = vunpack.c.l.s4 1983009808
  %v5031 = vunpack.c.0.s8 %v5030
  %v5032 = vlaneseq
  %v5033 = vshrl.u32 %v5032, 7
  %v5034 = vsub.s32 %v5031, %v5033
  %v5035 = vrot.slane %v5028, %v5034
  %v5036 = vcombine.low %v4804, %v4811
  %v5038 = vunpack.c.l.s4 1983009808
  %v5039 = vunpack.c.0.s8 %v5038
  %v5040 = vlaneseq
  %v5041 = vshrl.u32 %v5040, 7
  %v5042 = vsub.s32 %v5039, %v5041
  %v5043 = vrot.slane %v5036, %v5042
  %v5044 = vcombine.low %v4814, %v4815
  %v5046 = vunpack.c.l.s4 1983009808
  %v5047 = vunpack.c.0.s8 %v5046
  %v5048 = vlaneseq
  %v5049 = vshrl.u32 %v5048, 7
  %v5050 = vsub.s32 %v5047, %v5049
  %v5051 = vrot.slane %v5044, %v5050
  %v5052 = vcombine.low %v5027, %v5035
  %v5053 = vcombine.high %v5027, %v5035
  %v5055 = vunpack.c.l.s4 1934713408
  %v5056 = vunpack.c.0.s8 %v5055
  %v5057 = vlaneseq
  %v5058 = vshrl.u32 %v5057, 7
  %v5059 = vsub.s32 %v5056, %v5058
  %v5060 = vrot.slane %v5052, %v5059
  %v5062 = vunpack.c.l.s4 1934713408
  %v5063 = vunpack.c.0.s8 %v5062
  %v5064 = vlaneseq
  %v5065 = vshrl.u32 %v5064, 7
  %v5066 = vsub.s32 %v5063, %v5065
  %v5067 = vrot.slane %v5053, %v5066
  %v5068 = vcombine.low %v5043, %v5051
  %v5069 = vcombine.high %v5043, %v5051
  %v5071 = vunpack.c.l.s4 1934713408
  %v5072 = vunpack.c.0.s8 %v5071
  %v5073 = vlaneseq
  %v5074 = vshrl.u32 %v5073, 7
  %v5075 = vsub.s32 %v5072, %v5074
  %v5076 = vrot.slane %v5068, %v5075
  %v5078 = vunpack.c.l.s4 1934713408
  %v5079 = vunpack.c.0.s8 %v5078
  %v5080 = vlaneseq
  %v5081 = vshrl.u32 %v5080, 7
  %v5082 = vsub.s32 %v5079, %v5081
  %v5083 = vrot.slane %v5069, %v5082
  %v5084 = vcombine.low %v5060, %v5076
  %v5085 = vcombine.high %v5060, %v5076
  %v5086 = vcombine.low %v5067, %v5083
  %v5087 = vcombine.high %v5067, %v5083
  %v5088 = vcombine.low %v4856, %v4863
  %v5090 = vunpack.c.l.s4 1983009808
  %v5091 = vunpack.c.0.s8 %v5090
  %v5092 = vlaneseq
  %v5093 = vshrl.u32 %v5092, 7
  %v5094 = vsub.s32 %v5091, %v5093
  %v5095 = vrot.slane %v5088, %v5094
  %v5096 = vcombine.low %v4880, %v4881
  %v5098 = vunpack.c.l.s4 1983009808
  %v5099 = vunpack.c.0.s8 %v5098
  %v5100 = vlaneseq
  %v5101 = vshrl.u32 %v5100, 7
  %v5102 = vsub.s32 %v5099, %v5101
  %v5103 = vrot.slane %v5096, %v5102
  %v5104 = vcombine.low %v4872, %v4879
  %v5106 = vunpack.c.l.s4 1983009808
  %v5107 = vunpack.c.0.s8 %v5106
  %v5108 = vlaneseq
  %v5109 = vshrl.u32 %v5108, 7
  %v5110 = vsub.s32 %v5107, %v5109
  %v5111 = vrot.slane %v5104, %v5110
  %v5112 = vcombine.low %v4882, %v4883
  %v5114 = vunpack.c.l.s4 1983009808
  %v5115 = vunpack.c.0.s8 %v5114
  %v5116 = vlaneseq
  %v5117 = vshrl.u32 %v5116, 7
  %v5118 = vsub.s32 %v5115, %v5117
  %v5119 = vrot.slane %v5112, %v5118
  %v5120 = vcombine.low %v5095, %v5103
  %v5121 = vcombine.high %v5095, %v5103
  %v5123 = vunpack.c.l.s4 1934713408
  %v5124 = vunpack.c.0.s8 %v5123
  %v5125 = vlaneseq
  %v5126 = vshrl.u32 %v5125, 7
  %v5127 = vsub.s32 %v5124, %v5126
  %v5128 = vrot.slane %v5120, %v5127
  %v5130 = vunpack.c.l.s4 1934713408
  %v5131 = vunpack.c.0.s8 %v5130
  %v5132 = vlaneseq
  %v5133 = vshrl.u32 %v5132, 7
  %v5134 = vsub.s32 %v5131, %v5133
  %v5135 = vrot.slane %v5121, %v5134
  %v5136 = vcombine.low %v5111, %v5119
  %v5137 = vcombine.high %v5111, %v5119
  %v5139 = vunpack.c.l.s4 1934713408
  %v5140 = vunpack.c.0.s8 %v5139
  %v5141 = vlaneseq
  %v5142 = vshrl.u32 %v5141, 7
  %v5143 = vsub.s32 %v5140, %v5142
  %v5144 = vrot.slane %v5136, %v5143
  %v5146 = vunpack.c.l.s4 1934713408
  %v5147 = vunpack.c.0.s8 %v5146
  %v5148 = vlaneseq
  %v5149 = vshrl.u32 %v5148, 7
  %v5150 = vsub.s32 %v5147, %v5149
  %v5151 = vrot.slane %v5137, %v5150
  %v5152 = vcombine.low %v5128, %v5144
  %v5153 = vcombine.high %v5128, %v5144
  %v5154 = vcombine.low %v5135, %v5151
  %v5155 = vcombine.high %v5135, %v5151
  %v5156 = vcombine.low %v4924, %v4931
  %v5158 = vunpack.c.l.s4 1983009808
  %v5159 = vunpack.c.0.s8 %v5158
  %v5160 = vlaneseq
  %v5161 = vshrl.u32 %v5160, 7
  %v5162 = vsub.s32 %v5159, %v5161
  %v5163 = vrot.slane %v5156, %v5162
  %v5164 = vcombine.low %v4948, %v4949
  %v5166 = vunpack.c.l.s4 1983009808
  %v5167 = vunpack.c.0.s8 %v5166
  %v5168 = vlaneseq
  %v5169 = vshrl.u32 %v5168, 7
  %v5170 = vsub.s32 %v5167, %v5169
  %v5171 = vrot.slane %v5164, %v5170
  %v5172 = vcombine.low %v4940, %v4947
  %v5174 = vunpack.c.l.s4 1983009808
  %v5175 = vunpack.c.0.s8 %v5174
  %v5176 = vlaneseq
  %v5177 = vshrl.u32 %v5176, 7
  %v5178 = vsub.s32 %v5175, %v5177
  %v5179 = vrot.slane %v5172, %v5178
  %v5180 = vcombine.low %v4950, %v4951
  %v5182 = vunpack.c.l.s4 1983009808
  %v5183 = vunpack.c.0.s8 %v5182
  %v5184 = vlaneseq
  %v5185 = vshrl.u32 %v5184, 7
  %v5186 = vsub.s32 %v5183, %v5185
  %v5187 = vrot.slane %v5180, %v5186
  %v5188 = vcombine.low %v5163, %v5171
  %v5189 = vcombine.high %v5163, %v5171
  %v5191 = vunpack.c.l.s4 1934713408
  %v5192 = vunpack.c.0.s8 %v5191
  %v5193 = vlaneseq
  %v5194 = vshrl.u32 %v5193, 7
  %v5195 = vsub.s32 %v5192, %v5194
  %v5196 = vrot.slane %v5188, %v5195
  %v5198 = vunpack.c.l.s4 1934713408
  %v5199 = vunpack.c.0.s8 %v5198
  %v5200 = vlaneseq
  %v5201 = vshrl.u32 %v5200, 7
  %v5202 = vsub.s32 %v5199, %v5201
  %v5203 = vrot.slane %v5189, %v5202
  %v5204 = vcombine.low %v5179, %v5187
  %v5205 = vcombine.high %v5179, %v5187
  %v5207 = vunpack.c.l.s4 1934713408
  %v5208 = vunpack.c.0.s8 %v5207
  %v5209 = vlaneseq
  %v5210 = vshrl.u32 %v5209, 7
  %v5211 = vsub.s32 %v5208, %v5210
  %v5212 = vrot.slane %v5204, %v5211
  %v5214 = vunpack.c.l.s4 1934713408
  %v5215 = vunpack.c.0.s8 %v5214
  %v5216 = vlaneseq
  %v5217 = vshrl.u32 %v5216, 7
  %v5218 = vsub.s32 %v5215, %v5217
  %v5219 = vrot.slane %v5205, %v5218
  %v5220 = vcombine.low %v5196, %v5212
  %v5221 = vcombine.high %v5196, %v5212
  %v5222 = vcombine.low %v5203, %v5219
  %v5223 = vcombine.high %v5203, %v5219
  %v5224 = vcombine.low %v4992, %v4999
  %v5226 = vunpack.c.l.s4 1983009808
  %v5227 = vunpack.c.0.s8 %v5226
  %v5228 = vlaneseq
  %v5229 = vshrl.u32 %v5228, 7
  %v5230 = vsub.s32 %v5227, %v5229
  %v5231 = vrot.slane %v5224, %v5230
  %v5232 = vcombine.low %v5016, %v5017
  %v5234 = vunpack.c.l.s4 1983009808
  %v5235 = vunpack.c.0.s8 %v5234
  %v5236 = vlaneseq
  %v5237 = vshrl.u32 %v5236, 7
  %v5238 = vsub.s32 %v5235, %v5237
  %v5239 = vrot.slane %v5232, %v5238
  %v5240 = vcombine.low %v5008, %v5015
  %v5242 = vunpack.c.l.s4 1983009808
  %v5243 = vunpack.c.0.s8 %v5242
  %v5244 = vlaneseq
  %v5245 = vshrl.u32 %v5244, 7
  %v5246 = vsub.s32 %v5243, %v5245
  %v5247 = vrot.slane %v5240, %v5246
  %v5248 = vcombine.low %v5018, %v5019
  %v5250 = vunpack.c.l.s4 1983009808
  %v5251 = vunpack.c.0.s8 %v5250
  %v5252 = vlaneseq
  %v5253 = vshrl.u32 %v5252, 7
  %v5254 = vsub.s32 %v5251, %v5253
  %v5255 = vrot.slane %v5248, %v5254
  %v5256 = vcombine.low %v5231, %v5239
  %v5257 = vcombine.high %v5231, %v5239
  %v5259 = vunpack.c.l.s4 1934713408
  %v5260 = vunpack.c.0.s8 %v5259
  %v5261 = vlaneseq
  %v5262 = vshrl.u32 %v5261, 7
  %v5263 = vsub.s32 %v5260, %v5262
  %v5264 = vrot.slane %v5256, %v5263
  %v5266 = vunpack.c.l.s4 1934713408
  %v5267 = vunpack.c.0.s8 %v5266
  %v5268 = vlaneseq
  %v5269 = vshrl.u32 %v5268, 7
  %v5270 = vsub.s32 %v5267, %v5269
  %v5271 = vrot.slane %v5257, %v5270
  %v5272 = vcombine.low %v5247, %v5255
  %v5273 = vcombine.high %v5247, %v5255
  %v5275 = vunpack.c.l.s4 1934713408
  %v5276 = vunpack.c.0.s8 %v5275
  %v5277 = vlaneseq
  %v5278 = vshrl.u32 %v5277, 7
  %v5279 = vsub.s32 %v5276, %v5278
  %v5280 = vrot.slane %v5272, %v5279
  %v5282 = vunpack.c.l.s4 1934713408
  %v5283 = vunpack.c.0.s8 %v5282
  %v5284 = vlaneseq
  %v5285 = vshrl.u32 %v5284, 7
  %v5286 = vsub.s32 %v5283, %v5285
  %v5287 = vrot.slane %v5273, %v5286
  %v5288 = vcombine.low %v5264, %v5280
  %v5289 = vcombine.high %v5264, %v5280
  %v5290 = vcombine.low %v5271, %v5287
  %v5291 = vcombine.high %v5271, %v5287
  %5296 = vrot.lane.b32.xlu0 %v5085, 32
  %v5297 = vpop.permute.xlu0 %5296
  %5298 = vrot.lane.b32.xlu0 %v5153, 32
  %v5299 = vpop.permute.xlu0 %5298
  %5300 = vrot.lane.b32.xlu0 %v5221, 32
  %v5301 = vpop.permute.xlu0 %5300
  %5302 = vrot.lane.b32.xlu0 %v5289, 32
  %v5303 = vpop.permute.xlu0 %5302
  %5312 = vrot.lane.b32.xlu0 %v5086, 64
  %v5313 = vpop.permute.xlu0 %5312
  %5314 = vrot.lane.b32.xlu0 %v5154, 64
  %v5315 = vpop.permute.xlu0 %5314
  %5316 = vrot.lane.b32.xlu0 %v5222, 64
  %v5317 = vpop.permute.xlu0 %5316
  %5318 = vrot.lane.b32.xlu0 %v5290, 64
  %v5319 = vpop.permute.xlu0 %5318
  %5328 = vrot.lane.b32.xlu0 %v5087, 96
  %v5329 = vpop.permute.xlu0 %5328
  %5330 = vrot.lane.b32.xlu0 %v5155, 96
  %v5331 = vpop.permute.xlu0 %5330
  %5332 = vrot.lane.b32.xlu0 %v5223, 96
  %v5333 = vpop.permute.xlu0 %5332
  %5334 = vrot.lane.b32.xlu0 %v5291, 96
  %v5335 = vpop.permute.xlu0 %5334
  %v5340 = vsel %vm3082, %v5084, %v5297
  %v5341 = vsel %vm3082, %v5152, %v5299
  %v5342 = vsel %vm3082, %v5220, %v5301
  %v5343 = vsel %vm3082, %v5288, %v5303
  %vm5344 = vcmask 523264
  %v5345 = vsel %vm5344, %v5340, %v5313
  %v5346 = vsel %vm5344, %v5341, %v5315
  %v5347 = vsel %vm5344, %v5342, %v5317
  %v5348 = vsel %vm5344, %v5343, %v5319
  %vm5349 = vcmask 785408
  %v5350 = vsel %vm5349, %v5345, %v5329
  %v5351 = vsel %vm5349, %v5346, %v5331
  %v5352 = vsel %vm5349, %v5347, %v5333
  %v5353 = vsel %vm5349, %v5348, %v5335
  %v5354 = vpack.c.bf16 %v5351, %v5350
  %v5355 = vpack.c.bf16 %v5353, %v5352
  %v5356 = vld [vmem:[%s8] sm:$0xf]
  %v5357 = vld [vmem:[%s8 + $0x4] sm:$0xf]
  %v5358 = vld [vmem:[%s8 + $0x8] sm:$0xf]
  %v5359 = vld [vmem:[%s8 + $0xc] sm:$0xf]
  %v5360 = vld [vmem:[%s8 + $0x10] sm:$0xf]
  %v5361 = vld [vmem:[%s8 + $0x14] sm:$0xf]
  %v5362 = vld [vmem:[%s8 + $0x18] sm:$0xf]
  %v5363 = vld [vmem:[%s8 + $0x1c] sm:$0xf]
  %v5364 = vld [vmem:[%s8 + $0x20] sm:$0xf]
  %v5365 = vld [vmem:[%s8 + $0x24] sm:$0xf]
  %v5366 = vld [vmem:[%s8 + $0x28] sm:$0xf]
  %v5367 = vld [vmem:[%s8 + $0x2c] sm:$0xf]
  %v5368 = vld [vmem:[%s8 + $0x30] sm:$0xf]
  %v5369 = vld [vmem:[%s8 + $0x34] sm:$0xf]
  %v5370 = vld [vmem:[%s8 + $0x38] sm:$0xf]
  %v5371 = vld [vmem:[%s8 + $0x3c] sm:$0xf]
  %v5372 = vlaneseq
  %v5373 = vshrl.u32 %v5372, 7
  %v5374 = vsub.s32 1, %v5373
  %v5375 = vrot.slane %v1113, %v5374
  %v5392 = vunpack.c.l.b16 %v5356
  %v5393 = vunpack.c.l.b16 %v5357
  %v5394 = vunpack.c.l.b16 %v5358
  %v5395 = vunpack.c.l.b16 %v5359
  %v5396 = vunpack.c.l.b16 %v5360
  %v5397 = vunpack.c.l.b16 %v5361
  %v5398 = vunpack.c.l.b16 %v5362
  %v5399 = vunpack.c.l.b16 %v5363
  %v5400 = vunpack.c.l.b16 %v5364
  %v5401 = vunpack.c.l.b16 %v5365
  %v5402 = vunpack.c.l.b16 %v5366
  %v5403 = vunpack.c.l.b16 %v5367
  %v5404 = vunpack.c.l.b16 %v5368
  %v5405 = vunpack.c.l.b16 %v5369
  %v5406 = vunpack.c.l.b16 %v5370
  %v5407 = vunpack.c.l.b16 %v5371
  %v5408 = vpack.c.b16 %v5393, %v5392
  %v5409 = vpack.c.b16 %v5395, %v5394
  %v5410 = vpack.c.b16 %v5397, %v5396
  %v5411 = vpack.c.b16 %v5399, %v5398
  %v5412 = vpack.c.b16 %v5401, %v5400
  %v5413 = vpack.c.b16 %v5403, %v5402
  %v5414 = vpack.c.b16 %v5405, %v5404
  %v5415 = vpack.c.b16 %v5407, %v5406
  %5424 = vmatprep.subr.bf16.mxu0 0
  %5425 = vmatpush1.bf16.msra.mxu0 %v5415
  %5426 = vmatprep.subr.bf16.mxu0 0
  %5427 = vmatpush1.bf16.msra.mxu0 %v5414
  %5428 = vmatprep.subr.bf16.mxu0 0
  %5429 = vmatpush1.bf16.msra.mxu0 %v5413
  %5430 = vmatprep.subr.bf16.mxu0 0
  %5431 = vmatpush1.bf16.msra.mxu0 %v5412
  %5432 = vmatprep.subr.bf16.mxu0 0
  %5433 = vmatpush1.bf16.msra.mxu0 %v5411
  %5434 = vmatprep.subr.bf16.mxu0 0
  %5435 = vmatpush1.bf16.msra.mxu0 %v5410
  %5436 = vmatprep.subr.bf16.mxu0 0
  %5437 = vmatpush1.bf16.msra.mxu0 %v5409
  %5438 = vmatprep.subr.bf16.mxu0 0
  %5439 = vmatpush1.bf16.msra.mxu0 %v5408
  %5440 = vmatprep.subr.bf16.mxu0 0
  %5441 = vmatpush2.bf16.msra.mxu0 0
  %5442 = vmatprep.subr.bf16.mxu0 0
  %5443 = vmatpush2.bf16.msra.mxu0 0
  %5444 = vmatprep.subr.bf16.mxu0 0
  %5445 = vmatpush2.bf16.msra.mxu0 0
  %5446 = vmatprep.subr.bf16.mxu0 0
  %5447 = vmatpush2.bf16.msra.mxu0 0
  %5448 = vmatprep.subr.bf16.mxu0 0
  %5449 = vmatpush2.bf16.msra.mxu0 0
  %5450 = vmatprep.subr.bf16.mxu0 0
  %5451 = vmatpush2.bf16.msra.mxu0 0
  %5452 = vmatprep.subr.bf16.mxu0 0
  %5453 = vmatpush2.bf16.msra.mxu0 0
  %5454 = vmatprep.subr.bf16.mxu0 0
  %5455 = vmatpush2.bf16.msra.mxu0 0
  %5456 = vmatprep.mubr.bf16.mxu0 0
  %5457 = vmatmul.mubr.bf16.gmra.mxu0 %v5354
  %v5458 = vpop.f32.mrf.mxu0
  %v5459 = vadd.f32 %v5375, %v5458
  %v5460 = vpop.f32.mrf.mxu0
  %v5461 = vpop.f32.mrf.mxu0
  %v5462 = vadd.f32 %v5375, %v5461
  %v5463 = vpop.f32.mrf.mxu0
  %5464 = vmatprep.mubr.bf16.mxu0 0
  %5465 = vmatmul.mubr.bf16.gmra.mxu0 %v5355
  %v5466 = vpop.f32.mrf.mxu0
  %v5467 = vadd.f32 %v5375, %v5466
  %v5468 = vpop.f32.mrf.mxu0
  %v5469 = vpop.f32.mrf.mxu0
  %v5470 = vadd.f32 %v5375, %v5469
  %v5471 = vpop.f32.mrf.mxu0
  %5472 = vdwg.mxu0
  %v5473 = vadd.f32 %v829, %v5459
  %v5474 = vadd.f32 %v832, %v5462
  %v5475 = vadd.f32 %v837, %v5467
  %v5476 = vadd.f32 %v840, %v5470
  %5477 = vadd.xlane.f32.xlu0 %v5473
  %v5478 = vpop.xlane.xlu0 %5477
  %5479 = vadd.xlane.f32.xlu0 %v5474
  %v5480 = vpop.xlane.xlu0 %5479
  %5481 = vadd.xlane.f32.xlu0 %v5475
  %v5482 = vpop.xlane.xlu0 %5481
  %5483 = vadd.xlane.f32.xlu0 %v5476
  %v5484 = vpop.xlane.xlu0 %5483
  %v5485 = vrcp.pop 128.0
  %v5486 = vmul.f32 %v5478, %v5485
  %v5487 = vmul.f32 %v5480, %v5485
  %v5488 = vmul.f32 %v5482, %v5485
  %v5489 = vmul.f32 %v5484, %v5485
  %v5490 = vsub.f32 %v5473, %v5486
  %v5491 = vsub.f32 %v5474, %v5487
  %v5492 = vsub.f32 %v5475, %v5488
  %v5493 = vsub.f32 %v5476, %v5489
  %v5494 = vmul.f32 %v5490, %v5490
  %v5495 = vmul.f32 %v5491, %v5491
  %v5496 = vmul.f32 %v5492, %v5492
  %v5497 = vmul.f32 %v5493, %v5493
  %5498 = vadd.xlane.f32.xlu0 %v5494
  %v5499 = vpop.xlane.xlu0 %5498
  %5500 = vadd.xlane.f32.xlu0 %v5495
  %v5501 = vpop.xlane.xlu0 %5500
  %5502 = vadd.xlane.f32.xlu0 %v5496
  %v5503 = vpop.xlane.xlu0 %5502
  %5504 = vadd.xlane.f32.xlu0 %v5497
  %v5505 = vpop.xlane.xlu0 %5504
  %v5506 = vmul.f32 %v5499, %v5485
  %v5507 = vmul.f32 %v5501, %v5485
  %v5508 = vmul.f32 %v5503, %v5485
  %v5509 = vmul.f32 %v5505, %v5485
  %v5510 = vadd.f32 %v5506, 1e-05
  %v5511 = vadd.f32 %v5507, 1e-05
  %v5512 = vadd.f32 %v5508, 1e-05
  %v5513 = vadd.f32 %v5509, 1e-05
  %v5514 = vrsqrt.pop %v5510
  %v5515 = vrsqrt.pop %v5511
  %v5516 = vrsqrt.pop %v5512
  %v5517 = vrsqrt.pop %v5513
  %v5518 = vmul.f32 %v5490, %v5514
  %v5519 = vmul.f32 %v5491, %v5515
  %v5520 = vmul.f32 %v5492, %v5516
  %v5521 = vmul.f32 %v5493, %v5517
  %v5522 = vlaneseq
  %v5523 = vshrl.u32 %v5522, 7
  %v5524 = vsub.s32 2, %v5523
  %v5525 = vrot.slane %v1113, %v5524
  %v5526 = vmul.f32 %v5518, %v5525
  %v5527 = vmul.f32 %v5519, %v5525
  %v5528 = vmul.f32 %v5520, %v5525
  %v5529 = vmul.f32 %v5521, %v5525
  %v5530 = vlaneseq
  %v5531 = vshrl.u32 %v5530, 7
  %v5532 = vsub.s32 3, %v5531
  %v5533 = vrot.slane %v1113, %v5532
  %v5534 = vadd.f32 %v5526, %v5533
  %v5535 = vadd.f32 %v5527, %v5533
  %v5536 = vadd.f32 %v5528, %v5533
  %v5537 = vadd.f32 %v5529, %v5533
  %s5538 = scalar_lea.vmem %s11, 16
  %v5539 = vld [vmem:[%s5538] sm:$0xff]
  %v5540 = vld [vmem:[%s5538 + $0x8] sm:$0xff]
  %v5541 = vlaneseq
  %v5542 = vshrl.u32 %v5541, 7
  %v5543 = vsub.s32 4, %v5542
  %v5544 = vrot.slane %v5539, %v5543
  %v5545 = vadd.f32 %v1097, %v5544
  %v5546 = vadd.f32 %v1101, %v5544
  %v5547 = vadd.f32 %v1107, %v5544
  %v5548 = vadd.f32 %v1111, %v5544
  %v5549 = vpack.c.bf16 %v5535, %v5534
  %v5550 = vpack.c.bf16 %v5537, %v5536
  %s5551 = scalar_lea.vmem %s7, 128
  %v5552 = vld [vmem:[%s5551] sm:$0xff]
  %v5553 = vld [vmem:[%s5551 + $0x8] sm:$0xff]
  %v5554 = vld [vmem:[%s5551 + $0x10] sm:$0xff]
  %v5555 = vld [vmem:[%s5551 + $0x18] sm:$0xff]
  %v5556 = vld [vmem:[%s5551 + $0x20] sm:$0xff]
  %v5557 = vld [vmem:[%s5551 + $0x28] sm:$0xff]
  %v5558 = vld [vmem:[%s5551 + $0x30] sm:$0xff]
  %v5559 = vld [vmem:[%s5551 + $0x38] sm:$0xff]
  %v5560 = vld [vmem:[%s5551 + $0x40] sm:$0xff]
  %v5561 = vld [vmem:[%s5551 + $0x48] sm:$0xff]
  %v5562 = vld [vmem:[%s5551 + $0x50] sm:$0xff]
  %v5563 = vld [vmem:[%s5551 + $0x58] sm:$0xff]
  %v5564 = vld [vmem:[%s5551 + $0x60] sm:$0xff]
  %v5565 = vld [vmem:[%s5551 + $0x68] sm:$0xff]
  %v5566 = vld [vmem:[%s5551 + $0x70] sm:$0xff]
  %v5567 = vld [vmem:[%s5551 + $0x78] sm:$0xff]
  %v5568 = vlaneseq
  %v5569 = vshrl.u32 %v5568, 7
  %v5570 = vsub.s32 0, %v5569
  %v5571 = vrot.slane %v5539, %v5570
  %v5572 = vlaneseq
  %v5573 = vshrl.u32 %v5572, 7
  %v5574 = vsub.s32 0, %v5573
  %v5575 = vrot.slane %v5540, %v5574
  %v5592 = vunpack.c.l.b16 %v5552
  %v5593 = vunpack.c.h.b16 %v5552
  %v5594 = vunpack.c.l.b16 %v5553
  %v5595 = vunpack.c.h.b16 %v5553
  %v5596 = vunpack.c.l.b16 %v5554
  %v5597 = vunpack.c.h.b16 %v5554
  %v5598 = vunpack.c.l.b16 %v5555
  %v5599 = vunpack.c.h.b16 %v5555
  %v5600 = vunpack.c.l.b16 %v5556
  %v5601 = vunpack.c.h.b16 %v5556
  %v5602 = vunpack.c.l.b16 %v5557
  %v5603 = vunpack.c.h.b16 %v5557
  %v5604 = vunpack.c.l.b16 %v5558
  %v5605 = vunpack.c.h.b16 %v5558
  %v5606 = vunpack.c.l.b16 %v5559
  %v5607 = vunpack.c.h.b16 %v5559
  %v5608 = vunpack.c.l.b16 %v5560
  %v5609 = vunpack.c.h.b16 %v5560
  %v5610 = vunpack.c.l.b16 %v5561
  %v5611 = vunpack.c.h.b16 %v5561
  %v5612 = vunpack.c.l.b16 %v5562
  %v5613 = vunpack.c.h.b16 %v5562
  %v5614 = vunpack.c.l.b16 %v5563
  %v5615 = vunpack.c.h.b16 %v5563
  %v5616 = vunpack.c.l.b16 %v5564
  %v5617 = vunpack.c.h.b16 %v5564
  %v5618 = vunpack.c.l.b16 %v5565
  %v5619 = vunpack.c.h.b16 %v5565
  %v5620 = vunpack.c.l.b16 %v5566
  %v5621 = vunpack.c.h.b16 %v5566
  %v5622 = vunpack.c.l.b16 %v5567
  %v5623 = vunpack.c.h.b16 %v5567
  %v5624 = vpack.c.b16 %v5594, %v5592
  %v5625 = vpack.c.b16 %v5595, %v5593
  %v5626 = vpack.c.b16 %v5598, %v5596
  %v5627 = vpack.c.b16 %v5599, %v5597
  %v5628 = vpack.c.b16 %v5602, %v5600
  %v5629 = vpack.c.b16 %v5603, %v5601
  %v5630 = vpack.c.b16 %v5606, %v5604
  %v5631 = vpack.c.b16 %v5607, %v5605
  %v5632 = vpack.c.b16 %v5610, %v5608
  %v5633 = vpack.c.b16 %v5611, %v5609
  %v5634 = vpack.c.b16 %v5614, %v5612
  %v5635 = vpack.c.b16 %v5615, %v5613
  %v5636 = vpack.c.b16 %v5618, %v5616
  %v5637 = vpack.c.b16 %v5619, %v5617
  %v5638 = vpack.c.b16 %v5622, %v5620
  %v5639 = vpack.c.b16 %v5623, %v5621
  %5656 = vmatprep.subr.bf16.mxu0 %v5639
  %5657 = vmatpush1.bf16.msra.mxu0 %v5638
  %5658 = vmatprep.subr.bf16.mxu0 %v5637
  %5659 = vmatpush1.bf16.msra.mxu0 %v5636
  %5660 = vmatprep.subr.bf16.mxu0 %v5635
  %5661 = vmatpush1.bf16.msra.mxu0 %v5634
  %5662 = vmatprep.subr.bf16.mxu0 %v5633
  %5663 = vmatpush1.bf16.msra.mxu0 %v5632
  %5664 = vmatprep.subr.bf16.mxu0 %v5631
  %5665 = vmatpush1.bf16.msra.mxu0 %v5630
  %5666 = vmatprep.subr.bf16.mxu0 %v5629
  %5667 = vmatpush1.bf16.msra.mxu0 %v5628
  %5668 = vmatprep.subr.bf16.mxu0 %v5627
  %5669 = vmatpush1.bf16.msra.mxu0 %v5626
  %5670 = vmatprep.subr.bf16.mxu0 %v5625
  %5671 = vmatpush1.bf16.msra.mxu0 %v5624
  %5672 = vmatprep.subr.bf16.mxu0 0
  %5673 = vmatpush2.bf16.msra.mxu0 0
  %5674 = vmatprep.subr.bf16.mxu0 0
  %5675 = vmatpush2.bf16.msra.mxu0 0
  %5676 = vmatprep.subr.bf16.mxu0 0
  %5677 = vmatpush2.bf16.msra.mxu0 0
  %5678 = vmatprep.subr.bf16.mxu0 0
  %5679 = vmatpush2.bf16.msra.mxu0 0
  %5680 = vmatprep.subr.bf16.mxu0 0
  %5681 = vmatpush2.bf16.msra.mxu0 0
  %5682 = vmatprep.subr.bf16.mxu0 0
  %5683 = vmatpush2.bf16.msra.mxu0 0
  %5684 = vmatprep.subr.bf16.mxu0 0
  %5685 = vmatpush2.bf16.msra.mxu0 0
  %5686 = vmatprep.subr.bf16.mxu0 0
  %5687 = vmatpush2.bf16.msra.mxu0 0
  %5688 = vmatprep.mubr.bf16.mxu0 0
  %5689 = vmatmul.mubr.bf16.gmra.mxu0 %v5549
  %v5690 = vpop.f32.mrf.mxu0
  %v5691 = vadd.f32 %v5571, %v5690
  %v5692 = vpop.f32.mrf.mxu0
  %v5693 = vadd.f32 %v5575, %v5692
  %v5694 = vpop.f32.mrf.mxu0
  %v5695 = vadd.f32 %v5571, %v5694
  %v5696 = vpop.f32.mrf.mxu0
  %v5697 = vadd.f32 %v5575, %v5696
  %5698 = vmatprep.mubr.bf16.mxu0 0
  %5699 = vmatmul.mubr.bf16.gmra.mxu0 %v5550
  %v5700 = vpop.f32.mrf.mxu0
  %v5701 = vadd.f32 %v5571, %v5700
  %v5702 = vpop.f32.mrf.mxu0
  %v5703 = vadd.f32 %v5575, %v5702
  %v5704 = vpop.f32.mrf.mxu0
  %v5705 = vadd.f32 %v5571, %v5704
  %v5706 = vpop.f32.mrf.mxu0
  %v5707 = vadd.f32 %v5575, %v5706
  %5708 = vdwg.mxu0
  %5713 = vrot.lane.b32.xlu0 %v5545, 96
  %v5714 = vpop.permute.xlu0 %5713
  %5715 = vrot.lane.b32.xlu0 %v5546, 96
  %v5716 = vpop.permute.xlu0 %5715
  %5717 = vrot.lane.b32.xlu0 %v5547, 96
  %v5718 = vpop.permute.xlu0 %5717
  %5719 = vrot.lane.b32.xlu0 %v5548, 96
  %v5720 = vpop.permute.xlu0 %5719
  %5725 = vrot.lane.b32.xlu0 %v5545, 64
  %v5726 = vpop.permute.xlu0 %5725
  %5727 = vrot.lane.b32.xlu0 %v5546, 64
  %v5728 = vpop.permute.xlu0 %5727
  %5729 = vrot.lane.b32.xlu0 %v5547, 64
  %v5730 = vpop.permute.xlu0 %5729
  %5731 = vrot.lane.b32.xlu0 %v5548, 64
  %v5732 = vpop.permute.xlu0 %5731
  %5737 = vrot.lane.b32.xlu0 %v5545, 32
  %v5738 = vpop.permute.xlu0 %5737
  %5739 = vrot.lane.b32.xlu0 %v5546, 32
  %v5740 = vpop.permute.xlu0 %5739
  %5741 = vrot.lane.b32.xlu0 %v5547, 32
  %v5742 = vpop.permute.xlu0 %5741
  %5743 = vrot.lane.b32.xlu0 %v5548, 32
  %v5744 = vpop.permute.xlu0 %5743
  %v5749 = vcombine.low %v5545, %v5726
  %v5750 = vcombine.high %v5545, %v5726
  %v5752 = vunpack.c.l.s4 1983009808
  %v5753 = vunpack.c.0.s8 %v5752
  %v5754 = vlaneseq
  %v5755 = vshrl.u32 %v5754, 7
  %v5756 = vsub.s32 %v5753, %v5755
  %v5757 = vrot.slane %v5749, %v5756
  %v5759 = vunpack.c.l.s4 1983009808
  %v5760 = vunpack.c.0.s8 %v5759
  %v5761 = vlaneseq
  %v5762 = vshrl.u32 %v5761, 7
  %v5763 = vsub.s32 %v5760, %v5762
  %v5764 = vrot.slane %v5750, %v5763
  %v5765 = vcombine.low %v5714, %v5738
  %v5766 = vcombine.high %v5714, %v5738
  %v5768 = vunpack.c.l.s4 1983009808
  %v5769 = vunpack.c.0.s8 %v5768
  %v5770 = vlaneseq
  %v5771 = vshrl.u32 %v5770, 7
  %v5772 = vsub.s32 %v5769, %v5771
  %v5773 = vrot.slane %v5765, %v5772
  %v5775 = vunpack.c.l.s4 1983009808
  %v5776 = vunpack.c.0.s8 %v5775
  %v5777 = vlaneseq
  %v5778 = vshrl.u32 %v5777, 7
  %v5779 = vsub.s32 %v5776, %v5778
  %v5780 = vrot.slane %v5766, %v5779
  %v5781 = vcombine.low %v5757, %v5773
  %v5782 = vcombine.high %v5757, %v5773
  %v5784 = vunpack.c.l.s4 1934713408
  %v5785 = vunpack.c.0.s8 %v5784
  %v5786 = vlaneseq
  %v5787 = vshrl.u32 %v5786, 7
  %v5788 = vsub.s32 %v5785, %v5787
  %v5789 = vrot.slane %v5781, %v5788
  %v5791 = vunpack.c.l.s4 1934713408
  %v5792 = vunpack.c.0.s8 %v5791
  %v5793 = vlaneseq
  %v5794 = vshrl.u32 %v5793, 7
  %v5795 = vsub.s32 %v5792, %v5794
  %v5796 = vrot.slane %v5782, %v5795
  %v5797 = vcombine.low %v5764, %v5780
  %v5798 = vcombine.high %v5764, %v5780
  %v5800 = vunpack.c.l.s4 1934713408
  %v5801 = vunpack.c.0.s8 %v5800
  %v5802 = vlaneseq
  %v5803 = vshrl.u32 %v5802, 7
  %v5804 = vsub.s32 %v5801, %v5803
  %v5805 = vrot.slane %v5797, %v5804
  %v5807 = vunpack.c.l.s4 1934713408
  %v5808 = vunpack.c.0.s8 %v5807
  %v5809 = vlaneseq
  %v5810 = vshrl.u32 %v5809, 7
  %v5811 = vsub.s32 %v5808, %v5810
  %v5812 = vrot.slane %v5798, %v5811
  %v5813 = vcombine.high %v5789, 0.0
  %v5814 = vcombine.high %v5796, 0.0
  %v5815 = vcombine.high %v5805, 0.0
  %v5816 = vcombine.high %v5812, 0.0
  %v5817 = vcombine.low %v5546, %v5728
  %v5818 = vcombine.high %v5546, %v5728
  %v5820 = vunpack.c.l.s4 1983009808
  %v5821 = vunpack.c.0.s8 %v5820
  %v5822 = vlaneseq
  %v5823 = vshrl.u32 %v5822, 7
  %v5824 = vsub.s32 %v5821, %v5823
  %v5825 = vrot.slane %v5817, %v5824
  %v5827 = vunpack.c.l.s4 1983009808
  %v5828 = vunpack.c.0.s8 %v5827
  %v5829 = vlaneseq
  %v5830 = vshrl.u32 %v5829, 7
  %v5831 = vsub.s32 %v5828, %v5830
  %v5832 = vrot.slane %v5818, %v5831
  %v5833 = vcombine.low %v5716, %v5740
  %v5834 = vcombine.high %v5716, %v5740
  %v5836 = vunpack.c.l.s4 1983009808
  %v5837 = vunpack.c.0.s8 %v5836
  %v5838 = vlaneseq
  %v5839 = vshrl.u32 %v5838, 7
  %v5840 = vsub.s32 %v5837, %v5839
  %v5841 = vrot.slane %v5833, %v5840
  %v5843 = vunpack.c.l.s4 1983009808
  %v5844 = vunpack.c.0.s8 %v5843
  %v5845 = vlaneseq
  %v5846 = vshrl.u32 %v5845, 7
  %v5847 = vsub.s32 %v5844, %v5846
  %v5848 = vrot.slane %v5834, %v5847
  %v5849 = vcombine.low %v5825, %v5841
  %v5850 = vcombine.high %v5825, %v5841
  %v5852 = vunpack.c.l.s4 1934713408
  %v5853 = vunpack.c.0.s8 %v5852
  %v5854 = vlaneseq
  %v5855 = vshrl.u32 %v5854, 7
  %v5856 = vsub.s32 %v5853, %v5855
  %v5857 = vrot.slane %v5849, %v5856
  %v5859 = vunpack.c.l.s4 1934713408
  %v5860 = vunpack.c.0.s8 %v5859
  %v5861 = vlaneseq
  %v5862 = vshrl.u32 %v5861, 7
  %v5863 = vsub.s32 %v5860, %v5862
  %v5864 = vrot.slane %v5850, %v5863
  %v5865 = vcombine.low %v5832, %v5848
  %v5866 = vcombine.high %v5832, %v5848
  %v5868 = vunpack.c.l.s4 1934713408
  %v5869 = vunpack.c.0.s8 %v5868
  %v5870 = vlaneseq
  %v5871 = vshrl.u32 %v5870, 7
  %v5872 = vsub.s32 %v5869, %v5871
  %v5873 = vrot.slane %v5865, %v5872
  %v5875 = vunpack.c.l.s4 1934713408
  %v5876 = vunpack.c.0.s8 %v5875
  %v5877 = vlaneseq
  %v5878 = vshrl.u32 %v5877, 7
  %v5879 = vsub.s32 %v5876, %v5878
  %v5880 = vrot.slane %v5866, %v5879
  %v5881 = vcombine.high %v5857, 0.0
  %v5882 = vcombine.high %v5864, 0.0
  %v5883 = vcombine.high %v5873, 0.0
  %v5884 = vcombine.high %v5880, 0.0
  %v5885 = vcombine.low %v5547, %v5730
  %v5886 = vcombine.high %v5547, %v5730
  %v5888 = vunpack.c.l.s4 1983009808
  %v5889 = vunpack.c.0.s8 %v5888
  %v5890 = vlaneseq
  %v5891 = vshrl.u32 %v5890, 7
  %v5892 = vsub.s32 %v5889, %v5891
  %v5893 = vrot.slane %v5885, %v5892
  %v5895 = vunpack.c.l.s4 1983009808
  %v5896 = vunpack.c.0.s8 %v5895
  %v5897 = vlaneseq
  %v5898 = vshrl.u32 %v5897, 7
  %v5899 = vsub.s32 %v5896, %v5898
  %v5900 = vrot.slane %v5886, %v5899
  %v5901 = vcombine.low %v5718, %v5742
  %v5902 = vcombine.high %v5718, %v5742
  %v5904 = vunpack.c.l.s4 1983009808
  %v5905 = vunpack.c.0.s8 %v5904
  %v5906 = vlaneseq
  %v5907 = vshrl.u32 %v5906, 7
  %v5908 = vsub.s32 %v5905, %v5907
  %v5909 = vrot.slane %v5901, %v5908
  %v5911 = vunpack.c.l.s4 1983009808
  %v5912 = vunpack.c.0.s8 %v5911
  %v5913 = vlaneseq
  %v5914 = vshrl.u32 %v5913, 7
  %v5915 = vsub.s32 %v5912, %v5914
  %v5916 = vrot.slane %v5902, %v5915
  %v5917 = vcombine.low %v5893, %v5909
  %v5918 = vcombine.high %v5893, %v5909
  %v5920 = vunpack.c.l.s4 1934713408
  %v5921 = vunpack.c.0.s8 %v5920
  %v5922 = vlaneseq
  %v5923 = vshrl.u32 %v5922, 7
  %v5924 = vsub.s32 %v5921, %v5923
  %v5925 = vrot.slane %v5917, %v5924
  %v5927 = vunpack.c.l.s4 1934713408
  %v5928 = vunpack.c.0.s8 %v5927
  %v5929 = vlaneseq
  %v5930 = vshrl.u32 %v5929, 7
  %v5931 = vsub.s32 %v5928, %v5930
  %v5932 = vrot.slane %v5918, %v5931
  %v5933 = vcombine.low %v5900, %v5916
  %v5934 = vcombine.high %v5900, %v5916
  %v5936 = vunpack.c.l.s4 1934713408
  %v5937 = vunpack.c.0.s8 %v5936
  %v5938 = vlaneseq
  %v5939 = vshrl.u32 %v5938, 7
  %v5940 = vsub.s32 %v5937, %v5939
  %v5941 = vrot.slane %v5933, %v5940
  %v5943 = vunpack.c.l.s4 1934713408
  %v5944 = vunpack.c.0.s8 %v5943
  %v5945 = vlaneseq
  %v5946 = vshrl.u32 %v5945, 7
  %v5947 = vsub.s32 %v5944, %v5946
  %v5948 = vrot.slane %v5934, %v5947
  %v5949 = vcombine.high %v5925, 0.0
  %v5950 = vcombine.high %v5932, 0.0
  %v5951 = vcombine.high %v5941, 0.0
  %v5952 = vcombine.high %v5948, 0.0
  %v5953 = vcombine.low %v5548, %v5732
  %v5954 = vcombine.high %v5548, %v5732
  %v5956 = vunpack.c.l.s4 1983009808
  %v5957 = vunpack.c.0.s8 %v5956
  %v5958 = vlaneseq
  %v5959 = vshrl.u32 %v5958, 7
  %v5960 = vsub.s32 %v5957, %v5959
  %v5961 = vrot.slane %v5953, %v5960
  %v5963 = vunpack.c.l.s4 1983009808
  %v5964 = vunpack.c.0.s8 %v5963
  %v5965 = vlaneseq
  %v5966 = vshrl.u32 %v5965, 7
  %v5967 = vsub.s32 %v5964, %v5966
  %v5968 = vrot.slane %v5954, %v5967
  %v5969 = vcombine.low %v5720, %v5744
  %v5970 = vcombine.high %v5720, %v5744
  %v5972 = vunpack.c.l.s4 1983009808
  %v5973 = vunpack.c.0.s8 %v5972
  %v5974 = vlaneseq
  %v5975 = vshrl.u32 %v5974, 7
  %v5976 = vsub.s32 %v5973, %v5975
  %v5977 = vrot.slane %v5969, %v5976
  %v5979 = vunpack.c.l.s4 1983009808
  %v5980 = vunpack.c.0.s8 %v5979
  %v5981 = vlaneseq
  %v5982 = vshrl.u32 %v5981, 7
  %v5983 = vsub.s32 %v5980, %v5982
  %v5984 = vrot.slane %v5970, %v5983
  %v5985 = vcombine.low %v5961, %v5977
  %v5986 = vcombine.high %v5961, %v5977
  %v5988 = vunpack.c.l.s4 1934713408
  %v5989 = vunpack.c.0.s8 %v5988
  %v5990 = vlaneseq
  %v5991 = vshrl.u32 %v5990, 7
  %v5992 = vsub.s32 %v5989, %v5991
  %v5993 = vrot.slane %v5985, %v5992
  %v5995 = vunpack.c.l.s4 1934713408
  %v5996 = vunpack.c.0.s8 %v5995
  %v5997 = vlaneseq
  %v5998 = vshrl.u32 %v5997, 7
  %v5999 = vsub.s32 %v5996, %v5998
  %v6000 = vrot.slane %v5986, %v5999
  %v6001 = vcombine.low %v5968, %v5984
  %v6002 = vcombine.high %v5968, %v5984
  %v6004 = vunpack.c.l.s4 1934713408
  %v6005 = vunpack.c.0.s8 %v6004
  %v6006 = vlaneseq
  %v6007 = vshrl.u32 %v6006, 7
  %v6008 = vsub.s32 %v6005, %v6007
  %v6009 = vrot.slane %v6001, %v6008
  %v6011 = vunpack.c.l.s4 1934713408
  %v6012 = vunpack.c.0.s8 %v6011
  %v6013 = vlaneseq
  %v6014 = vshrl.u32 %v6013, 7
  %v6015 = vsub.s32 %v6012, %v6014
  %v6016 = vrot.slane %v6002, %v6015
  %v6017 = vcombine.high %v5993, 0.0
  %v6018 = vcombine.high %v6000, 0.0
  %v6019 = vcombine.high %v6009, 0.0
  %v6020 = vcombine.high %v6016, 0.0
  %v6021 = vcombine.low %v5789, %v5796
  %v6023 = vunpack.c.l.s4 1983009808
  %v6024 = vunpack.c.0.s8 %v6023
  %v6025 = vlaneseq
  %v6026 = vshrl.u32 %v6025, 7
  %v6027 = vsub.s32 %v6024, %v6026
  %v6028 = vrot.slane %v6021, %v6027
  %v6029 = vcombine.low %v5813, %v5814
  %v6031 = vunpack.c.l.s4 1983009808
  %v6032 = vunpack.c.0.s8 %v6031
  %v6033 = vlaneseq
  %v6034 = vshrl.u32 %v6033, 7
  %v6035 = vsub.s32 %v6032, %v6034
  %v6036 = vrot.slane %v6029, %v6035
  %v6037 = vcombine.low %v5805, %v5812
  %v6039 = vunpack.c.l.s4 1983009808
  %v6040 = vunpack.c.0.s8 %v6039
  %v6041 = vlaneseq
  %v6042 = vshrl.u32 %v6041, 7
  %v6043 = vsub.s32 %v6040, %v6042
  %v6044 = vrot.slane %v6037, %v6043
  %v6045 = vcombine.low %v5815, %v5816
  %v6047 = vunpack.c.l.s4 1983009808
  %v6048 = vunpack.c.0.s8 %v6047
  %v6049 = vlaneseq
  %v6050 = vshrl.u32 %v6049, 7
  %v6051 = vsub.s32 %v6048, %v6050
  %v6052 = vrot.slane %v6045, %v6051
  %v6053 = vcombine.low %v6028, %v6036
  %v6054 = vcombine.high %v6028, %v6036
  %v6056 = vunpack.c.l.s4 1934713408
  %v6057 = vunpack.c.0.s8 %v6056
  %v6058 = vlaneseq
  %v6059 = vshrl.u32 %v6058, 7
  %v6060 = vsub.s32 %v6057, %v6059
  %v6061 = vrot.slane %v6053, %v6060
  %v6063 = vunpack.c.l.s4 1934713408
  %v6064 = vunpack.c.0.s8 %v6063
  %v6065 = vlaneseq
  %v6066 = vshrl.u32 %v6065, 7
  %v6067 = vsub.s32 %v6064, %v6066
  %v6068 = vrot.slane %v6054, %v6067
  %v6069 = vcombine.low %v6044, %v6052
  %v6070 = vcombine.high %v6044, %v6052
  %v6072 = vunpack.c.l.s4 1934713408
  %v6073 = vunpack.c.0.s8 %v6072
  %v6074 = vlaneseq
  %v6075 = vshrl.u32 %v6074, 7
  %v6076 = vsub.s32 %v6073, %v6075
  %v6077 = vrot.slane %v6069, %v6076
  %v6079 = vunpack.c.l.s4 1934713408
  %v6080 = vunpack.c.0.s8 %v6079
  %v6081 = vlaneseq
  %v6082 = vshrl.u32 %v6081, 7
  %v6083 = vsub.s32 %v6080, %v6082
  %v6084 = vrot.slane %v6070, %v6083
  %v6085 = vcombine.low %v6061, %v6077
  %v6086 = vcombine.high %v6061, %v6077
  %v6087 = vcombine.low %v6068, %v6084
  %v6088 = vcombine.high %v6068, %v6084
  %v6089 = vcombine.low %v5857, %v5864
  %v6091 = vunpack.c.l.s4 1983009808
  %v6092 = vunpack.c.0.s8 %v6091
  %v6093 = vlaneseq
  %v6094 = vshrl.u32 %v6093, 7
  %v6095 = vsub.s32 %v6092, %v6094
  %v6096 = vrot.slane %v6089, %v6095
  %v6097 = vcombine.low %v5881, %v5882
  %v6099 = vunpack.c.l.s4 1983009808
  %v6100 = vunpack.c.0.s8 %v6099
  %v6101 = vlaneseq
  %v6102 = vshrl.u32 %v6101, 7
  %v6103 = vsub.s32 %v6100, %v6102
  %v6104 = vrot.slane %v6097, %v6103
  %v6105 = vcombine.low %v5873, %v5880
  %v6107 = vunpack.c.l.s4 1983009808
  %v6108 = vunpack.c.0.s8 %v6107
  %v6109 = vlaneseq
  %v6110 = vshrl.u32 %v6109, 7
  %v6111 = vsub.s32 %v6108, %v6110
  %v6112 = vrot.slane %v6105, %v6111
  %v6113 = vcombine.low %v5883, %v5884
  %v6115 = vunpack.c.l.s4 1983009808
  %v6116 = vunpack.c.0.s8 %v6115
  %v6117 = vlaneseq
  %v6118 = vshrl.u32 %v6117, 7
  %v6119 = vsub.s32 %v6116, %v6118
  %v6120 = vrot.slane %v6113, %v6119
  %v6121 = vcombine.low %v6096, %v6104
  %v6122 = vcombine.high %v6096, %v6104
  %v6124 = vunpack.c.l.s4 1934713408
  %v6125 = vunpack.c.0.s8 %v6124
  %v6126 = vlaneseq
  %v6127 = vshrl.u32 %v6126, 7
  %v6128 = vsub.s32 %v6125, %v6127
  %v6129 = vrot.slane %v6121, %v6128
  %v6131 = vunpack.c.l.s4 1934713408
  %v6132 = vunpack.c.0.s8 %v6131
  %v6133 = vlaneseq
  %v6134 = vshrl.u32 %v6133, 7
  %v6135 = vsub.s32 %v6132, %v6134
  %v6136 = vrot.slane %v6122, %v6135
  %v6137 = vcombine.low %v6112, %v6120
  %v6138 = vcombine.high %v6112, %v6120
  %v6140 = vunpack.c.l.s4 1934713408
  %v6141 = vunpack.c.0.s8 %v6140
  %v6142 = vlaneseq
  %v6143 = vshrl.u32 %v6142, 7
  %v6144 = vsub.s32 %v6141, %v6143
  %v6145 = vrot.slane %v6137, %v6144
  %v6147 = vunpack.c.l.s4 1934713408
  %v6148 = vunpack.c.0.s8 %v6147
  %v6149 = vlaneseq
  %v6150 = vshrl.u32 %v6149, 7
  %v6151 = vsub.s32 %v6148, %v6150
  %v6152 = vrot.slane %v6138, %v6151
  %v6153 = vcombine.low %v6129, %v6145
  %v6154 = vcombine.high %v6129, %v6145
  %v6155 = vcombine.low %v6136, %v6152
  %v6156 = vcombine.high %v6136, %v6152
  %v6157 = vcombine.low %v5925, %v5932
  %v6159 = vunpack.c.l.s4 1983009808
  %v6160 = vunpack.c.0.s8 %v6159
  %v6161 = vlaneseq
  %v6162 = vshrl.u32 %v6161, 7
  %v6163 = vsub.s32 %v6160, %v6162
  %v6164 = vrot.slane %v6157, %v6163
  %v6165 = vcombine.low %v5949, %v5950
  %v6167 = vunpack.c.l.s4 1983009808
  %v6168 = vunpack.c.0.s8 %v6167
  %v6169 = vlaneseq
  %v6170 = vshrl.u32 %v6169, 7
  %v6171 = vsub.s32 %v6168, %v6170
  %v6172 = vrot.slane %v6165, %v6171
  %v6173 = vcombine.low %v5941, %v5948
  %v6175 = vunpack.c.l.s4 1983009808
  %v6176 = vunpack.c.0.s8 %v6175
  %v6177 = vlaneseq
  %v6178 = vshrl.u32 %v6177, 7
  %v6179 = vsub.s32 %v6176, %v6178
  %v6180 = vrot.slane %v6173, %v6179
  %v6181 = vcombine.low %v5951, %v5952
  %v6183 = vunpack.c.l.s4 1983009808
  %v6184 = vunpack.c.0.s8 %v6183
  %v6185 = vlaneseq
  %v6186 = vshrl.u32 %v6185, 7
  %v6187 = vsub.s32 %v6184, %v6186
  %v6188 = vrot.slane %v6181, %v6187
  %v6189 = vcombine.low %v6164, %v6172
  %v6190 = vcombine.high %v6164, %v6172
  %v6192 = vunpack.c.l.s4 1934713408
  %v6193 = vunpack.c.0.s8 %v6192
  %v6194 = vlaneseq
  %v6195 = vshrl.u32 %v6194, 7
  %v6196 = vsub.s32 %v6193, %v6195
  %v6197 = vrot.slane %v6189, %v6196
  %v6199 = vunpack.c.l.s4 1934713408
  %v6200 = vunpack.c.0.s8 %v6199
  %v6201 = vlaneseq
  %v6202 = vshrl.u32 %v6201, 7
  %v6203 = vsub.s32 %v6200, %v6202
  %v6204 = vrot.slane %v6190, %v6203
  %v6205 = vcombine.low %v6180, %v6188
  %v6206 = vcombine.high %v6180, %v6188
  %v6208 = vunpack.c.l.s4 1934713408
  %v6209 = vunpack.c.0.s8 %v6208
  %v6210 = vlaneseq
  %v6211 = vshrl.u32 %v6210, 7
  %v6212 = vsub.s32 %v6209, %v6211
  %v6213 = vrot.slane %v6205, %v6212
  %v6215 = vunpack.c.l.s4 1934713408
  %v6216 = vunpack.c.0.s8 %v6215
  %v6217 = vlaneseq
  %v6218 = vshrl.u32 %v6217, 7
  %v6219 = vsub.s32 %v6216, %v6218
  %v6220 = vrot.slane %v6206, %v6219
  %v6221 = vcombine.low %v6197, %v6213
  %v6222 = vcombine.high %v6197, %v6213
  %v6223 = vcombine.low %v6204, %v6220
  %v6224 = vcombine.high %v6204, %v6220
  %v6225 = vcombine.low %v5993, %v6000
  %v6227 = vunpack.c.l.s4 1983009808
  %v6228 = vunpack.c.0.s8 %v6227
  %v6229 = vlaneseq
  %v6230 = vshrl.u32 %v6229, 7
  %v6231 = vsub.s32 %v6228, %v6230
  %v6232 = vrot.slane %v6225, %v6231
  %v6233 = vcombine.low %v6017, %v6018
  %v6235 = vunpack.c.l.s4 1983009808
  %v6236 = vunpack.c.0.s8 %v6235
  %v6237 = vlaneseq
  %v6238 = vshrl.u32 %v6237, 7
  %v6239 = vsub.s32 %v6236, %v6238
  %v6240 = vrot.slane %v6233, %v6239
  %v6241 = vcombine.low %v6009, %v6016
  %v6243 = vunpack.c.l.s4 1983009808
  %v6244 = vunpack.c.0.s8 %v6243
  %v6245 = vlaneseq
  %v6246 = vshrl.u32 %v6245, 7
  %v6247 = vsub.s32 %v6244, %v6246
  %v6248 = vrot.slane %v6241, %v6247
  %v6249 = vcombine.low %v6019, %v6020
  %v6251 = vunpack.c.l.s4 1983009808
  %v6252 = vunpack.c.0.s8 %v6251
  %v6253 = vlaneseq
  %v6254 = vshrl.u32 %v6253, 7
  %v6255 = vsub.s32 %v6252, %v6254
  %v6256 = vrot.slane %v6249, %v6255
  %v6257 = vcombine.low %v6232, %v6240
  %v6258 = vcombine.high %v6232, %v6240
  %v6260 = vunpack.c.l.s4 1934713408
  %v6261 = vunpack.c.0.s8 %v6260
  %v6262 = vlaneseq
  %v6263 = vshrl.u32 %v6262, 7
  %v6264 = vsub.s32 %v6261, %v6263
  %v6265 = vrot.slane %v6257, %v6264
  %v6267 = vunpack.c.l.s4 1934713408
  %v6268 = vunpack.c.0.s8 %v6267
  %v6269 = vlaneseq
  %v6270 = vshrl.u32 %v6269, 7
  %v6271 = vsub.s32 %v6268, %v6270
  %v6272 = vrot.slane %v6258, %v6271
  %v6273 = vcombine.low %v6248, %v6256
  %v6274 = vcombine.high %v6248, %v6256
  %v6276 = vunpack.c.l.s4 1934713408
  %v6277 = vunpack.c.0.s8 %v6276
  %v6278 = vlaneseq
  %v6279 = vshrl.u32 %v6278, 7
  %v6280 = vsub.s32 %v6277, %v6279
  %v6281 = vrot.slane %v6273, %v6280
  %v6283 = vunpack.c.l.s4 1934713408
  %v6284 = vunpack.c.0.s8 %v6283
  %v6285 = vlaneseq
  %v6286 = vshrl.u32 %v6285, 7
  %v6287 = vsub.s32 %v6284, %v6286
  %v6288 = vrot.slane %v6274, %v6287
  %v6289 = vcombine.low %v6265, %v6281
  %v6290 = vcombine.high %v6265, %v6281
  %v6291 = vcombine.low %v6272, %v6288
  %v6292 = vcombine.high %v6272, %v6288
  %v6293 = vpack.c.bf16 %v6085, %v6085
  %v6294 = vpack.c.bf16 %v6153, %v6153
  %v6295 = vpack.c.bf16 %v6221, %v6221
  %v6296 = vpack.c.bf16 %v6289, %v6289
  %v6297 = vpack.c.bf16 %v6086, %v6086
  %v6298 = vpack.c.bf16 %v6154, %v6154
  %v6299 = vpack.c.bf16 %v6222, %v6222
  %v6300 = vpack.c.bf16 %v6290, %v6290
  %v6301 = vpack.c.bf16 %v6087, %v6087
  %v6302 = vpack.c.bf16 %v6155, %v6155
  %v6303 = vpack.c.bf16 %v6223, %v6223
  %v6304 = vpack.c.bf16 %v6291, %v6291
  %v6305 = vpack.c.bf16 %v6088, %v6088
  %v6306 = vpack.c.bf16 %v6156, %v6156
  %v6307 = vpack.c.bf16 %v6224, %v6224
  %v6308 = vpack.c.bf16 %v6292, %v6292
  %6313 = vrot.lane.b32.xlu0 %v5691, 96
  %v6314 = vpop.permute.xlu0 %6313
  %6315 = vrot.lane.b32.xlu0 %v5695, 96
  %v6316 = vpop.permute.xlu0 %6315
  %6317 = vrot.lane.b32.xlu0 %v5701, 96
  %v6318 = vpop.permute.xlu0 %6317
  %6319 = vrot.lane.b32.xlu0 %v5705, 96
  %v6320 = vpop.permute.xlu0 %6319
  %6325 = vrot.lane.b32.xlu0 %v5691, 64
  %v6326 = vpop.permute.xlu0 %6325
  %6327 = vrot.lane.b32.xlu0 %v5695, 64
  %v6328 = vpop.permute.xlu0 %6327
  %6329 = vrot.lane.b32.xlu0 %v5701, 64
  %v6330 = vpop.permute.xlu0 %6329
  %6331 = vrot.lane.b32.xlu0 %v5705, 64
  %v6332 = vpop.permute.xlu0 %6331
  %6337 = vrot.lane.b32.xlu0 %v5691, 32
  %v6338 = vpop.permute.xlu0 %6337
  %6339 = vrot.lane.b32.xlu0 %v5695, 32
  %v6340 = vpop.permute.xlu0 %6339
  %6341 = vrot.lane.b32.xlu0 %v5701, 32
  %v6342 = vpop.permute.xlu0 %6341
  %6343 = vrot.lane.b32.xlu0 %v5705, 32
  %v6344 = vpop.permute.xlu0 %6343
  %v6349 = vcombine.low %v5691, %v6326
  %v6350 = vcombine.high %v5691, %v6326
  %v6352 = vunpack.c.l.s4 1983009808
  %v6353 = vunpack.c.0.s8 %v6352
  %v6354 = vlaneseq
  %v6355 = vshrl.u32 %v6354, 7
  %v6356 = vsub.s32 %v6353, %v6355
  %v6357 = vrot.slane %v6349, %v6356
  %v6359 = vunpack.c.l.s4 1983009808
  %v6360 = vunpack.c.0.s8 %v6359
  %v6361 = vlaneseq
  %v6362 = vshrl.u32 %v6361, 7
  %v6363 = vsub.s32 %v6360, %v6362
  %v6364 = vrot.slane %v6350, %v6363
  %v6365 = vcombine.low %v6314, %v6338
  %v6366 = vcombine.high %v6314, %v6338
  %v6368 = vunpack.c.l.s4 1983009808
  %v6369 = vunpack.c.0.s8 %v6368
  %v6370 = vlaneseq
  %v6371 = vshrl.u32 %v6370, 7
  %v6372 = vsub.s32 %v6369, %v6371
  %v6373 = vrot.slane %v6365, %v6372
  %v6375 = vunpack.c.l.s4 1983009808
  %v6376 = vunpack.c.0.s8 %v6375
  %v6377 = vlaneseq
  %v6378 = vshrl.u32 %v6377, 7
  %v6379 = vsub.s32 %v6376, %v6378
  %v6380 = vrot.slane %v6366, %v6379
  %v6381 = vcombine.low %v6357, %v6373
  %v6382 = vcombine.high %v6357, %v6373
  %v6384 = vunpack.c.l.s4 1934713408
  %v6385 = vunpack.c.0.s8 %v6384
  %v6386 = vlaneseq
  %v6387 = vshrl.u32 %v6386, 7
  %v6388 = vsub.s32 %v6385, %v6387
  %v6389 = vrot.slane %v6381, %v6388
  %v6391 = vunpack.c.l.s4 1934713408
  %v6392 = vunpack.c.0.s8 %v6391
  %v6393 = vlaneseq
  %v6394 = vshrl.u32 %v6393, 7
  %v6395 = vsub.s32 %v6392, %v6394
  %v6396 = vrot.slane %v6382, %v6395
  %v6397 = vcombine.low %v6364, %v6380
  %v6398 = vcombine.high %v6364, %v6380
  %v6400 = vunpack.c.l.s4 1934713408
  %v6401 = vunpack.c.0.s8 %v6400
  %v6402 = vlaneseq
  %v6403 = vshrl.u32 %v6402, 7
  %v6404 = vsub.s32 %v6401, %v6403
  %v6405 = vrot.slane %v6397, %v6404
  %v6407 = vunpack.c.l.s4 1934713408
  %v6408 = vunpack.c.0.s8 %v6407
  %v6409 = vlaneseq
  %v6410 = vshrl.u32 %v6409, 7
  %v6411 = vsub.s32 %v6408, %v6410
  %v6412 = vrot.slane %v6398, %v6411
  %v6413 = vcombine.high %v6389, 0.0
  %v6414 = vcombine.high %v6396, 0.0
  %v6415 = vcombine.high %v6405, 0.0
  %v6416 = vcombine.high %v6412, 0.0
  %v6417 = vcombine.low %v5695, %v6328
  %v6418 = vcombine.high %v5695, %v6328
  %v6420 = vunpack.c.l.s4 1983009808
  %v6421 = vunpack.c.0.s8 %v6420
  %v6422 = vlaneseq
  %v6423 = vshrl.u32 %v6422, 7
  %v6424 = vsub.s32 %v6421, %v6423
  %v6425 = vrot.slane %v6417, %v6424
  %v6427 = vunpack.c.l.s4 1983009808
  %v6428 = vunpack.c.0.s8 %v6427
  %v6429 = vlaneseq
  %v6430 = vshrl.u32 %v6429, 7
  %v6431 = vsub.s32 %v6428, %v6430
  %v6432 = vrot.slane %v6418, %v6431
  %v6433 = vcombine.low %v6316, %v6340
  %v6434 = vcombine.high %v6316, %v6340
  %v6436 = vunpack.c.l.s4 1983009808
  %v6437 = vunpack.c.0.s8 %v6436
  %v6438 = vlaneseq
  %v6439 = vshrl.u32 %v6438, 7
  %v6440 = vsub.s32 %v6437, %v6439
  %v6441 = vrot.slane %v6433, %v6440
  %v6443 = vunpack.c.l.s4 1983009808
  %v6444 = vunpack.c.0.s8 %v6443
  %v6445 = vlaneseq
  %v6446 = vshrl.u32 %v6445, 7
  %v6447 = vsub.s32 %v6444, %v6446
  %v6448 = vrot.slane %v6434, %v6447
  %v6449 = vcombine.low %v6425, %v6441
  %v6450 = vcombine.high %v6425, %v6441
  %v6452 = vunpack.c.l.s4 1934713408
  %v6453 = vunpack.c.0.s8 %v6452
  %v6454 = vlaneseq
  %v6455 = vshrl.u32 %v6454, 7
  %v6456 = vsub.s32 %v6453, %v6455
  %v6457 = vrot.slane %v6449, %v6456
  %v6459 = vunpack.c.l.s4 1934713408
  %v6460 = vunpack.c.0.s8 %v6459
  %v6461 = vlaneseq
  %v6462 = vshrl.u32 %v6461, 7
  %v6463 = vsub.s32 %v6460, %v6462
  %v6464 = vrot.slane %v6450, %v6463
  %v6465 = vcombine.low %v6432, %v6448
  %v6466 = vcombine.high %v6432, %v6448
  %v6468 = vunpack.c.l.s4 1934713408
  %v6469 = vunpack.c.0.s8 %v6468
  %v6470 = vlaneseq
  %v6471 = vshrl.u32 %v6470, 7
  %v6472 = vsub.s32 %v6469, %v6471
  %v6473 = vrot.slane %v6465, %v6472
  %v6475 = vunpack.c.l.s4 1934713408
  %v6476 = vunpack.c.0.s8 %v6475
  %v6477 = vlaneseq
  %v6478 = vshrl.u32 %v6477, 7
  %v6479 = vsub.s32 %v6476, %v6478
  %v6480 = vrot.slane %v6466, %v6479
  %v6481 = vcombine.high %v6457, 0.0
  %v6482 = vcombine.high %v6464, 0.0
  %v6483 = vcombine.high %v6473, 0.0
  %v6484 = vcombine.high %v6480, 0.0
  %v6485 = vcombine.low %v5701, %v6330
  %v6486 = vcombine.high %v5701, %v6330
  %v6488 = vunpack.c.l.s4 1983009808
  %v6489 = vunpack.c.0.s8 %v6488
  %v6490 = vlaneseq
  %v6491 = vshrl.u32 %v6490, 7
  %v6492 = vsub.s32 %v6489, %v6491
  %v6493 = vrot.slane %v6485, %v6492
  %v6495 = vunpack.c.l.s4 1983009808
  %v6496 = vunpack.c.0.s8 %v6495
  %v6497 = vlaneseq
  %v6498 = vshrl.u32 %v6497, 7
  %v6499 = vsub.s32 %v6496, %v6498
  %v6500 = vrot.slane %v6486, %v6499
  %v6501 = vcombine.low %v6318, %v6342
  %v6502 = vcombine.high %v6318, %v6342
  %v6504 = vunpack.c.l.s4 1983009808
  %v6505 = vunpack.c.0.s8 %v6504
  %v6506 = vlaneseq
  %v6507 = vshrl.u32 %v6506, 7
  %v6508 = vsub.s32 %v6505, %v6507
  %v6509 = vrot.slane %v6501, %v6508
  %v6511 = vunpack.c.l.s4 1983009808
  %v6512 = vunpack.c.0.s8 %v6511
  %v6513 = vlaneseq
  %v6514 = vshrl.u32 %v6513, 7
  %v6515 = vsub.s32 %v6512, %v6514
  %v6516 = vrot.slane %v6502, %v6515
  %v6517 = vcombine.low %v6493, %v6509
  %v6518 = vcombine.high %v6493, %v6509
  %v6520 = vunpack.c.l.s4 1934713408
  %v6521 = vunpack.c.0.s8 %v6520
  %v6522 = vlaneseq
  %v6523 = vshrl.u32 %v6522, 7
  %v6524 = vsub.s32 %v6521, %v6523
  %v6525 = vrot.slane %v6517, %v6524
  %v6527 = vunpack.c.l.s4 1934713408
  %v6528 = vunpack.c.0.s8 %v6527
  %v6529 = vlaneseq
  %v6530 = vshrl.u32 %v6529, 7
  %v6531 = vsub.s32 %v6528, %v6530
  %v6532 = vrot.slane %v6518, %v6531
  %v6533 = vcombine.low %v6500, %v6516
  %v6534 = vcombine.high %v6500, %v6516
  %v6536 = vunpack.c.l.s4 1934713408
  %v6537 = vunpack.c.0.s8 %v6536
  %v6538 = vlaneseq
  %v6539 = vshrl.u32 %v6538, 7
  %v6540 = vsub.s32 %v6537, %v6539
  %v6541 = vrot.slane %v6533, %v6540
  %v6543 = vunpack.c.l.s4 1934713408
  %v6544 = vunpack.c.0.s8 %v6543
  %v6545 = vlaneseq
  %v6546 = vshrl.u32 %v6545, 7
  %v6547 = vsub.s32 %v6544, %v6546
  %v6548 = vrot.slane %v6534, %v6547
  %v6549 = vcombine.high %v6525, 0.0
  %v6550 = vcombine.high %v6532, 0.0
  %v6551 = vcombine.high %v6541, 0.0
  %v6552 = vcombine.high %v6548, 0.0
  %v6553 = vcombine.low %v5705, %v6332
  %v6554 = vcombine.high %v5705, %v6332
  %v6556 = vunpack.c.l.s4 1983009808
  %v6557 = vunpack.c.0.s8 %v6556
  %v6558 = vlaneseq
  %v6559 = vshrl.u32 %v6558, 7
  %v6560 = vsub.s32 %v6557, %v6559
  %v6561 = vrot.slane %v6553, %v6560
  %v6563 = vunpack.c.l.s4 1983009808
  %v6564 = vunpack.c.0.s8 %v6563
  %v6565 = vlaneseq
  %v6566 = vshrl.u32 %v6565, 7
  %v6567 = vsub.s32 %v6564, %v6566
  %v6568 = vrot.slane %v6554, %v6567
  %v6569 = vcombine.low %v6320, %v6344
  %v6570 = vcombine.high %v6320, %v6344
  %v6572 = vunpack.c.l.s4 1983009808
  %v6573 = vunpack.c.0.s8 %v6572
  %v6574 = vlaneseq
  %v6575 = vshrl.u32 %v6574, 7
  %v6576 = vsub.s32 %v6573, %v6575
  %v6577 = vrot.slane %v6569, %v6576
  %v6579 = vunpack.c.l.s4 1983009808
  %v6580 = vunpack.c.0.s8 %v6579
  %v6581 = vlaneseq
  %v6582 = vshrl.u32 %v6581, 7
  %v6583 = vsub.s32 %v6580, %v6582
  %v6584 = vrot.slane %v6570, %v6583
  %v6585 = vcombine.low %v6561, %v6577
  %v6586 = vcombine.high %v6561, %v6577
  %v6588 = vunpack.c.l.s4 1934713408
  %v6589 = vunpack.c.0.s8 %v6588
  %v6590 = vlaneseq
  %v6591 = vshrl.u32 %v6590, 7
  %v6592 = vsub.s32 %v6589, %v6591
  %v6593 = vrot.slane %v6585, %v6592
  %v6595 = vunpack.c.l.s4 1934713408
  %v6596 = vunpack.c.0.s8 %v6595
  %v6597 = vlaneseq
  %v6598 = vshrl.u32 %v6597, 7
  %v6599 = vsub.s32 %v6596, %v6598
  %v6600 = vrot.slane %v6586, %v6599
  %v6601 = vcombine.low %v6568, %v6584
  %v6602 = vcombine.high %v6568, %v6584
  %v6604 = vunpack.c.l.s4 1934713408
  %v6605 = vunpack.c.0.s8 %v6604
  %v6606 = vlaneseq
  %v6607 = vshrl.u32 %v6606, 7
  %v6608 = vsub.s32 %v6605, %v6607
  %v6609 = vrot.slane %v6601, %v6608
  %v6611 = vunpack.c.l.s4 1934713408
  %v6612 = vunpack.c.0.s8 %v6611
  %v6613 = vlaneseq
  %v6614 = vshrl.u32 %v6613, 7
  %v6615 = vsub.s32 %v6612, %v6614
  %v6616 = vrot.slane %v6602, %v6615
  %v6617 = vcombine.high %v6593, 0.0
  %v6618 = vcombine.high %v6600, 0.0
  %v6619 = vcombine.high %v6609, 0.0
  %v6620 = vcombine.high %v6616, 0.0
  %v6621 = vcombine.low %v6389, %v6396
  %v6623 = vunpack.c.l.s4 1983009808
  %v6624 = vunpack.c.0.s8 %v6623
  %v6625 = vlaneseq
  %v6626 = vshrl.u32 %v6625, 7
  %v6627 = vsub.s32 %v6624, %v6626
  %v6628 = vrot.slane %v6621, %v6627
  %v6629 = vcombine.low %v6413, %v6414
  %v6631 = vunpack.c.l.s4 1983009808
  %v6632 = vunpack.c.0.s8 %v6631
  %v6633 = vlaneseq
  %v6634 = vshrl.u32 %v6633, 7
  %v6635 = vsub.s32 %v6632, %v6634
  %v6636 = vrot.slane %v6629, %v6635
  %v6637 = vcombine.low %v6405, %v6412
  %v6639 = vunpack.c.l.s4 1983009808
  %v6640 = vunpack.c.0.s8 %v6639
  %v6641 = vlaneseq
  %v6642 = vshrl.u32 %v6641, 7
  %v6643 = vsub.s32 %v6640, %v6642
  %v6644 = vrot.slane %v6637, %v6643
  %v6645 = vcombine.low %v6415, %v6416
  %v6647 = vunpack.c.l.s4 1983009808
  %v6648 = vunpack.c.0.s8 %v6647
  %v6649 = vlaneseq
  %v6650 = vshrl.u32 %v6649, 7
  %v6651 = vsub.s32 %v6648, %v6650
  %v6652 = vrot.slane %v6645, %v6651
  %v6653 = vcombine.low %v6628, %v6636
  %v6654 = vcombine.high %v6628, %v6636
  %v6656 = vunpack.c.l.s4 1934713408
  %v6657 = vunpack.c.0.s8 %v6656
  %v6658 = vlaneseq
  %v6659 = vshrl.u32 %v6658, 7
  %v6660 = vsub.s32 %v6657, %v6659
  %v6661 = vrot.slane %v6653, %v6660
  %v6663 = vunpack.c.l.s4 1934713408
  %v6664 = vunpack.c.0.s8 %v6663
  %v6665 = vlaneseq
  %v6666 = vshrl.u32 %v6665, 7
  %v6667 = vsub.s32 %v6664, %v6666
  %v6668 = vrot.slane %v6654, %v6667
  %v6669 = vcombine.low %v6644, %v6652
  %v6670 = vcombine.high %v6644, %v6652
  %v6672 = vunpack.c.l.s4 1934713408
  %v6673 = vunpack.c.0.s8 %v6672
  %v6674 = vlaneseq
  %v6675 = vshrl.u32 %v6674, 7
  %v6676 = vsub.s32 %v6673, %v6675
  %v6677 = vrot.slane %v6669, %v6676
  %v6679 = vunpack.c.l.s4 1934713408
  %v6680 = vunpack.c.0.s8 %v6679
  %v6681 = vlaneseq
  %v6682 = vshrl.u32 %v6681, 7
  %v6683 = vsub.s32 %v6680, %v6682
  %v6684 = vrot.slane %v6670, %v6683
  %v6685 = vcombine.low %v6661, %v6677
  %v6686 = vcombine.high %v6661, %v6677
  %v6687 = vcombine.low %v6668, %v6684
  %v6688 = vcombine.high %v6668, %v6684
  %v6689 = vcombine.low %v6457, %v6464
  %v6691 = vunpack.c.l.s4 1983009808
  %v6692 = vunpack.c.0.s8 %v6691
  %v6693 = vlaneseq
  %v6694 = vshrl.u32 %v6693, 7
  %v6695 = vsub.s32 %v6692, %v6694
  %v6696 = vrot.slane %v6689, %v6695
  %v6697 = vcombine.low %v6481, %v6482
  %v6699 = vunpack.c.l.s4 1983009808
  %v6700 = vunpack.c.0.s8 %v6699
  %v6701 = vlaneseq
  %v6702 = vshrl.u32 %v6701, 7
  %v6703 = vsub.s32 %v6700, %v6702
  %v6704 = vrot.slane %v6697, %v6703
  %v6705 = vcombine.low %v6473, %v6480
  %v6707 = vunpack.c.l.s4 1983009808
  %v6708 = vunpack.c.0.s8 %v6707
  %v6709 = vlaneseq
  %v6710 = vshrl.u32 %v6709, 7
  %v6711 = vsub.s32 %v6708, %v6710
  %v6712 = vrot.slane %v6705, %v6711
  %v6713 = vcombine.low %v6483, %v6484
  %v6715 = vunpack.c.l.s4 1983009808
  %v6716 = vunpack.c.0.s8 %v6715
  %v6717 = vlaneseq
  %v6718 = vshrl.u32 %v6717, 7
  %v6719 = vsub.s32 %v6716, %v6718
  %v6720 = vrot.slane %v6713, %v6719
  %v6721 = vcombine.low %v6696, %v6704
  %v6722 = vcombine.high %v6696, %v6704
  %v6724 = vunpack.c.l.s4 1934713408
  %v6725 = vunpack.c.0.s8 %v6724
  %v6726 = vlaneseq
  %v6727 = vshrl.u32 %v6726, 7
  %v6728 = vsub.s32 %v6725, %v6727
  %v6729 = vrot.slane %v6721, %v6728
  %v6731 = vunpack.c.l.s4 1934713408
  %v6732 = vunpack.c.0.s8 %v6731
  %v6733 = vlaneseq
  %v6734 = vshrl.u32 %v6733, 7
  %v6735 = vsub.s32 %v6732, %v6734
  %v6736 = vrot.slane %v6722, %v6735
  %v6737 = vcombine.low %v6712, %v6720
  %v6738 = vcombine.high %v6712, %v6720
  %v6740 = vunpack.c.l.s4 1934713408
  %v6741 = vunpack.c.0.s8 %v6740
  %v6742 = vlaneseq
  %v6743 = vshrl.u32 %v6742, 7
  %v6744 = vsub.s32 %v6741, %v6743
  %v6745 = vrot.slane %v6737, %v6744
  %v6747 = vunpack.c.l.s4 1934713408
  %v6748 = vunpack.c.0.s8 %v6747
  %v6749 = vlaneseq
  %v6750 = vshrl.u32 %v6749, 7
  %v6751 = vsub.s32 %v6748, %v6750
  %v6752 = vrot.slane %v6738, %v6751
  %v6753 = vcombine.low %v6729, %v6745
  %v6754 = vcombine.high %v6729, %v6745
  %v6755 = vcombine.low %v6736, %v6752
  %v6756 = vcombine.high %v6736, %v6752
  %v6757 = vcombine.low %v6525, %v6532
  %v6759 = vunpack.c.l.s4 1983009808
  %v6760 = vunpack.c.0.s8 %v6759
  %v6761 = vlaneseq
  %v6762 = vshrl.u32 %v6761, 7
  %v6763 = vsub.s32 %v6760, %v6762
  %v6764 = vrot.slane %v6757, %v6763
  %v6765 = vcombine.low %v6549, %v6550
  %v6767 = vunpack.c.l.s4 1983009808
  %v6768 = vunpack.c.0.s8 %v6767
  %v6769 = vlaneseq
  %v6770 = vshrl.u32 %v6769, 7
  %v6771 = vsub.s32 %v6768, %v6770
  %v6772 = vrot.slane %v6765, %v6771
  %v6773 = vcombine.low %v6541, %v6548
  %v6775 = vunpack.c.l.s4 1983009808
  %v6776 = vunpack.c.0.s8 %v6775
  %v6777 = vlaneseq
  %v6778 = vshrl.u32 %v6777, 7
  %v6779 = vsub.s32 %v6776, %v6778
  %v6780 = vrot.slane %v6773, %v6779
  %v6781 = vcombine.low %v6551, %v6552
  %v6783 = vunpack.c.l.s4 1983009808
  %v6784 = vunpack.c.0.s8 %v6783
  %v6785 = vlaneseq
  %v6786 = vshrl.u32 %v6785, 7
  %v6787 = vsub.s32 %v6784, %v6786
  %v6788 = vrot.slane %v6781, %v6787
  %v6789 = vcombine.low %v6764, %v6772
  %v6790 = vcombine.high %v6764, %v6772
  %v6792 = vunpack.c.l.s4 1934713408
  %v6793 = vunpack.c.0.s8 %v6792
  %v6794 = vlaneseq
  %v6795 = vshrl.u32 %v6794, 7
  %v6796 = vsub.s32 %v6793, %v6795
  %v6797 = vrot.slane %v6789, %v6796
  %v6799 = vunpack.c.l.s4 1934713408
  %v6800 = vunpack.c.0.s8 %v6799
  %v6801 = vlaneseq
  %v6802 = vshrl.u32 %v6801, 7
  %v6803 = vsub.s32 %v6800, %v6802
  %v6804 = vrot.slane %v6790, %v6803
  %v6805 = vcombine.low %v6780, %v6788
  %v6806 = vcombine.high %v6780, %v6788
  %v6808 = vunpack.c.l.s4 1934713408
  %v6809 = vunpack.c.0.s8 %v6808
  %v6810 = vlaneseq
  %v6811 = vshrl.u32 %v6810, 7
  %v6812 = vsub.s32 %v6809, %v6811
  %v6813 = vrot.slane %v6805, %v6812
  %v6815 = vunpack.c.l.s4 1934713408
  %v6816 = vunpack.c.0.s8 %v6815
  %v6817 = vlaneseq
  %v6818 = vshrl.u32 %v6817, 7
  %v6819 = vsub.s32 %v6816, %v6818
  %v6820 = vrot.slane %v6806, %v6819
  %v6821 = vcombine.low %v6797, %v6813
  %v6822 = vcombine.high %v6797, %v6813
  %v6823 = vcombine.low %v6804, %v6820
  %v6824 = vcombine.high %v6804, %v6820
  %v6825 = vcombine.low %v6593, %v6600
  %v6827 = vunpack.c.l.s4 1983009808
  %v6828 = vunpack.c.0.s8 %v6827
  %v6829 = vlaneseq
  %v6830 = vshrl.u32 %v6829, 7
  %v6831 = vsub.s32 %v6828, %v6830
  %v6832 = vrot.slane %v6825, %v6831
  %v6833 = vcombine.low %v6617, %v6618
  %v6835 = vunpack.c.l.s4 1983009808
  %v6836 = vunpack.c.0.s8 %v6835
  %v6837 = vlaneseq
  %v6838 = vshrl.u32 %v6837, 7
  %v6839 = vsub.s32 %v6836, %v6838
  %v6840 = vrot.slane %v6833, %v6839
  %v6841 = vcombine.low %v6609, %v6616
  %v6843 = vunpack.c.l.s4 1983009808
  %v6844 = vunpack.c.0.s8 %v6843
  %v6845 = vlaneseq
  %v6846 = vshrl.u32 %v6845, 7
  %v6847 = vsub.s32 %v6844, %v6846
  %v6848 = vrot.slane %v6841, %v6847
  %v6849 = vcombine.low %v6619, %v6620
  %v6851 = vunpack.c.l.s4 1983009808
  %v6852 = vunpack.c.0.s8 %v6851
  %v6853 = vlaneseq
  %v6854 = vshrl.u32 %v6853, 7
  %v6855 = vsub.s32 %v6852, %v6854
  %v6856 = vrot.slane %v6849, %v6855
  %v6857 = vcombine.low %v6832, %v6840
  %v6858 = vcombine.high %v6832, %v6840
  %v6860 = vunpack.c.l.s4 1934713408
  %v6861 = vunpack.c.0.s8 %v6860
  %v6862 = vlaneseq
  %v6863 = vshrl.u32 %v6862, 7
  %v6864 = vsub.s32 %v6861, %v6863
  %v6865 = vrot.slane %v6857, %v6864
  %v6867 = vunpack.c.l.s4 1934713408
  %v6868 = vunpack.c.0.s8 %v6867
  %v6869 = vlaneseq
  %v6870 = vshrl.u32 %v6869, 7
  %v6871 = vsub.s32 %v6868, %v6870
  %v6872 = vrot.slane %v6858, %v6871
  %v6873 = vcombine.low %v6848, %v6856
  %v6874 = vcombine.high %v6848, %v6856
  %v6876 = vunpack.c.l.s4 1934713408
  %v6877 = vunpack.c.0.s8 %v6876
  %v6878 = vlaneseq
  %v6879 = vshrl.u32 %v6878, 7
  %v6880 = vsub.s32 %v6877, %v6879
  %v6881 = vrot.slane %v6873, %v6880
  %v6883 = vunpack.c.l.s4 1934713408
  %v6884 = vunpack.c.0.s8 %v6883
  %v6885 = vlaneseq
  %v6886 = vshrl.u32 %v6885, 7
  %v6887 = vsub.s32 %v6884, %v6886
  %v6888 = vrot.slane %v6874, %v6887
  %v6889 = vcombine.low %v6865, %v6881
  %v6890 = vcombine.high %v6865, %v6881
  %v6891 = vcombine.low %v6872, %v6888
  %v6892 = vcombine.high %v6872, %v6888
  %v6893 = vpack.c.bf16 %v6685, %v6685
  %v6894 = vpack.c.bf16 %v6753, %v6753
  %v6895 = vpack.c.bf16 %v6821, %v6821
  %v6896 = vpack.c.bf16 %v6889, %v6889
  %v6897 = vpack.c.bf16 %v6686, %v6686
  %v6898 = vpack.c.bf16 %v6754, %v6754
  %v6899 = vpack.c.bf16 %v6822, %v6822
  %v6900 = vpack.c.bf16 %v6890, %v6890
  %v6901 = vpack.c.bf16 %v6687, %v6687
  %v6902 = vpack.c.bf16 %v6755, %v6755
  %v6903 = vpack.c.bf16 %v6823, %v6823
  %v6904 = vpack.c.bf16 %v6891, %v6891
  %v6905 = vpack.c.bf16 %v6688, %v6688
  %v6906 = vpack.c.bf16 %v6756, %v6756
  %v6907 = vpack.c.bf16 %v6824, %v6824
  %v6908 = vpack.c.bf16 %v6892, %v6892
  %6913 = vrot.lane.b32.xlu0 %v5693, 96
  %v6914 = vpop.permute.xlu0 %6913
  %6915 = vrot.lane.b32.xlu0 %v5697, 96
  %v6916 = vpop.permute.xlu0 %6915
  %6917 = vrot.lane.b32.xlu0 %v5703, 96
  %v6918 = vpop.permute.xlu0 %6917
  %6919 = vrot.lane.b32.xlu0 %v5707, 96
  %v6920 = vpop.permute.xlu0 %6919
  %6925 = vrot.lane.b32.xlu0 %v5693, 64
  %v6926 = vpop.permute.xlu0 %6925
  %6927 = vrot.lane.b32.xlu0 %v5697, 64
  %v6928 = vpop.permute.xlu0 %6927
  %6929 = vrot.lane.b32.xlu0 %v5703, 64
  %v6930 = vpop.permute.xlu0 %6929
  %6931 = vrot.lane.b32.xlu0 %v5707, 64
  %v6932 = vpop.permute.xlu0 %6931
  %6937 = vrot.lane.b32.xlu0 %v5693, 32
  %v6938 = vpop.permute.xlu0 %6937
  %6939 = vrot.lane.b32.xlu0 %v5697, 32
  %v6940 = vpop.permute.xlu0 %6939
  %6941 = vrot.lane.b32.xlu0 %v5703, 32
  %v6942 = vpop.permute.xlu0 %6941
  %6943 = vrot.lane.b32.xlu0 %v5707, 32
  %v6944 = vpop.permute.xlu0 %6943
  %v6949 = vcombine.low %v5693, %v6926
  %v6950 = vcombine.high %v5693, %v6926
  %v6952 = vunpack.c.l.s4 1983009808
  %v6953 = vunpack.c.0.s8 %v6952
  %v6954 = vlaneseq
  %v6955 = vshrl.u32 %v6954, 7
  %v6956 = vsub.s32 %v6953, %v6955
  %v6957 = vrot.slane %v6949, %v6956
  %v6959 = vunpack.c.l.s4 1983009808
  %v6960 = vunpack.c.0.s8 %v6959
  %v6961 = vlaneseq
  %v6962 = vshrl.u32 %v6961, 7
  %v6963 = vsub.s32 %v6960, %v6962
  %v6964 = vrot.slane %v6950, %v6963
  %v6965 = vcombine.low %v6914, %v6938
  %v6966 = vcombine.high %v6914, %v6938
  %v6968 = vunpack.c.l.s4 1983009808
  %v6969 = vunpack.c.0.s8 %v6968
  %v6970 = vlaneseq
  %v6971 = vshrl.u32 %v6970, 7
  %v6972 = vsub.s32 %v6969, %v6971
  %v6973 = vrot.slane %v6965, %v6972
  %v6975 = vunpack.c.l.s4 1983009808
  %v6976 = vunpack.c.0.s8 %v6975
  %v6977 = vlaneseq
  %v6978 = vshrl.u32 %v6977, 7
  %v6979 = vsub.s32 %v6976, %v6978
  %v6980 = vrot.slane %v6966, %v6979
  %v6981 = vcombine.low %v6957, %v6973
  %v6982 = vcombine.high %v6957, %v6973
  %v6984 = vunpack.c.l.s4 1934713408
  %v6985 = vunpack.c.0.s8 %v6984
  %v6986 = vlaneseq
  %v6987 = vshrl.u32 %v6986, 7
  %v6988 = vsub.s32 %v6985, %v6987
  %v6989 = vrot.slane %v6981, %v6988
  %v6991 = vunpack.c.l.s4 1934713408
  %v6992 = vunpack.c.0.s8 %v6991
  %v6993 = vlaneseq
  %v6994 = vshrl.u32 %v6993, 7
  %v6995 = vsub.s32 %v6992, %v6994
  %v6996 = vrot.slane %v6982, %v6995
  %v6997 = vcombine.low %v6964, %v6980
  %v6998 = vcombine.high %v6964, %v6980
  %v7000 = vunpack.c.l.s4 1934713408
  %v7001 = vunpack.c.0.s8 %v7000
  %v7002 = vlaneseq
  %v7003 = vshrl.u32 %v7002, 7
  %v7004 = vsub.s32 %v7001, %v7003
  %v7005 = vrot.slane %v6997, %v7004
  %v7007 = vunpack.c.l.s4 1934713408
  %v7008 = vunpack.c.0.s8 %v7007
  %v7009 = vlaneseq
  %v7010 = vshrl.u32 %v7009, 7
  %v7011 = vsub.s32 %v7008, %v7010
  %v7012 = vrot.slane %v6998, %v7011
  %v7013 = vcombine.high %v6989, 0.0
  %v7014 = vcombine.high %v6996, 0.0
  %v7015 = vcombine.high %v7005, 0.0
  %v7016 = vcombine.high %v7012, 0.0
  %v7017 = vcombine.low %v5697, %v6928
  %v7018 = vcombine.high %v5697, %v6928
  %v7020 = vunpack.c.l.s4 1983009808
  %v7021 = vunpack.c.0.s8 %v7020
  %v7022 = vlaneseq
  %v7023 = vshrl.u32 %v7022, 7
  %v7024 = vsub.s32 %v7021, %v7023
  %v7025 = vrot.slane %v7017, %v7024
  %v7027 = vunpack.c.l.s4 1983009808
  %v7028 = vunpack.c.0.s8 %v7027
  %v7029 = vlaneseq
  %v7030 = vshrl.u32 %v7029, 7
  %v7031 = vsub.s32 %v7028, %v7030
  %v7032 = vrot.slane %v7018, %v7031
  %v7033 = vcombine.low %v6916, %v6940
  %v7034 = vcombine.high %v6916, %v6940
  %v7036 = vunpack.c.l.s4 1983009808
  %v7037 = vunpack.c.0.s8 %v7036
  %v7038 = vlaneseq
  %v7039 = vshrl.u32 %v7038, 7
  %v7040 = vsub.s32 %v7037, %v7039
  %v7041 = vrot.slane %v7033, %v7040
  %v7043 = vunpack.c.l.s4 1983009808
  %v7044 = vunpack.c.0.s8 %v7043
  %v7045 = vlaneseq
  %v7046 = vshrl.u32 %v7045, 7
  %v7047 = vsub.s32 %v7044, %v7046
  %v7048 = vrot.slane %v7034, %v7047
  %v7049 = vcombine.low %v7025, %v7041
  %v7050 = vcombine.high %v7025, %v7041
  %v7052 = vunpack.c.l.s4 1934713408
  %v7053 = vunpack.c.0.s8 %v7052
  %v7054 = vlaneseq
  %v7055 = vshrl.u32 %v7054, 7
  %v7056 = vsub.s32 %v7053, %v7055
  %v7057 = vrot.slane %v7049, %v7056
  %v7059 = vunpack.c.l.s4 1934713408
  %v7060 = vunpack.c.0.s8 %v7059
  %v7061 = vlaneseq
  %v7062 = vshrl.u32 %v7061, 7
  %v7063 = vsub.s32 %v7060, %v7062
  %v7064 = vrot.slane %v7050, %v7063
  %v7065 = vcombine.low %v7032, %v7048
  %v7066 = vcombine.high %v7032, %v7048
  %v7068 = vunpack.c.l.s4 1934713408
  %v7069 = vunpack.c.0.s8 %v7068
  %v7070 = vlaneseq
  %v7071 = vshrl.u32 %v7070, 7
  %v7072 = vsub.s32 %v7069, %v7071
  %v7073 = vrot.slane %v7065, %v7072
  %v7075 = vunpack.c.l.s4 1934713408
  %v7076 = vunpack.c.0.s8 %v7075
  %v7077 = vlaneseq
  %v7078 = vshrl.u32 %v7077, 7
  %v7079 = vsub.s32 %v7076, %v7078
  %v7080 = vrot.slane %v7066, %v7079
  %v7081 = vcombine.high %v7057, 0.0
  %v7082 = vcombine.high %v7064, 0.0
  %v7083 = vcombine.high %v7073, 0.0
  %v7084 = vcombine.high %v7080, 0.0
  %v7085 = vcombine.low %v5703, %v6930
  %v7086 = vcombine.high %v5703, %v6930
  %v7088 = vunpack.c.l.s4 1983009808
  %v7089 = vunpack.c.0.s8 %v7088
  %v7090 = vlaneseq
  %v7091 = vshrl.u32 %v7090, 7
  %v7092 = vsub.s32 %v7089, %v7091
  %v7093 = vrot.slane %v7085, %v7092
  %v7095 = vunpack.c.l.s4 1983009808
  %v7096 = vunpack.c.0.s8 %v7095
  %v7097 = vlaneseq
  %v7098 = vshrl.u32 %v7097, 7
  %v7099 = vsub.s32 %v7096, %v7098
  %v7100 = vrot.slane %v7086, %v7099
  %v7101 = vcombine.low %v6918, %v6942
  %v7102 = vcombine.high %v6918, %v6942
  %v7104 = vunpack.c.l.s4 1983009808
  %v7105 = vunpack.c.0.s8 %v7104
  %v7106 = vlaneseq
  %v7107 = vshrl.u32 %v7106, 7
  %v7108 = vsub.s32 %v7105, %v7107
  %v7109 = vrot.slane %v7101, %v7108
  %v7111 = vunpack.c.l.s4 1983009808
  %v7112 = vunpack.c.0.s8 %v7111
  %v7113 = vlaneseq
  %v7114 = vshrl.u32 %v7113, 7
  %v7115 = vsub.s32 %v7112, %v7114
  %v7116 = vrot.slane %v7102, %v7115
  %v7117 = vcombine.low %v7093, %v7109
  %v7118 = vcombine.high %v7093, %v7109
  %v7120 = vunpack.c.l.s4 1934713408
  %v7121 = vunpack.c.0.s8 %v7120
  %v7122 = vlaneseq
  %v7123 = vshrl.u32 %v7122, 7
  %v7124 = vsub.s32 %v7121, %v7123
  %v7125 = vrot.slane %v7117, %v7124
  %v7127 = vunpack.c.l.s4 1934713408
  %v7128 = vunpack.c.0.s8 %v7127
  %v7129 = vlaneseq
  %v7130 = vshrl.u32 %v7129, 7
  %v7131 = vsub.s32 %v7128, %v7130
  %v7132 = vrot.slane %v7118, %v7131
  %v7133 = vcombine.low %v7100, %v7116
  %v7134 = vcombine.high %v7100, %v7116
  %v7136 = vunpack.c.l.s4 1934713408
  %v7137 = vunpack.c.0.s8 %v7136
  %v7138 = vlaneseq
  %v7139 = vshrl.u32 %v7138, 7
  %v7140 = vsub.s32 %v7137, %v7139
  %v7141 = vrot.slane %v7133, %v7140
  %v7143 = vunpack.c.l.s4 1934713408
  %v7144 = vunpack.c.0.s8 %v7143
  %v7145 = vlaneseq
  %v7146 = vshrl.u32 %v7145, 7
  %v7147 = vsub.s32 %v7144, %v7146
  %v7148 = vrot.slane %v7134, %v7147
  %v7149 = vcombine.high %v7125, 0.0
  %v7150 = vcombine.high %v7132, 0.0
  %v7151 = vcombine.high %v7141, 0.0
  %v7152 = vcombine.high %v7148, 0.0
  %v7153 = vcombine.low %v5707, %v6932
  %v7154 = vcombine.high %v5707, %v6932
  %v7156 = vunpack.c.l.s4 1983009808
  %v7157 = vunpack.c.0.s8 %v7156
  %v7158 = vlaneseq
  %v7159 = vshrl.u32 %v7158, 7
  %v7160 = vsub.s32 %v7157, %v7159
  %v7161 = vrot.slane %v7153, %v7160
  %v7163 = vunpack.c.l.s4 1983009808
  %v7164 = vunpack.c.0.s8 %v7163
  %v7165 = vlaneseq
  %v7166 = vshrl.u32 %v7165, 7
  %v7167 = vsub.s32 %v7164, %v7166
  %v7168 = vrot.slane %v7154, %v7167
  %v7169 = vcombine.low %v6920, %v6944
  %v7170 = vcombine.high %v6920, %v6944
  %v7172 = vunpack.c.l.s4 1983009808
  %v7173 = vunpack.c.0.s8 %v7172
  %v7174 = vlaneseq
  %v7175 = vshrl.u32 %v7174, 7
  %v7176 = vsub.s32 %v7173, %v7175
  %v7177 = vrot.slane %v7169, %v7176
  %v7179 = vunpack.c.l.s4 1983009808
  %v7180 = vunpack.c.0.s8 %v7179
  %v7181 = vlaneseq
  %v7182 = vshrl.u32 %v7181, 7
  %v7183 = vsub.s32 %v7180, %v7182
  %v7184 = vrot.slane %v7170, %v7183
  %v7185 = vcombine.low %v7161, %v7177
  %v7186 = vcombine.high %v7161, %v7177
  %v7188 = vunpack.c.l.s4 1934713408
  %v7189 = vunpack.c.0.s8 %v7188
  %v7190 = vlaneseq
  %v7191 = vshrl.u32 %v7190, 7
  %v7192 = vsub.s32 %v7189, %v7191
  %v7193 = vrot.slane %v7185, %v7192
  %v7195 = vunpack.c.l.s4 1934713408
  %v7196 = vunpack.c.0.s8 %v7195
  %v7197 = vlaneseq
  %v7198 = vshrl.u32 %v7197, 7
  %v7199 = vsub.s32 %v7196, %v7198
  %v7200 = vrot.slane %v7186, %v7199
  %v7201 = vcombine.low %v7168, %v7184
  %v7202 = vcombine.high %v7168, %v7184
  %v7204 = vunpack.c.l.s4 1934713408
  %v7205 = vunpack.c.0.s8 %v7204
  %v7206 = vlaneseq
  %v7207 = vshrl.u32 %v7206, 7
  %v7208 = vsub.s32 %v7205, %v7207
  %v7209 = vrot.slane %v7201, %v7208
  %v7211 = vunpack.c.l.s4 1934713408
  %v7212 = vunpack.c.0.s8 %v7211
  %v7213 = vlaneseq
  %v7214 = vshrl.u32 %v7213, 7
  %v7215 = vsub.s32 %v7212, %v7214
  %v7216 = vrot.slane %v7202, %v7215
  %v7217 = vcombine.high %v7193, 0.0
  %v7218 = vcombine.high %v7200, 0.0
  %v7219 = vcombine.high %v7209, 0.0
  %v7220 = vcombine.high %v7216, 0.0
  %v7221 = vcombine.low %v6989, %v6996
  %v7223 = vunpack.c.l.s4 1983009808
  %v7224 = vunpack.c.0.s8 %v7223
  %v7225 = vlaneseq
  %v7226 = vshrl.u32 %v7225, 7
  %v7227 = vsub.s32 %v7224, %v7226
  %v7228 = vrot.slane %v7221, %v7227
  %v7229 = vcombine.low %v7013, %v7014
  %v7231 = vunpack.c.l.s4 1983009808
  %v7232 = vunpack.c.0.s8 %v7231
  %v7233 = vlaneseq
  %v7234 = vshrl.u32 %v7233, 7
  %v7235 = vsub.s32 %v7232, %v7234
  %v7236 = vrot.slane %v7229, %v7235
  %v7237 = vcombine.low %v7005, %v7012
  %v7239 = vunpack.c.l.s4 1983009808
  %v7240 = vunpack.c.0.s8 %v7239
  %v7241 = vlaneseq
  %v7242 = vshrl.u32 %v7241, 7
  %v7243 = vsub.s32 %v7240, %v7242
  %v7244 = vrot.slane %v7237, %v7243
  %v7245 = vcombine.low %v7015, %v7016
  %v7247 = vunpack.c.l.s4 1983009808
  %v7248 = vunpack.c.0.s8 %v7247
  %v7249 = vlaneseq
  %v7250 = vshrl.u32 %v7249, 7
  %v7251 = vsub.s32 %v7248, %v7250
  %v7252 = vrot.slane %v7245, %v7251
  %v7253 = vcombine.low %v7228, %v7236
  %v7254 = vcombine.high %v7228, %v7236
  %v7256 = vunpack.c.l.s4 1934713408
  %v7257 = vunpack.c.0.s8 %v7256
  %v7258 = vlaneseq
  %v7259 = vshrl.u32 %v7258, 7
  %v7260 = vsub.s32 %v7257, %v7259
  %v7261 = vrot.slane %v7253, %v7260
  %v7263 = vunpack.c.l.s4 1934713408
  %v7264 = vunpack.c.0.s8 %v7263
  %v7265 = vlaneseq
  %v7266 = vshrl.u32 %v7265, 7
  %v7267 = vsub.s32 %v7264, %v7266
  %v7268 = vrot.slane %v7254, %v7267
  %v7269 = vcombine.low %v7244, %v7252
  %v7270 = vcombine.high %v7244, %v7252
  %v7272 = vunpack.c.l.s4 1934713408
  %v7273 = vunpack.c.0.s8 %v7272
  %v7274 = vlaneseq
  %v7275 = vshrl.u32 %v7274, 7
  %v7276 = vsub.s32 %v7273, %v7275
  %v7277 = vrot.slane %v7269, %v7276
  %v7279 = vunpack.c.l.s4 1934713408
  %v7280 = vunpack.c.0.s8 %v7279
  %v7281 = vlaneseq
  %v7282 = vshrl.u32 %v7281, 7
  %v7283 = vsub.s32 %v7280, %v7282
  %v7284 = vrot.slane %v7270, %v7283
  %v7285 = vcombine.low %v7261, %v7277
  %v7286 = vcombine.high %v7261, %v7277
  %v7287 = vcombine.low %v7268, %v7284
  %v7288 = vcombine.high %v7268, %v7284
  %v7289 = vcombine.low %v7057, %v7064
  %v7291 = vunpack.c.l.s4 1983009808
  %v7292 = vunpack.c.0.s8 %v7291
  %v7293 = vlaneseq
  %v7294 = vshrl.u32 %v7293, 7
  %v7295 = vsub.s32 %v7292, %v7294
  %v7296 = vrot.slane %v7289, %v7295
  %v7297 = vcombine.low %v7081, %v7082
  %v7299 = vunpack.c.l.s4 1983009808
  %v7300 = vunpack.c.0.s8 %v7299
  %v7301 = vlaneseq
  %v7302 = vshrl.u32 %v7301, 7
  %v7303 = vsub.s32 %v7300, %v7302
  %v7304 = vrot.slane %v7297, %v7303
  %v7305 = vcombine.low %v7073, %v7080
  %v7307 = vunpack.c.l.s4 1983009808
  %v7308 = vunpack.c.0.s8 %v7307
  %v7309 = vlaneseq
  %v7310 = vshrl.u32 %v7309, 7
  %v7311 = vsub.s32 %v7308, %v7310
  %v7312 = vrot.slane %v7305, %v7311
  %v7313 = vcombine.low %v7083, %v7084
  %v7315 = vunpack.c.l.s4 1983009808
  %v7316 = vunpack.c.0.s8 %v7315
  %v7317 = vlaneseq
  %v7318 = vshrl.u32 %v7317, 7
  %v7319 = vsub.s32 %v7316, %v7318
  %v7320 = vrot.slane %v7313, %v7319
  %v7321 = vcombine.low %v7296, %v7304
  %v7322 = vcombine.high %v7296, %v7304
  %v7324 = vunpack.c.l.s4 1934713408
  %v7325 = vunpack.c.0.s8 %v7324
  %v7326 = vlaneseq
  %v7327 = vshrl.u32 %v7326, 7
  %v7328 = vsub.s32 %v7325, %v7327
  %v7329 = vrot.slane %v7321, %v7328
  %v7331 = vunpack.c.l.s4 1934713408
  %v7332 = vunpack.c.0.s8 %v7331
  %v7333 = vlaneseq
  %v7334 = vshrl.u32 %v7333, 7
  %v7335 = vsub.s32 %v7332, %v7334
  %v7336 = vrot.slane %v7322, %v7335
  %v7337 = vcombine.low %v7312, %v7320
  %v7338 = vcombine.high %v7312, %v7320
  %v7340 = vunpack.c.l.s4 1934713408
  %v7341 = vunpack.c.0.s8 %v7340
  %v7342 = vlaneseq
  %v7343 = vshrl.u32 %v7342, 7
  %v7344 = vsub.s32 %v7341, %v7343
  %v7345 = vrot.slane %v7337, %v7344
  %v7347 = vunpack.c.l.s4 1934713408
  %v7348 = vunpack.c.0.s8 %v7347
  %v7349 = vlaneseq
  %v7350 = vshrl.u32 %v7349, 7
  %v7351 = vsub.s32 %v7348, %v7350
  %v7352 = vrot.slane %v7338, %v7351
  %v7353 = vcombine.low %v7329, %v7345
  %v7354 = vcombine.high %v7329, %v7345
  %v7355 = vcombine.low %v7336, %v7352
  %v7356 = vcombine.high %v7336, %v7352
  %v7357 = vcombine.low %v7125, %v7132
  %v7359 = vunpack.c.l.s4 1983009808
  %v7360 = vunpack.c.0.s8 %v7359
  %v7361 = vlaneseq
  %v7362 = vshrl.u32 %v7361, 7
  %v7363 = vsub.s32 %v7360, %v7362
  %v7364 = vrot.slane %v7357, %v7363
  %v7365 = vcombine.low %v7149, %v7150
  %v7367 = vunpack.c.l.s4 1983009808
  %v7368 = vunpack.c.0.s8 %v7367
  %v7369 = vlaneseq
  %v7370 = vshrl.u32 %v7369, 7
  %v7371 = vsub.s32 %v7368, %v7370
  %v7372 = vrot.slane %v7365, %v7371
  %v7373 = vcombine.low %v7141, %v7148
  %v7375 = vunpack.c.l.s4 1983009808
  %v7376 = vunpack.c.0.s8 %v7375
  %v7377 = vlaneseq
  %v7378 = vshrl.u32 %v7377, 7
  %v7379 = vsub.s32 %v7376, %v7378
  %v7380 = vrot.slane %v7373, %v7379
  %v7381 = vcombine.low %v7151, %v7152
  %v7383 = vunpack.c.l.s4 1983009808
  %v7384 = vunpack.c.0.s8 %v7383
  %v7385 = vlaneseq
  %v7386 = vshrl.u32 %v7385, 7
  %v7387 = vsub.s32 %v7384, %v7386
  %v7388 = vrot.slane %v7381, %v7387
  %v7389 = vcombine.low %v7364, %v7372
  %v7390 = vcombine.high %v7364, %v7372
  %v7392 = vunpack.c.l.s4 1934713408
  %v7393 = vunpack.c.0.s8 %v7392
  %v7394 = vlaneseq
  %v7395 = vshrl.u32 %v7394, 7
  %v7396 = vsub.s32 %v7393, %v7395
  %v7397 = vrot.slane %v7389, %v7396
  %v7399 = vunpack.c.l.s4 1934713408
  %v7400 = vunpack.c.0.s8 %v7399
  %v7401 = vlaneseq
  %v7402 = vshrl.u32 %v7401, 7
  %v7403 = vsub.s32 %v7400, %v7402
  %v7404 = vrot.slane %v7390, %v7403
  %v7405 = vcombine.low %v7380, %v7388
  %v7406 = vcombine.high %v7380, %v7388
  %v7408 = vunpack.c.l.s4 1934713408
  %v7409 = vunpack.c.0.s8 %v7408
  %v7410 = vlaneseq
  %v7411 = vshrl.u32 %v7410, 7
  %v7412 = vsub.s32 %v7409, %v7411
  %v7413 = vrot.slane %v7405, %v7412
  %v7415 = vunpack.c.l.s4 1934713408
  %v7416 = vunpack.c.0.s8 %v7415
  %v7417 = vlaneseq
  %v7418 = vshrl.u32 %v7417, 7
  %v7419 = vsub.s32 %v7416, %v7418
  %v7420 = vrot.slane %v7406, %v7419
  %v7421 = vcombine.low %v7397, %v7413
  %v7422 = vcombine.high %v7397, %v7413
  %v7423 = vcombine.low %v7404, %v7420
  %v7424 = vcombine.high %v7404, %v7420
  %v7425 = vcombine.low %v7193, %v7200
  %v7427 = vunpack.c.l.s4 1983009808
  %v7428 = vunpack.c.0.s8 %v7427
  %v7429 = vlaneseq
  %v7430 = vshrl.u32 %v7429, 7
  %v7431 = vsub.s32 %v7428, %v7430
  %v7432 = vrot.slane %v7425, %v7431
  %v7433 = vcombine.low %v7217, %v7218
  %v7435 = vunpack.c.l.s4 1983009808
  %v7436 = vunpack.c.0.s8 %v7435
  %v7437 = vlaneseq
  %v7438 = vshrl.u32 %v7437, 7
  %v7439 = vsub.s32 %v7436, %v7438
  %v7440 = vrot.slane %v7433, %v7439
  %v7441 = vcombine.low %v7209, %v7216
  %v7443 = vunpack.c.l.s4 1983009808
  %v7444 = vunpack.c.0.s8 %v7443
  %v7445 = vlaneseq
  %v7446 = vshrl.u32 %v7445, 7
  %v7447 = vsub.s32 %v7444, %v7446
  %v7448 = vrot.slane %v7441, %v7447
  %v7449 = vcombine.low %v7219, %v7220
  %v7451 = vunpack.c.l.s4 1983009808
  %v7452 = vunpack.c.0.s8 %v7451
  %v7453 = vlaneseq
  %v7454 = vshrl.u32 %v7453, 7
  %v7455 = vsub.s32 %v7452, %v7454
  %v7456 = vrot.slane %v7449, %v7455
  %v7457 = vcombine.low %v7432, %v7440
  %v7458 = vcombine.high %v7432, %v7440
  %v7460 = vunpack.c.l.s4 1934713408
  %v7461 = vunpack.c.0.s8 %v7460
  %v7462 = vlaneseq
  %v7463 = vshrl.u32 %v7462, 7
  %v7464 = vsub.s32 %v7461, %v7463
  %v7465 = vrot.slane %v7457, %v7464
  %v7467 = vunpack.c.l.s4 1934713408
  %v7468 = vunpack.c.0.s8 %v7467
  %v7469 = vlaneseq
  %v7470 = vshrl.u32 %v7469, 7
  %v7471 = vsub.s32 %v7468, %v7470
  %v7472 = vrot.slane %v7458, %v7471
  %v7473 = vcombine.low %v7448, %v7456
  %v7474 = vcombine.high %v7448, %v7456
  %v7476 = vunpack.c.l.s4 1934713408
  %v7477 = vunpack.c.0.s8 %v7476
  %v7478 = vlaneseq
  %v7479 = vshrl.u32 %v7478, 7
  %v7480 = vsub.s32 %v7477, %v7479
  %v7481 = vrot.slane %v7473, %v7480
  %v7483 = vunpack.c.l.s4 1934713408
  %v7484 = vunpack.c.0.s8 %v7483
  %v7485 = vlaneseq
  %v7486 = vshrl.u32 %v7485, 7
  %v7487 = vsub.s32 %v7484, %v7486
  %v7488 = vrot.slane %v7474, %v7487
  %v7489 = vcombine.low %v7465, %v7481
  %v7490 = vcombine.high %v7465, %v7481
  %v7491 = vcombine.low %v7472, %v7488
  %v7492 = vcombine.high %v7472, %v7488
  %v7493 = vpack.c.bf16 %v7285, %v7285
  %v7494 = vpack.c.bf16 %v7353, %v7353
  %v7495 = vpack.c.bf16 %v7421, %v7421
  %v7496 = vpack.c.bf16 %v7489, %v7489
  %v7497 = vpack.c.bf16 %v7286, %v7286
  %v7498 = vpack.c.bf16 %v7354, %v7354
  %v7499 = vpack.c.bf16 %v7422, %v7422
  %v7500 = vpack.c.bf16 %v7490, %v7490
  %v7501 = vpack.c.bf16 %v7287, %v7287
  %v7502 = vpack.c.bf16 %v7355, %v7355
  %v7503 = vpack.c.bf16 %v7423, %v7423
  %v7504 = vpack.c.bf16 %v7491, %v7491
  %v7505 = vpack.c.bf16 %v7288, %v7288
  %v7506 = vpack.c.bf16 %v7356, %v7356
  %v7507 = vpack.c.bf16 %v7424, %v7424
  %v7508 = vpack.c.bf16 %v7492, %v7492
  %v7510 = vsel %vm3082, %v6293, 0
  %v7513 = vsel %vm3082, %v6893, 0
  %7515 = vmatprep.subr.bf16.mxu0 0
  %7516 = vmatpush1.bf16.xpose.msra.mxu0 0
  %7517 = vmatprep.subr.bf16.mxu0 0
  %7518 = vmatpush1.bf16.xpose.msra.mxu0 0
  %7519 = vmatprep.subr.bf16.mxu0 0
  %7520 = vmatpush1.bf16.xpose.msra.mxu0 0
  %7521 = vmatprep.subr.bf16.mxu0 0
  %7522 = vmatpush1.bf16.xpose.msra.mxu0 0
  %7523 = vmatprep.subr.bf16.mxu0 0
  %7524 = vmatpush1.bf16.xpose.msra.mxu0 0
  %7525 = vmatprep.subr.bf16.mxu0 0
  %7526 = vmatpush1.bf16.xpose.msra.mxu0 0
  %7527 = vmatprep.subr.bf16.mxu0 0
  %7528 = vmatpush1.bf16.xpose.msra.mxu0 0
  %7529 = vmatprep.subr.bf16.mxu0 0
  %7530 = vmatpush1.bf16.xpose.msra.mxu0 %v7513
  %7531 = vmatprep.subr.bf16.mxu0 0
  %7532 = vmatpush2.bf16.xpose.msra.mxu0 0
  %7533 = vmatprep.subr.bf16.mxu0 0
  %7534 = vmatpush2.bf16.xpose.msra.mxu0 0
  %7535 = vmatprep.subr.bf16.mxu0 0
  %7536 = vmatpush2.bf16.xpose.msra.mxu0 0
  %7537 = vmatprep.subr.bf16.mxu0 0
  %7538 = vmatpush2.bf16.xpose.msra.mxu0 0
  %7539 = vmatprep.subr.bf16.mxu0 0
  %7540 = vmatpush2.bf16.xpose.msra.mxu0 0
  %7541 = vmatprep.subr.bf16.mxu0 0
  %7542 = vmatpush2.bf16.xpose.msra.mxu0 0
  %7543 = vmatprep.subr.bf16.mxu0 0
  %7544 = vmatpush2.bf16.xpose.msra.mxu0 0
  %7545 = vmatprep.subr.bf16.mxu0 0
  %7546 = vmatpush2.bf16.xpose.msra.mxu0 0
  %7547 = vmatprep.mubr.bf16.mxu0 0
  %7548 = vmatmul.mubr.bf16.gmra.mxu0 %v7510
  %v7549 = vpop.f32.mrf.mxu0
  %v7550 = vadd.f32 0.0, %v7549
  %v7551 = vpop.f32.mrf.mxu0
  %v7552 = vpop.f32.mrf.mxu0
  %v7553 = vpop.f32.mrf.mxu0
  %7554 = vdwg.mxu0
  %v7556 = vsel %vm3082, %v6294, 0
  %v7559 = vsel %vm3082, %v6894, 0
  %7561 = vmatprep.subr.bf16.mxu0 0
  %7562 = vmatpush1.bf16.xpose.msra.mxu0 0
  %7563 = vmatprep.subr.bf16.mxu0 0
  %7564 = vmatpush1.bf16.xpose.msra.mxu0 0
  %7565 = vmatprep.subr.bf16.mxu0 0
  %7566 = vmatpush1.bf16.xpose.msra.mxu0 0
  %7567 = vmatprep.subr.bf16.mxu0 0
  %7568 = vmatpush1.bf16.xpose.msra.mxu0 0
  %7569 = vmatprep.subr.bf16.mxu0 0
  %7570 = vmatpush1.bf16.xpose.msra.mxu0 0
  %7571 = vmatprep.subr.bf16.mxu0 0
  %7572 = vmatpush1.bf16.xpose.msra.mxu0 0
  %7573 = vmatprep.subr.bf16.mxu0 0
  %7574 = vmatpush1.bf16.xpose.msra.mxu0 0
  %7575 = vmatprep.subr.bf16.mxu0 0
  %7576 = vmatpush1.bf16.xpose.msra.mxu0 %v7559
  %7577 = vmatprep.subr.bf16.mxu0 0
  %7578 = vmatpush2.bf16.xpose.msra.mxu0 0
  %7579 = vmatprep.subr.bf16.mxu0 0
  %7580 = vmatpush2.bf16.xpose.msra.mxu0 0
  %7581 = vmatprep.subr.bf16.mxu0 0
  %7582 = vmatpush2.bf16.xpose.msra.mxu0 0
  %7583 = vmatprep.subr.bf16.mxu0 0
  %7584 = vmatpush2.bf16.xpose.msra.mxu0 0
  %7585 = vmatprep.subr.bf16.mxu0 0
  %7586 = vmatpush2.bf16.xpose.msra.mxu0 0
  %7587 = vmatprep.subr.bf16.mxu0 0
  %7588 = vmatpush2.bf16.xpose.msra.mxu0 0
  %7589 = vmatprep.subr.bf16.mxu0 0
  %7590 = vmatpush2.bf16.xpose.msra.mxu0 0
  %7591 = vmatprep.subr.bf16.mxu0 0
  %7592 = vmatpush2.bf16.xpose.msra.mxu0 0
  %7593 = vmatprep.mubr.bf16.mxu0 0
  %7594 = vmatmul.mubr.bf16.gmra.mxu0 %v7556
  %v7595 = vpop.f32.mrf.mxu0
  %v7596 = vadd.f32 0.0, %v7595
  %v7597 = vpop.f32.mrf.mxu0
  %v7598 = vpop.f32.mrf.mxu0
  %v7599 = vpop.f32.mrf.mxu0
  %7600 = vdwg.mxu0
  %v7602 = vsel %vm3082, %v6295, 0
  %v7605 = vsel %vm3082, %v6895, 0
  %7607 = vmatprep.subr.bf16.mxu0 0
  %7608 = vmatpush1.bf16.xpose.msra.mxu0 0
  %7609 = vmatprep.subr.bf16.mxu0 0
  %7610 = vmatpush1.bf16.xpose.msra.mxu0 0
  %7611 = vmatprep.subr.bf16.mxu0 0
  %7612 = vmatpush1.bf16.xpose.msra.mxu0 0
  %7613 = vmatprep.subr.bf16.mxu0 0
  %7614 = vmatpush1.bf16.xpose.msra.mxu0 0
  %7615 = vmatprep.subr.bf16.mxu0 0
  %7616 = vmatpush1.bf16.xpose.msra.mxu0 0
  %7617 = vmatprep.subr.bf16.mxu0 0
  %7618 = vmatpush1.bf16.xpose.msra.mxu0 0
  %7619 = vmatprep.subr.bf16.mxu0 0
  %7620 = vmatpush1.bf16.xpose.msra.mxu0 0
  %7621 = vmatprep.subr.bf16.mxu0 0
  %7622 = vmatpush1.bf16.xpose.msra.mxu0 %v7605
  %7623 = vmatprep.subr.bf16.mxu0 0
  %7624 = vmatpush2.bf16.xpose.msra.mxu0 0
  %7625 = vmatprep.subr.bf16.mxu0 0
  %7626 = vmatpush2.bf16.xpose.msra.mxu0 0
  %7627 = vmatprep.subr.bf16.mxu0 0
  %7628 = vmatpush2.bf16.xpose.msra.mxu0 0
  %7629 = vmatprep.subr.bf16.mxu0 0
  %7630 = vmatpush2.bf16.xpose.msra.mxu0 0
  %7631 = vmatprep.subr.bf16.mxu0 0
  %7632 = vmatpush2.bf16.xpose.msra.mxu0 0
  %7633 = vmatprep.subr.bf16.mxu0 0
  %7634 = vmatpush2.bf16.xpose.msra.mxu0 0
  %7635 = vmatprep.subr.bf16.mxu0 0
  %7636 = vmatpush2.bf16.xpose.msra.mxu0 0
  %7637 = vmatprep.subr.bf16.mxu0 0
  %7638 = vmatpush2.bf16.xpose.msra.mxu0 0
  %7639 = vmatprep.mubr.bf16.mxu0 0
  %7640 = vmatmul.mubr.bf16.gmra.mxu0 %v7602
  %v7641 = vpop.f32.mrf.mxu0
  %v7642 = vadd.f32 0.0, %v7641
  %v7643 = vpop.f32.mrf.mxu0
  %v7644 = vpop.f32.mrf.mxu0
  %v7645 = vpop.f32.mrf.mxu0
  %7646 = vdwg.mxu0
  %v7648 = vsel %vm3082, %v6296, 0
  %v7651 = vsel %vm3082, %v6896, 0
  %7653 = vmatprep.subr.bf16.mxu0 0
  %7654 = vmatpush1.bf16.xpose.msra.mxu0 0
  %7655 = vmatprep.subr.bf16.mxu0 0
  %7656 = vmatpush1.bf16.xpose.msra.mxu0 0
  %7657 = vmatprep.subr.bf16.mxu0 0
  %7658 = vmatpush1.bf16.xpose.msra.mxu0 0
  %7659 = vmatprep.subr.bf16.mxu0 0
  %7660 = vmatpush1.bf16.xpose.msra.mxu0 0
  %7661 = vmatprep.subr.bf16.mxu0 0
  %7662 = vmatpush1.bf16.xpose.msra.mxu0 0
  %7663 = vmatprep.subr.bf16.mxu0 0
  %7664 = vmatpush1.bf16.xpose.msra.mxu0 0
  %7665 = vmatprep.subr.bf16.mxu0 0
  %7666 = vmatpush1.bf16.xpose.msra.mxu0 0
  %7667 = vmatprep.subr.bf16.mxu0 0
  %7668 = vmatpush1.bf16.xpose.msra.mxu0 %v7651
  %7669 = vmatprep.subr.bf16.mxu0 0
  %7670 = vmatpush2.bf16.xpose.msra.mxu0 0
  %7671 = vmatprep.subr.bf16.mxu0 0
  %7672 = vmatpush2.bf16.xpose.msra.mxu0 0
  %7673 = vmatprep.subr.bf16.mxu0 0
  %7674 = vmatpush2.bf16.xpose.msra.mxu0 0
  %7675 = vmatprep.subr.bf16.mxu0 0
  %7676 = vmatpush2.bf16.xpose.msra.mxu0 0
  %7677 = vmatprep.subr.bf16.mxu0 0
  %7678 = vmatpush2.bf16.xpose.msra.mxu0 0
  %7679 = vmatprep.subr.bf16.mxu0 0
  %7680 = vmatpush2.bf16.xpose.msra.mxu0 0
  %7681 = vmatprep.subr.bf16.mxu0 0
  %7682 = vmatpush2.bf16.xpose.msra.mxu0 0
  %7683 = vmatprep.subr.bf16.mxu0 0
  %7684 = vmatpush2.bf16.xpose.msra.mxu0 0
  %7685 = vmatprep.mubr.bf16.mxu0 0
  %7686 = vmatmul.mubr.bf16.gmra.mxu0 %v7648
  %v7687 = vpop.f32.mrf.mxu0
  %v7688 = vadd.f32 0.0, %v7687
  %v7689 = vpop.f32.mrf.mxu0
  %v7690 = vpop.f32.mrf.mxu0
  %v7691 = vpop.f32.mrf.mxu0
  %7692 = vdwg.mxu0
  %v7694 = vsel %vm3082, %v6297, 0
  %v7697 = vsel %vm3082, %v6897, 0
  %7699 = vmatprep.subr.bf16.mxu0 0
  %7700 = vmatpush1.bf16.xpose.msra.mxu0 0
  %7701 = vmatprep.subr.bf16.mxu0 0
  %7702 = vmatpush1.bf16.xpose.msra.mxu0 0
  %7703 = vmatprep.subr.bf16.mxu0 0
  %7704 = vmatpush1.bf16.xpose.msra.mxu0 0
  %7705 = vmatprep.subr.bf16.mxu0 0
  %7706 = vmatpush1.bf16.xpose.msra.mxu0 0
  %7707 = vmatprep.subr.bf16.mxu0 0
  %7708 = vmatpush1.bf16.xpose.msra.mxu0 0
  %7709 = vmatprep.subr.bf16.mxu0 0
  %7710 = vmatpush1.bf16.xpose.msra.mxu0 0
  %7711 = vmatprep.subr.bf16.mxu0 0
  %7712 = vmatpush1.bf16.xpose.msra.mxu0 0
  %7713 = vmatprep.subr.bf16.mxu0 0
  %7714 = vmatpush1.bf16.xpose.msra.mxu0 %v7697
  %7715 = vmatprep.subr.bf16.mxu0 0
  %7716 = vmatpush2.bf16.xpose.msra.mxu0 0
  %7717 = vmatprep.subr.bf16.mxu0 0
  %7718 = vmatpush2.bf16.xpose.msra.mxu0 0
  %7719 = vmatprep.subr.bf16.mxu0 0
  %7720 = vmatpush2.bf16.xpose.msra.mxu0 0
  %7721 = vmatprep.subr.bf16.mxu0 0
  %7722 = vmatpush2.bf16.xpose.msra.mxu0 0
  %7723 = vmatprep.subr.bf16.mxu0 0
  %7724 = vmatpush2.bf16.xpose.msra.mxu0 0
  %7725 = vmatprep.subr.bf16.mxu0 0
  %7726 = vmatpush2.bf16.xpose.msra.mxu0 0
  %7727 = vmatprep.subr.bf16.mxu0 0
  %7728 = vmatpush2.bf16.xpose.msra.mxu0 0
  %7729 = vmatprep.subr.bf16.mxu0 0
  %7730 = vmatpush2.bf16.xpose.msra.mxu0 0
  %7731 = vmatprep.mubr.bf16.mxu0 0
  %7732 = vmatmul.mubr.bf16.gmra.mxu0 %v7694
  %v7733 = vpop.f32.mrf.mxu0
  %v7734 = vadd.f32 0.0, %v7733
  %v7735 = vpop.f32.mrf.mxu0
  %v7736 = vpop.f32.mrf.mxu0
  %v7737 = vpop.f32.mrf.mxu0
  %7738 = vdwg.mxu0
  %v7740 = vsel %vm3082, %v6298, 0
  %v7743 = vsel %vm3082, %v6898, 0
  %7745 = vmatprep.subr.bf16.mxu0 0
  %7746 = vmatpush1.bf16.xpose.msra.mxu0 0
  %7747 = vmatprep.subr.bf16.mxu0 0
  %7748 = vmatpush1.bf16.xpose.msra.mxu0 0
  %7749 = vmatprep.subr.bf16.mxu0 0
  %7750 = vmatpush1.bf16.xpose.msra.mxu0 0
  %7751 = vmatprep.subr.bf16.mxu0 0
  %7752 = vmatpush1.bf16.xpose.msra.mxu0 0
  %7753 = vmatprep.subr.bf16.mxu0 0
  %7754 = vmatpush1.bf16.xpose.msra.mxu0 0
  %7755 = vmatprep.subr.bf16.mxu0 0
  %7756 = vmatpush1.bf16.xpose.msra.mxu0 0
  %7757 = vmatprep.subr.bf16.mxu0 0
  %7758 = vmatpush1.bf16.xpose.msra.mxu0 0
  %7759 = vmatprep.subr.bf16.mxu0 0
  %7760 = vmatpush1.bf16.xpose.msra.mxu0 %v7743
  %7761 = vmatprep.subr.bf16.mxu0 0
  %7762 = vmatpush2.bf16.xpose.msra.mxu0 0
  %7763 = vmatprep.subr.bf16.mxu0 0
  %7764 = vmatpush2.bf16.xpose.msra.mxu0 0
  %7765 = vmatprep.subr.bf16.mxu0 0
  %7766 = vmatpush2.bf16.xpose.msra.mxu0 0
  %7767 = vmatprep.subr.bf16.mxu0 0
  %7768 = vmatpush2.bf16.xpose.msra.mxu0 0
  %7769 = vmatprep.subr.bf16.mxu0 0
  %7770 = vmatpush2.bf16.xpose.msra.mxu0 0
  %7771 = vmatprep.subr.bf16.mxu0 0
  %7772 = vmatpush2.bf16.xpose.msra.mxu0 0
  %7773 = vmatprep.subr.bf16.mxu0 0
  %7774 = vmatpush2.bf16.xpose.msra.mxu0 0
  %7775 = vmatprep.subr.bf16.mxu0 0
  %7776 = vmatpush2.bf16.xpose.msra.mxu0 0
  %7777 = vmatprep.mubr.bf16.mxu0 0
  %7778 = vmatmul.mubr.bf16.gmra.mxu0 %v7740
  %v7779 = vpop.f32.mrf.mxu0
  %v7780 = vadd.f32 0.0, %v7779
  %v7781 = vpop.f32.mrf.mxu0
  %v7782 = vpop.f32.mrf.mxu0
  %v7783 = vpop.f32.mrf.mxu0
  %7784 = vdwg.mxu0
  %v7786 = vsel %vm3082, %v6299, 0
  %v7789 = vsel %vm3082, %v6899, 0
  %7791 = vmatprep.subr.bf16.mxu0 0
  %7792 = vmatpush1.bf16.xpose.msra.mxu0 0
  %7793 = vmatprep.subr.bf16.mxu0 0
  %7794 = vmatpush1.bf16.xpose.msra.mxu0 0
  %7795 = vmatprep.subr.bf16.mxu0 0
  %7796 = vmatpush1.bf16.xpose.msra.mxu0 0
  %7797 = vmatprep.subr.bf16.mxu0 0
  %7798 = vmatpush1.bf16.xpose.msra.mxu0 0
  %7799 = vmatprep.subr.bf16.mxu0 0
  %7800 = vmatpush1.bf16.xpose.msra.mxu0 0
  %7801 = vmatprep.subr.bf16.mxu0 0
  %7802 = vmatpush1.bf16.xpose.msra.mxu0 0
  %7803 = vmatprep.subr.bf16.mxu0 0
  %7804 = vmatpush1.bf16.xpose.msra.mxu0 0
  %7805 = vmatprep.subr.bf16.mxu0 0
  %7806 = vmatpush1.bf16.xpose.msra.mxu0 %v7789
  %7807 = vmatprep.subr.bf16.mxu0 0
  %7808 = vmatpush2.bf16.xpose.msra.mxu0 0
  %7809 = vmatprep.subr.bf16.mxu0 0
  %7810 = vmatpush2.bf16.xpose.msra.mxu0 0
  %7811 = vmatprep.subr.bf16.mxu0 0
  %7812 = vmatpush2.bf16.xpose.msra.mxu0 0
  %7813 = vmatprep.subr.bf16.mxu0 0
  %7814 = vmatpush2.bf16.xpose.msra.mxu0 0
  %7815 = vmatprep.subr.bf16.mxu0 0
  %7816 = vmatpush2.bf16.xpose.msra.mxu0 0
  %7817 = vmatprep.subr.bf16.mxu0 0
  %7818 = vmatpush2.bf16.xpose.msra.mxu0 0
  %7819 = vmatprep.subr.bf16.mxu0 0
  %7820 = vmatpush2.bf16.xpose.msra.mxu0 0
  %7821 = vmatprep.subr.bf16.mxu0 0
  %7822 = vmatpush2.bf16.xpose.msra.mxu0 0
  %7823 = vmatprep.mubr.bf16.mxu0 0
  %7824 = vmatmul.mubr.bf16.gmra.mxu0 %v7786
  %v7825 = vpop.f32.mrf.mxu0
  %v7826 = vadd.f32 0.0, %v7825
  %v7827 = vpop.f32.mrf.mxu0
  %v7828 = vpop.f32.mrf.mxu0
  %v7829 = vpop.f32.mrf.mxu0
  %7830 = vdwg.mxu0
  %v7832 = vsel %vm3082, %v6300, 0
  %v7835 = vsel %vm3082, %v6900, 0
  %7837 = vmatprep.subr.bf16.mxu0 0
  %7838 = vmatpush1.bf16.xpose.msra.mxu0 0
  %7839 = vmatprep.subr.bf16.mxu0 0
  %7840 = vmatpush1.bf16.xpose.msra.mxu0 0
  %7841 = vmatprep.subr.bf16.mxu0 0
  %7842 = vmatpush1.bf16.xpose.msra.mxu0 0
  %7843 = vmatprep.subr.bf16.mxu0 0
  %7844 = vmatpush1.bf16.xpose.msra.mxu0 0
  %7845 = vmatprep.subr.bf16.mxu0 0
  %7846 = vmatpush1.bf16.xpose.msra.mxu0 0
  %7847 = vmatprep.subr.bf16.mxu0 0
  %7848 = vmatpush1.bf16.xpose.msra.mxu0 0
  %7849 = vmatprep.subr.bf16.mxu0 0
  %7850 = vmatpush1.bf16.xpose.msra.mxu0 0
  %7851 = vmatprep.subr.bf16.mxu0 0
  %7852 = vmatpush1.bf16.xpose.msra.mxu0 %v7835
  %7853 = vmatprep.subr.bf16.mxu0 0
  %7854 = vmatpush2.bf16.xpose.msra.mxu0 0
  %7855 = vmatprep.subr.bf16.mxu0 0
  %7856 = vmatpush2.bf16.xpose.msra.mxu0 0
  %7857 = vmatprep.subr.bf16.mxu0 0
  %7858 = vmatpush2.bf16.xpose.msra.mxu0 0
  %7859 = vmatprep.subr.bf16.mxu0 0
  %7860 = vmatpush2.bf16.xpose.msra.mxu0 0
  %7861 = vmatprep.subr.bf16.mxu0 0
  %7862 = vmatpush2.bf16.xpose.msra.mxu0 0
  %7863 = vmatprep.subr.bf16.mxu0 0
  %7864 = vmatpush2.bf16.xpose.msra.mxu0 0
  %7865 = vmatprep.subr.bf16.mxu0 0
  %7866 = vmatpush2.bf16.xpose.msra.mxu0 0
  %7867 = vmatprep.subr.bf16.mxu0 0
  %7868 = vmatpush2.bf16.xpose.msra.mxu0 0
  %7869 = vmatprep.mubr.bf16.mxu0 0
  %7870 = vmatmul.mubr.bf16.gmra.mxu0 %v7832
  %v7871 = vpop.f32.mrf.mxu0
  %v7872 = vadd.f32 0.0, %v7871
  %v7873 = vpop.f32.mrf.mxu0
  %v7874 = vpop.f32.mrf.mxu0
  %v7875 = vpop.f32.mrf.mxu0
  %7876 = vdwg.mxu0
  %v7878 = vsel %vm3082, %v6301, 0
  %v7881 = vsel %vm3082, %v6901, 0
  %7883 = vmatprep.subr.bf16.mxu0 0
  %7884 = vmatpush1.bf16.xpose.msra.mxu0 0
  %7885 = vmatprep.subr.bf16.mxu0 0
  %7886 = vmatpush1.bf16.xpose.msra.mxu0 0
  %7887 = vmatprep.subr.bf16.mxu0 0
  %7888 = vmatpush1.bf16.xpose.msra.mxu0 0
  %7889 = vmatprep.subr.bf16.mxu0 0
  %7890 = vmatpush1.bf16.xpose.msra.mxu0 0
  %7891 = vmatprep.subr.bf16.mxu0 0
  %7892 = vmatpush1.bf16.xpose.msra.mxu0 0
  %7893 = vmatprep.subr.bf16.mxu0 0
  %7894 = vmatpush1.bf16.xpose.msra.mxu0 0
  %7895 = vmatprep.subr.bf16.mxu0 0
  %7896 = vmatpush1.bf16.xpose.msra.mxu0 0
  %7897 = vmatprep.subr.bf16.mxu0 0
  %7898 = vmatpush1.bf16.xpose.msra.mxu0 %v7881
  %7899 = vmatprep.subr.bf16.mxu0 0
  %7900 = vmatpush2.bf16.xpose.msra.mxu0 0
  %7901 = vmatprep.subr.bf16.mxu0 0
  %7902 = vmatpush2.bf16.xpose.msra.mxu0 0
  %7903 = vmatprep.subr.bf16.mxu0 0
  %7904 = vmatpush2.bf16.xpose.msra.mxu0 0
  %7905 = vmatprep.subr.bf16.mxu0 0
  %7906 = vmatpush2.bf16.xpose.msra.mxu0 0
  %7907 = vmatprep.subr.bf16.mxu0 0
  %7908 = vmatpush2.bf16.xpose.msra.mxu0 0
  %7909 = vmatprep.subr.bf16.mxu0 0
  %7910 = vmatpush2.bf16.xpose.msra.mxu0 0
  %7911 = vmatprep.subr.bf16.mxu0 0
  %7912 = vmatpush2.bf16.xpose.msra.mxu0 0
  %7913 = vmatprep.subr.bf16.mxu0 0
  %7914 = vmatpush2.bf16.xpose.msra.mxu0 0
  %7915 = vmatprep.mubr.bf16.mxu0 0
  %7916 = vmatmul.mubr.bf16.gmra.mxu0 %v7878
  %v7917 = vpop.f32.mrf.mxu0
  %v7918 = vadd.f32 0.0, %v7917
  %v7919 = vpop.f32.mrf.mxu0
  %v7920 = vpop.f32.mrf.mxu0
  %v7921 = vpop.f32.mrf.mxu0
  %7922 = vdwg.mxu0
  %v7924 = vsel %vm3082, %v6302, 0
  %v7927 = vsel %vm3082, %v6902, 0
  %7929 = vmatprep.subr.bf16.mxu0 0
  %7930 = vmatpush1.bf16.xpose.msra.mxu0 0
  %7931 = vmatprep.subr.bf16.mxu0 0
  %7932 = vmatpush1.bf16.xpose.msra.mxu0 0
  %7933 = vmatprep.subr.bf16.mxu0 0
  %7934 = vmatpush1.bf16.xpose.msra.mxu0 0
  %7935 = vmatprep.subr.bf16.mxu0 0
  %7936 = vmatpush1.bf16.xpose.msra.mxu0 0
  %7937 = vmatprep.subr.bf16.mxu0 0
  %7938 = vmatpush1.bf16.xpose.msra.mxu0 0
  %7939 = vmatprep.subr.bf16.mxu0 0
  %7940 = vmatpush1.bf16.xpose.msra.mxu0 0
  %7941 = vmatprep.subr.bf16.mxu0 0
  %7942 = vmatpush1.bf16.xpose.msra.mxu0 0
  %7943 = vmatprep.subr.bf16.mxu0 0
  %7944 = vmatpush1.bf16.xpose.msra.mxu0 %v7927
  %7945 = vmatprep.subr.bf16.mxu0 0
  %7946 = vmatpush2.bf16.xpose.msra.mxu0 0
  %7947 = vmatprep.subr.bf16.mxu0 0
  %7948 = vmatpush2.bf16.xpose.msra.mxu0 0
  %7949 = vmatprep.subr.bf16.mxu0 0
  %7950 = vmatpush2.bf16.xpose.msra.mxu0 0
  %7951 = vmatprep.subr.bf16.mxu0 0
  %7952 = vmatpush2.bf16.xpose.msra.mxu0 0
  %7953 = vmatprep.subr.bf16.mxu0 0
  %7954 = vmatpush2.bf16.xpose.msra.mxu0 0
  %7955 = vmatprep.subr.bf16.mxu0 0
  %7956 = vmatpush2.bf16.xpose.msra.mxu0 0
  %7957 = vmatprep.subr.bf16.mxu0 0
  %7958 = vmatpush2.bf16.xpose.msra.mxu0 0
  %7959 = vmatprep.subr.bf16.mxu0 0
  %7960 = vmatpush2.bf16.xpose.msra.mxu0 0
  %7961 = vmatprep.mubr.bf16.mxu0 0
  %7962 = vmatmul.mubr.bf16.gmra.mxu0 %v7924
  %v7963 = vpop.f32.mrf.mxu0
  %v7964 = vadd.f32 0.0, %v7963
  %v7965 = vpop.f32.mrf.mxu0
  %v7966 = vpop.f32.mrf.mxu0
  %v7967 = vpop.f32.mrf.mxu0
  %7968 = vdwg.mxu0
  %v7970 = vsel %vm3082, %v6303, 0
  %v7973 = vsel %vm3082, %v6903, 0
  %7975 = vmatprep.subr.bf16.mxu0 0
  %7976 = vmatpush1.bf16.xpose.msra.mxu0 0
  %7977 = vmatprep.subr.bf16.mxu0 0
  %7978 = vmatpush1.bf16.xpose.msra.mxu0 0
  %7979 = vmatprep.subr.bf16.mxu0 0
  %7980 = vmatpush1.bf16.xpose.msra.mxu0 0
  %7981 = vmatprep.subr.bf16.mxu0 0
  %7982 = vmatpush1.bf16.xpose.msra.mxu0 0
  %7983 = vmatprep.subr.bf16.mxu0 0
  %7984 = vmatpush1.bf16.xpose.msra.mxu0 0
  %7985 = vmatprep.subr.bf16.mxu0 0
  %7986 = vmatpush1.bf16.xpose.msra.mxu0 0
  %7987 = vmatprep.subr.bf16.mxu0 0
  %7988 = vmatpush1.bf16.xpose.msra.mxu0 0
  %7989 = vmatprep.subr.bf16.mxu0 0
  %7990 = vmatpush1.bf16.xpose.msra.mxu0 %v7973
  %7991 = vmatprep.subr.bf16.mxu0 0
  %7992 = vmatpush2.bf16.xpose.msra.mxu0 0
  %7993 = vmatprep.subr.bf16.mxu0 0
  %7994 = vmatpush2.bf16.xpose.msra.mxu0 0
  %7995 = vmatprep.subr.bf16.mxu0 0
  %7996 = vmatpush2.bf16.xpose.msra.mxu0 0
  %7997 = vmatprep.subr.bf16.mxu0 0
  %7998 = vmatpush2.bf16.xpose.msra.mxu0 0
  %7999 = vmatprep.subr.bf16.mxu0 0
  %8000 = vmatpush2.bf16.xpose.msra.mxu0 0
  %8001 = vmatprep.subr.bf16.mxu0 0
  %8002 = vmatpush2.bf16.xpose.msra.mxu0 0
  %8003 = vmatprep.subr.bf16.mxu0 0
  %8004 = vmatpush2.bf16.xpose.msra.mxu0 0
  %8005 = vmatprep.subr.bf16.mxu0 0
  %8006 = vmatpush2.bf16.xpose.msra.mxu0 0
  %8007 = vmatprep.mubr.bf16.mxu0 0
  %8008 = vmatmul.mubr.bf16.gmra.mxu0 %v7970
  %v8009 = vpop.f32.mrf.mxu0
  %v8010 = vadd.f32 0.0, %v8009
  %v8011 = vpop.f32.mrf.mxu0
  %v8012 = vpop.f32.mrf.mxu0
  %v8013 = vpop.f32.mrf.mxu0
  %8014 = vdwg.mxu0
  %v8016 = vsel %vm3082, %v6304, 0
  %v8019 = vsel %vm3082, %v6904, 0
  %8021 = vmatprep.subr.bf16.mxu0 0
  %8022 = vmatpush1.bf16.xpose.msra.mxu0 0
  %8023 = vmatprep.subr.bf16.mxu0 0
  %8024 = vmatpush1.bf16.xpose.msra.mxu0 0
  %8025 = vmatprep.subr.bf16.mxu0 0
  %8026 = vmatpush1.bf16.xpose.msra.mxu0 0
  %8027 = vmatprep.subr.bf16.mxu0 0
  %8028 = vmatpush1.bf16.xpose.msra.mxu0 0
  %8029 = vmatprep.subr.bf16.mxu0 0
  %8030 = vmatpush1.bf16.xpose.msra.mxu0 0
  %8031 = vmatprep.subr.bf16.mxu0 0
  %8032 = vmatpush1.bf16.xpose.msra.mxu0 0
  %8033 = vmatprep.subr.bf16.mxu0 0
  %8034 = vmatpush1.bf16.xpose.msra.mxu0 0
  %8035 = vmatprep.subr.bf16.mxu0 0
  %8036 = vmatpush1.bf16.xpose.msra.mxu0 %v8019
  %8037 = vmatprep.subr.bf16.mxu0 0
  %8038 = vmatpush2.bf16.xpose.msra.mxu0 0
  %8039 = vmatprep.subr.bf16.mxu0 0
  %8040 = vmatpush2.bf16.xpose.msra.mxu0 0
  %8041 = vmatprep.subr.bf16.mxu0 0
  %8042 = vmatpush2.bf16.xpose.msra.mxu0 0
  %8043 = vmatprep.subr.bf16.mxu0 0
  %8044 = vmatpush2.bf16.xpose.msra.mxu0 0
  %8045 = vmatprep.subr.bf16.mxu0 0
  %8046 = vmatpush2.bf16.xpose.msra.mxu0 0
  %8047 = vmatprep.subr.bf16.mxu0 0
  %8048 = vmatpush2.bf16.xpose.msra.mxu0 0
  %8049 = vmatprep.subr.bf16.mxu0 0
  %8050 = vmatpush2.bf16.xpose.msra.mxu0 0
  %8051 = vmatprep.subr.bf16.mxu0 0
  %8052 = vmatpush2.bf16.xpose.msra.mxu0 0
  %8053 = vmatprep.mubr.bf16.mxu0 0
  %8054 = vmatmul.mubr.bf16.gmra.mxu0 %v8016
  %v8055 = vpop.f32.mrf.mxu0
  %v8056 = vadd.f32 0.0, %v8055
  %v8057 = vpop.f32.mrf.mxu0
  %v8058 = vpop.f32.mrf.mxu0
  %v8059 = vpop.f32.mrf.mxu0
  %8060 = vdwg.mxu0
  %v8062 = vsel %vm3082, %v6305, 0
  %v8065 = vsel %vm3082, %v6905, 0
  %8067 = vmatprep.subr.bf16.mxu0 0
  %8068 = vmatpush1.bf16.xpose.msra.mxu0 0
  %8069 = vmatprep.subr.bf16.mxu0 0
  %8070 = vmatpush1.bf16.xpose.msra.mxu0 0
  %8071 = vmatprep.subr.bf16.mxu0 0
  %8072 = vmatpush1.bf16.xpose.msra.mxu0 0
  %8073 = vmatprep.subr.bf16.mxu0 0
  %8074 = vmatpush1.bf16.xpose.msra.mxu0 0
  %8075 = vmatprep.subr.bf16.mxu0 0
  %8076 = vmatpush1.bf16.xpose.msra.mxu0 0
  %8077 = vmatprep.subr.bf16.mxu0 0
  %8078 = vmatpush1.bf16.xpose.msra.mxu0 0
  %8079 = vmatprep.subr.bf16.mxu0 0
  %8080 = vmatpush1.bf16.xpose.msra.mxu0 0
  %8081 = vmatprep.subr.bf16.mxu0 0
  %8082 = vmatpush1.bf16.xpose.msra.mxu0 %v8065
  %8083 = vmatprep.subr.bf16.mxu0 0
  %8084 = vmatpush2.bf16.xpose.msra.mxu0 0
  %8085 = vmatprep.subr.bf16.mxu0 0
  %8086 = vmatpush2.bf16.xpose.msra.mxu0 0
  %8087 = vmatprep.subr.bf16.mxu0 0
  %8088 = vmatpush2.bf16.xpose.msra.mxu0 0
  %8089 = vmatprep.subr.bf16.mxu0 0
  %8090 = vmatpush2.bf16.xpose.msra.mxu0 0
  %8091 = vmatprep.subr.bf16.mxu0 0
  %8092 = vmatpush2.bf16.xpose.msra.mxu0 0
  %8093 = vmatprep.subr.bf16.mxu0 0
  %8094 = vmatpush2.bf16.xpose.msra.mxu0 0
  %8095 = vmatprep.subr.bf16.mxu0 0
  %8096 = vmatpush2.bf16.xpose.msra.mxu0 0
  %8097 = vmatprep.subr.bf16.mxu0 0
  %8098 = vmatpush2.bf16.xpose.msra.mxu0 0
  %8099 = vmatprep.mubr.bf16.mxu0 0
  %8100 = vmatmul.mubr.bf16.gmra.mxu0 %v8062
  %v8101 = vpop.f32.mrf.mxu0
  %v8102 = vadd.f32 0.0, %v8101
  %v8103 = vpop.f32.mrf.mxu0
  %v8104 = vpop.f32.mrf.mxu0
  %v8105 = vpop.f32.mrf.mxu0
  %8106 = vdwg.mxu0
  %v8108 = vsel %vm3082, %v6306, 0
  %v8111 = vsel %vm3082, %v6906, 0
  %8113 = vmatprep.subr.bf16.mxu0 0
  %8114 = vmatpush1.bf16.xpose.msra.mxu0 0
  %8115 = vmatprep.subr.bf16.mxu0 0
  %8116 = vmatpush1.bf16.xpose.msra.mxu0 0
  %8117 = vmatprep.subr.bf16.mxu0 0
  %8118 = vmatpush1.bf16.xpose.msra.mxu0 0
  %8119 = vmatprep.subr.bf16.mxu0 0
  %8120 = vmatpush1.bf16.xpose.msra.mxu0 0
  %8121 = vmatprep.subr.bf16.mxu0 0
  %8122 = vmatpush1.bf16.xpose.msra.mxu0 0
  %8123 = vmatprep.subr.bf16.mxu0 0
  %8124 = vmatpush1.bf16.xpose.msra.mxu0 0
  %8125 = vmatprep.subr.bf16.mxu0 0
  %8126 = vmatpush1.bf16.xpose.msra.mxu0 0
  %8127 = vmatprep.subr.bf16.mxu0 0
  %8128 = vmatpush1.bf16.xpose.msra.mxu0 %v8111
  %8129 = vmatprep.subr.bf16.mxu0 0
  %8130 = vmatpush2.bf16.xpose.msra.mxu0 0
  %8131 = vmatprep.subr.bf16.mxu0 0
  %8132 = vmatpush2.bf16.xpose.msra.mxu0 0
  %8133 = vmatprep.subr.bf16.mxu0 0
  %8134 = vmatpush2.bf16.xpose.msra.mxu0 0
  %8135 = vmatprep.subr.bf16.mxu0 0
  %8136 = vmatpush2.bf16.xpose.msra.mxu0 0
  %8137 = vmatprep.subr.bf16.mxu0 0
  %8138 = vmatpush2.bf16.xpose.msra.mxu0 0
  %8139 = vmatprep.subr.bf16.mxu0 0
  %8140 = vmatpush2.bf16.xpose.msra.mxu0 0
  %8141 = vmatprep.subr.bf16.mxu0 0
  %8142 = vmatpush2.bf16.xpose.msra.mxu0 0
  %8143 = vmatprep.subr.bf16.mxu0 0
  %8144 = vmatpush2.bf16.xpose.msra.mxu0 0
  %8145 = vmatprep.mubr.bf16.mxu0 0
  %8146 = vmatmul.mubr.bf16.gmra.mxu0 %v8108
  %v8147 = vpop.f32.mrf.mxu0
  %v8148 = vadd.f32 0.0, %v8147
  %v8149 = vpop.f32.mrf.mxu0
  %v8150 = vpop.f32.mrf.mxu0
  %v8151 = vpop.f32.mrf.mxu0
  %8152 = vdwg.mxu0
  %v8154 = vsel %vm3082, %v6307, 0
  %v8157 = vsel %vm3082, %v6907, 0
  %8159 = vmatprep.subr.bf16.mxu0 0
  %8160 = vmatpush1.bf16.xpose.msra.mxu0 0
  %8161 = vmatprep.subr.bf16.mxu0 0
  %8162 = vmatpush1.bf16.xpose.msra.mxu0 0
  %8163 = vmatprep.subr.bf16.mxu0 0
  %8164 = vmatpush1.bf16.xpose.msra.mxu0 0
  %8165 = vmatprep.subr.bf16.mxu0 0
  %8166 = vmatpush1.bf16.xpose.msra.mxu0 0
  %8167 = vmatprep.subr.bf16.mxu0 0
  %8168 = vmatpush1.bf16.xpose.msra.mxu0 0
  %8169 = vmatprep.subr.bf16.mxu0 0
  %8170 = vmatpush1.bf16.xpose.msra.mxu0 0
  %8171 = vmatprep.subr.bf16.mxu0 0
  %8172 = vmatpush1.bf16.xpose.msra.mxu0 0
  %8173 = vmatprep.subr.bf16.mxu0 0
  %8174 = vmatpush1.bf16.xpose.msra.mxu0 %v8157
  %8175 = vmatprep.subr.bf16.mxu0 0
  %8176 = vmatpush2.bf16.xpose.msra.mxu0 0
  %8177 = vmatprep.subr.bf16.mxu0 0
  %8178 = vmatpush2.bf16.xpose.msra.mxu0 0
  %8179 = vmatprep.subr.bf16.mxu0 0
  %8180 = vmatpush2.bf16.xpose.msra.mxu0 0
  %8181 = vmatprep.subr.bf16.mxu0 0
  %8182 = vmatpush2.bf16.xpose.msra.mxu0 0
  %8183 = vmatprep.subr.bf16.mxu0 0
  %8184 = vmatpush2.bf16.xpose.msra.mxu0 0
  %8185 = vmatprep.subr.bf16.mxu0 0
  %8186 = vmatpush2.bf16.xpose.msra.mxu0 0
  %8187 = vmatprep.subr.bf16.mxu0 0
  %8188 = vmatpush2.bf16.xpose.msra.mxu0 0
  %8189 = vmatprep.subr.bf16.mxu0 0
  %8190 = vmatpush2.bf16.xpose.msra.mxu0 0
  %8191 = vmatprep.mubr.bf16.mxu0 0
  %8192 = vmatmul.mubr.bf16.gmra.mxu0 %v8154
  %v8193 = vpop.f32.mrf.mxu0
  %v8194 = vadd.f32 0.0, %v8193
  %v8195 = vpop.f32.mrf.mxu0
  %v8196 = vpop.f32.mrf.mxu0
  %v8197 = vpop.f32.mrf.mxu0
  %8198 = vdwg.mxu0
  %v8200 = vsel %vm3082, %v6308, 0
  %v8203 = vsel %vm3082, %v6908, 0
  %8205 = vmatprep.subr.bf16.mxu0 0
  %8206 = vmatpush1.bf16.xpose.msra.mxu0 0
  %8207 = vmatprep.subr.bf16.mxu0 0
  %8208 = vmatpush1.bf16.xpose.msra.mxu0 0
  %8209 = vmatprep.subr.bf16.mxu0 0
  %8210 = vmatpush1.bf16.xpose.msra.mxu0 0
  %8211 = vmatprep.subr.bf16.mxu0 0
  %8212 = vmatpush1.bf16.xpose.msra.mxu0 0
  %8213 = vmatprep.subr.bf16.mxu0 0
  %8214 = vmatpush1.bf16.xpose.msra.mxu0 0
  %8215 = vmatprep.subr.bf16.mxu0 0
  %8216 = vmatpush1.bf16.xpose.msra.mxu0 0
  %8217 = vmatprep.subr.bf16.mxu0 0
  %8218 = vmatpush1.bf16.xpose.msra.mxu0 0
  %8219 = vmatprep.subr.bf16.mxu0 0
  %8220 = vmatpush1.bf16.xpose.msra.mxu0 %v8203
  %8221 = vmatprep.subr.bf16.mxu0 0
  %8222 = vmatpush2.bf16.xpose.msra.mxu0 0
  %8223 = vmatprep.subr.bf16.mxu0 0
  %8224 = vmatpush2.bf16.xpose.msra.mxu0 0
  %8225 = vmatprep.subr.bf16.mxu0 0
  %8226 = vmatpush2.bf16.xpose.msra.mxu0 0
  %8227 = vmatprep.subr.bf16.mxu0 0
  %8228 = vmatpush2.bf16.xpose.msra.mxu0 0
  %8229 = vmatprep.subr.bf16.mxu0 0
  %8230 = vmatpush2.bf16.xpose.msra.mxu0 0
  %8231 = vmatprep.subr.bf16.mxu0 0
  %8232 = vmatpush2.bf16.xpose.msra.mxu0 0
  %8233 = vmatprep.subr.bf16.mxu0 0
  %8234 = vmatpush2.bf16.xpose.msra.mxu0 0
  %8235 = vmatprep.subr.bf16.mxu0 0
  %8236 = vmatpush2.bf16.xpose.msra.mxu0 0
  %8237 = vmatprep.mubr.bf16.mxu0 0
  %8238 = vmatmul.mubr.bf16.gmra.mxu0 %v8200
  %v8239 = vpop.f32.mrf.mxu0
  %v8240 = vadd.f32 0.0, %v8239
  %v8241 = vpop.f32.mrf.mxu0
  %v8242 = vpop.f32.mrf.mxu0
  %v8243 = vpop.f32.mrf.mxu0
  %8244 = vdwg.mxu0
  %v8245 = vsel %vm3819, %v7550, -inf
  %8246 = vmax.xlane.f32.xlu0 %v8245
  %v8247 = vpop.xlane.xlu0 %8246
  %v8248 = vsel %vm3819, %v7596, -inf
  %8249 = vmax.xlane.f32.xlu0 %v8248
  %v8250 = vpop.xlane.xlu0 %8249
  %v8251 = vsel %vm3819, %v7642, -inf
  %8252 = vmax.xlane.f32.xlu0 %v8251
  %v8253 = vpop.xlane.xlu0 %8252
  %v8254 = vsel %vm3819, %v7688, -inf
  %8255 = vmax.xlane.f32.xlu0 %v8254
  %v8256 = vpop.xlane.xlu0 %8255
  %v8257 = vsel %vm3819, %v7734, -inf
  %8258 = vmax.xlane.f32.xlu0 %v8257
  %v8259 = vpop.xlane.xlu0 %8258
  %v8260 = vsel %vm3819, %v7780, -inf
  %8261 = vmax.xlane.f32.xlu0 %v8260
  %v8262 = vpop.xlane.xlu0 %8261
  %v8263 = vsel %vm3819, %v7826, -inf
  %8264 = vmax.xlane.f32.xlu0 %v8263
  %v8265 = vpop.xlane.xlu0 %8264
  %v8266 = vsel %vm3819, %v7872, -inf
  %8267 = vmax.xlane.f32.xlu0 %v8266
  %v8268 = vpop.xlane.xlu0 %8267
  %v8269 = vsel %vm3819, %v7918, -inf
  %8270 = vmax.xlane.f32.xlu0 %v8269
  %v8271 = vpop.xlane.xlu0 %8270
  %v8272 = vsel %vm3819, %v7964, -inf
  %8273 = vmax.xlane.f32.xlu0 %v8272
  %v8274 = vpop.xlane.xlu0 %8273
  %v8275 = vsel %vm3819, %v8010, -inf
  %8276 = vmax.xlane.f32.xlu0 %v8275
  %v8277 = vpop.xlane.xlu0 %8276
  %v8278 = vsel %vm3819, %v8056, -inf
  %8279 = vmax.xlane.f32.xlu0 %v8278
  %v8280 = vpop.xlane.xlu0 %8279
  %v8281 = vsel %vm3819, %v8102, -inf
  %8282 = vmax.xlane.f32.xlu0 %v8281
  %v8283 = vpop.xlane.xlu0 %8282
  %v8284 = vsel %vm3819, %v8148, -inf
  %8285 = vmax.xlane.f32.xlu0 %v8284
  %v8286 = vpop.xlane.xlu0 %8285
  %v8287 = vsel %vm3819, %v8194, -inf
  %8288 = vmax.xlane.f32.xlu0 %v8287
  %v8289 = vpop.xlane.xlu0 %8288
  %v8290 = vsel %vm3819, %v8240, -inf
  %8291 = vmax.xlane.f32.xlu0 %v8290
  %v8292 = vpop.xlane.xlu0 %8291
  %v8293 = vsub.f32 %v7550, %v8247
  %v8294 = vsub.f32 %v7596, %v8250
  %v8295 = vsub.f32 %v7642, %v8253
  %v8296 = vsub.f32 %v7688, %v8256
  %v8297 = vsub.f32 %v7734, %v8259
  %v8298 = vsub.f32 %v7780, %v8262
  %v8299 = vsub.f32 %v7826, %v8265
  %v8300 = vsub.f32 %v7872, %v8268
  %v8301 = vsub.f32 %v7918, %v8271
  %v8302 = vsub.f32 %v7964, %v8274
  %v8303 = vsub.f32 %v8010, %v8277
  %v8304 = vsub.f32 %v8056, %v8280
  %v8305 = vsub.f32 %v8102, %v8283
  %v8306 = vsub.f32 %v8148, %v8286
  %v8307 = vsub.f32 %v8194, %v8289
  %v8308 = vsub.f32 %v8240, %v8292
  %v8309 = vmul.f32 %v8293, 1.442695
  %v8310 = vpow.pop %v8309
  %v8311 = vmul.f32 %v8294, 1.442695
  %v8312 = vpow.pop %v8311
  %v8313 = vmul.f32 %v8295, 1.442695
  %v8314 = vpow.pop %v8313
  %v8315 = vmul.f32 %v8296, 1.442695
  %v8316 = vpow.pop %v8315
  %v8317 = vmul.f32 %v8297, 1.442695
  %v8318 = vpow.pop %v8317
  %v8319 = vmul.f32 %v8298, 1.442695
  %v8320 = vpow.pop %v8319
  %v8321 = vmul.f32 %v8299, 1.442695
  %v8322 = vpow.pop %v8321
  %v8323 = vmul.f32 %v8300, 1.442695
  %v8324 = vpow.pop %v8323
  %v8325 = vmul.f32 %v8301, 1.442695
  %v8326 = vpow.pop %v8325
  %v8327 = vmul.f32 %v8302, 1.442695
  %v8328 = vpow.pop %v8327
  %v8329 = vmul.f32 %v8303, 1.442695
  %v8330 = vpow.pop %v8329
  %v8331 = vmul.f32 %v8304, 1.442695
  %v8332 = vpow.pop %v8331
  %v8333 = vmul.f32 %v8305, 1.442695
  %v8334 = vpow.pop %v8333
  %v8335 = vmul.f32 %v8306, 1.442695
  %v8336 = vpow.pop %v8335
  %v8337 = vmul.f32 %v8307, 1.442695
  %v8338 = vpow.pop %v8337
  %v8339 = vmul.f32 %v8308, 1.442695
  %v8340 = vpow.pop %v8339
  %v8341 = vsel %vm3819, %v8310, 0.0
  %8342 = vadd.xlane.f32.xlu0 %v8341
  %v8343 = vpop.xlane.xlu0 %8342
  %v8344 = vsel %vm3819, %v8312, 0.0
  %8345 = vadd.xlane.f32.xlu0 %v8344
  %v8346 = vpop.xlane.xlu0 %8345
  %v8347 = vsel %vm3819, %v8314, 0.0
  %8348 = vadd.xlane.f32.xlu0 %v8347
  %v8349 = vpop.xlane.xlu0 %8348
  %v8350 = vsel %vm3819, %v8316, 0.0
  %8351 = vadd.xlane.f32.xlu0 %v8350
  %v8352 = vpop.xlane.xlu0 %8351
  %v8353 = vsel %vm3819, %v8318, 0.0
  %8354 = vadd.xlane.f32.xlu0 %v8353
  %v8355 = vpop.xlane.xlu0 %8354
  %v8356 = vsel %vm3819, %v8320, 0.0
  %8357 = vadd.xlane.f32.xlu0 %v8356
  %v8358 = vpop.xlane.xlu0 %8357
  %v8359 = vsel %vm3819, %v8322, 0.0
  %8360 = vadd.xlane.f32.xlu0 %v8359
  %v8361 = vpop.xlane.xlu0 %8360
  %v8362 = vsel %vm3819, %v8324, 0.0
  %8363 = vadd.xlane.f32.xlu0 %v8362
  %v8364 = vpop.xlane.xlu0 %8363
  %v8365 = vsel %vm3819, %v8326, 0.0
  %8366 = vadd.xlane.f32.xlu0 %v8365
  %v8367 = vpop.xlane.xlu0 %8366
  %v8368 = vsel %vm3819, %v8328, 0.0
  %8369 = vadd.xlane.f32.xlu0 %v8368
  %v8370 = vpop.xlane.xlu0 %8369
  %v8371 = vsel %vm3819, %v8330, 0.0
  %8372 = vadd.xlane.f32.xlu0 %v8371
  %v8373 = vpop.xlane.xlu0 %8372
  %v8374 = vsel %vm3819, %v8332, 0.0
  %8375 = vadd.xlane.f32.xlu0 %v8374
  %v8376 = vpop.xlane.xlu0 %8375
  %v8377 = vsel %vm3819, %v8334, 0.0
  %8378 = vadd.xlane.f32.xlu0 %v8377
  %v8379 = vpop.xlane.xlu0 %8378
  %v8380 = vsel %vm3819, %v8336, 0.0
  %8381 = vadd.xlane.f32.xlu0 %v8380
  %v8382 = vpop.xlane.xlu0 %8381
  %v8383 = vsel %vm3819, %v8338, 0.0
  %8384 = vadd.xlane.f32.xlu0 %v8383
  %v8385 = vpop.xlane.xlu0 %8384
  %v8386 = vsel %vm3819, %v8340, 0.0
  %8387 = vadd.xlane.f32.xlu0 %v8386
  %v8388 = vpop.xlane.xlu0 %8387
  %v8389 = vrcp.pop %v8343
  %v8390 = vmul.f32 %v8310, %v8389
  %v8391 = vrcp.pop %v8346
  %v8392 = vmul.f32 %v8312, %v8391
  %v8393 = vrcp.pop %v8349
  %v8394 = vmul.f32 %v8314, %v8393
  %v8395 = vrcp.pop %v8352
  %v8396 = vmul.f32 %v8316, %v8395
  %v8397 = vrcp.pop %v8355
  %v8398 = vmul.f32 %v8318, %v8397
  %v8399 = vrcp.pop %v8358
  %v8400 = vmul.f32 %v8320, %v8399
  %v8401 = vrcp.pop %v8361
  %v8402 = vmul.f32 %v8322, %v8401
  %v8403 = vrcp.pop %v8364
  %v8404 = vmul.f32 %v8324, %v8403
  %v8405 = vrcp.pop %v8367
  %v8406 = vmul.f32 %v8326, %v8405
  %v8407 = vrcp.pop %v8370
  %v8408 = vmul.f32 %v8328, %v8407
  %v8409 = vrcp.pop %v8373
  %v8410 = vmul.f32 %v8330, %v8409
  %v8411 = vrcp.pop %v8376
  %v8412 = vmul.f32 %v8332, %v8411
  %v8413 = vrcp.pop %v8379
  %v8414 = vmul.f32 %v8334, %v8413
  %v8415 = vrcp.pop %v8382
  %v8416 = vmul.f32 %v8336, %v8415
  %v8417 = vrcp.pop %v8385
  %v8418 = vmul.f32 %v8338, %v8417
  %v8419 = vrcp.pop %v8388
  %v8420 = vmul.f32 %v8340, %v8419
  %v8421 = vpack.c.bf16 %v8390, %v8390
  %v8422 = vpack.c.bf16 %v8392, %v8392
  %v8423 = vpack.c.bf16 %v8394, %v8394
  %v8424 = vpack.c.bf16 %v8396, %v8396
  %v8425 = vpack.c.bf16 %v8398, %v8398
  %v8426 = vpack.c.bf16 %v8400, %v8400
  %v8427 = vpack.c.bf16 %v8402, %v8402
  %v8428 = vpack.c.bf16 %v8404, %v8404
  %v8429 = vpack.c.bf16 %v8406, %v8406
  %v8430 = vpack.c.bf16 %v8408, %v8408
  %v8431 = vpack.c.bf16 %v8410, %v8410
  %v8432 = vpack.c.bf16 %v8412, %v8412
  %v8433 = vpack.c.bf16 %v8414, %v8414
  %v8434 = vpack.c.bf16 %v8416, %v8416
  %v8435 = vpack.c.bf16 %v8418, %v8418
  %v8436 = vpack.c.bf16 %v8420, %v8420
  %v8438 = vsel %vm3819, %v8421, 0
  %v8441 = vsel %vm154, %v7493, 0
  %8443 = vmatprep.subr.bf16.mxu0 0
  %8444 = vmatpush1.bf16.msra.mxu0 0
  %8445 = vmatprep.subr.bf16.mxu0 0
  %8446 = vmatpush1.bf16.msra.mxu0 0
  %8447 = vmatprep.subr.bf16.mxu0 0
  %8448 = vmatpush1.bf16.msra.mxu0 0
  %8449 = vmatprep.subr.bf16.mxu0 0
  %8450 = vmatpush1.bf16.msra.mxu0 0
  %8451 = vmatprep.subr.bf16.mxu0 0
  %8452 = vmatpush1.bf16.msra.mxu0 0
  %8453 = vmatprep.subr.bf16.mxu0 0
  %8454 = vmatpush1.bf16.msra.mxu0 0
  %8455 = vmatprep.subr.bf16.mxu0 0
  %8456 = vmatpush1.bf16.msra.mxu0 0
  %8457 = vmatprep.subr.bf16.mxu0 0
  %8458 = vmatpush1.bf16.msra.mxu0 %v8441
  %8459 = vmatprep.subr.bf16.mxu0 0
  %8460 = vmatpush2.bf16.msra.mxu0 0
  %8461 = vmatprep.subr.bf16.mxu0 0
  %8462 = vmatpush2.bf16.msra.mxu0 0
  %8463 = vmatprep.subr.bf16.mxu0 0
  %8464 = vmatpush2.bf16.msra.mxu0 0
  %8465 = vmatprep.subr.bf16.mxu0 0
  %8466 = vmatpush2.bf16.msra.mxu0 0
  %8467 = vmatprep.subr.bf16.mxu0 0
  %8468 = vmatpush2.bf16.msra.mxu0 0
  %8469 = vmatprep.subr.bf16.mxu0 0
  %8470 = vmatpush2.bf16.msra.mxu0 0
  %8471 = vmatprep.subr.bf16.mxu0 0
  %8472 = vmatpush2.bf16.msra.mxu0 0
  %8473 = vmatprep.subr.bf16.mxu0 0
  %8474 = vmatpush2.bf16.msra.mxu0 0
  %8475 = vmatprep.mubr.bf16.mxu0 0
  %8476 = vmatmul.mubr.bf16.gmra.mxu0 %v8438
  %v8477 = vpop.f32.mrf.mxu0
  %v8478 = vadd.f32 0.0, %v8477
  %v8479 = vpop.f32.mrf.mxu0
  %v8480 = vpop.f32.mrf.mxu0
  %v8481 = vpop.f32.mrf.mxu0
  %8482 = vdwg.mxu0
  %v8484 = vsel %vm3819, %v8422, 0
  %v8487 = vsel %vm154, %v7494, 0
  %8489 = vmatprep.subr.bf16.mxu0 0
  %8490 = vmatpush1.bf16.msra.mxu0 0
  %8491 = vmatprep.subr.bf16.mxu0 0
  %8492 = vmatpush1.bf16.msra.mxu0 0
  %8493 = vmatprep.subr.bf16.mxu0 0
  %8494 = vmatpush1.bf16.msra.mxu0 0
  %8495 = vmatprep.subr.bf16.mxu0 0
  %8496 = vmatpush1.bf16.msra.mxu0 0
  %8497 = vmatprep.subr.bf16.mxu0 0
  %8498 = vmatpush1.bf16.msra.mxu0 0
  %8499 = vmatprep.subr.bf16.mxu0 0
  %8500 = vmatpush1.bf16.msra.mxu0 0
  %8501 = vmatprep.subr.bf16.mxu0 0
  %8502 = vmatpush1.bf16.msra.mxu0 0
  %8503 = vmatprep.subr.bf16.mxu0 0
  %8504 = vmatpush1.bf16.msra.mxu0 %v8487
  %8505 = vmatprep.subr.bf16.mxu0 0
  %8506 = vmatpush2.bf16.msra.mxu0 0
  %8507 = vmatprep.subr.bf16.mxu0 0
  %8508 = vmatpush2.bf16.msra.mxu0 0
  %8509 = vmatprep.subr.bf16.mxu0 0
  %8510 = vmatpush2.bf16.msra.mxu0 0
  %8511 = vmatprep.subr.bf16.mxu0 0
  %8512 = vmatpush2.bf16.msra.mxu0 0
  %8513 = vmatprep.subr.bf16.mxu0 0
  %8514 = vmatpush2.bf16.msra.mxu0 0
  %8515 = vmatprep.subr.bf16.mxu0 0
  %8516 = vmatpush2.bf16.msra.mxu0 0
  %8517 = vmatprep.subr.bf16.mxu0 0
  %8518 = vmatpush2.bf16.msra.mxu0 0
  %8519 = vmatprep.subr.bf16.mxu0 0
  %8520 = vmatpush2.bf16.msra.mxu0 0
  %8521 = vmatprep.mubr.bf16.mxu0 0
  %8522 = vmatmul.mubr.bf16.gmra.mxu0 %v8484
  %v8523 = vpop.f32.mrf.mxu0
  %v8524 = vadd.f32 0.0, %v8523
  %v8525 = vpop.f32.mrf.mxu0
  %v8526 = vpop.f32.mrf.mxu0
  %v8527 = vpop.f32.mrf.mxu0
  %8528 = vdwg.mxu0
  %v8530 = vsel %vm3819, %v8423, 0
  %v8533 = vsel %vm154, %v7495, 0
  %8535 = vmatprep.subr.bf16.mxu0 0
  %8536 = vmatpush1.bf16.msra.mxu0 0
  %8537 = vmatprep.subr.bf16.mxu0 0
  %8538 = vmatpush1.bf16.msra.mxu0 0
  %8539 = vmatprep.subr.bf16.mxu0 0
  %8540 = vmatpush1.bf16.msra.mxu0 0
  %8541 = vmatprep.subr.bf16.mxu0 0
  %8542 = vmatpush1.bf16.msra.mxu0 0
  %8543 = vmatprep.subr.bf16.mxu0 0
  %8544 = vmatpush1.bf16.msra.mxu0 0
  %8545 = vmatprep.subr.bf16.mxu0 0
  %8546 = vmatpush1.bf16.msra.mxu0 0
  %8547 = vmatprep.subr.bf16.mxu0 0
  %8548 = vmatpush1.bf16.msra.mxu0 0
  %8549 = vmatprep.subr.bf16.mxu0 0
  %8550 = vmatpush1.bf16.msra.mxu0 %v8533
  %8551 = vmatprep.subr.bf16.mxu0 0
  %8552 = vmatpush2.bf16.msra.mxu0 0
  %8553 = vmatprep.subr.bf16.mxu0 0
  %8554 = vmatpush2.bf16.msra.mxu0 0
  %8555 = vmatprep.subr.bf16.mxu0 0
  %8556 = vmatpush2.bf16.msra.mxu0 0
  %8557 = vmatprep.subr.bf16.mxu0 0
  %8558 = vmatpush2.bf16.msra.mxu0 0
  %8559 = vmatprep.subr.bf16.mxu0 0
  %8560 = vmatpush2.bf16.msra.mxu0 0
  %8561 = vmatprep.subr.bf16.mxu0 0
  %8562 = vmatpush2.bf16.msra.mxu0 0
  %8563 = vmatprep.subr.bf16.mxu0 0
  %8564 = vmatpush2.bf16.msra.mxu0 0
  %8565 = vmatprep.subr.bf16.mxu0 0
  %8566 = vmatpush2.bf16.msra.mxu0 0
  %8567 = vmatprep.mubr.bf16.mxu0 0
  %8568 = vmatmul.mubr.bf16.gmra.mxu0 %v8530
  %v8569 = vpop.f32.mrf.mxu0
  %v8570 = vadd.f32 0.0, %v8569
  %v8571 = vpop.f32.mrf.mxu0
  %v8572 = vpop.f32.mrf.mxu0
  %v8573 = vpop.f32.mrf.mxu0
  %8574 = vdwg.mxu0
  %v8576 = vsel %vm3819, %v8424, 0
  %v8579 = vsel %vm154, %v7496, 0
  %8581 = vmatprep.subr.bf16.mxu0 0
  %8582 = vmatpush1.bf16.msra.mxu0 0
  %8583 = vmatprep.subr.bf16.mxu0 0
  %8584 = vmatpush1.bf16.msra.mxu0 0
  %8585 = vmatprep.subr.bf16.mxu0 0
  %8586 = vmatpush1.bf16.msra.mxu0 0
  %8587 = vmatprep.subr.bf16.mxu0 0
  %8588 = vmatpush1.bf16.msra.mxu0 0
  %8589 = vmatprep.subr.bf16.mxu0 0
  %8590 = vmatpush1.bf16.msra.mxu0 0
  %8591 = vmatprep.subr.bf16.mxu0 0
  %8592 = vmatpush1.bf16.msra.mxu0 0
  %8593 = vmatprep.subr.bf16.mxu0 0
  %8594 = vmatpush1.bf16.msra.mxu0 0
  %8595 = vmatprep.subr.bf16.mxu0 0
  %8596 = vmatpush1.bf16.msra.mxu0 %v8579
  %8597 = vmatprep.subr.bf16.mxu0 0
  %8598 = vmatpush2.bf16.msra.mxu0 0
  %8599 = vmatprep.subr.bf16.mxu0 0
  %8600 = vmatpush2.bf16.msra.mxu0 0
  %8601 = vmatprep.subr.bf16.mxu0 0
  %8602 = vmatpush2.bf16.msra.mxu0 0
  %8603 = vmatprep.subr.bf16.mxu0 0
  %8604 = vmatpush2.bf16.msra.mxu0 0
  %8605 = vmatprep.subr.bf16.mxu0 0
  %8606 = vmatpush2.bf16.msra.mxu0 0
  %8607 = vmatprep.subr.bf16.mxu0 0
  %8608 = vmatpush2.bf16.msra.mxu0 0
  %8609 = vmatprep.subr.bf16.mxu0 0
  %8610 = vmatpush2.bf16.msra.mxu0 0
  %8611 = vmatprep.subr.bf16.mxu0 0
  %8612 = vmatpush2.bf16.msra.mxu0 0
  %8613 = vmatprep.mubr.bf16.mxu0 0
  %8614 = vmatmul.mubr.bf16.gmra.mxu0 %v8576
  %v8615 = vpop.f32.mrf.mxu0
  %v8616 = vadd.f32 0.0, %v8615
  %v8617 = vpop.f32.mrf.mxu0
  %v8618 = vpop.f32.mrf.mxu0
  %v8619 = vpop.f32.mrf.mxu0
  %8620 = vdwg.mxu0
  %v8622 = vsel %vm3819, %v8425, 0
  %v8625 = vsel %vm154, %v7497, 0
  %8627 = vmatprep.subr.bf16.mxu0 0
  %8628 = vmatpush1.bf16.msra.mxu0 0
  %8629 = vmatprep.subr.bf16.mxu0 0
  %8630 = vmatpush1.bf16.msra.mxu0 0
  %8631 = vmatprep.subr.bf16.mxu0 0
  %8632 = vmatpush1.bf16.msra.mxu0 0
  %8633 = vmatprep.subr.bf16.mxu0 0
  %8634 = vmatpush1.bf16.msra.mxu0 0
  %8635 = vmatprep.subr.bf16.mxu0 0
  %8636 = vmatpush1.bf16.msra.mxu0 0
  %8637 = vmatprep.subr.bf16.mxu0 0
  %8638 = vmatpush1.bf16.msra.mxu0 0
  %8639 = vmatprep.subr.bf16.mxu0 0
  %8640 = vmatpush1.bf16.msra.mxu0 0
  %8641 = vmatprep.subr.bf16.mxu0 0
  %8642 = vmatpush1.bf16.msra.mxu0 %v8625
  %8643 = vmatprep.subr.bf16.mxu0 0
  %8644 = vmatpush2.bf16.msra.mxu0 0
  %8645 = vmatprep.subr.bf16.mxu0 0
  %8646 = vmatpush2.bf16.msra.mxu0 0
  %8647 = vmatprep.subr.bf16.mxu0 0
  %8648 = vmatpush2.bf16.msra.mxu0 0
  %8649 = vmatprep.subr.bf16.mxu0 0
  %8650 = vmatpush2.bf16.msra.mxu0 0
  %8651 = vmatprep.subr.bf16.mxu0 0
  %8652 = vmatpush2.bf16.msra.mxu0 0
  %8653 = vmatprep.subr.bf16.mxu0 0
  %8654 = vmatpush2.bf16.msra.mxu0 0
  %8655 = vmatprep.subr.bf16.mxu0 0
  %8656 = vmatpush2.bf16.msra.mxu0 0
  %8657 = vmatprep.subr.bf16.mxu0 0
  %8658 = vmatpush2.bf16.msra.mxu0 0
  %8659 = vmatprep.mubr.bf16.mxu0 0
  %8660 = vmatmul.mubr.bf16.gmra.mxu0 %v8622
  %v8661 = vpop.f32.mrf.mxu0
  %v8662 = vadd.f32 0.0, %v8661
  %v8663 = vpop.f32.mrf.mxu0
  %v8664 = vpop.f32.mrf.mxu0
  %v8665 = vpop.f32.mrf.mxu0
  %8666 = vdwg.mxu0
  %v8668 = vsel %vm3819, %v8426, 0
  %v8671 = vsel %vm154, %v7498, 0
  %8673 = vmatprep.subr.bf16.mxu0 0
  %8674 = vmatpush1.bf16.msra.mxu0 0
  %8675 = vmatprep.subr.bf16.mxu0 0
  %8676 = vmatpush1.bf16.msra.mxu0 0
  %8677 = vmatprep.subr.bf16.mxu0 0
  %8678 = vmatpush1.bf16.msra.mxu0 0
  %8679 = vmatprep.subr.bf16.mxu0 0
  %8680 = vmatpush1.bf16.msra.mxu0 0
  %8681 = vmatprep.subr.bf16.mxu0 0
  %8682 = vmatpush1.bf16.msra.mxu0 0
  %8683 = vmatprep.subr.bf16.mxu0 0
  %8684 = vmatpush1.bf16.msra.mxu0 0
  %8685 = vmatprep.subr.bf16.mxu0 0
  %8686 = vmatpush1.bf16.msra.mxu0 0
  %8687 = vmatprep.subr.bf16.mxu0 0
  %8688 = vmatpush1.bf16.msra.mxu0 %v8671
  %8689 = vmatprep.subr.bf16.mxu0 0
  %8690 = vmatpush2.bf16.msra.mxu0 0
  %8691 = vmatprep.subr.bf16.mxu0 0
  %8692 = vmatpush2.bf16.msra.mxu0 0
  %8693 = vmatprep.subr.bf16.mxu0 0
  %8694 = vmatpush2.bf16.msra.mxu0 0
  %8695 = vmatprep.subr.bf16.mxu0 0
  %8696 = vmatpush2.bf16.msra.mxu0 0
  %8697 = vmatprep.subr.bf16.mxu0 0
  %8698 = vmatpush2.bf16.msra.mxu0 0
  %8699 = vmatprep.subr.bf16.mxu0 0
  %8700 = vmatpush2.bf16.msra.mxu0 0
  %8701 = vmatprep.subr.bf16.mxu0 0
  %8702 = vmatpush2.bf16.msra.mxu0 0
  %8703 = vmatprep.subr.bf16.mxu0 0
  %8704 = vmatpush2.bf16.msra.mxu0 0
  %8705 = vmatprep.mubr.bf16.mxu0 0
  %8706 = vmatmul.mubr.bf16.gmra.mxu0 %v8668
  %v8707 = vpop.f32.mrf.mxu0
  %v8708 = vadd.f32 0.0, %v8707
  %v8709 = vpop.f32.mrf.mxu0
  %v8710 = vpop.f32.mrf.mxu0
  %v8711 = vpop.f32.mrf.mxu0
  %8712 = vdwg.mxu0
  %v8714 = vsel %vm3819, %v8427, 0
  %v8717 = vsel %vm154, %v7499, 0
  %8719 = vmatprep.subr.bf16.mxu0 0
  %8720 = vmatpush1.bf16.msra.mxu0 0
  %8721 = vmatprep.subr.bf16.mxu0 0
  %8722 = vmatpush1.bf16.msra.mxu0 0
  %8723 = vmatprep.subr.bf16.mxu0 0
  %8724 = vmatpush1.bf16.msra.mxu0 0
  %8725 = vmatprep.subr.bf16.mxu0 0
  %8726 = vmatpush1.bf16.msra.mxu0 0
  %8727 = vmatprep.subr.bf16.mxu0 0
  %8728 = vmatpush1.bf16.msra.mxu0 0
  %8729 = vmatprep.subr.bf16.mxu0 0
  %8730 = vmatpush1.bf16.msra.mxu0 0
  %8731 = vmatprep.subr.bf16.mxu0 0
  %8732 = vmatpush1.bf16.msra.mxu0 0
  %8733 = vmatprep.subr.bf16.mxu0 0
  %8734 = vmatpush1.bf16.msra.mxu0 %v8717
  %8735 = vmatprep.subr.bf16.mxu0 0
  %8736 = vmatpush2.bf16.msra.mxu0 0
  %8737 = vmatprep.subr.bf16.mxu0 0
  %8738 = vmatpush2.bf16.msra.mxu0 0
  %8739 = vmatprep.subr.bf16.mxu0 0
  %8740 = vmatpush2.bf16.msra.mxu0 0
  %8741 = vmatprep.subr.bf16.mxu0 0
  %8742 = vmatpush2.bf16.msra.mxu0 0
  %8743 = vmatprep.subr.bf16.mxu0 0
  %8744 = vmatpush2.bf16.msra.mxu0 0
  %8745 = vmatprep.subr.bf16.mxu0 0
  %8746 = vmatpush2.bf16.msra.mxu0 0
  %8747 = vmatprep.subr.bf16.mxu0 0
  %8748 = vmatpush2.bf16.msra.mxu0 0
  %8749 = vmatprep.subr.bf16.mxu0 0
  %8750 = vmatpush2.bf16.msra.mxu0 0
  %8751 = vmatprep.mubr.bf16.mxu0 0
  %8752 = vmatmul.mubr.bf16.gmra.mxu0 %v8714
  %v8753 = vpop.f32.mrf.mxu0
  %v8754 = vadd.f32 0.0, %v8753
  %v8755 = vpop.f32.mrf.mxu0
  %v8756 = vpop.f32.mrf.mxu0
  %v8757 = vpop.f32.mrf.mxu0
  %8758 = vdwg.mxu0
  %v8760 = vsel %vm3819, %v8428, 0
  %v8763 = vsel %vm154, %v7500, 0
  %8765 = vmatprep.subr.bf16.mxu0 0
  %8766 = vmatpush1.bf16.msra.mxu0 0
  %8767 = vmatprep.subr.bf16.mxu0 0
  %8768 = vmatpush1.bf16.msra.mxu0 0
  %8769 = vmatprep.subr.bf16.mxu0 0
  %8770 = vmatpush1.bf16.msra.mxu0 0
  %8771 = vmatprep.subr.bf16.mxu0 0
  %8772 = vmatpush1.bf16.msra.mxu0 0
  %8773 = vmatprep.subr.bf16.mxu0 0
  %8774 = vmatpush1.bf16.msra.mxu0 0
  %8775 = vmatprep.subr.bf16.mxu0 0
  %8776 = vmatpush1.bf16.msra.mxu0 0
  %8777 = vmatprep.subr.bf16.mxu0 0
  %8778 = vmatpush1.bf16.msra.mxu0 0
  %8779 = vmatprep.subr.bf16.mxu0 0
  %8780 = vmatpush1.bf16.msra.mxu0 %v8763
  %8781 = vmatprep.subr.bf16.mxu0 0
  %8782 = vmatpush2.bf16.msra.mxu0 0
  %8783 = vmatprep.subr.bf16.mxu0 0
  %8784 = vmatpush2.bf16.msra.mxu0 0
  %8785 = vmatprep.subr.bf16.mxu0 0
  %8786 = vmatpush2.bf16.msra.mxu0 0
  %8787 = vmatprep.subr.bf16.mxu0 0
  %8788 = vmatpush2.bf16.msra.mxu0 0
  %8789 = vmatprep.subr.bf16.mxu0 0
  %8790 = vmatpush2.bf16.msra.mxu0 0
  %8791 = vmatprep.subr.bf16.mxu0 0
  %8792 = vmatpush2.bf16.msra.mxu0 0
  %8793 = vmatprep.subr.bf16.mxu0 0
  %8794 = vmatpush2.bf16.msra.mxu0 0
  %8795 = vmatprep.subr.bf16.mxu0 0
  %8796 = vmatpush2.bf16.msra.mxu0 0
  %8797 = vmatprep.mubr.bf16.mxu0 0
  %8798 = vmatmul.mubr.bf16.gmra.mxu0 %v8760
  %v8799 = vpop.f32.mrf.mxu0
  %v8800 = vadd.f32 0.0, %v8799
  %v8801 = vpop.f32.mrf.mxu0
  %v8802 = vpop.f32.mrf.mxu0
  %v8803 = vpop.f32.mrf.mxu0
  %8804 = vdwg.mxu0
  %v8806 = vsel %vm3819, %v8429, 0
  %v8809 = vsel %vm154, %v7501, 0
  %8811 = vmatprep.subr.bf16.mxu0 0
  %8812 = vmatpush1.bf16.msra.mxu0 0
  %8813 = vmatprep.subr.bf16.mxu0 0
  %8814 = vmatpush1.bf16.msra.mxu0 0
  %8815 = vmatprep.subr.bf16.mxu0 0
  %8816 = vmatpush1.bf16.msra.mxu0 0
  %8817 = vmatprep.subr.bf16.mxu0 0
  %8818 = vmatpush1.bf16.msra.mxu0 0
  %8819 = vmatprep.subr.bf16.mxu0 0
  %8820 = vmatpush1.bf16.msra.mxu0 0
  %8821 = vmatprep.subr.bf16.mxu0 0
  %8822 = vmatpush1.bf16.msra.mxu0 0
  %8823 = vmatprep.subr.bf16.mxu0 0
  %8824 = vmatpush1.bf16.msra.mxu0 0
  %8825 = vmatprep.subr.bf16.mxu0 0
  %8826 = vmatpush1.bf16.msra.mxu0 %v8809
  %8827 = vmatprep.subr.bf16.mxu0 0
  %8828 = vmatpush2.bf16.msra.mxu0 0
  %8829 = vmatprep.subr.bf16.mxu0 0
  %8830 = vmatpush2.bf16.msra.mxu0 0
  %8831 = vmatprep.subr.bf16.mxu0 0
  %8832 = vmatpush2.bf16.msra.mxu0 0
  %8833 = vmatprep.subr.bf16.mxu0 0
  %8834 = vmatpush2.bf16.msra.mxu0 0
  %8835 = vmatprep.subr.bf16.mxu0 0
  %8836 = vmatpush2.bf16.msra.mxu0 0
  %8837 = vmatprep.subr.bf16.mxu0 0
  %8838 = vmatpush2.bf16.msra.mxu0 0
  %8839 = vmatprep.subr.bf16.mxu0 0
  %8840 = vmatpush2.bf16.msra.mxu0 0
  %8841 = vmatprep.subr.bf16.mxu0 0
  %8842 = vmatpush2.bf16.msra.mxu0 0
  %8843 = vmatprep.mubr.bf16.mxu0 0
  %8844 = vmatmul.mubr.bf16.gmra.mxu0 %v8806
  %v8845 = vpop.f32.mrf.mxu0
  %v8846 = vadd.f32 0.0, %v8845
  %v8847 = vpop.f32.mrf.mxu0
  %v8848 = vpop.f32.mrf.mxu0
  %v8849 = vpop.f32.mrf.mxu0
  %8850 = vdwg.mxu0
  %v8852 = vsel %vm3819, %v8430, 0
  %v8855 = vsel %vm154, %v7502, 0
  %8857 = vmatprep.subr.bf16.mxu0 0
  %8858 = vmatpush1.bf16.msra.mxu0 0
  %8859 = vmatprep.subr.bf16.mxu0 0
  %8860 = vmatpush1.bf16.msra.mxu0 0
  %8861 = vmatprep.subr.bf16.mxu0 0
  %8862 = vmatpush1.bf16.msra.mxu0 0
  %8863 = vmatprep.subr.bf16.mxu0 0
  %8864 = vmatpush1.bf16.msra.mxu0 0
  %8865 = vmatprep.subr.bf16.mxu0 0
  %8866 = vmatpush1.bf16.msra.mxu0 0
  %8867 = vmatprep.subr.bf16.mxu0 0
  %8868 = vmatpush1.bf16.msra.mxu0 0
  %8869 = vmatprep.subr.bf16.mxu0 0
  %8870 = vmatpush1.bf16.msra.mxu0 0
  %8871 = vmatprep.subr.bf16.mxu0 0
  %8872 = vmatpush1.bf16.msra.mxu0 %v8855
  %8873 = vmatprep.subr.bf16.mxu0 0
  %8874 = vmatpush2.bf16.msra.mxu0 0
  %8875 = vmatprep.subr.bf16.mxu0 0
  %8876 = vmatpush2.bf16.msra.mxu0 0
  %8877 = vmatprep.subr.bf16.mxu0 0
  %8878 = vmatpush2.bf16.msra.mxu0 0
  %8879 = vmatprep.subr.bf16.mxu0 0
  %8880 = vmatpush2.bf16.msra.mxu0 0
  %8881 = vmatprep.subr.bf16.mxu0 0
  %8882 = vmatpush2.bf16.msra.mxu0 0
  %8883 = vmatprep.subr.bf16.mxu0 0
  %8884 = vmatpush2.bf16.msra.mxu0 0
  %8885 = vmatprep.subr.bf16.mxu0 0
  %8886 = vmatpush2.bf16.msra.mxu0 0
  %8887 = vmatprep.subr.bf16.mxu0 0
  %8888 = vmatpush2.bf16.msra.mxu0 0
  %8889 = vmatprep.mubr.bf16.mxu0 0
  %8890 = vmatmul.mubr.bf16.gmra.mxu0 %v8852
  %v8891 = vpop.f32.mrf.mxu0
  %v8892 = vadd.f32 0.0, %v8891
  %v8893 = vpop.f32.mrf.mxu0
  %v8894 = vpop.f32.mrf.mxu0
  %v8895 = vpop.f32.mrf.mxu0
  %8896 = vdwg.mxu0
  %v8898 = vsel %vm3819, %v8431, 0
  %v8901 = vsel %vm154, %v7503, 0
  %8903 = vmatprep.subr.bf16.mxu0 0
  %8904 = vmatpush1.bf16.msra.mxu0 0
  %8905 = vmatprep.subr.bf16.mxu0 0
  %8906 = vmatpush1.bf16.msra.mxu0 0
  %8907 = vmatprep.subr.bf16.mxu0 0
  %8908 = vmatpush1.bf16.msra.mxu0 0
  %8909 = vmatprep.subr.bf16.mxu0 0
  %8910 = vmatpush1.bf16.msra.mxu0 0
  %8911 = vmatprep.subr.bf16.mxu0 0
  %8912 = vmatpush1.bf16.msra.mxu0 0
  %8913 = vmatprep.subr.bf16.mxu0 0
  %8914 = vmatpush1.bf16.msra.mxu0 0
  %8915 = vmatprep.subr.bf16.mxu0 0
  %8916 = vmatpush1.bf16.msra.mxu0 0
  %8917 = vmatprep.subr.bf16.mxu0 0
  %8918 = vmatpush1.bf16.msra.mxu0 %v8901
  %8919 = vmatprep.subr.bf16.mxu0 0
  %8920 = vmatpush2.bf16.msra.mxu0 0
  %8921 = vmatprep.subr.bf16.mxu0 0
  %8922 = vmatpush2.bf16.msra.mxu0 0
  %8923 = vmatprep.subr.bf16.mxu0 0
  %8924 = vmatpush2.bf16.msra.mxu0 0
  %8925 = vmatprep.subr.bf16.mxu0 0
  %8926 = vmatpush2.bf16.msra.mxu0 0
  %8927 = vmatprep.subr.bf16.mxu0 0
  %8928 = vmatpush2.bf16.msra.mxu0 0
  %8929 = vmatprep.subr.bf16.mxu0 0
  %8930 = vmatpush2.bf16.msra.mxu0 0
  %8931 = vmatprep.subr.bf16.mxu0 0
  %8932 = vmatpush2.bf16.msra.mxu0 0
  %8933 = vmatprep.subr.bf16.mxu0 0
  %8934 = vmatpush2.bf16.msra.mxu0 0
  %8935 = vmatprep.mubr.bf16.mxu0 0
  %8936 = vmatmul.mubr.bf16.gmra.mxu0 %v8898
  %v8937 = vpop.f32.mrf.mxu0
  %v8938 = vadd.f32 0.0, %v8937
  %v8939 = vpop.f32.mrf.mxu0
  %v8940 = vpop.f32.mrf.mxu0
  %v8941 = vpop.f32.mrf.mxu0
  %8942 = vdwg.mxu0
  %v8944 = vsel %vm3819, %v8432, 0
  %v8947 = vsel %vm154, %v7504, 0
  %8949 = vmatprep.subr.bf16.mxu0 0
  %8950 = vmatpush1.bf16.msra.mxu0 0
  %8951 = vmatprep.subr.bf16.mxu0 0
  %8952 = vmatpush1.bf16.msra.mxu0 0
  %8953 = vmatprep.subr.bf16.mxu0 0
  %8954 = vmatpush1.bf16.msra.mxu0 0
  %8955 = vmatprep.subr.bf16.mxu0 0
  %8956 = vmatpush1.bf16.msra.mxu0 0
  %8957 = vmatprep.subr.bf16.mxu0 0
  %8958 = vmatpush1.bf16.msra.mxu0 0
  %8959 = vmatprep.subr.bf16.mxu0 0
  %8960 = vmatpush1.bf16.msra.mxu0 0
  %8961 = vmatprep.subr.bf16.mxu0 0
  %8962 = vmatpush1.bf16.msra.mxu0 0
  %8963 = vmatprep.subr.bf16.mxu0 0
  %8964 = vmatpush1.bf16.msra.mxu0 %v8947
  %8965 = vmatprep.subr.bf16.mxu0 0
  %8966 = vmatpush2.bf16.msra.mxu0 0
  %8967 = vmatprep.subr.bf16.mxu0 0
  %8968 = vmatpush2.bf16.msra.mxu0 0
  %8969 = vmatprep.subr.bf16.mxu0 0
  %8970 = vmatpush2.bf16.msra.mxu0 0
  %8971 = vmatprep.subr.bf16.mxu0 0
  %8972 = vmatpush2.bf16.msra.mxu0 0
  %8973 = vmatprep.subr.bf16.mxu0 0
  %8974 = vmatpush2.bf16.msra.mxu0 0
  %8975 = vmatprep.subr.bf16.mxu0 0
  %8976 = vmatpush2.bf16.msra.mxu0 0
  %8977 = vmatprep.subr.bf16.mxu0 0
  %8978 = vmatpush2.bf16.msra.mxu0 0
  %8979 = vmatprep.subr.bf16.mxu0 0
  %8980 = vmatpush2.bf16.msra.mxu0 0
  %8981 = vmatprep.mubr.bf16.mxu0 0
  %8982 = vmatmul.mubr.bf16.gmra.mxu0 %v8944
  %v8983 = vpop.f32.mrf.mxu0
  %v8984 = vadd.f32 0.0, %v8983
  %v8985 = vpop.f32.mrf.mxu0
  %v8986 = vpop.f32.mrf.mxu0
  %v8987 = vpop.f32.mrf.mxu0
  %8988 = vdwg.mxu0
  %v8990 = vsel %vm3819, %v8433, 0
  %v8993 = vsel %vm154, %v7505, 0
  %8995 = vmatprep.subr.bf16.mxu0 0
  %8996 = vmatpush1.bf16.msra.mxu0 0
  %8997 = vmatprep.subr.bf16.mxu0 0
  %8998 = vmatpush1.bf16.msra.mxu0 0
  %8999 = vmatprep.subr.bf16.mxu0 0
  %9000 = vmatpush1.bf16.msra.mxu0 0
  %9001 = vmatprep.subr.bf16.mxu0 0
  %9002 = vmatpush1.bf16.msra.mxu0 0
  %9003 = vmatprep.subr.bf16.mxu0 0
  %9004 = vmatpush1.bf16.msra.mxu0 0
  %9005 = vmatprep.subr.bf16.mxu0 0
  %9006 = vmatpush1.bf16.msra.mxu0 0
  %9007 = vmatprep.subr.bf16.mxu0 0
  %9008 = vmatpush1.bf16.msra.mxu0 0
  %9009 = vmatprep.subr.bf16.mxu0 0
  %9010 = vmatpush1.bf16.msra.mxu0 %v8993
  %9011 = vmatprep.subr.bf16.mxu0 0
  %9012 = vmatpush2.bf16.msra.mxu0 0
  %9013 = vmatprep.subr.bf16.mxu0 0
  %9014 = vmatpush2.bf16.msra.mxu0 0
  %9015 = vmatprep.subr.bf16.mxu0 0
  %9016 = vmatpush2.bf16.msra.mxu0 0
  %9017 = vmatprep.subr.bf16.mxu0 0
  %9018 = vmatpush2.bf16.msra.mxu0 0
  %9019 = vmatprep.subr.bf16.mxu0 0
  %9020 = vmatpush2.bf16.msra.mxu0 0
  %9021 = vmatprep.subr.bf16.mxu0 0
  %9022 = vmatpush2.bf16.msra.mxu0 0
  %9023 = vmatprep.subr.bf16.mxu0 0
  %9024 = vmatpush2.bf16.msra.mxu0 0
  %9025 = vmatprep.subr.bf16.mxu0 0
  %9026 = vmatpush2.bf16.msra.mxu0 0
  %9027 = vmatprep.mubr.bf16.mxu0 0
  %9028 = vmatmul.mubr.bf16.gmra.mxu0 %v8990
  %v9029 = vpop.f32.mrf.mxu0
  %v9030 = vadd.f32 0.0, %v9029
  %v9031 = vpop.f32.mrf.mxu0
  %v9032 = vpop.f32.mrf.mxu0
  %v9033 = vpop.f32.mrf.mxu0
  %9034 = vdwg.mxu0
  %v9036 = vsel %vm3819, %v8434, 0
  %v9039 = vsel %vm154, %v7506, 0
  %9041 = vmatprep.subr.bf16.mxu0 0
  %9042 = vmatpush1.bf16.msra.mxu0 0
  %9043 = vmatprep.subr.bf16.mxu0 0
  %9044 = vmatpush1.bf16.msra.mxu0 0
  %9045 = vmatprep.subr.bf16.mxu0 0
  %9046 = vmatpush1.bf16.msra.mxu0 0
  %9047 = vmatprep.subr.bf16.mxu0 0
  %9048 = vmatpush1.bf16.msra.mxu0 0
  %9049 = vmatprep.subr.bf16.mxu0 0
  %9050 = vmatpush1.bf16.msra.mxu0 0
  %9051 = vmatprep.subr.bf16.mxu0 0
  %9052 = vmatpush1.bf16.msra.mxu0 0
  %9053 = vmatprep.subr.bf16.mxu0 0
  %9054 = vmatpush1.bf16.msra.mxu0 0
  %9055 = vmatprep.subr.bf16.mxu0 0
  %9056 = vmatpush1.bf16.msra.mxu0 %v9039
  %9057 = vmatprep.subr.bf16.mxu0 0
  %9058 = vmatpush2.bf16.msra.mxu0 0
  %9059 = vmatprep.subr.bf16.mxu0 0
  %9060 = vmatpush2.bf16.msra.mxu0 0
  %9061 = vmatprep.subr.bf16.mxu0 0
  %9062 = vmatpush2.bf16.msra.mxu0 0
  %9063 = vmatprep.subr.bf16.mxu0 0
  %9064 = vmatpush2.bf16.msra.mxu0 0
  %9065 = vmatprep.subr.bf16.mxu0 0
  %9066 = vmatpush2.bf16.msra.mxu0 0
  %9067 = vmatprep.subr.bf16.mxu0 0
  %9068 = vmatpush2.bf16.msra.mxu0 0
  %9069 = vmatprep.subr.bf16.mxu0 0
  %9070 = vmatpush2.bf16.msra.mxu0 0
  %9071 = vmatprep.subr.bf16.mxu0 0
  %9072 = vmatpush2.bf16.msra.mxu0 0
  %9073 = vmatprep.mubr.bf16.mxu0 0
  %9074 = vmatmul.mubr.bf16.gmra.mxu0 %v9036
  %v9075 = vpop.f32.mrf.mxu0
  %v9076 = vadd.f32 0.0, %v9075
  %v9077 = vpop.f32.mrf.mxu0
  %v9078 = vpop.f32.mrf.mxu0
  %v9079 = vpop.f32.mrf.mxu0
  %9080 = vdwg.mxu0
  %v9082 = vsel %vm3819, %v8435, 0
  %v9085 = vsel %vm154, %v7507, 0
  %9087 = vmatprep.subr.bf16.mxu0 0
  %9088 = vmatpush1.bf16.msra.mxu0 0
  %9089 = vmatprep.subr.bf16.mxu0 0
  %9090 = vmatpush1.bf16.msra.mxu0 0
  %9091 = vmatprep.subr.bf16.mxu0 0
  %9092 = vmatpush1.bf16.msra.mxu0 0
  %9093 = vmatprep.subr.bf16.mxu0 0
  %9094 = vmatpush1.bf16.msra.mxu0 0
  %9095 = vmatprep.subr.bf16.mxu0 0
  %9096 = vmatpush1.bf16.msra.mxu0 0
  %9097 = vmatprep.subr.bf16.mxu0 0
  %9098 = vmatpush1.bf16.msra.mxu0 0
  %9099 = vmatprep.subr.bf16.mxu0 0
  %9100 = vmatpush1.bf16.msra.mxu0 0
  %9101 = vmatprep.subr.bf16.mxu0 0
  %9102 = vmatpush1.bf16.msra.mxu0 %v9085
  %9103 = vmatprep.subr.bf16.mxu0 0
  %9104 = vmatpush2.bf16.msra.mxu0 0
  %9105 = vmatprep.subr.bf16.mxu0 0
  %9106 = vmatpush2.bf16.msra.mxu0 0
  %9107 = vmatprep.subr.bf16.mxu0 0
  %9108 = vmatpush2.bf16.msra.mxu0 0
  %9109 = vmatprep.subr.bf16.mxu0 0
  %9110 = vmatpush2.bf16.msra.mxu0 0
  %9111 = vmatprep.subr.bf16.mxu0 0
  %9112 = vmatpush2.bf16.msra.mxu0 0
  %9113 = vmatprep.subr.bf16.mxu0 0
  %9114 = vmatpush2.bf16.msra.mxu0 0
  %9115 = vmatprep.subr.bf16.mxu0 0
  %9116 = vmatpush2.bf16.msra.mxu0 0
  %9117 = vmatprep.subr.bf16.mxu0 0
  %9118 = vmatpush2.bf16.msra.mxu0 0
  %9119 = vmatprep.mubr.bf16.mxu0 0
  %9120 = vmatmul.mubr.bf16.gmra.mxu0 %v9082
  %v9121 = vpop.f32.mrf.mxu0
  %v9122 = vadd.f32 0.0, %v9121
  %v9123 = vpop.f32.mrf.mxu0
  %v9124 = vpop.f32.mrf.mxu0
  %v9125 = vpop.f32.mrf.mxu0
  %9126 = vdwg.mxu0
  %v9128 = vsel %vm3819, %v8436, 0
  %v9131 = vsel %vm154, %v7508, 0
  %9133 = vmatprep.subr.bf16.mxu0 0
  %9134 = vmatpush1.bf16.msra.mxu0 0
  %9135 = vmatprep.subr.bf16.mxu0 0
  %9136 = vmatpush1.bf16.msra.mxu0 0
  %9137 = vmatprep.subr.bf16.mxu0 0
  %9138 = vmatpush1.bf16.msra.mxu0 0
  %9139 = vmatprep.subr.bf16.mxu0 0
  %9140 = vmatpush1.bf16.msra.mxu0 0
  %9141 = vmatprep.subr.bf16.mxu0 0
  %9142 = vmatpush1.bf16.msra.mxu0 0
  %9143 = vmatprep.subr.bf16.mxu0 0
  %9144 = vmatpush1.bf16.msra.mxu0 0
  %9145 = vmatprep.subr.bf16.mxu0 0
  %9146 = vmatpush1.bf16.msra.mxu0 0
  %9147 = vmatprep.subr.bf16.mxu0 0
  %9148 = vmatpush1.bf16.msra.mxu0 %v9131
  %9149 = vmatprep.subr.bf16.mxu0 0
  %9150 = vmatpush2.bf16.msra.mxu0 0
  %9151 = vmatprep.subr.bf16.mxu0 0
  %9152 = vmatpush2.bf16.msra.mxu0 0
  %9153 = vmatprep.subr.bf16.mxu0 0
  %9154 = vmatpush2.bf16.msra.mxu0 0
  %9155 = vmatprep.subr.bf16.mxu0 0
  %9156 = vmatpush2.bf16.msra.mxu0 0
  %9157 = vmatprep.subr.bf16.mxu0 0
  %9158 = vmatpush2.bf16.msra.mxu0 0
  %9159 = vmatprep.subr.bf16.mxu0 0
  %9160 = vmatpush2.bf16.msra.mxu0 0
  %9161 = vmatprep.subr.bf16.mxu0 0
  %9162 = vmatpush2.bf16.msra.mxu0 0
  %9163 = vmatprep.subr.bf16.mxu0 0
  %9164 = vmatpush2.bf16.msra.mxu0 0
  %9165 = vmatprep.mubr.bf16.mxu0 0
  %9166 = vmatmul.mubr.bf16.gmra.mxu0 %v9128
  %v9167 = vpop.f32.mrf.mxu0
  %v9168 = vadd.f32 0.0, %v9167
  %v9169 = vpop.f32.mrf.mxu0
  %v9170 = vpop.f32.mrf.mxu0
  %v9171 = vpop.f32.mrf.mxu0
  %9172 = vdwg.mxu0
  %v9173 = vcombine.low %v8478, %v8846
  %v9174 = vcombine.high %v8478, %v8846
  %v9176 = vunpack.c.l.s4 1983009808
  %v9177 = vunpack.c.0.s8 %v9176
  %v9178 = vlaneseq
  %v9179 = vshrl.u32 %v9178, 7
  %v9180 = vsub.s32 %v9177, %v9179
  %v9181 = vrot.slane %v9173, %v9180
  %v9183 = vunpack.c.l.s4 1983009808
  %v9184 = vunpack.c.0.s8 %v9183
  %v9185 = vlaneseq
  %v9186 = vshrl.u32 %v9185, 7
  %v9187 = vsub.s32 %v9184, %v9186
  %v9188 = vrot.slane %v9174, %v9187
  %v9189 = vcombine.low %v8662, %v9030
  %v9190 = vcombine.high %v8662, %v9030
  %v9192 = vunpack.c.l.s4 1983009808
  %v9193 = vunpack.c.0.s8 %v9192
  %v9194 = vlaneseq
  %v9195 = vshrl.u32 %v9194, 7
  %v9196 = vsub.s32 %v9193, %v9195
  %v9197 = vrot.slane %v9189, %v9196
  %v9199 = vunpack.c.l.s4 1983009808
  %v9200 = vunpack.c.0.s8 %v9199
  %v9201 = vlaneseq
  %v9202 = vshrl.u32 %v9201, 7
  %v9203 = vsub.s32 %v9200, %v9202
  %v9204 = vrot.slane %v9190, %v9203
  %v9205 = vcombine.low %v9181, %v9197
  %v9206 = vcombine.high %v9181, %v9197
  %v9208 = vunpack.c.l.s4 1934713408
  %v9209 = vunpack.c.0.s8 %v9208
  %v9210 = vlaneseq
  %v9211 = vshrl.u32 %v9210, 7
  %v9212 = vsub.s32 %v9209, %v9211
  %v9213 = vrot.slane %v9205, %v9212
  %v9215 = vunpack.c.l.s4 1934713408
  %v9216 = vunpack.c.0.s8 %v9215
  %v9217 = vlaneseq
  %v9218 = vshrl.u32 %v9217, 7
  %v9219 = vsub.s32 %v9216, %v9218
  %v9220 = vrot.slane %v9206, %v9219
  %v9221 = vcombine.low %v9188, %v9204
  %v9222 = vcombine.high %v9188, %v9204
  %v9224 = vunpack.c.l.s4 1934713408
  %v9225 = vunpack.c.0.s8 %v9224
  %v9226 = vlaneseq
  %v9227 = vshrl.u32 %v9226, 7
  %v9228 = vsub.s32 %v9225, %v9227
  %v9229 = vrot.slane %v9221, %v9228
  %v9231 = vunpack.c.l.s4 1934713408
  %v9232 = vunpack.c.0.s8 %v9231
  %v9233 = vlaneseq
  %v9234 = vshrl.u32 %v9233, 7
  %v9235 = vsub.s32 %v9232, %v9234
  %v9236 = vrot.slane %v9222, %v9235
  %v9237 = vcombine.high %v9213, 0.0
  %v9238 = vcombine.high %v9220, 0.0
  %v9239 = vcombine.high %v9229, 0.0
  %v9240 = vcombine.high %v9236, 0.0
  %v9241 = vcombine.low %v8524, %v8892
  %v9242 = vcombine.high %v8524, %v8892
  %v9244 = vunpack.c.l.s4 1983009808
  %v9245 = vunpack.c.0.s8 %v9244
  %v9246 = vlaneseq
  %v9247 = vshrl.u32 %v9246, 7
  %v9248 = vsub.s32 %v9245, %v9247
  %v9249 = vrot.slane %v9241, %v9248
  %v9251 = vunpack.c.l.s4 1983009808
  %v9252 = vunpack.c.0.s8 %v9251
  %v9253 = vlaneseq
  %v9254 = vshrl.u32 %v9253, 7
  %v9255 = vsub.s32 %v9252, %v9254
  %v9256 = vrot.slane %v9242, %v9255
  %v9257 = vcombine.low %v8708, %v9076
  %v9258 = vcombine.high %v8708, %v9076
  %v9260 = vunpack.c.l.s4 1983009808
  %v9261 = vunpack.c.0.s8 %v9260
  %v9262 = vlaneseq
  %v9263 = vshrl.u32 %v9262, 7
  %v9264 = vsub.s32 %v9261, %v9263
  %v9265 = vrot.slane %v9257, %v9264
  %v9267 = vunpack.c.l.s4 1983009808
  %v9268 = vunpack.c.0.s8 %v9267
  %v9269 = vlaneseq
  %v9270 = vshrl.u32 %v9269, 7
  %v9271 = vsub.s32 %v9268, %v9270
  %v9272 = vrot.slane %v9258, %v9271
  %v9273 = vcombine.low %v9249, %v9265
  %v9274 = vcombine.high %v9249, %v9265
  %v9276 = vunpack.c.l.s4 1934713408
  %v9277 = vunpack.c.0.s8 %v9276
  %v9278 = vlaneseq
  %v9279 = vshrl.u32 %v9278, 7
  %v9280 = vsub.s32 %v9277, %v9279
  %v9281 = vrot.slane %v9273, %v9280
  %v9283 = vunpack.c.l.s4 1934713408
  %v9284 = vunpack.c.0.s8 %v9283
  %v9285 = vlaneseq
  %v9286 = vshrl.u32 %v9285, 7
  %v9287 = vsub.s32 %v9284, %v9286
  %v9288 = vrot.slane %v9274, %v9287
  %v9289 = vcombine.low %v9256, %v9272
  %v9290 = vcombine.high %v9256, %v9272
  %v9292 = vunpack.c.l.s4 1934713408
  %v9293 = vunpack.c.0.s8 %v9292
  %v9294 = vlaneseq
  %v9295 = vshrl.u32 %v9294, 7
  %v9296 = vsub.s32 %v9293, %v9295
  %v9297 = vrot.slane %v9289, %v9296
  %v9299 = vunpack.c.l.s4 1934713408
  %v9300 = vunpack.c.0.s8 %v9299
  %v9301 = vlaneseq
  %v9302 = vshrl.u32 %v9301, 7
  %v9303 = vsub.s32 %v9300, %v9302
  %v9304 = vrot.slane %v9290, %v9303
  %v9305 = vcombine.high %v9281, 0.0
  %v9306 = vcombine.high %v9288, 0.0
  %v9307 = vcombine.high %v9297, 0.0
  %v9308 = vcombine.high %v9304, 0.0
  %v9309 = vcombine.low %v8570, %v8938
  %v9310 = vcombine.high %v8570, %v8938
  %v9312 = vunpack.c.l.s4 1983009808
  %v9313 = vunpack.c.0.s8 %v9312
  %v9314 = vlaneseq
  %v9315 = vshrl.u32 %v9314, 7
  %v9316 = vsub.s32 %v9313, %v9315
  %v9317 = vrot.slane %v9309, %v9316
  %v9319 = vunpack.c.l.s4 1983009808
  %v9320 = vunpack.c.0.s8 %v9319
  %v9321 = vlaneseq
  %v9322 = vshrl.u32 %v9321, 7
  %v9323 = vsub.s32 %v9320, %v9322
  %v9324 = vrot.slane %v9310, %v9323
  %v9325 = vcombine.low %v8754, %v9122
  %v9326 = vcombine.high %v8754, %v9122
  %v9328 = vunpack.c.l.s4 1983009808
  %v9329 = vunpack.c.0.s8 %v9328
  %v9330 = vlaneseq
  %v9331 = vshrl.u32 %v9330, 7
  %v9332 = vsub.s32 %v9329, %v9331
  %v9333 = vrot.slane %v9325, %v9332
  %v9335 = vunpack.c.l.s4 1983009808
  %v9336 = vunpack.c.0.s8 %v9335
  %v9337 = vlaneseq
  %v9338 = vshrl.u32 %v9337, 7
  %v9339 = vsub.s32 %v9336, %v9338
  %v9340 = vrot.slane %v9326, %v9339
  %v9341 = vcombine.low %v9317, %v9333
  %v9342 = vcombine.high %v9317, %v9333
  %v9344 = vunpack.c.l.s4 1934713408
  %v9345 = vunpack.c.0.s8 %v9344
  %v9346 = vlaneseq
  %v9347 = vshrl.u32 %v9346, 7
  %v9348 = vsub.s32 %v9345, %v9347
  %v9349 = vrot.slane %v9341, %v9348
  %v9351 = vunpack.c.l.s4 1934713408
  %v9352 = vunpack.c.0.s8 %v9351
  %v9353 = vlaneseq
  %v9354 = vshrl.u32 %v9353, 7
  %v9355 = vsub.s32 %v9352, %v9354
  %v9356 = vrot.slane %v9342, %v9355
  %v9357 = vcombine.low %v9324, %v9340
  %v9358 = vcombine.high %v9324, %v9340
  %v9360 = vunpack.c.l.s4 1934713408
  %v9361 = vunpack.c.0.s8 %v9360
  %v9362 = vlaneseq
  %v9363 = vshrl.u32 %v9362, 7
  %v9364 = vsub.s32 %v9361, %v9363
  %v9365 = vrot.slane %v9357, %v9364
  %v9367 = vunpack.c.l.s4 1934713408
  %v9368 = vunpack.c.0.s8 %v9367
  %v9369 = vlaneseq
  %v9370 = vshrl.u32 %v9369, 7
  %v9371 = vsub.s32 %v9368, %v9370
  %v9372 = vrot.slane %v9358, %v9371
  %v9373 = vcombine.high %v9349, 0.0
  %v9374 = vcombine.high %v9356, 0.0
  %v9375 = vcombine.high %v9365, 0.0
  %v9376 = vcombine.high %v9372, 0.0
  %v9377 = vcombine.low %v8616, %v8984
  %v9378 = vcombine.high %v8616, %v8984
  %v9380 = vunpack.c.l.s4 1983009808
  %v9381 = vunpack.c.0.s8 %v9380
  %v9382 = vlaneseq
  %v9383 = vshrl.u32 %v9382, 7
  %v9384 = vsub.s32 %v9381, %v9383
  %v9385 = vrot.slane %v9377, %v9384
  %v9387 = vunpack.c.l.s4 1983009808
  %v9388 = vunpack.c.0.s8 %v9387
  %v9389 = vlaneseq
  %v9390 = vshrl.u32 %v9389, 7
  %v9391 = vsub.s32 %v9388, %v9390
  %v9392 = vrot.slane %v9378, %v9391
  %v9393 = vcombine.low %v8800, %v9168
  %v9394 = vcombine.high %v8800, %v9168
  %v9396 = vunpack.c.l.s4 1983009808
  %v9397 = vunpack.c.0.s8 %v9396
  %v9398 = vlaneseq
  %v9399 = vshrl.u32 %v9398, 7
  %v9400 = vsub.s32 %v9397, %v9399
  %v9401 = vrot.slane %v9393, %v9400
  %v9403 = vunpack.c.l.s4 1983009808
  %v9404 = vunpack.c.0.s8 %v9403
  %v9405 = vlaneseq
  %v9406 = vshrl.u32 %v9405, 7
  %v9407 = vsub.s32 %v9404, %v9406
  %v9408 = vrot.slane %v9394, %v9407
  %v9409 = vcombine.low %v9385, %v9401
  %v9410 = vcombine.high %v9385, %v9401
  %v9412 = vunpack.c.l.s4 1934713408
  %v9413 = vunpack.c.0.s8 %v9412
  %v9414 = vlaneseq
  %v9415 = vshrl.u32 %v9414, 7
  %v9416 = vsub.s32 %v9413, %v9415
  %v9417 = vrot.slane %v9409, %v9416
  %v9419 = vunpack.c.l.s4 1934713408
  %v9420 = vunpack.c.0.s8 %v9419
  %v9421 = vlaneseq
  %v9422 = vshrl.u32 %v9421, 7
  %v9423 = vsub.s32 %v9420, %v9422
  %v9424 = vrot.slane %v9410, %v9423
  %v9425 = vcombine.low %v9392, %v9408
  %v9426 = vcombine.high %v9392, %v9408
  %v9428 = vunpack.c.l.s4 1934713408
  %v9429 = vunpack.c.0.s8 %v9428
  %v9430 = vlaneseq
  %v9431 = vshrl.u32 %v9430, 7
  %v9432 = vsub.s32 %v9429, %v9431
  %v9433 = vrot.slane %v9425, %v9432
  %v9435 = vunpack.c.l.s4 1934713408
  %v9436 = vunpack.c.0.s8 %v9435
  %v9437 = vlaneseq
  %v9438 = vshrl.u32 %v9437, 7
  %v9439 = vsub.s32 %v9436, %v9438
  %v9440 = vrot.slane %v9426, %v9439
  %v9441 = vcombine.high %v9417, 0.0
  %v9442 = vcombine.high %v9424, 0.0
  %v9443 = vcombine.high %v9433, 0.0
  %v9444 = vcombine.high %v9440, 0.0
  %v9445 = vcombine.low %v9213, %v9220
  %v9447 = vunpack.c.l.s4 1983009808
  %v9448 = vunpack.c.0.s8 %v9447
  %v9449 = vlaneseq
  %v9450 = vshrl.u32 %v9449, 7
  %v9451 = vsub.s32 %v9448, %v9450
  %v9452 = vrot.slane %v9445, %v9451
  %v9453 = vcombine.low %v9237, %v9238
  %v9455 = vunpack.c.l.s4 1983009808
  %v9456 = vunpack.c.0.s8 %v9455
  %v9457 = vlaneseq
  %v9458 = vshrl.u32 %v9457, 7
  %v9459 = vsub.s32 %v9456, %v9458
  %v9460 = vrot.slane %v9453, %v9459
  %v9461 = vcombine.low %v9229, %v9236
  %v9463 = vunpack.c.l.s4 1983009808
  %v9464 = vunpack.c.0.s8 %v9463
  %v9465 = vlaneseq
  %v9466 = vshrl.u32 %v9465, 7
  %v9467 = vsub.s32 %v9464, %v9466
  %v9468 = vrot.slane %v9461, %v9467
  %v9469 = vcombine.low %v9239, %v9240
  %v9471 = vunpack.c.l.s4 1983009808
  %v9472 = vunpack.c.0.s8 %v9471
  %v9473 = vlaneseq
  %v9474 = vshrl.u32 %v9473, 7
  %v9475 = vsub.s32 %v9472, %v9474
  %v9476 = vrot.slane %v9469, %v9475
  %v9477 = vcombine.low %v9452, %v9460
  %v9478 = vcombine.high %v9452, %v9460
  %v9480 = vunpack.c.l.s4 1934713408
  %v9481 = vunpack.c.0.s8 %v9480
  %v9482 = vlaneseq
  %v9483 = vshrl.u32 %v9482, 7
  %v9484 = vsub.s32 %v9481, %v9483
  %v9485 = vrot.slane %v9477, %v9484
  %v9487 = vunpack.c.l.s4 1934713408
  %v9488 = vunpack.c.0.s8 %v9487
  %v9489 = vlaneseq
  %v9490 = vshrl.u32 %v9489, 7
  %v9491 = vsub.s32 %v9488, %v9490
  %v9492 = vrot.slane %v9478, %v9491
  %v9493 = vcombine.low %v9468, %v9476
  %v9494 = vcombine.high %v9468, %v9476
  %v9496 = vunpack.c.l.s4 1934713408
  %v9497 = vunpack.c.0.s8 %v9496
  %v9498 = vlaneseq
  %v9499 = vshrl.u32 %v9498, 7
  %v9500 = vsub.s32 %v9497, %v9499
  %v9501 = vrot.slane %v9493, %v9500
  %v9503 = vunpack.c.l.s4 1934713408
  %v9504 = vunpack.c.0.s8 %v9503
  %v9505 = vlaneseq
  %v9506 = vshrl.u32 %v9505, 7
  %v9507 = vsub.s32 %v9504, %v9506
  %v9508 = vrot.slane %v9494, %v9507
  %v9509 = vcombine.low %v9485, %v9501
  %v9510 = vcombine.high %v9485, %v9501
  %v9511 = vcombine.low %v9492, %v9508
  %v9512 = vcombine.high %v9492, %v9508
  %v9513 = vcombine.low %v9281, %v9288
  %v9515 = vunpack.c.l.s4 1983009808
  %v9516 = vunpack.c.0.s8 %v9515
  %v9517 = vlaneseq
  %v9518 = vshrl.u32 %v9517, 7
  %v9519 = vsub.s32 %v9516, %v9518
  %v9520 = vrot.slane %v9513, %v9519
  %v9521 = vcombine.low %v9305, %v9306
  %v9523 = vunpack.c.l.s4 1983009808
  %v9524 = vunpack.c.0.s8 %v9523
  %v9525 = vlaneseq
  %v9526 = vshrl.u32 %v9525, 7
  %v9527 = vsub.s32 %v9524, %v9526
  %v9528 = vrot.slane %v9521, %v9527
  %v9529 = vcombine.low %v9297, %v9304
  %v9531 = vunpack.c.l.s4 1983009808
  %v9532 = vunpack.c.0.s8 %v9531
  %v9533 = vlaneseq
  %v9534 = vshrl.u32 %v9533, 7
  %v9535 = vsub.s32 %v9532, %v9534
  %v9536 = vrot.slane %v9529, %v9535
  %v9537 = vcombine.low %v9307, %v9308
  %v9539 = vunpack.c.l.s4 1983009808
  %v9540 = vunpack.c.0.s8 %v9539
  %v9541 = vlaneseq
  %v9542 = vshrl.u32 %v9541, 7
  %v9543 = vsub.s32 %v9540, %v9542
  %v9544 = vrot.slane %v9537, %v9543
  %v9545 = vcombine.low %v9520, %v9528
  %v9546 = vcombine.high %v9520, %v9528
  %v9548 = vunpack.c.l.s4 1934713408
  %v9549 = vunpack.c.0.s8 %v9548
  %v9550 = vlaneseq
  %v9551 = vshrl.u32 %v9550, 7
  %v9552 = vsub.s32 %v9549, %v9551
  %v9553 = vrot.slane %v9545, %v9552
  %v9555 = vunpack.c.l.s4 1934713408
  %v9556 = vunpack.c.0.s8 %v9555
  %v9557 = vlaneseq
  %v9558 = vshrl.u32 %v9557, 7
  %v9559 = vsub.s32 %v9556, %v9558
  %v9560 = vrot.slane %v9546, %v9559
  %v9561 = vcombine.low %v9536, %v9544
  %v9562 = vcombine.high %v9536, %v9544
  %v9564 = vunpack.c.l.s4 1934713408
  %v9565 = vunpack.c.0.s8 %v9564
  %v9566 = vlaneseq
  %v9567 = vshrl.u32 %v9566, 7
  %v9568 = vsub.s32 %v9565, %v9567
  %v9569 = vrot.slane %v9561, %v9568
  %v9571 = vunpack.c.l.s4 1934713408
  %v9572 = vunpack.c.0.s8 %v9571
  %v9573 = vlaneseq
  %v9574 = vshrl.u32 %v9573, 7
  %v9575 = vsub.s32 %v9572, %v9574
  %v9576 = vrot.slane %v9562, %v9575
  %v9577 = vcombine.low %v9553, %v9569
  %v9578 = vcombine.high %v9553, %v9569
  %v9579 = vcombine.low %v9560, %v9576
  %v9580 = vcombine.high %v9560, %v9576
  %v9581 = vcombine.low %v9349, %v9356
  %v9583 = vunpack.c.l.s4 1983009808
  %v9584 = vunpack.c.0.s8 %v9583
  %v9585 = vlaneseq
  %v9586 = vshrl.u32 %v9585, 7
  %v9587 = vsub.s32 %v9584, %v9586
  %v9588 = vrot.slane %v9581, %v9587
  %v9589 = vcombine.low %v9373, %v9374
  %v9591 = vunpack.c.l.s4 1983009808
  %v9592 = vunpack.c.0.s8 %v9591
  %v9593 = vlaneseq
  %v9594 = vshrl.u32 %v9593, 7
  %v9595 = vsub.s32 %v9592, %v9594
  %v9596 = vrot.slane %v9589, %v9595
  %v9597 = vcombine.low %v9365, %v9372
  %v9599 = vunpack.c.l.s4 1983009808
  %v9600 = vunpack.c.0.s8 %v9599
  %v9601 = vlaneseq
  %v9602 = vshrl.u32 %v9601, 7
  %v9603 = vsub.s32 %v9600, %v9602
  %v9604 = vrot.slane %v9597, %v9603
  %v9605 = vcombine.low %v9375, %v9376
  %v9607 = vunpack.c.l.s4 1983009808
  %v9608 = vunpack.c.0.s8 %v9607
  %v9609 = vlaneseq
  %v9610 = vshrl.u32 %v9609, 7
  %v9611 = vsub.s32 %v9608, %v9610
  %v9612 = vrot.slane %v9605, %v9611
  %v9613 = vcombine.low %v9588, %v9596
  %v9614 = vcombine.high %v9588, %v9596
  %v9616 = vunpack.c.l.s4 1934713408
  %v9617 = vunpack.c.0.s8 %v9616
  %v9618 = vlaneseq
  %v9619 = vshrl.u32 %v9618, 7
  %v9620 = vsub.s32 %v9617, %v9619
  %v9621 = vrot.slane %v9613, %v9620
  %v9623 = vunpack.c.l.s4 1934713408
  %v9624 = vunpack.c.0.s8 %v9623
  %v9625 = vlaneseq
  %v9626 = vshrl.u32 %v9625, 7
  %v9627 = vsub.s32 %v9624, %v9626
  %v9628 = vrot.slane %v9614, %v9627
  %v9629 = vcombine.low %v9604, %v9612
  %v9630 = vcombine.high %v9604, %v9612
  %v9632 = vunpack.c.l.s4 1934713408
  %v9633 = vunpack.c.0.s8 %v9632
  %v9634 = vlaneseq
  %v9635 = vshrl.u32 %v9634, 7
  %v9636 = vsub.s32 %v9633, %v9635
  %v9637 = vrot.slane %v9629, %v9636
  %v9639 = vunpack.c.l.s4 1934713408
  %v9640 = vunpack.c.0.s8 %v9639
  %v9641 = vlaneseq
  %v9642 = vshrl.u32 %v9641, 7
  %v9643 = vsub.s32 %v9640, %v9642
  %v9644 = vrot.slane %v9630, %v9643
  %v9645 = vcombine.low %v9621, %v9637
  %v9646 = vcombine.high %v9621, %v9637
  %v9647 = vcombine.low %v9628, %v9644
  %v9648 = vcombine.high %v9628, %v9644
  %v9649 = vcombine.low %v9417, %v9424
  %v9651 = vunpack.c.l.s4 1983009808
  %v9652 = vunpack.c.0.s8 %v9651
  %v9653 = vlaneseq
  %v9654 = vshrl.u32 %v9653, 7
  %v9655 = vsub.s32 %v9652, %v9654
  %v9656 = vrot.slane %v9649, %v9655
  %v9657 = vcombine.low %v9441, %v9442
  %v9659 = vunpack.c.l.s4 1983009808
  %v9660 = vunpack.c.0.s8 %v9659
  %v9661 = vlaneseq
  %v9662 = vshrl.u32 %v9661, 7
  %v9663 = vsub.s32 %v9660, %v9662
  %v9664 = vrot.slane %v9657, %v9663
  %v9665 = vcombine.low %v9433, %v9440
  %v9667 = vunpack.c.l.s4 1983009808
  %v9668 = vunpack.c.0.s8 %v9667
  %v9669 = vlaneseq
  %v9670 = vshrl.u32 %v9669, 7
  %v9671 = vsub.s32 %v9668, %v9670
  %v9672 = vrot.slane %v9665, %v9671
  %v9673 = vcombine.low %v9443, %v9444
  %v9675 = vunpack.c.l.s4 1983009808
  %v9676 = vunpack.c.0.s8 %v9675
  %v9677 = vlaneseq
  %v9678 = vshrl.u32 %v9677, 7
  %v9679 = vsub.s32 %v9676, %v9678
  %v9680 = vrot.slane %v9673, %v9679
  %v9681 = vcombine.low %v9656, %v9664
  %v9682 = vcombine.high %v9656, %v9664
  %v9684 = vunpack.c.l.s4 1934713408
  %v9685 = vunpack.c.0.s8 %v9684
  %v9686 = vlaneseq
  %v9687 = vshrl.u32 %v9686, 7
  %v9688 = vsub.s32 %v9685, %v9687
  %v9689 = vrot.slane %v9681, %v9688
  %v9691 = vunpack.c.l.s4 1934713408
  %v9692 = vunpack.c.0.s8 %v9691
  %v9693 = vlaneseq
  %v9694 = vshrl.u32 %v9693, 7
  %v9695 = vsub.s32 %v9692, %v9694
  %v9696 = vrot.slane %v9682, %v9695
  %v9697 = vcombine.low %v9672, %v9680
  %v9698 = vcombine.high %v9672, %v9680
  %v9700 = vunpack.c.l.s4 1934713408
  %v9701 = vunpack.c.0.s8 %v9700
  %v9702 = vlaneseq
  %v9703 = vshrl.u32 %v9702, 7
  %v9704 = vsub.s32 %v9701, %v9703
  %v9705 = vrot.slane %v9697, %v9704
  %v9707 = vunpack.c.l.s4 1934713408
  %v9708 = vunpack.c.0.s8 %v9707
  %v9709 = vlaneseq
  %v9710 = vshrl.u32 %v9709, 7
  %v9711 = vsub.s32 %v9708, %v9710
  %v9712 = vrot.slane %v9698, %v9711
  %v9713 = vcombine.low %v9689, %v9705
  %v9714 = vcombine.high %v9689, %v9705
  %v9715 = vcombine.low %v9696, %v9712
  %v9716 = vcombine.high %v9696, %v9712
  %9721 = vrot.lane.b32.xlu0 %v9510, 32
  %v9722 = vpop.permute.xlu0 %9721
  %9723 = vrot.lane.b32.xlu0 %v9578, 32
  %v9724 = vpop.permute.xlu0 %9723
  %9725 = vrot.lane.b32.xlu0 %v9646, 32
  %v9726 = vpop.permute.xlu0 %9725
  %9727 = vrot.lane.b32.xlu0 %v9714, 32
  %v9728 = vpop.permute.xlu0 %9727
  %9737 = vrot.lane.b32.xlu0 %v9511, 64
  %v9738 = vpop.permute.xlu0 %9737
  %9739 = vrot.lane.b32.xlu0 %v9579, 64
  %v9740 = vpop.permute.xlu0 %9739
  %9741 = vrot.lane.b32.xlu0 %v9647, 64
  %v9742 = vpop.permute.xlu0 %9741
  %9743 = vrot.lane.b32.xlu0 %v9715, 64
  %v9744 = vpop.permute.xlu0 %9743
  %9753 = vrot.lane.b32.xlu0 %v9512, 96
  %v9754 = vpop.permute.xlu0 %9753
  %9755 = vrot.lane.b32.xlu0 %v9580, 96
  %v9756 = vpop.permute.xlu0 %9755
  %9757 = vrot.lane.b32.xlu0 %v9648, 96
  %v9758 = vpop.permute.xlu0 %9757
  %9759 = vrot.lane.b32.xlu0 %v9716, 96
  %v9760 = vpop.permute.xlu0 %9759
  %v9765 = vsel %vm3082, %v9509, %v9722
  %v9766 = vsel %vm3082, %v9577, %v9724
  %v9767 = vsel %vm3082, %v9645, %v9726
  %v9768 = vsel %vm3082, %v9713, %v9728
  %v9769 = vsel %vm5344, %v9765, %v9738
  %v9770 = vsel %vm5344, %v9766, %v9740
  %v9771 = vsel %vm5344, %v9767, %v9742
  %v9772 = vsel %vm5344, %v9768, %v9744
  %v9773 = vsel %vm5349, %v9769, %v9754
  %v9774 = vsel %vm5349, %v9770, %v9756
  %v9775 = vsel %vm5349, %v9771, %v9758
  %v9776 = vsel %vm5349, %v9772, %v9760
  %v9777 = vpack.c.bf16 %v9774, %v9773
  %v9778 = vpack.c.bf16 %v9776, %v9775
  %s9779 = scalar_lea.vmem %s8, 64
  %v9780 = vld [vmem:[%s9779] sm:$0xf]
  %v9781 = vld [vmem:[%s9779 + $0x4] sm:$0xf]
  %v9782 = vld [vmem:[%s9779 + $0x8] sm:$0xf]
  %v9783 = vld [vmem:[%s9779 + $0xc] sm:$0xf]
  %v9784 = vld [vmem:[%s9779 + $0x10] sm:$0xf]
  %v9785 = vld [vmem:[%s9779 + $0x14] sm:$0xf]
  %v9786 = vld [vmem:[%s9779 + $0x18] sm:$0xf]
  %v9787 = vld [vmem:[%s9779 + $0x1c] sm:$0xf]
  %v9788 = vld [vmem:[%s9779 + $0x20] sm:$0xf]
  %v9789 = vld [vmem:[%s9779 + $0x24] sm:$0xf]
  %v9790 = vld [vmem:[%s9779 + $0x28] sm:$0xf]
  %v9791 = vld [vmem:[%s9779 + $0x2c] sm:$0xf]
  %v9792 = vld [vmem:[%s9779 + $0x30] sm:$0xf]
  %v9793 = vld [vmem:[%s9779 + $0x34] sm:$0xf]
  %v9794 = vld [vmem:[%s9779 + $0x38] sm:$0xf]
  %v9795 = vld [vmem:[%s9779 + $0x3c] sm:$0xf]
  %v9796 = vlaneseq
  %v9797 = vshrl.u32 %v9796, 7
  %v9798 = vsub.s32 1, %v9797
  %v9799 = vrot.slane %v5539, %v9798
  %v9816 = vunpack.c.l.b16 %v9780
  %v9817 = vunpack.c.l.b16 %v9781
  %v9818 = vunpack.c.l.b16 %v9782
  %v9819 = vunpack.c.l.b16 %v9783
  %v9820 = vunpack.c.l.b16 %v9784
  %v9821 = vunpack.c.l.b16 %v9785
  %v9822 = vunpack.c.l.b16 %v9786
  %v9823 = vunpack.c.l.b16 %v9787
  %v9824 = vunpack.c.l.b16 %v9788
  %v9825 = vunpack.c.l.b16 %v9789
  %v9826 = vunpack.c.l.b16 %v9790
  %v9827 = vunpack.c.l.b16 %v9791
  %v9828 = vunpack.c.l.b16 %v9792
  %v9829 = vunpack.c.l.b16 %v9793
  %v9830 = vunpack.c.l.b16 %v9794
  %v9831 = vunpack.c.l.b16 %v9795
  %v9832 = vpack.c.b16 %v9817, %v9816
  %v9833 = vpack.c.b16 %v9819, %v9818
  %v9834 = vpack.c.b16 %v9821, %v9820
  %v9835 = vpack.c.b16 %v9823, %v9822
  %v9836 = vpack.c.b16 %v9825, %v9824
  %v9837 = vpack.c.b16 %v9827, %v9826
  %v9838 = vpack.c.b16 %v9829, %v9828
  %v9839 = vpack.c.b16 %v9831, %v9830
  %9848 = vmatprep.subr.bf16.mxu0 0
  %9849 = vmatpush1.bf16.msra.mxu0 %v9839
  %9850 = vmatprep.subr.bf16.mxu0 0
  %9851 = vmatpush1.bf16.msra.mxu0 %v9838
  %9852 = vmatprep.subr.bf16.mxu0 0
  %9853 = vmatpush1.bf16.msra.mxu0 %v9837
  %9854 = vmatprep.subr.bf16.mxu0 0
  %9855 = vmatpush1.bf16.msra.mxu0 %v9836
  %9856 = vmatprep.subr.bf16.mxu0 0
  %9857 = vmatpush1.bf16.msra.mxu0 %v9835
  %9858 = vmatprep.subr.bf16.mxu0 0
  %9859 = vmatpush1.bf16.msra.mxu0 %v9834
  %9860 = vmatprep.subr.bf16.mxu0 0
  %9861 = vmatpush1.bf16.msra.mxu0 %v9833
  %9862 = vmatprep.subr.bf16.mxu0 0
  %9863 = vmatpush1.bf16.msra.mxu0 %v9832
  %9864 = vmatprep.subr.bf16.mxu0 0
  %9865 = vmatpush2.bf16.msra.mxu0 0
  %9866 = vmatprep.subr.bf16.mxu0 0
  %9867 = vmatpush2.bf16.msra.mxu0 0
  %9868 = vmatprep.subr.bf16.mxu0 0
  %9869 = vmatpush2.bf16.msra.mxu0 0
  %9870 = vmatprep.subr.bf16.mxu0 0
  %9871 = vmatpush2.bf16.msra.mxu0 0
  %9872 = vmatprep.subr.bf16.mxu0 0
  %9873 = vmatpush2.bf16.msra.mxu0 0
  %9874 = vmatprep.subr.bf16.mxu0 0
  %9875 = vmatpush2.bf16.msra.mxu0 0
  %9876 = vmatprep.subr.bf16.mxu0 0
  %9877 = vmatpush2.bf16.msra.mxu0 0
  %9878 = vmatprep.subr.bf16.mxu0 0
  %9879 = vmatpush2.bf16.msra.mxu0 0
  %9880 = vmatprep.mubr.bf16.mxu0 0
  %9881 = vmatmul.mubr.bf16.gmra.mxu0 %v9777
  %v9882 = vpop.f32.mrf.mxu0
  %v9883 = vadd.f32 %v9799, %v9882
  %v9884 = vpop.f32.mrf.mxu0
  %v9885 = vpop.f32.mrf.mxu0
  %v9886 = vadd.f32 %v9799, %v9885
  %v9887 = vpop.f32.mrf.mxu0
  %9888 = vmatprep.mubr.bf16.mxu0 0
  %9889 = vmatmul.mubr.bf16.gmra.mxu0 %v9778
  %v9890 = vpop.f32.mrf.mxu0
  %v9891 = vadd.f32 %v9799, %v9890
  %v9892 = vpop.f32.mrf.mxu0
  %v9893 = vpop.f32.mrf.mxu0
  %v9894 = vadd.f32 %v9799, %v9893
  %v9895 = vpop.f32.mrf.mxu0
  %9896 = vdwg.mxu0
  %v9897 = vadd.f32 %v5534, %v9883
  %v9898 = vadd.f32 %v5535, %v9886
  %v9899 = vadd.f32 %v5536, %v9891
  %v9900 = vadd.f32 %v5537, %v9894
  %9901 = vadd.xlane.f32.xlu0 %v9897
  %v9902 = vpop.xlane.xlu0 %9901
  %9903 = vadd.xlane.f32.xlu0 %v9898
  %v9904 = vpop.xlane.xlu0 %9903
  %9905 = vadd.xlane.f32.xlu0 %v9899
  %v9906 = vpop.xlane.xlu0 %9905
  %9907 = vadd.xlane.f32.xlu0 %v9900
  %v9908 = vpop.xlane.xlu0 %9907
  %v9909 = vmul.f32 %v9902, %v5485
  %v9910 = vmul.f32 %v9904, %v5485
  %v9911 = vmul.f32 %v9906, %v5485
  %v9912 = vmul.f32 %v9908, %v5485
  %v9913 = vsub.f32 %v9897, %v9909
  %v9914 = vsub.f32 %v9898, %v9910
  %v9915 = vsub.f32 %v9899, %v9911
  %v9916 = vsub.f32 %v9900, %v9912
  %v9917 = vmul.f32 %v9913, %v9913
  %v9918 = vmul.f32 %v9914, %v9914
  %v9919 = vmul.f32 %v9915, %v9915
  %v9920 = vmul.f32 %v9916, %v9916
  %9921 = vadd.xlane.f32.xlu0 %v9917
  %v9922 = vpop.xlane.xlu0 %9921
  %9923 = vadd.xlane.f32.xlu0 %v9918
  %v9924 = vpop.xlane.xlu0 %9923
  %9925 = vadd.xlane.f32.xlu0 %v9919
  %v9926 = vpop.xlane.xlu0 %9925
  %9927 = vadd.xlane.f32.xlu0 %v9920
  %v9928 = vpop.xlane.xlu0 %9927
  %v9929 = vmul.f32 %v9922, %v5485
  %v9930 = vmul.f32 %v9924, %v5485
  %v9931 = vmul.f32 %v9926, %v5485
  %v9932 = vmul.f32 %v9928, %v5485
  %v9933 = vadd.f32 %v9929, 1e-05
  %v9934 = vadd.f32 %v9930, 1e-05
  %v9935 = vadd.f32 %v9931, 1e-05
  %v9936 = vadd.f32 %v9932, 1e-05
  %v9937 = vrsqrt.pop %v9933
  %v9938 = vrsqrt.pop %v9934
  %v9939 = vrsqrt.pop %v9935
  %v9940 = vrsqrt.pop %v9936
  %v9941 = vmul.f32 %v9913, %v9937
  %v9942 = vmul.f32 %v9914, %v9938
  %v9943 = vmul.f32 %v9915, %v9939
  %v9944 = vmul.f32 %v9916, %v9940
  %v9945 = vlaneseq
  %v9946 = vshrl.u32 %v9945, 7
  %v9947 = vsub.s32 2, %v9946
  %v9948 = vrot.slane %v5539, %v9947
  %v9949 = vmul.f32 %v9941, %v9948
  %v9950 = vmul.f32 %v9942, %v9948
  %v9951 = vmul.f32 %v9943, %v9948
  %v9952 = vmul.f32 %v9944, %v9948
  %v9953 = vlaneseq
  %v9954 = vshrl.u32 %v9953, 7
  %v9955 = vsub.s32 3, %v9954
  %v9956 = vrot.slane %v5539, %v9955
  %v9957 = vadd.f32 %v9949, %v9956
  %v9958 = vadd.f32 %v9950, %v9956
  %v9959 = vadd.f32 %v9951, %v9956
  %v9960 = vadd.f32 %v9952, %v9956
  %v9961 = vpack.c.bf16 %v9958, %v9957
  %v9962 = vpack.c.bf16 %v9960, %v9959
  %v9963 = vld [vmem:[%s9] sm:$0xf]
  %v9964 = vld [vmem:[%s9 + $0x4] sm:$0xf]
  %v9965 = vld [vmem:[%s9 + $0x8] sm:$0xf]
  %v9966 = vld [vmem:[%s9 + $0xc] sm:$0xf]
  %v9967 = vld [vmem:[%s9 + $0x10] sm:$0xf]
  %v9968 = vld [vmem:[%s9 + $0x14] sm:$0xf]
  %v9969 = vld [vmem:[%s9 + $0x18] sm:$0xf]
  %v9970 = vld [vmem:[%s9 + $0x1c] sm:$0xf]
  %v9971 = vld [vmem:[%s9 + $0x20] sm:$0xf]
  %v9972 = vld [vmem:[%s9 + $0x24] sm:$0xf]
  %v9973 = vld [vmem:[%s9 + $0x28] sm:$0xf]
  %v9974 = vld [vmem:[%s9 + $0x2c] sm:$0xf]
  %v9975 = vld [vmem:[%s9 + $0x30] sm:$0xf]
  %v9976 = vld [vmem:[%s9 + $0x34] sm:$0xf]
  %v9977 = vld [vmem:[%s9 + $0x38] sm:$0xf]
  %v9978 = vld [vmem:[%s9 + $0x3c] sm:$0xf]
  %v9979 = vlaneseq
  %v9980 = vshrl.u32 %v9979, 7
  %v9981 = vsub.s32 4, %v9980
  %v9982 = vrot.slane %v116, %v9981
  %v9999 = vunpack.c.l.b16 %v9963
  %v10000 = vunpack.c.l.b16 %v9964
  %v10001 = vunpack.c.l.b16 %v9965
  %v10002 = vunpack.c.l.b16 %v9966
  %v10003 = vunpack.c.l.b16 %v9967
  %v10004 = vunpack.c.l.b16 %v9968
  %v10005 = vunpack.c.l.b16 %v9969
  %v10006 = vunpack.c.l.b16 %v9970
  %v10007 = vunpack.c.l.b16 %v9971
  %v10008 = vunpack.c.l.b16 %v9972
  %v10009 = vunpack.c.l.b16 %v9973
  %v10010 = vunpack.c.l.b16 %v9974
  %v10011 = vunpack.c.l.b16 %v9975
  %v10012 = vunpack.c.l.b16 %v9976
  %v10013 = vunpack.c.l.b16 %v9977
  %v10014 = vunpack.c.l.b16 %v9978
  %v10015 = vpack.c.b16 %v10000, %v9999
  %v10016 = vpack.c.b16 %v10002, %v10001
  %v10017 = vpack.c.b16 %v10004, %v10003
  %v10018 = vpack.c.b16 %v10006, %v10005
  %v10019 = vpack.c.b16 %v10008, %v10007
  %v10020 = vpack.c.b16 %v10010, %v10009
  %v10021 = vpack.c.b16 %v10012, %v10011
  %v10022 = vpack.c.b16 %v10014, %v10013
  %10031 = vmatprep.subr.bf16.mxu0 0
  %10032 = vmatpush1.bf16.msra.mxu0 %v10022
  %10033 = vmatprep.subr.bf16.mxu0 0
  %10034 = vmatpush1.bf16.msra.mxu0 %v10021
  %10035 = vmatprep.subr.bf16.mxu0 0
  %10036 = vmatpush1.bf16.msra.mxu0 %v10020
  %10037 = vmatprep.subr.bf16.mxu0 0
  %10038 = vmatpush1.bf16.msra.mxu0 %v10019
  %10039 = vmatprep.subr.bf16.mxu0 0
  %10040 = vmatpush1.bf16.msra.mxu0 %v10018
  %10041 = vmatprep.subr.bf16.mxu0 0
  %10042 = vmatpush1.bf16.msra.mxu0 %v10017
  %10043 = vmatprep.subr.bf16.mxu0 0
  %10044 = vmatpush1.bf16.msra.mxu0 %v10016
  %10045 = vmatprep.subr.bf16.mxu0 0
  %10046 = vmatpush1.bf16.msra.mxu0 %v10015
  %10047 = vmatprep.subr.bf16.mxu0 0
  %10048 = vmatpush2.bf16.msra.mxu0 0
  %10049 = vmatprep.subr.bf16.mxu0 0
  %10050 = vmatpush2.bf16.msra.mxu0 0
  %10051 = vmatprep.subr.bf16.mxu0 0
  %10052 = vmatpush2.bf16.msra.mxu0 0
  %10053 = vmatprep.subr.bf16.mxu0 0
  %10054 = vmatpush2.bf16.msra.mxu0 0
  %10055 = vmatprep.subr.bf16.mxu0 0
  %10056 = vmatpush2.bf16.msra.mxu0 0
  %10057 = vmatprep.subr.bf16.mxu0 0
  %10058 = vmatpush2.bf16.msra.mxu0 0
  %10059 = vmatprep.subr.bf16.mxu0 0
  %10060 = vmatpush2.bf16.msra.mxu0 0
  %10061 = vmatprep.subr.bf16.mxu0 0
  %10062 = vmatpush2.bf16.msra.mxu0 0
  %10063 = vmatprep.mubr.bf16.mxu0 0
  %10064 = vmatmul.mubr.bf16.gmra.mxu0 %v9961
  %v10065 = vpop.f32.mrf.mxu0
  %v10066 = vadd.f32 %v9982, %v10065
  %v10067 = vpop.f32.mrf.mxu0
  %v10068 = vpop.f32.mrf.mxu0
  %v10069 = vadd.f32 %v9982, %v10068
  %v10070 = vpop.f32.mrf.mxu0
  %10071 = vmatprep.mubr.bf16.mxu0 0
  %10072 = vmatmul.mubr.bf16.gmra.mxu0 %v9962
  %v10073 = vpop.f32.mrf.mxu0
  %v10074 = vadd.f32 %v9982, %v10073
  %v10075 = vpop.f32.mrf.mxu0
  %v10076 = vpop.f32.mrf.mxu0
  %v10077 = vadd.f32 %v9982, %v10076
  %v10078 = vpop.f32.mrf.mxu0
  %10079 = vdwg.mxu0
  %10080 = vst [vmem:[%s12] sm:$0xff] %v10066
  %10081 = vst [vmem:[%s12 + $0x8] sm:$0xff] %v10069
  %10082 = vst [vmem:[%s12 + $0x10] sm:$0xff] %v10074
  %10083 = vst [vmem:[%s12 + $0x18] sm:$0xff] %v10077
  // Predicated region
  $region50: #{_lambda_.1} parent=0 // pred_check
    _
  $region51: #{_lambda_.1} parent=0 // pred_check_branch
    %10085 = sbr.rel (0) target = $region53
  $region52: #{_lambda_.1} parent=0 // pred_region
    _
  $region53: #{_lambda_.1} parent=0 // pred_fallthru
    _
  // Predicated region
  $region54: #{_lambda_.1} parent=0 // pred_check
    _
  $region55: #{_lambda_.1} parent=0 // pred_check_branch
    %10087 = sbr.rel (0) target = $region57
  $region56: #{_lambda_.1} parent=0 // pred_region
    _
  $region57: #{_lambda_.1} parent=0 // pred_fallthru
    _
  // Predicated region
  $region58: #{_lambda_.1} parent=0 // pred_check
    _
  $region59: #{_lambda_.1} parent=0 // pred_check_branch
    %10089 = sbr.rel (0) target = $region61
  $region60: #{_lambda_.1} parent=0 // pred_region
    _
  $region61: #{_lambda_.1} parent=0 // pred_fallthru
    _
  // Predicated region
  $region62: #{_lambda_.1} parent=0 // pred_check
    _
  $region63: #{_lambda_.1} parent=0 // pred_check_branch
    %10091 = sbr.rel (0) target = $region65
  $region64: #{_lambda_.1} parent=0 // pred_region
    _
  $region65: #{_lambda_.1} parent=0 // pred_fallthru
    _
  // Predicated region
  $region66: #{_lambda_.1} parent=0 // pred_check
    _
  $region67: #{_lambda_.1} parent=0 // pred_check_branch
    %10093 = sbr.rel (0) target = $region69
  $region68: #{_lambda_.1} parent=0 // pred_region
    _
  $region69: #{_lambda_.1} parent=0 // pred_fallthru
    _
  // Predicated region
  $region70: #{_lambda_.1} parent=0 // pred_check
    _
  $region71: #{_lambda_.1} parent=0 // pred_check_branch
    %10095 = sbr.rel (0) target = $region73
  $region72: #{_lambda_.1} parent=0 // pred_region
    _
  $region73: #{_lambda_.1} parent=0 // pred_fallthru
    _

</llo_original>
